<compile_context>
chip_gen: v6e
topology: v6e:2x2x1
jax: 0.10.0
libtpu: 0.0.40
codegen_flags: <defaults>
</compile_context>

<pallas_src>
import math

import jax
import jax.numpy as jnp
from jax import lax
from jax.experimental import pallas as pl
from jax.experimental.pallas import tpu as pltpu


D_MODEL = 64
D_K = 64
D_V = 64
N_HEADS = 8
LN_EPS = 1e-5  # torch.nn.LayerNorm default


def _mha_kernel(xq_ref, xk_ref, xv_ref, mask_ref,
                wq_ref, wk_ref, wv_ref, wfc_ref,
                out_ref, attn_ref):
    Bb, L, d_model = xq_ref.shape
    M = Bb * L

    # Flatten the batch block into the matmul M dimension.
    xq2 = xq_ref[...].reshape(M, d_model)
    xk2 = xk_ref[...].reshape(M, d_model)
    xv2 = xv_ref[...].reshape(M, d_model)

    # Mask select is built once per step and reused across all heads.
    masked = mask_ref[...] != 0                      # (Bb, L, L) bool
    neg_big = jnp.float32(-1e9)
    inv_sqrt_dk = jnp.float32(1.0 / math.sqrt(64.0))  # d_k=64 -> exactly 0.125

    # Per-head projections with head-major (64_in, 64_out) weight views
    # (leading-dim ref indexing -> contiguous views, no lane slicing).
    s_list = []
    v_list = []
    for h in range(N_HEADS):
        q_h = jnp.dot(xq2, wq_ref[h],
                      preferred_element_type=jnp.float32).reshape(Bb, L, D_K)
        k_h = jnp.dot(xk2, wk_ref[h],
                      preferred_element_type=jnp.float32).reshape(Bb, L, D_K)
        v_h = jnp.dot(xv2, wv_ref[h],
                      preferred_element_type=jnp.float32).reshape(Bb, L, D_V)
        # Contract the last dims directly (no explicit transpose).
        s_h = jnp.einsum('bqd,bkd->bqk', q_h, k_h,
                         preferred_element_type=jnp.float32)   # (Bb, L, L)
        s_list.append(jnp.where(masked, neg_big, s_h * inv_sqrt_dk))
        v_list.append(v_h)

    # Fused softmax over all heads at once (one reduce/exp/reduce pass).
    s_all = jnp.stack(s_list, axis=1)                # (Bb, H, L, L)
    m = jnp.max(s_all, axis=-1, keepdims=True)
    e = jnp.exp(s_all - m)
    denom = jnp.sum(e, axis=-1, keepdims=True)
    attn_all = e * pl.reciprocal(denom, approx=False)

    # Single-shot attention-probability store per grid step.
    attn_ref[...] = attn_all.astype(attn_ref.dtype)

    # Context + output projection, accumulated per head (no concat).
    y = xq2                                          # residual = input_Q block
    for h in range(N_HEADS):
        ctx_h = jnp.einsum('bqk,bkd->bqd', attn_all[:, h], v_list[h],
                           preferred_element_type=jnp.float32)   # (Bb, L, d_v)
        y = y + jnp.dot(ctx_h.reshape(M, D_V), wfc_ref[h],
                        preferred_element_type=jnp.float32)

    # LayerNorm (fresh nn.LayerNorm: gamma=1, beta=0), EUP rsqrt.
    mean = jnp.mean(y, axis=-1, keepdims=True)
    yc = y - mean
    var = jnp.mean(yc * yc, axis=-1, keepdims=True)
    y_norm = yc * lax.rsqrt(var + LN_EPS)
    out_ref[...] = y_norm.reshape(Bb, L, d_model).astype(out_ref.dtype)


def multi_head_attention(input_Q, input_K, input_V, attn_mask,
                         w_q, w_k, w_v, w_fc, *, batch_block=8):
    """input_*: [B, L, d_model] f32; attn_mask: [B, L, L] bool (True = masked).
    w_q/w_k/w_v: torch-style (n_heads*d_k, d_model); w_fc: (d_model, n_heads*d_v).
    Returns (output [B, L, d_model], attn [B, n_heads, L, L])."""
    B, L, _ = input_Q.shape

    # Head-major weights: head h's projection is a clean (64_in, 64_out) slab.
    wq_heads = w_q.reshape(N_HEADS, D_K, D_MODEL).transpose(0, 2, 1)    # (H, in, out_h)
    wk_heads = w_k.reshape(N_HEADS, D_K, D_MODEL).transpose(0, 2, 1)
    wv_heads = w_v.reshape(N_HEADS, D_V, D_MODEL).transpose(0, 2, 1)
    wfc_heads = w_fc.reshape(D_MODEL, N_HEADS, D_V).transpose(1, 2, 0)  # (H, d_v, d_model)

    # Pass the mask itself; the -1e9 fill happens inside the kernel.
    mask_i = attn_mask.astype(jnp.int32)

    # Block several batch elements per grid step.
    Bb = max(1, min(batch_block, B))
    num_steps = -(-B // Bb)
    B_pad = num_steps * Bb
    if B_pad != B:
        pad = B_pad - B
        padcfg = ((0, pad), (0, 0), (0, 0))
        input_Q = jnp.pad(input_Q, padcfg)
        input_K = jnp.pad(input_K, padcfg)
        input_V = jnp.pad(input_V, padcfg)
        mask_i = jnp.pad(mask_i, padcfg)

    out_shape = (
        jax.ShapeDtypeStruct((B_pad, L, D_MODEL), jnp.float32),
        jax.ShapeDtypeStruct((B_pad, N_HEADS, L, L), jnp.float32),
    )

    out, attn = pl.pallas_call(
        _mha_kernel,
        out_shape=out_shape,
        grid_spec=pltpu.PrefetchScalarGridSpec(
            num_scalar_prefetch=0,
            grid=(num_steps,),
            in_specs=[
                pl.BlockSpec((Bb, L, D_MODEL), lambda b: (b, 0, 0)),          # input_Q
                pl.BlockSpec((Bb, L, D_MODEL), lambda b: (b, 0, 0)),          # input_K
                pl.BlockSpec((Bb, L, D_MODEL), lambda b: (b, 0, 0)),          # input_V
                pl.BlockSpec((Bb, L, L), lambda b: (b, 0, 0)),                # mask
                pl.BlockSpec((N_HEADS, D_MODEL, D_K), lambda b: (0, 0, 0)),   # W_Q (resident)
                pl.BlockSpec((N_HEADS, D_MODEL, D_K), lambda b: (0, 0, 0)),   # W_K (resident)
                pl.BlockSpec((N_HEADS, D_MODEL, D_V), lambda b: (0, 0, 0)),   # W_V (resident)
                pl.BlockSpec((N_HEADS, D_V, D_MODEL), lambda b: (0, 0, 0)),   # fc  (resident)
            ],
            out_specs=[
                pl.BlockSpec((Bb, L, D_MODEL), lambda b: (b, 0, 0)),          # output
                pl.BlockSpec((Bb, N_HEADS, L, L), lambda b: (b, 0, 0, 0)),    # attn
            ],
        ),
        compiler_params=pltpu.CompilerParams(
            # On v7x, (pltpu.CORE_PARALLEL,) shards the batch grid across both
            # TensorCores once the blocked grid has >= 2 steps.
            dimension_semantics=("parallel",),
            vmem_limit_bytes=32 * 1024 * 1024,
        ),
    )(input_Q, input_K, input_V, mask_i,
      wq_heads, wk_heads, wv_heads, wfc_heads)

    if B_pad != B:
        out = out[:B]
        attn = attn[:B]
    return out, attn


def _reference(input_Q, input_K, input_V, attn_mask, w_q, w_k, w_v, w_fc):
    B, L, _ = input_Q.shape
    Q = (input_Q @ w_q.T).reshape(B, L, N_HEADS, D_K).transpose(0, 2, 1, 3)
    K = (input_K @ w_k.T).reshape(B, L, N_HEADS, D_K).transpose(0, 2, 1, 3)
    V = (input_V @ w_v.T).reshape(B, L, N_HEADS, D_V).transpose(0, 2, 1, 3)
    scores = jnp.einsum("bhqd,bhkd->bhqk", Q, K) / math.sqrt(64.0)
    scores = jnp.where(attn_mask[:, None, :, :], -1e9, scores)
    attn = jax.nn.softmax(scores, axis=-1)
    ctx = jnp.einsum("bhqk,bhkd->bhqd", attn, V)
    ctx = ctx.transpose(0, 2, 1, 3).reshape(B, L, N_HEADS * D_V)
    out = ctx @ w_fc.T + input_Q
    mean = out.mean(-1, keepdims=True)
    var = ((out - mean) ** 2).mean(-1, keepdims=True)
    return (out - mean) / jnp.sqrt(var + LN_EPS), attn


if __name__ == "__main__":
    key = jax.random.PRNGKey(0)
    ks = jax.random.split(key, 8)

    B, L = 2, 8
    input_Q = jax.random.normal(ks[0], (B, L, D_MODEL), jnp.float32)
    input_K = jax.random.normal(ks[1], (B, L, D_MODEL), jnp.float32)
    input_V = jax.random.normal(ks[2], (B, L, D_MODEL), jnp.float32)
    # causal-style boolean mask (True = masked out)
    attn_mask = jnp.triu(jnp.ones((L, L), jnp.bool_), k=1)[None].repeat(B, axis=0)

    bound = 1.0 / math.sqrt(D_MODEL)
    w_q = jax.random.uniform(ks[3], (N_HEADS * D_K, D_MODEL), jnp.float32, -bound, bound)
    w_k = jax.random.uniform(ks[4], (N_HEADS * D_K, D_MODEL), jnp.float32, -bound, bound)
    w_v = jax.random.uniform(ks[5], (N_HEADS * D_V, D_MODEL), jnp.float32, -bound, bound)
    w_fc = jax.random.uniform(ks[6], (D_MODEL, N_HEADS * D_V), jnp.float32,
                              -1.0 / math.sqrt(N_HEADS * D_V), 1.0 / math.sqrt(N_HEADS * D_V))

    out, attn = multi_head_attention(input_Q, input_K, input_V, attn_mask,
                                     w_q, w_k, w_v, w_fc)
    jax.block_until_ready((out, attn))

    ref_out, ref_attn = _reference(input_Q, input_K, input_V, attn_mask,
                                   w_q, w_k, w_v, w_fc)
    assert jnp.allclose(out, ref_out, atol=1e-4, rtol=1e-4), "output mismatch"
    assert jnp.allclose(attn, ref_attn, atol=1e-5, rtol=1e-5), "attn mismatch"

    print("KERNEL_OK")
</pallas_src>

<mosaic_0001>
module attributes {stable_mosaic.version = 11 : i64} {
  func.func @_mha_kernel(%arg0: i32, %arg1: memref<2x8x64xf32, #tpu.memory_space<vmem>>, %arg2: memref<2x8x64xf32, #tpu.memory_space<vmem>>, %arg3: memref<2x8x64xf32, #tpu.memory_space<vmem>>, %arg4: memref<2x8x8xi32, #tpu.memory_space<vmem>>, %arg5: memref<8x64x64xf32, #tpu.memory_space<vmem>>, %arg6: memref<8x64x64xf32, #tpu.memory_space<vmem>>, %arg7: memref<8x64x64xf32, #tpu.memory_space<vmem>>, %arg8: memref<8x64x64xf32, #tpu.memory_space<vmem>>, %arg9: memref<2x8x64xf32, #tpu.memory_space<vmem>>, %arg10: memref<2x8x8x8xf32, #tpu.memory_space<vmem>>) attributes {dimension_semantics = [#tpu.dimension_semantics<parallel>], iteration_bounds = array<i64: 1>, scalar_prefetch = 0 : i64, scratch_operands = 0 : i64, tpu.core_type = #tpu.core_type<tc>, window_params = [{transform_indices = @transform_0, window_bounds = array<i64: 2, 8, 64>}, {transform_indices = @transform_1, window_bounds = array<i64: 2, 8, 64>}, {transform_indices = @transform_2, window_bounds = array<i64: 2, 8, 64>}, {transform_indices = @transform_3, window_bounds = array<i64: 2, 8, 8>}, {pipeline_mode = #tpu.pipeline_mode<synchronous>, transform_indices = @transform_4, window_bounds = array<i64: 8, 64, 64>}, {pipeline_mode = #tpu.pipeline_mode<synchronous>, transform_indices = @transform_5, window_bounds = array<i64: 8, 64, 64>}, {pipeline_mode = #tpu.pipeline_mode<synchronous>, transform_indices = @transform_6, window_bounds = array<i64: 8, 64, 64>}, {pipeline_mode = #tpu.pipeline_mode<synchronous>, transform_indices = @transform_7, window_bounds = array<i64: 8, 64, 64>}, {transform_indices = @transform_8, window_bounds = array<i64: 2, 8, 64>}, {transform_indices = @transform_9, window_bounds = array<i64: 2, 8, 8, 8>}]} {
    %c0 = arith.constant 0 : index
    %c0_0 = arith.constant 0 : index
    %c0_1 = arith.constant 0 : index
    %0 = vector.load %arg1[%c0, %c0_0, %c0_1] : memref<2x8x64xf32, #tpu.memory_space<vmem>>, vector<2x8x64xf32>
    %1 = vector.shape_cast %0 : vector<2x8x64xf32> to vector<16x64xf32>
    %c0_2 = arith.constant 0 : index
    %c0_3 = arith.constant 0 : index
    %c0_4 = arith.constant 0 : index
    %2 = vector.load %arg2[%c0_2, %c0_3, %c0_4] : memref<2x8x64xf32, #tpu.memory_space<vmem>>, vector<2x8x64xf32>
    %3 = vector.shape_cast %2 : vector<2x8x64xf32> to vector<16x64xf32>
    %c0_5 = arith.constant 0 : index
    %c0_6 = arith.constant 0 : index
    %c0_7 = arith.constant 0 : index
    %4 = vector.load %arg3[%c0_5, %c0_6, %c0_7] : memref<2x8x64xf32, #tpu.memory_space<vmem>>, vector<2x8x64xf32>
    %5 = vector.shape_cast %4 : vector<2x8x64xf32> to vector<16x64xf32>
    %c0_8 = arith.constant 0 : index
    %c0_9 = arith.constant 0 : index
    %c0_10 = arith.constant 0 : index
    %6 = vector.load %arg4[%c0_8, %c0_9, %c0_10] : memref<2x8x8xi32, #tpu.memory_space<vmem>>, vector<2x8x8xi32>
    %c0_i32 = arith.constant 0 : i32
    %7 = vector.broadcast %c0_i32 : i32 to vector<2x8x8xi32>
    %8 = arith.cmpi ne, %6, %7 : vector<2x8x8xi32>
    %c0_11 = arith.constant 0 : index
    %c0_12 = arith.constant 0 : index
    %c0_13 = arith.constant 0 : index
    %9 = vector.load %arg5[%c0_11, %c0_12, %c0_13] : memref<8x64x64xf32, #tpu.memory_space<vmem>>, vector<1x64x64xf32>
    %10 = vector.shape_cast %9 : vector<1x64x64xf32> to vector<64x64xf32>
    %cst = arith.constant dense<0.000000e+00> : vector<16x64xf32>
    %11 = tpu.matmul %1, %10, %cst {dimension_numbers = #tpu.dot_dimension_numbers<[1], [0], [0], [1], [0, 0, 1, 1], [], []>} : vector<16x64xf32>, vector<64x64xf32>, vector<16x64xf32> -> vector<16x64xf32>
    %12 = vector.shape_cast %11 : vector<16x64xf32> to vector<2x8x64xf32>
    %c0_14 = arith.constant 0 : index
    %c0_15 = arith.constant 0 : index
    %c0_16 = arith.constant 0 : index
    %13 = vector.load %arg6[%c0_14, %c0_15, %c0_16] : memref<8x64x64xf32, #tpu.memory_space<vmem>>, vector<1x64x64xf32>
    %14 = vector.shape_cast %13 : vector<1x64x64xf32> to vector<64x64xf32>
    %cst_17 = arith.constant dense<0.000000e+00> : vector<16x64xf32>
    %15 = tpu.matmul %3, %14, %cst_17 {dimension_numbers = #tpu.dot_dimension_numbers<[1], [0], [0], [1], [0, 0, 1, 1], [], []>} : vector<16x64xf32>, vector<64x64xf32>, vector<16x64xf32> -> vector<16x64xf32>
    %16 = vector.shape_cast %15 : vector<16x64xf32> to vector<2x8x64xf32>
    %c0_18 = arith.constant 0 : index
    %c0_19 = arith.constant 0 : index
    %c0_20 = arith.constant 0 : index
    %17 = vector.load %arg7[%c0_18, %c0_19, %c0_20] : memref<8x64x64xf32, #tpu.memory_space<vmem>>, vector<1x64x64xf32>
    %18 = vector.shape_cast %17 : vector<1x64x64xf32> to vector<64x64xf32>
    %cst_21 = arith.constant dense<0.000000e+00> : vector<16x64xf32>
    %19 = tpu.matmul %5, %18, %cst_21 {dimension_numbers = #tpu.dot_dimension_numbers<[1], [0], [0], [1], [0, 0, 1, 1], [], []>} : vector<16x64xf32>, vector<64x64xf32>, vector<16x64xf32> -> vector<16x64xf32>
    %20 = vector.shape_cast %19 : vector<16x64xf32> to vector<2x8x64xf32>
    "tpu.trace_start"() <{level = 10 : i32, message = "bqd,bkd->bqk"}> : () -> ()
    %cst_22 = arith.constant dense<0.000000e+00> : vector<2x8x8xf32>
    %21 = tpu.matmul %12, %16, %cst_22 {dimension_numbers = #tpu.dot_dimension_numbers<[2], [2], [1], [1], [0, 0, 0, 1, 1, 1], [0], [0]>} : vector<2x8x64xf32>, vector<2x8x64xf32>, vector<2x8x8xf32> -> vector<2x8x8xf32>
    "tpu.trace_stop"() : () -> ()
    %cst_23 = arith.constant 1.250000e-01 : f32
    %22 = vector.broadcast %cst_23 : f32 to vector<2x8x8xf32>
    %23 = arith.mulf %21, %22 : vector<2x8x8xf32>
    %cst_24 = arith.constant -1.000000e+09 : f32
    %24 = vector.broadcast %cst_24 : f32 to vector<2x8x8xf32>
    %25 = arith.select %8, %24, %23 : vector<2x8x8xi1>, vector<2x8x8xf32>
    %c1 = arith.constant 1 : index
    %c0_25 = arith.constant 0 : index
    %c0_26 = arith.constant 0 : index
    %26 = vector.load %arg5[%c1, %c0_25, %c0_26] : memref<8x64x64xf32, #tpu.memory_space<vmem>>, vector<1x64x64xf32>
    %27 = vector.shape_cast %26 : vector<1x64x64xf32> to vector<64x64xf32>
    %cst_27 = arith.constant dense<0.000000e+00> : vector<16x64xf32>
    %28 = tpu.matmul %1, %27, %cst_27 {dimension_numbers = #tpu.dot_dimension_numbers<[1], [0], [0], [1], [0, 0, 1, 1], [], []>} : vector<16x64xf32>, vector<64x64xf32>, vector<16x64xf32> -> vector<16x64xf32>
    %29 = vector.shape_cast %28 : vector<16x64xf32> to vector<2x8x64xf32>
    %c1_28 = arith.constant 1 : index
    %c0_29 = arith.constant 0 : index
    %c0_30 = arith.constant 0 : index
    %30 = vector.load %arg6[%c1_28, %c0_29, %c0_30] : memref<8x64x64xf32, #tpu.memory_space<vmem>>, vector<1x64x64xf32>
    %31 = vector.shape_cast %30 : vector<1x64x64xf32> to vector<64x64xf32>
    %cst_31 = arith.constant dense<0.000000e+00> : vector<16x64xf32>
    %32 = tpu.matmul %3, %31, %cst_31 {dimension_numbers = #tpu.dot_dimension_numbers<[1], [0], [0], [1], [0, 0, 1, 1], [], []>} : vector<16x64xf32>, vector<64x64xf32>, vector<16x64xf32> -> vector<16x64xf32>
    %33 = vector.shape_cast %32 : vector<16x64xf32> to vector<2x8x64xf32>
    %c1_32 = arith.constant 1 : index
    %c0_33 = arith.constant 0 : index
    %c0_34 = arith.constant 0 : index
    %34 = vector.load %arg7[%c1_32, %c0_33, %c0_34] : memref<8x64x64xf32, #tpu.memory_space<vmem>>, vector<1x64x64xf32>
    %35 = vector.shape_cast %34 : vector<1x64x64xf32> to vector<64x64xf32>
    %cst_35 = arith.constant dense<0.000000e+00> : vector<16x64xf32>
    %36 = tpu.matmul %5, %35, %cst_35 {dimension_numbers = #tpu.dot_dimension_numbers<[1], [0], [0], [1], [0, 0, 1, 1], [], []>} : vector<16x64xf32>, vector<64x64xf32>, vector<16x64xf32> -> vector<16x64xf32>
    %37 = vector.shape_cast %36 : vector<16x64xf32> to vector<2x8x64xf32>
    "tpu.trace_start"() <{level = 10 : i32, message = "bqd,bkd->bqk"}> : () -> ()
    %cst_36 = arith.constant dense<0.000000e+00> : vector<2x8x8xf32>
    %38 = tpu.matmul %29, %33, %cst_36 {dimension_numbers = #tpu.dot_dimension_numbers<[2], [2], [1], [1], [0, 0, 0, 1, 1, 1], [0], [0]>} : vector<2x8x64xf32>, vector<2x8x64xf32>, vector<2x8x8xf32> -> vector<2x8x8xf32>
    "tpu.trace_stop"() : () -> ()
    %cst_37 = arith.constant 1.250000e-01 : f32
    %39 = vector.broadcast %cst_37 : f32 to vector<2x8x8xf32>
    %40 = arith.mulf %38, %39 : vector<2x8x8xf32>
    %cst_38 = arith.constant -1.000000e+09 : f32
    %41 = vector.broadcast %cst_38 : f32 to vector<2x8x8xf32>
    %42 = arith.select %8, %41, %40 : vector<2x8x8xi1>, vector<2x8x8xf32>
    %c2 = arith.constant 2 : index
    %c0_39 = arith.constant 0 : index
    %c0_40 = arith.constant 0 : index
    %43 = vector.load %arg5[%c2, %c0_39, %c0_40] : memref<8x64x64xf32, #tpu.memory_space<vmem>>, vector<1x64x64xf32>
    %44 = vector.shape_cast %43 : vector<1x64x64xf32> to vector<64x64xf32>
    %cst_41 = arith.constant dense<0.000000e+00> : vector<16x64xf32>
    %45 = tpu.matmul %1, %44, %cst_41 {dimension_numbers = #tpu.dot_dimension_numbers<[1], [0], [0], [1], [0, 0, 1, 1], [], []>} : vector<16x64xf32>, vector<64x64xf32>, vector<16x64xf32> -> vector<16x64xf32>
    %46 = vector.shape_cast %45 : vector<16x64xf32> to vector<2x8x64xf32>
    %c2_42 = arith.constant 2 : index
    %c0_43 = arith.constant 0 : index
    %c0_44 = arith.constant 0 : index
    %47 = vector.load %arg6[%c2_42, %c0_43, %c0_44] : memref<8x64x64xf32, #tpu.memory_space<vmem>>, vector<1x64x64xf32>
    %48 = vector.shape_cast %47 : vector<1x64x64xf32> to vector<64x64xf32>
    %cst_45 = arith.constant dense<0.000000e+00> : vector<16x64xf32>
    %49 = tpu.matmul %3, %48, %cst_45 {dimension_numbers = #tpu.dot_dimension_numbers<[1], [0], [0], [1], [0, 0, 1, 1], [], []>} : vector<16x64xf32>, vector<64x64xf32>, vector<16x64xf32> -> vector<16x64xf32>
    %50 = vector.shape_cast %49 : vector<16x64xf32> to vector<2x8x64xf32>
    %c2_46 = arith.constant 2 : index
    %c0_47 = arith.constant 0 : index
    %c0_48 = arith.constant 0 : index
    %51 = vector.load %arg7[%c2_46, %c0_47, %c0_48] : memref<8x64x64xf32, #tpu.memory_space<vmem>>, vector<1x64x64xf32>
    %52 = vector.shape_cast %51 : vector<1x64x64xf32> to vector<64x64xf32>
    %cst_49 = arith.constant dense<0.000000e+00> : vector<16x64xf32>
    %53 = tpu.matmul %5, %52, %cst_49 {dimension_numbers = #tpu.dot_dimension_numbers<[1], [0], [0], [1], [0, 0, 1, 1], [], []>} : vector<16x64xf32>, vector<64x64xf32>, vector<16x64xf32> -> vector<16x64xf32>
    %54 = vector.shape_cast %53 : vector<16x64xf32> to vector<2x8x64xf32>
    "tpu.trace_start"() <{level = 10 : i32, message = "bqd,bkd->bqk"}> : () -> ()
    %cst_50 = arith.constant dense<0.000000e+00> : vector<2x8x8xf32>
    %55 = tpu.matmul %46, %50, %cst_50 {dimension_numbers = #tpu.dot_dimension_numbers<[2], [2], [1], [1], [0, 0, 0, 1, 1, 1], [0], [0]>} : vector<2x8x64xf32>, vector<2x8x64xf32>, vector<2x8x8xf32> -> vector<2x8x8xf32>
    "tpu.trace_stop"() : () -> ()
    %cst_51 = arith.constant 1.250000e-01 : f32
    %56 = vector.broadcast %cst_51 : f32 to vector<2x8x8xf32>
    %57 = arith.mulf %55, %56 : vector<2x8x8xf32>
    %cst_52 = arith.constant -1.000000e+09 : f32
    %58 = vector.broadcast %cst_52 : f32 to vector<2x8x8xf32>
    %59 = arith.select %8, %58, %57 : vector<2x8x8xi1>, vector<2x8x8xf32>
    %c3 = arith.constant 3 : index
    %c0_53 = arith.constant 0 : index
    %c0_54 = arith.constant 0 : index
    %60 = vector.load %arg5[%c3, %c0_53, %c0_54] : memref<8x64x64xf32, #tpu.memory_space<vmem>>, vector<1x64x64xf32>
    %61 = vector.shape_cast %60 : vector<1x64x64xf32> to vector<64x64xf32>
    %cst_55 = arith.constant dense<0.000000e+00> : vector<16x64xf32>
    %62 = tpu.matmul %1, %61, %cst_55 {dimension_numbers = #tpu.dot_dimension_numbers<[1], [0], [0], [1], [0, 0, 1, 1], [], []>} : vector<16x64xf32>, vector<64x64xf32>, vector<16x64xf32> -> vector<16x64xf32>
    %63 = vector.shape_cast %62 : vector<16x64xf32> to vector<2x8x64xf32>
    %c3_56 = arith.constant 3 : index
    %c0_57 = arith.constant 0 : index
    %c0_58 = arith.constant 0 : index
    %64 = vector.load %arg6[%c3_56, %c0_57, %c0_58] : memref<8x64x64xf32, #tpu.memory_space<vmem>>, vector<1x64x64xf32>
    %65 = vector.shape_cast %64 : vector<1x64x64xf32> to vector<64x64xf32>
    %cst_59 = arith.constant dense<0.000000e+00> : vector<16x64xf32>
    %66 = tpu.matmul %3, %65, %cst_59 {dimension_numbers = #tpu.dot_dimension_numbers<[1], [0], [0], [1], [0, 0, 1, 1], [], []>} : vector<16x64xf32>, vector<64x64xf32>, vector<16x64xf32> -> vector<16x64xf32>
    %67 = vector.shape_cast %66 : vector<16x64xf32> to vector<2x8x64xf32>
    %c3_60 = arith.constant 3 : index
    %c0_61 = arith.constant 0 : index
    %c0_62 = arith.constant 0 : index
    %68 = vector.load %arg7[%c3_60, %c0_61, %c0_62] : memref<8x64x64xf32, #tpu.memory_space<vmem>>, vector<1x64x64xf32>
    %69 = vector.shape_cast %68 : vector<1x64x64xf32> to vector<64x64xf32>
    %cst_63 = arith.constant dense<0.000000e+00> : vector<16x64xf32>
    %70 = tpu.matmul %5, %69, %cst_63 {dimension_numbers = #tpu.dot_dimension_numbers<[1], [0], [0], [1], [0, 0, 1, 1], [], []>} : vector<16x64xf32>, vector<64x64xf32>, vector<16x64xf32> -> vector<16x64xf32>
    %71 = vector.shape_cast %70 : vector<16x64xf32> to vector<2x8x64xf32>
    "tpu.trace_start"() <{level = 10 : i32, message = "bqd,bkd->bqk"}> : () -> ()
    %cst_64 = arith.constant dense<0.000000e+00> : vector<2x8x8xf32>
    %72 = tpu.matmul %63, %67, %cst_64 {dimension_numbers = #tpu.dot_dimension_numbers<[2], [2], [1], [1], [0, 0, 0, 1, 1, 1], [0], [0]>} : vector<2x8x64xf32>, vector<2x8x64xf32>, vector<2x8x8xf32> -> vector<2x8x8xf32>
    "tpu.trace_stop"() : () -> ()
    %cst_65 = arith.constant 1.250000e-01 : f32
    %73 = vector.broadcast %cst_65 : f32 to vector<2x8x8xf32>
    %74 = arith.mulf %72, %73 : vector<2x8x8xf32>
    %cst_66 = arith.constant -1.000000e+09 : f32
    %75 = vector.broadcast %cst_66 : f32 to vector<2x8x8xf32>
    %76 = arith.select %8, %75, %74 : vector<2x8x8xi1>, vector<2x8x8xf32>
    %c4 = arith.constant 4 : index
    %c0_67 = arith.constant 0 : index
    %c0_68 = arith.constant 0 : index
    %77 = vector.load %arg5[%c4, %c0_67, %c0_68] : memref<8x64x64xf32, #tpu.memory_space<vmem>>, vector<1x64x64xf32>
    %78 = vector.shape_cast %77 : vector<1x64x64xf32> to vector<64x64xf32>
    %cst_69 = arith.constant dense<0.000000e+00> : vector<16x64xf32>
    %79 = tpu.matmul %1, %78, %cst_69 {dimension_numbers = #tpu.dot_dimension_numbers<[1], [0], [0], [1], [0, 0, 1, 1], [], []>} : vector<16x64xf32>, vector<64x64xf32>, vector<16x64xf32> -> vector<16x64xf32>
    %80 = vector.shape_cast %79 : vector<16x64xf32> to vector<2x8x64xf32>
    %c4_70 = arith.constant 4 : index
    %c0_71 = arith.constant 0 : index
    %c0_72 = arith.constant 0 : index
    %81 = vector.load %arg6[%c4_70, %c0_71, %c0_72] : memref<8x64x64xf32, #tpu.memory_space<vmem>>, vector<1x64x64xf32>
    %82 = vector.shape_cast %81 : vector<1x64x64xf32> to vector<64x64xf32>
    %cst_73 = arith.constant dense<0.000000e+00> : vector<16x64xf32>
    %83 = tpu.matmul %3, %82, %cst_73 {dimension_numbers = #tpu.dot_dimension_numbers<[1], [0], [0], [1], [0, 0, 1, 1], [], []>} : vector<16x64xf32>, vector<64x64xf32>, vector<16x64xf32> -> vector<16x64xf32>
    %84 = vector.shape_cast %83 : vector<16x64xf32> to vector<2x8x64xf32>
    %c4_74 = arith.constant 4 : index
    %c0_75 = arith.constant 0 : index
    %c0_76 = arith.constant 0 : index
    %85 = vector.load %arg7[%c4_74, %c0_75, %c0_76] : memref<8x64x64xf32, #tpu.memory_space<vmem>>, vector<1x64x64xf32>
    %86 = vector.shape_cast %85 : vector<1x64x64xf32> to vector<64x64xf32>
    %cst_77 = arith.constant dense<0.000000e+00> : vector<16x64xf32>
    %87 = tpu.matmul %5, %86, %cst_77 {dimension_numbers = #tpu.dot_dimension_numbers<[1], [0], [0], [1], [0, 0, 1, 1], [], []>} : vector<16x64xf32>, vector<64x64xf32>, vector<16x64xf32> -> vector<16x64xf32>
    %88 = vector.shape_cast %87 : vector<16x64xf32> to vector<2x8x64xf32>
    "tpu.trace_start"() <{level = 10 : i32, message = "bqd,bkd->bqk"}> : () -> ()
    %cst_78 = arith.constant dense<0.000000e+00> : vector<2x8x8xf32>
    %89 = tpu.matmul %80, %84, %cst_78 {dimension_numbers = #tpu.dot_dimension_numbers<[2], [2], [1], [1], [0, 0, 0, 1, 1, 1], [0], [0]>} : vector<2x8x64xf32>, vector<2x8x64xf32>, vector<2x8x8xf32> -> vector<2x8x8xf32>
    "tpu.trace_stop"() : () -> ()
    %cst_79 = arith.constant 1.250000e-01 : f32
    %90 = vector.broadcast %cst_79 : f32 to vector<2x8x8xf32>
    %91 = arith.mulf %89, %90 : vector<2x8x8xf32>
    %cst_80 = arith.constant -1.000000e+09 : f32
    %92 = vector.broadcast %cst_80 : f32 to vector<2x8x8xf32>
    %93 = arith.select %8, %92, %91 : vector<2x8x8xi1>, vector<2x8x8xf32>
    %c5 = arith.constant 5 : index
    %c0_81 = arith.constant 0 : index
    %c0_82 = arith.constant 0 : index
    %94 = vector.load %arg5[%c5, %c0_81, %c0_82] : memref<8x64x64xf32, #tpu.memory_space<vmem>>, vector<1x64x64xf32>
    %95 = vector.shape_cast %94 : vector<1x64x64xf32> to vector<64x64xf32>
    %cst_83 = arith.constant dense<0.000000e+00> : vector<16x64xf32>
    %96 = tpu.matmul %1, %95, %cst_83 {dimension_numbers = #tpu.dot_dimension_numbers<[1], [0], [0], [1], [0, 0, 1, 1], [], []>} : vector<16x64xf32>, vector<64x64xf32>, vector<16x64xf32> -> vector<16x64xf32>
    %97 = vector.shape_cast %96 : vector<16x64xf32> to vector<2x8x64xf32>
    %c5_84 = arith.constant 5 : index
    %c0_85 = arith.constant 0 : index
    %c0_86 = arith.constant 0 : index
    %98 = vector.load %arg6[%c5_84, %c0_85, %c0_86] : memref<8x64x64xf32, #tpu.memory_space<vmem>>, vector<1x64x64xf32>
    %99 = vector.shape_cast %98 : vector<1x64x64xf32> to vector<64x64xf32>
    %cst_87 = arith.constant dense<0.000000e+00> : vector<16x64xf32>
    %100 = tpu.matmul %3, %99, %cst_87 {dimension_numbers = #tpu.dot_dimension_numbers<[1], [0], [0], [1], [0, 0, 1, 1], [], []>} : vector<16x64xf32>, vector<64x64xf32>, vector<16x64xf32> -> vector<16x64xf32>
    %101 = vector.shape_cast %100 : vector<16x64xf32> to vector<2x8x64xf32>
    %c5_88 = arith.constant 5 : index
    %c0_89 = arith.constant 0 : index
    %c0_90 = arith.constant 0 : index
    %102 = vector.load %arg7[%c5_88, %c0_89, %c0_90] : memref<8x64x64xf32, #tpu.memory_space<vmem>>, vector<1x64x64xf32>
    %103 = vector.shape_cast %102 : vector<1x64x64xf32> to vector<64x64xf32>
    %cst_91 = arith.constant dense<0.000000e+00> : vector<16x64xf32>
    %104 = tpu.matmul %5, %103, %cst_91 {dimension_numbers = #tpu.dot_dimension_numbers<[1], [0], [0], [1], [0, 0, 1, 1], [], []>} : vector<16x64xf32>, vector<64x64xf32>, vector<16x64xf32> -> vector<16x64xf32>
    %105 = vector.shape_cast %104 : vector<16x64xf32> to vector<2x8x64xf32>
    "tpu.trace_start"() <{level = 10 : i32, message = "bqd,bkd->bqk"}> : () -> ()
    %cst_92 = arith.constant dense<0.000000e+00> : vector<2x8x8xf32>
    %106 = tpu.matmul %97, %101, %cst_92 {dimension_numbers = #tpu.dot_dimension_numbers<[2], [2], [1], [1], [0, 0, 0, 1, 1, 1], [0], [0]>} : vector<2x8x64xf32>, vector<2x8x64xf32>, vector<2x8x8xf32> -> vector<2x8x8xf32>
    "tpu.trace_stop"() : () -> ()
    %cst_93 = arith.constant 1.250000e-01 : f32
    %107 = vector.broadcast %cst_93 : f32 to vector<2x8x8xf32>
    %108 = arith.mulf %106, %107 : vector<2x8x8xf32>
    %cst_94 = arith.constant -1.000000e+09 : f32
    %109 = vector.broadcast %cst_94 : f32 to vector<2x8x8xf32>
    %110 = arith.select %8, %109, %108 : vector<2x8x8xi1>, vector<2x8x8xf32>
    %c6 = arith.constant 6 : index
    %c0_95 = arith.constant 0 : index
    %c0_96 = arith.constant 0 : index
    %111 = vector.load %arg5[%c6, %c0_95, %c0_96] : memref<8x64x64xf32, #tpu.memory_space<vmem>>, vector<1x64x64xf32>
    %112 = vector.shape_cast %111 : vector<1x64x64xf32> to vector<64x64xf32>
    %cst_97 = arith.constant dense<0.000000e+00> : vector<16x64xf32>
    %113 = tpu.matmul %1, %112, %cst_97 {dimension_numbers = #tpu.dot_dimension_numbers<[1], [0], [0], [1], [0, 0, 1, 1], [], []>} : vector<16x64xf32>, vector<64x64xf32>, vector<16x64xf32> -> vector<16x64xf32>
    %114 = vector.shape_cast %113 : vector<16x64xf32> to vector<2x8x64xf32>
    %c6_98 = arith.constant 6 : index
    %c0_99 = arith.constant 0 : index
    %c0_100 = arith.constant 0 : index
    %115 = vector.load %arg6[%c6_98, %c0_99, %c0_100] : memref<8x64x64xf32, #tpu.memory_space<vmem>>, vector<1x64x64xf32>
    %116 = vector.shape_cast %115 : vector<1x64x64xf32> to vector<64x64xf32>
    %cst_101 = arith.constant dense<0.000000e+00> : vector<16x64xf32>
    %117 = tpu.matmul %3, %116, %cst_101 {dimension_numbers = #tpu.dot_dimension_numbers<[1], [0], [0], [1], [0, 0, 1, 1], [], []>} : vector<16x64xf32>, vector<64x64xf32>, vector<16x64xf32> -> vector<16x64xf32>
    %118 = vector.shape_cast %117 : vector<16x64xf32> to vector<2x8x64xf32>
    %c6_102 = arith.constant 6 : index
    %c0_103 = arith.constant 0 : index
    %c0_104 = arith.constant 0 : index
    %119 = vector.load %arg7[%c6_102, %c0_103, %c0_104] : memref<8x64x64xf32, #tpu.memory_space<vmem>>, vector<1x64x64xf32>
    %120 = vector.shape_cast %119 : vector<1x64x64xf32> to vector<64x64xf32>
    %cst_105 = arith.constant dense<0.000000e+00> : vector<16x64xf32>
    %121 = tpu.matmul %5, %120, %cst_105 {dimension_numbers = #tpu.dot_dimension_numbers<[1], [0], [0], [1], [0, 0, 1, 1], [], []>} : vector<16x64xf32>, vector<64x64xf32>, vector<16x64xf32> -> vector<16x64xf32>
    %122 = vector.shape_cast %121 : vector<16x64xf32> to vector<2x8x64xf32>
    "tpu.trace_start"() <{level = 10 : i32, message = "bqd,bkd->bqk"}> : () -> ()
    %cst_106 = arith.constant dense<0.000000e+00> : vector<2x8x8xf32>
    %123 = tpu.matmul %114, %118, %cst_106 {dimension_numbers = #tpu.dot_dimension_numbers<[2], [2], [1], [1], [0, 0, 0, 1, 1, 1], [0], [0]>} : vector<2x8x64xf32>, vector<2x8x64xf32>, vector<2x8x8xf32> -> vector<2x8x8xf32>
    "tpu.trace_stop"() : () -> ()
    %cst_107 = arith.constant 1.250000e-01 : f32
    %124 = vector.broadcast %cst_107 : f32 to vector<2x8x8xf32>
    %125 = arith.mulf %123, %124 : vector<2x8x8xf32>
    %cst_108 = arith.constant -1.000000e+09 : f32
    %126 = vector.broadcast %cst_108 : f32 to vector<2x8x8xf32>
    %127 = arith.select %8, %126, %125 : vector<2x8x8xi1>, vector<2x8x8xf32>
    %c7 = arith.constant 7 : index
    %c0_109 = arith.constant 0 : index
    %c0_110 = arith.constant 0 : index
    %128 = vector.load %arg5[%c7, %c0_109, %c0_110] : memref<8x64x64xf32, #tpu.memory_space<vmem>>, vector<1x64x64xf32>
    %129 = vector.shape_cast %128 : vector<1x64x64xf32> to vector<64x64xf32>
    %cst_111 = arith.constant dense<0.000000e+00> : vector<16x64xf32>
    %130 = tpu.matmul %1, %129, %cst_111 {dimension_numbers = #tpu.dot_dimension_numbers<[1], [0], [0], [1], [0, 0, 1, 1], [], []>} : vector<16x64xf32>, vector<64x64xf32>, vector<16x64xf32> -> vector<16x64xf32>
    %131 = vector.shape_cast %130 : vector<16x64xf32> to vector<2x8x64xf32>
    %c7_112 = arith.constant 7 : index
    %c0_113 = arith.constant 0 : index
    %c0_114 = arith.constant 0 : index
    %132 = vector.load %arg6[%c7_112, %c0_113, %c0_114] : memref<8x64x64xf32, #tpu.memory_space<vmem>>, vector<1x64x64xf32>
    %133 = vector.shape_cast %132 : vector<1x64x64xf32> to vector<64x64xf32>
    %cst_115 = arith.constant dense<0.000000e+00> : vector<16x64xf32>
    %134 = tpu.matmul %3, %133, %cst_115 {dimension_numbers = #tpu.dot_dimension_numbers<[1], [0], [0], [1], [0, 0, 1, 1], [], []>} : vector<16x64xf32>, vector<64x64xf32>, vector<16x64xf32> -> vector<16x64xf32>
    %135 = vector.shape_cast %134 : vector<16x64xf32> to vector<2x8x64xf32>
    %c7_116 = arith.constant 7 : index
    %c0_117 = arith.constant 0 : index
    %c0_118 = arith.constant 0 : index
    %136 = vector.load %arg7[%c7_116, %c0_117, %c0_118] : memref<8x64x64xf32, #tpu.memory_space<vmem>>, vector<1x64x64xf32>
    %137 = vector.shape_cast %136 : vector<1x64x64xf32> to vector<64x64xf32>
    %cst_119 = arith.constant dense<0.000000e+00> : vector<16x64xf32>
    %138 = tpu.matmul %5, %137, %cst_119 {dimension_numbers = #tpu.dot_dimension_numbers<[1], [0], [0], [1], [0, 0, 1, 1], [], []>} : vector<16x64xf32>, vector<64x64xf32>, vector<16x64xf32> -> vector<16x64xf32>
    %139 = vector.shape_cast %138 : vector<16x64xf32> to vector<2x8x64xf32>
    "tpu.trace_start"() <{level = 10 : i32, message = "bqd,bkd->bqk"}> : () -> ()
    %cst_120 = arith.constant dense<0.000000e+00> : vector<2x8x8xf32>
    %140 = tpu.matmul %131, %135, %cst_120 {dimension_numbers = #tpu.dot_dimension_numbers<[2], [2], [1], [1], [0, 0, 0, 1, 1, 1], [0], [0]>} : vector<2x8x64xf32>, vector<2x8x64xf32>, vector<2x8x8xf32> -> vector<2x8x8xf32>
    "tpu.trace_stop"() : () -> ()
    %cst_121 = arith.constant 1.250000e-01 : f32
    %141 = vector.broadcast %cst_121 : f32 to vector<2x8x8xf32>
    %142 = arith.mulf %140, %141 : vector<2x8x8xf32>
    %cst_122 = arith.constant -1.000000e+09 : f32
    %143 = vector.broadcast %cst_122 : f32 to vector<2x8x8xf32>
    %144 = arith.select %8, %143, %142 : vector<2x8x8xi1>, vector<2x8x8xf32>
    %145 = vector.shape_cast %25 : vector<2x8x8xf32> to vector<2x1x8x8xf32>
    %146 = vector.shape_cast %42 : vector<2x8x8xf32> to vector<2x1x8x8xf32>
    %147 = vector.shape_cast %59 : vector<2x8x8xf32> to vector<2x1x8x8xf32>
    %148 = vector.shape_cast %76 : vector<2x8x8xf32> to vector<2x1x8x8xf32>
    %149 = vector.shape_cast %93 : vector<2x8x8xf32> to vector<2x1x8x8xf32>
    %150 = vector.shape_cast %110 : vector<2x8x8xf32> to vector<2x1x8x8xf32>
    %151 = vector.shape_cast %127 : vector<2x8x8xf32> to vector<2x1x8x8xf32>
    %152 = vector.shape_cast %144 : vector<2x8x8xf32> to vector<2x1x8x8xf32>
    %153 = tpu.concatenate %145, %146, %147, %148, %149, %150, %151, %152 in 1 : vector<2x1x8x8xf32>, vector<2x1x8x8xf32>, vector<2x1x8x8xf32>, vector<2x1x8x8xf32>, vector<2x1x8x8xf32>, vector<2x1x8x8xf32>, vector<2x1x8x8xf32>, vector<2x1x8x8xf32> -> vector<2x8x8x8xf32>
    %cst_123 = arith.constant dense<0xFF800000> : vector<2x8x8xf32>
    %154 = vector.multi_reduction <maximumf>, %153, %cst_123 [3] : vector<2x8x8x8xf32> to vector<2x8x8xf32>
    %155 = vector.shape_cast %154 : vector<2x8x8xf32> to vector<2x8x8x1xf32>
    %156 = vector.broadcast %155 : vector<2x8x8x1xf32> to vector<2x8x8x8xf32>
    %157 = arith.subf %153, %156 : vector<2x8x8x8xf32>
    %158 = math.exp %157 : vector<2x8x8x8xf32>
    %cst_124 = arith.constant dense<0.000000e+00> : vector<2x8x8xf32>
    %159 = vector.multi_reduction <add>, %158, %cst_124 [3] : vector<2x8x8x8xf32> to vector<2x8x8xf32>
    %160 = vector.shape_cast %159 : vector<2x8x8xf32> to vector<2x8x8x1xf32>
    %161 = tpu.reciprocal %160 : vector<2x8x8x1xf32> -> vector<2x8x8x1xf32>
    %162 = vector.broadcast %161 : vector<2x8x8x1xf32> to vector<2x8x8x8xf32>
    %163 = arith.mulf %158, %162 : vector<2x8x8x8xf32>
    %c0_125 = arith.constant 0 : index
    %c0_126 = arith.constant 0 : index
    %c0_127 = arith.constant 0 : index
    %c0_128 = arith.constant 0 : index
    %164 = vector.load %arg10[%c0_125, %c0_126, %c0_127, %c0_128] : memref<2x8x8x8xf32, #tpu.memory_space<vmem>>, vector<2x8x8x8xf32>
    tpu.vector_store %arg10[%c0_125, %c0_126, %c0_127, %c0_128], %163 {strides = array<i32>} : memref<2x8x8x8xf32, #tpu.memory_space<vmem>>, vector<2x8x8x8xf32>,
    %165 = vector.extract_strided_slice %163 {offsets = [0, 0, 0, 0], sizes = [2, 1, 8, 8], strides = [1, 1, 1, 1]} : vector<2x8x8x8xf32> to vector<2x1x8x8xf32>
    %166 = vector.shape_cast %165 : vector<2x1x8x8xf32> to vector<2x8x8xf32>
    "tpu.trace_start"() <{level = 10 : i32, message = "bqk,bkd->bqd"}> : () -> ()
    %cst_129 = arith.constant dense<0.000000e+00> : vector<2x8x64xf32>
    %167 = tpu.matmul %166, %20, %cst_129 {dimension_numbers = #tpu.dot_dimension_numbers<[2], [1], [1], [2], [0, 0, 0, 1, 1, 2], [0], [0]>} : vector<2x8x8xf32>, vector<2x8x64xf32>, vector<2x8x64xf32> -> vector<2x8x64xf32>
    "tpu.trace_stop"() : () -> ()
    %168 = vector.shape_cast %167 : vector<2x8x64xf32> to vector<16x64xf32>
    %c0_130 = arith.constant 0 : index
    %c0_131 = arith.constant 0 : index
    %c0_132 = arith.constant 0 : index
    %169 = vector.load %arg8[%c0_130, %c0_131, %c0_132] : memref<8x64x64xf32, #tpu.memory_space<vmem>>, vector<1x64x64xf32>
    %170 = vector.shape_cast %169 : vector<1x64x64xf32> to vector<64x64xf32>
    %cst_133 = arith.constant dense<0.000000e+00> : vector<16x64xf32>
    %171 = tpu.matmul %168, %170, %cst_133 {dimension_numbers = #tpu.dot_dimension_numbers<[1], [0], [0], [1], [0, 0, 1, 1], [], []>} : vector<16x64xf32>, vector<64x64xf32>, vector<16x64xf32> -> vector<16x64xf32>
    %172 = arith.addf %1, %171 : vector<16x64xf32>
    %173 = vector.extract_strided_slice %163 {offsets = [0, 1, 0, 0], sizes = [2, 1, 8, 8], strides = [1, 1, 1, 1]} : vector<2x8x8x8xf32> to vector<2x1x8x8xf32>
    %174 = vector.shape_cast %173 : vector<2x1x8x8xf32> to vector<2x8x8xf32>
    "tpu.trace_start"() <{level = 10 : i32, message = "bqk,bkd->bqd"}> : () -> ()
    %cst_134 = arith.constant dense<0.000000e+00> : vector<2x8x64xf32>
    %175 = tpu.matmul %174, %37, %cst_134 {dimension_numbers = #tpu.dot_dimension_numbers<[2], [1], [1], [2], [0, 0, 0, 1, 1, 2], [0], [0]>} : vector<2x8x8xf32>, vector<2x8x64xf32>, vector<2x8x64xf32> -> vector<2x8x64xf32>
    "tpu.trace_stop"() : () -> ()
    %176 = vector.shape_cast %175 : vector<2x8x64xf32> to vector<16x64xf32>
    %c1_135 = arith.constant 1 : index
    %c0_136 = arith.constant 0 : index
    %c0_137 = arith.constant 0 : index
    %177 = vector.load %arg8[%c1_135, %c0_136, %c0_137] : memref<8x64x64xf32, #tpu.memory_space<vmem>>, vector<1x64x64xf32>
    %178 = vector.shape_cast %177 : vector<1x64x64xf32> to vector<64x64xf32>
    %cst_138 = arith.constant dense<0.000000e+00> : vector<16x64xf32>
    %179 = tpu.matmul %176, %178, %cst_138 {dimension_numbers = #tpu.dot_dimension_numbers<[1], [0], [0], [1], [0, 0, 1, 1], [], []>} : vector<16x64xf32>, vector<64x64xf32>, vector<16x64xf32> -> vector<16x64xf32>
    %180 = arith.addf %172, %179 : vector<16x64xf32>
    %181 = vector.extract_strided_slice %163 {offsets = [0, 2, 0, 0], sizes = [2, 1, 8, 8], strides = [1, 1, 1, 1]} : vector<2x8x8x8xf32> to vector<2x1x8x8xf32>
    %182 = vector.shape_cast %181 : vector<2x1x8x8xf32> to vector<2x8x8xf32>
    "tpu.trace_start"() <{level = 10 : i32, message = "bqk,bkd->bqd"}> : () -> ()
    %cst_139 = arith.constant dense<0.000000e+00> : vector<2x8x64xf32>
    %183 = tpu.matmul %182, %54, %cst_139 {dimension_numbers = #tpu.dot_dimension_numbers<[2], [1], [1], [2], [0, 0, 0, 1, 1, 2], [0], [0]>} : vector<2x8x8xf32>, vector<2x8x64xf32>, vector<2x8x64xf32> -> vector<2x8x64xf32>
    "tpu.trace_stop"() : () -> ()
    %184 = vector.shape_cast %183 : vector<2x8x64xf32> to vector<16x64xf32>
    %c2_140 = arith.constant 2 : index
    %c0_141 = arith.constant 0 : index
    %c0_142 = arith.constant 0 : index
    %185 = vector.load %arg8[%c2_140, %c0_141, %c0_142] : memref<8x64x64xf32, #tpu.memory_space<vmem>>, vector<1x64x64xf32>
    %186 = vector.shape_cast %185 : vector<1x64x64xf32> to vector<64x64xf32>
    %cst_143 = arith.constant dense<0.000000e+00> : vector<16x64xf32>
    %187 = tpu.matmul %184, %186, %cst_143 {dimension_numbers = #tpu.dot_dimension_numbers<[1], [0], [0], [1], [0, 0, 1, 1], [], []>} : vector<16x64xf32>, vector<64x64xf32>, vector<16x64xf32> -> vector<16x64xf32>
    %188 = arith.addf %180, %187 : vector<16x64xf32>
    %189 = vector.extract_strided_slice %163 {offsets = [0, 3, 0, 0], sizes = [2, 1, 8, 8], strides = [1, 1, 1, 1]} : vector<2x8x8x8xf32> to vector<2x1x8x8xf32>
    %190 = vector.shape_cast %189 : vector<2x1x8x8xf32> to vector<2x8x8xf32>
    "tpu.trace_start"() <{level = 10 : i32, message = "bqk,bkd->bqd"}> : () -> ()
    %cst_144 = arith.constant dense<0.000000e+00> : vector<2x8x64xf32>
    %191 = tpu.matmul %190, %71, %cst_144 {dimension_numbers = #tpu.dot_dimension_numbers<[2], [1], [1], [2], [0, 0, 0, 1, 1, 2], [0], [0]>} : vector<2x8x8xf32>, vector<2x8x64xf32>, vector<2x8x64xf32> -> vector<2x8x64xf32>
    "tpu.trace_stop"() : () -> ()
    %192 = vector.shape_cast %191 : vector<2x8x64xf32> to vector<16x64xf32>
    %c3_145 = arith.constant 3 : index
    %c0_146 = arith.constant 0 : index
    %c0_147 = arith.constant 0 : index
    %193 = vector.load %arg8[%c3_145, %c0_146, %c0_147] : memref<8x64x64xf32, #tpu.memory_space<vmem>>, vector<1x64x64xf32>
    %194 = vector.shape_cast %193 : vector<1x64x64xf32> to vector<64x64xf32>
    %cst_148 = arith.constant dense<0.000000e+00> : vector<16x64xf32>
    %195 = tpu.matmul %192, %194, %cst_148 {dimension_numbers = #tpu.dot_dimension_numbers<[1], [0], [0], [1], [0, 0, 1, 1], [], []>} : vector<16x64xf32>, vector<64x64xf32>, vector<16x64xf32> -> vector<16x64xf32>
    %196 = arith.addf %188, %195 : vector<16x64xf32>
    %197 = vector.extract_strided_slice %163 {offsets = [0, 4, 0, 0], sizes = [2, 1, 8, 8], strides = [1, 1, 1, 1]} : vector<2x8x8x8xf32> to vector<2x1x8x8xf32>
    %198 = vector.shape_cast %197 : vector<2x1x8x8xf32> to vector<2x8x8xf32>
    "tpu.trace_start"() <{level = 10 : i32, message = "bqk,bkd->bqd"}> : () -> ()
    %cst_149 = arith.constant dense<0.000000e+00> : vector<2x8x64xf32>
    %199 = tpu.matmul %198, %88, %cst_149 {dimension_numbers = #tpu.dot_dimension_numbers<[2], [1], [1], [2], [0, 0, 0, 1, 1, 2], [0], [0]>} : vector<2x8x8xf32>, vector<2x8x64xf32>, vector<2x8x64xf32> -> vector<2x8x64xf32>
    "tpu.trace_stop"() : () -> ()
    %200 = vector.shape_cast %199 : vector<2x8x64xf32> to vector<16x64xf32>
    %c4_150 = arith.constant 4 : index
    %c0_151 = arith.constant 0 : index
    %c0_152 = arith.constant 0 : index
    %201 = vector.load %arg8[%c4_150, %c0_151, %c0_152] : memref<8x64x64xf32, #tpu.memory_space<vmem>>, vector<1x64x64xf32>
    %202 = vector.shape_cast %201 : vector<1x64x64xf32> to vector<64x64xf32>
    %cst_153 = arith.constant dense<0.000000e+00> : vector<16x64xf32>
    %203 = tpu.matmul %200, %202, %cst_153 {dimension_numbers = #tpu.dot_dimension_numbers<[1], [0], [0], [1], [0, 0, 1, 1], [], []>} : vector<16x64xf32>, vector<64x64xf32>, vector<16x64xf32> -> vector<16x64xf32>
    %204 = arith.addf %196, %203 : vector<16x64xf32>
    %205 = vector.extract_strided_slice %163 {offsets = [0, 5, 0, 0], sizes = [2, 1, 8, 8], strides = [1, 1, 1, 1]} : vector<2x8x8x8xf32> to vector<2x1x8x8xf32>
    %206 = vector.shape_cast %205 : vector<2x1x8x8xf32> to vector<2x8x8xf32>
    "tpu.trace_start"() <{level = 10 : i32, message = "bqk,bkd->bqd"}> : () -> ()
    %cst_154 = arith.constant dense<0.000000e+00> : vector<2x8x64xf32>
    %207 = tpu.matmul %206, %105, %cst_154 {dimension_numbers = #tpu.dot_dimension_numbers<[2], [1], [1], [2], [0, 0, 0, 1, 1, 2], [0], [0]>} : vector<2x8x8xf32>, vector<2x8x64xf32>, vector<2x8x64xf32> -> vector<2x8x64xf32>
    "tpu.trace_stop"() : () -> ()
    %208 = vector.shape_cast %207 : vector<2x8x64xf32> to vector<16x64xf32>
    %c5_155 = arith.constant 5 : index
    %c0_156 = arith.constant 0 : index
    %c0_157 = arith.constant 0 : index
    %209 = vector.load %arg8[%c5_155, %c0_156, %c0_157] : memref<8x64x64xf32, #tpu.memory_space<vmem>>, vector<1x64x64xf32>
    %210 = vector.shape_cast %209 : vector<1x64x64xf32> to vector<64x64xf32>
    %cst_158 = arith.constant dense<0.000000e+00> : vector<16x64xf32>
    %211 = tpu.matmul %208, %210, %cst_158 {dimension_numbers = #tpu.dot_dimension_numbers<[1], [0], [0], [1], [0, 0, 1, 1], [], []>} : vector<16x64xf32>, vector<64x64xf32>, vector<16x64xf32> -> vector<16x64xf32>
    %212 = arith.addf %204, %211 : vector<16x64xf32>
    %213 = vector.extract_strided_slice %163 {offsets = [0, 6, 0, 0], sizes = [2, 1, 8, 8], strides = [1, 1, 1, 1]} : vector<2x8x8x8xf32> to vector<2x1x8x8xf32>
    %214 = vector.shape_cast %213 : vector<2x1x8x8xf32> to vector<2x8x8xf32>
    "tpu.trace_start"() <{level = 10 : i32, message = "bqk,bkd->bqd"}> : () -> ()
    %cst_159 = arith.constant dense<0.000000e+00> : vector<2x8x64xf32>
    %215 = tpu.matmul %214, %122, %cst_159 {dimension_numbers = #tpu.dot_dimension_numbers<[2], [1], [1], [2], [0, 0, 0, 1, 1, 2], [0], [0]>} : vector<2x8x8xf32>, vector<2x8x64xf32>, vector<2x8x64xf32> -> vector<2x8x64xf32>
    "tpu.trace_stop"() : () -> ()
    %216 = vector.shape_cast %215 : vector<2x8x64xf32> to vector<16x64xf32>
    %c6_160 = arith.constant 6 : index
    %c0_161 = arith.constant 0 : index
    %c0_162 = arith.constant 0 : index
    %217 = vector.load %arg8[%c6_160, %c0_161, %c0_162] : memref<8x64x64xf32, #tpu.memory_space<vmem>>, vector<1x64x64xf32>
    %218 = vector.shape_cast %217 : vector<1x64x64xf32> to vector<64x64xf32>
    %cst_163 = arith.constant dense<0.000000e+00> : vector<16x64xf32>
    %219 = tpu.matmul %216, %218, %cst_163 {dimension_numbers = #tpu.dot_dimension_numbers<[1], [0], [0], [1], [0, 0, 1, 1], [], []>} : vector<16x64xf32>, vector<64x64xf32>, vector<16x64xf32> -> vector<16x64xf32>
    %220 = arith.addf %212, %219 : vector<16x64xf32>
    %221 = vector.extract_strided_slice %163 {offsets = [0, 7, 0, 0], sizes = [2, 1, 8, 8], strides = [1, 1, 1, 1]} : vector<2x8x8x8xf32> to vector<2x1x8x8xf32>
    %222 = vector.shape_cast %221 : vector<2x1x8x8xf32> to vector<2x8x8xf32>
    "tpu.trace_start"() <{level = 10 : i32, message = "bqk,bkd->bqd"}> : () -> ()
    %cst_164 = arith.constant dense<0.000000e+00> : vector<2x8x64xf32>
    %223 = tpu.matmul %222, %139, %cst_164 {dimension_numbers = #tpu.dot_dimension_numbers<[2], [1], [1], [2], [0, 0, 0, 1, 1, 2], [0], [0]>} : vector<2x8x8xf32>, vector<2x8x64xf32>, vector<2x8x64xf32> -> vector<2x8x64xf32>
    "tpu.trace_stop"() : () -> ()
    %224 = vector.shape_cast %223 : vector<2x8x64xf32> to vector<16x64xf32>
    %c7_165 = arith.constant 7 : index
    %c0_166 = arith.constant 0 : index
    %c0_167 = arith.constant 0 : index
    %225 = vector.load %arg8[%c7_165, %c0_166, %c0_167] : memref<8x64x64xf32, #tpu.memory_space<vmem>>, vector<1x64x64xf32>
    %226 = vector.shape_cast %225 : vector<1x64x64xf32> to vector<64x64xf32>
    %cst_168 = arith.constant dense<0.000000e+00> : vector<16x64xf32>
    %227 = tpu.matmul %224, %226, %cst_168 {dimension_numbers = #tpu.dot_dimension_numbers<[1], [0], [0], [1], [0, 0, 1, 1], [], []>} : vector<16x64xf32>, vector<64x64xf32>, vector<16x64xf32> -> vector<16x64xf32>
    %228 = arith.addf %220, %227 : vector<16x64xf32>
    %cst_169 = arith.constant dense<0.000000e+00> : vector<16xf32>
    %229 = vector.multi_reduction <add>, %228, %cst_169 [1] : vector<16x64xf32> to vector<16xf32>
    %230 = vector.shape_cast %229 : vector<16xf32> to vector<16x1xf32>
    %cst_170 = arith.constant 6.400000e+01 : f32
    %231 = vector.broadcast %cst_170 : f32 to vector<16x1xf32>
    %232 = arith.divf %230, %231 : vector<16x1xf32>
    %233 = vector.broadcast %232 : vector<16x1xf32> to vector<16x64xf32>
    %234 = arith.subf %228, %233 : vector<16x64xf32>
    %235 = arith.mulf %234, %234 : vector<16x64xf32>
    %cst_171 = arith.constant dense<0.000000e+00> : vector<16xf32>
    %236 = vector.multi_reduction <add>, %235, %cst_171 [1] : vector<16x64xf32> to vector<16xf32>
    %237 = vector.shape_cast %236 : vector<16xf32> to vector<16x1xf32>
    %cst_172 = arith.constant 6.400000e+01 : f32
    %238 = vector.broadcast %cst_172 : f32 to vector<16x1xf32>
    %239 = arith.divf %237, %238 : vector<16x1xf32>
    %cst_173 = arith.constant 9.99999974E-6 : f32
    %240 = vector.broadcast %cst_173 : f32 to vector<16x1xf32>
    %241 = arith.addf %239, %240 : vector<16x1xf32>
    %242 = math.rsqrt %241 : vector<16x1xf32>
    %243 = vector.broadcast %242 : vector<16x1xf32> to vector<16x64xf32>
    %244 = arith.mulf %234, %243 : vector<16x64xf32>
    %245 = vector.shape_cast %244 : vector<16x64xf32> to vector<2x8x64xf32>
    %c0_174 = arith.constant 0 : index
    %c0_175 = arith.constant 0 : index
    %c0_176 = arith.constant 0 : index
    %246 = vector.load %arg9[%c0_174, %c0_175, %c0_176] : memref<2x8x64xf32, #tpu.memory_space<vmem>>, vector<2x8x64xf32>
    tpu.vector_store %arg9[%c0_174, %c0_175, %c0_176], %245 {strides = array<i32>} : memref<2x8x64xf32, #tpu.memory_space<vmem>>, vector<2x8x64xf32>,
    return
  }
  func.func @transform_0(%arg0: i32) -> (i32, i32, i32) {
    %c0_i32 = arith.constant 0 : i32
    %c0_i32_0 = arith.constant 0 : i32
    %c0_i32_1 = arith.constant 0 : i32
    return %arg0, %c0_i32, %c0_i32_0 : i32, i32, i32
  }
  func.func @transform_1(%arg0: i32) -> (i32, i32, i32) {
    %c0_i32 = arith.constant 0 : i32
    %c0_i32_0 = arith.constant 0 : i32
    %c0_i32_1 = arith.constant 0 : i32
    return %arg0, %c0_i32, %c0_i32_0 : i32, i32, i32
  }
  func.func @transform_2(%arg0: i32) -> (i32, i32, i32) {
    %c0_i32 = arith.constant 0 : i32
    %c0_i32_0 = arith.constant 0 : i32
    %c0_i32_1 = arith.constant 0 : i32
    return %arg0, %c0_i32, %c0_i32_0 : i32, i32, i32
  }
  func.func @transform_3(%arg0: i32) -> (i32, i32, i32) {
    %c0_i32 = arith.constant 0 : i32
    %c0_i32_0 = arith.constant 0 : i32
    %c0_i32_1 = arith.constant 0 : i32
    return %arg0, %c0_i32, %c0_i32_0 : i32, i32, i32
  }
  func.func @transform_4(%arg0: i32) -> (i32, i32, i32) {
    %c0_i32 = arith.constant 0 : i32
    %c0_i32_0 = arith.constant 0 : i32
    %c0_i32_1 = arith.constant 0 : i32
    %c0_i32_2 = arith.constant 0 : i32
    return %c0_i32, %c0_i32_0, %c0_i32_1 : i32, i32, i32
  }
  func.func @transform_5(%arg0: i32) -> (i32, i32, i32) {
    %c0_i32 = arith.constant 0 : i32
    %c0_i32_0 = arith.constant 0 : i32
    %c0_i32_1 = arith.constant 0 : i32
    %c0_i32_2 = arith.constant 0 : i32
    return %c0_i32, %c0_i32_0, %c0_i32_1 : i32, i32, i32
  }
  func.func @transform_6(%arg0: i32) -> (i32, i32, i32) {
    %c0_i32 = arith.constant 0 : i32
    %c0_i32_0 = arith.constant 0 : i32
    %c0_i32_1 = arith.constant 0 : i32
    %c0_i32_2 = arith.constant 0 : i32
    return %c0_i32, %c0_i32_0, %c0_i32_1 : i32, i32, i32
  }
  func.func @transform_7(%arg0: i32) -> (i32, i32, i32) {
    %c0_i32 = arith.constant 0 : i32
    %c0_i32_0 = arith.constant 0 : i32
    %c0_i32_1 = arith.constant 0 : i32
    %c0_i32_2 = arith.constant 0 : i32
    return %c0_i32, %c0_i32_0, %c0_i32_1 : i32, i32, i32
  }
  func.func @transform_8(%arg0: i32) -> (i32, i32, i32) {
    %c0_i32 = arith.constant 0 : i32
    %c0_i32_0 = arith.constant 0 : i32
    %c0_i32_1 = arith.constant 0 : i32
    return %arg0, %c0_i32, %c0_i32_0 : i32, i32, i32
  }
  func.func @transform_9(%arg0: i32) -> (i32, i32, i32, i32) {
    %c0_i32 = arith.constant 0 : i32
    %c0_i32_0 = arith.constant 0 : i32
    %c0_i32_1 = arith.constant 0 : i32
    %c0_i32_2 = arith.constant 0 : i32
    return %arg0, %c0_i32, %c0_i32_0, %c0_i32_1 : i32, i32, i32, i32
  }
}

</mosaic_0001>

<llo_original>
// kernel: tpu_custom_call.1
$region0: #{tpu_custom_call.1}
  #allocation0 [shape = 'u32[]', space=smem, size = 0x4, offset = 0x4, fixed_abs, tag = 'smem constant byte address 0x4 - core index']
  #allocation1 [shape = 'u32[144,128]{1,0:T(1,128)}', space=vmem, size = 0x12000, scoped, tag = 'internal scratch']
  %s0 = inlined_call_operand.hbm [shape: f32[2,8,64], index: 0, kind: input, shape index: {}]
  %s1 = inlined_call_operand.hbm [shape: f32[2,8,64], index: 1, kind: input, shape index: {}]
  %s2 = inlined_call_operand.hbm [shape: f32[2,8,64], index: 2, kind: input, shape index: {}]
  %s3 = inlined_call_operand.hbm [shape: s32[2,8,8], index: 3, kind: input, shape index: {}]
  %s4 = inlined_call_operand.hbm [shape: f32[8,64,64], index: 4, kind: input, shape index: {}]
  %s5 = inlined_call_operand.hbm [shape: f32[8,64,64], index: 5, kind: input, shape index: {}]
  %s6 = inlined_call_operand.hbm [shape: f32[8,64,64], index: 6, kind: input, shape index: {}]
  %s7 = inlined_call_operand.hbm [shape: f32[8,64,64], index: 7, kind: input, shape index: {}]
  %s8 = inlined_call_operand.hbm [shape: f32[2,8,64], index: 8, kind: output, shape index: {0}]
  %s9 = inlined_call_operand.hbm [shape: f32[2,8,8,8], index: 9, kind: output, shape index: {1}]
  %10 = xla_tuple %s8, %s9
  %s11 = sld [smem:[#allocation0]]
  $region82: #{tpu_custom_call.1} parent=0
    _
  %s13 = ssub.s32 1, %s11
  %s14 = scalar_select 0, %s13, %s11
  $region1: #{tpu_custom_call.1} parent=0
    #allocation2 [shape = 'u8[8192]{0}', space=vmem, size = 0x2000, scoped, tag = 'input window, operand 0, single buffered']
    #allocation3 [shape = 's32[1]{0}', space=sflag, size = 0x4, scoped, tag = 'scoped memory for tpu_custom_call.1']
    #allocation4 [shape = 's32[1]{0}', space=sflag, size = 0x4, scoped, tag = 'scoped memory for tpu_custom_call.1']
    #allocation5 [shape = 'u8[8192]{0}', space=vmem, size = 0x2000, scoped, tag = 'input window, operand 1, single buffered']
    #allocation6 [shape = 's32[1]{0}', space=sflag, size = 0x4, scoped, tag = 'scoped memory for tpu_custom_call.1']
    #allocation7 [shape = 'u8[8192]{0}', space=vmem, size = 0x2000, scoped, tag = 'input window, operand 2, single buffered']
    #allocation8 [shape = 'u8[8192]{0}', space=vmem, size = 0x2000, scoped, tag = 'input window, operand 3, single buffered']
    #allocation9 [shape = 's32[1]{0}', space=sflag, size = 0x4, scoped, tag = 'scoped memory for tpu_custom_call.1']
    #allocation10 [shape = 'u8[262144]{0}', space=vmem, size = 0x40000, scoped, tag = 'input window, operand 4, single buffered']
    #allocation11 [shape = 'u8[262144]{0}', space=vmem, size = 0x40000, scoped, tag = 'input window, operand 5, single buffered']
    #allocation12 [shape = 's32[1]{0}', space=sflag, size = 0x4, scoped, tag = 'scoped memory for tpu_custom_call.1']
    #allocation13 [shape = 'u8[262144]{0}', space=vmem, size = 0x40000, scoped, tag = 'input window, operand 6, single buffered']
    #allocation14 [shape = 'u8[262144]{0}', space=vmem, size = 0x40000, scoped, tag = 'input window, operand 7, single buffered']
    #allocation15 [shape = 's32[1]{0}', space=sflag, size = 0x4, scoped, tag = 'scoped memory for tpu_custom_call.1']
    #allocation16 [shape = 'u8[8192]{0}', space=vmem, size = 0x2000, scoped, tag = 'output window, operand 0, single buffered']
    #allocation17 [shape = 'u8[65536]{0}', space=vmem, size = 0x10000, scoped, tag = 'output window, operand 1, single buffered']
    #allocation18 [shape = 's32[1]{0}', space=sflag, size = 0x4, scoped, tag = 'scoped memory for tpu_custom_call.1']
    %15 = vsyncpa [#allocation3], 0
    %16 = vsyncpa [#allocation6], 0
    %17 = vsyncpa [#allocation9], 0
    %18 = vsyncpa [#allocation12], 0
    %19 = vsyncpa [#allocation15], 0
    %20 = vsyncpa [#allocation4], 0
    %21 = vsyncpa [#allocation18], 0
    // Predicated region
    $region2: #{tpu_custom_call.1} parent=1 // pred_check
      _
    $region3: #{tpu_custom_call.1} parent=1 // pred_check_branch
      %23 = sbr.rel (0) target = $region5
    $region4: #{tpu_custom_call.1} parent=1 // pred_region
      %s25 = ssub.s32 256, 256
      %26 = vsyncadd [#allocation3], %s25
      %s27 = sshll.u32 [#allocation2], 4
      %s28 = int_to_ptr.vmem [resolvable:$true] %s27
      %33 = dma.hbm_to_vmem [thread:$0]  %s0, 256, %s28, [#allocation3], 128, 128, 8
    $region5: #{tpu_custom_call.1} parent=1 // pred_fallthru
      _
    // Predicated region
    $region6: #{tpu_custom_call.1} parent=1 // pred_check
      _
    $region7: #{tpu_custom_call.1} parent=1 // pred_check_branch
      %35 = sbr.rel (0) target = $region9
    $region8: #{tpu_custom_call.1} parent=1 // pred_region
      %s37 = ssub.s32 256, 256
      %38 = vsyncadd [#allocation6], %s37
      %s39 = sshll.u32 [#allocation5], 4
      %s40 = int_to_ptr.vmem [resolvable:$true] %s39
      %45 = dma.hbm_to_vmem [thread:$0]  %s1, 256, %s40, [#allocation6], 128, 128, 8
    $region9: #{tpu_custom_call.1} parent=1 // pred_fallthru
      _
    // Predicated region
    $region10: #{tpu_custom_call.1} parent=1 // pred_check
      _
    $region11: #{tpu_custom_call.1} parent=1 // pred_check_branch
      %47 = sbr.rel (0) target = $region13
    $region12: #{tpu_custom_call.1} parent=1 // pred_region
      %s49 = ssub.s32 256, 256
      %50 = vsyncadd [#allocation6], %s49
      %s51 = sshll.u32 [#allocation7], 4
      %s52 = int_to_ptr.vmem [resolvable:$true] %s51
      %57 = dma.hbm_to_vmem [thread:$0]  %s2, 256, %s52, [#allocation6], 128, 128, 8
    $region13: #{tpu_custom_call.1} parent=1 // pred_fallthru
      _
    // Predicated region
    $region14: #{tpu_custom_call.1} parent=1 // pred_check
      _
    $region15: #{tpu_custom_call.1} parent=1 // pred_check_branch
      %59 = sbr.rel (0) target = $region17
    $region16: #{tpu_custom_call.1} parent=1 // pred_region
      %s61 = ssub.s32 256, 256
      %62 = vsyncadd [#allocation9], %s61
      %s63 = sshll.u32 [#allocation8], 4
      %s64 = int_to_ptr.vmem [resolvable:$true] %s63
      %69 = dma.hbm_to_vmem [thread:$0]  %s3, 256, %s64, [#allocation9], 128, 128, 8
    $region17: #{tpu_custom_call.1} parent=1 // pred_fallthru
      _
    // Predicated region
    $region18: #{tpu_custom_call.1} parent=1 // pred_check
      _
    $region19: #{tpu_custom_call.1} parent=1 // pred_check_branch
      %71 = sbr.rel (0) target = $region21
    $region20: #{tpu_custom_call.1} parent=1 // pred_region
      %s73 = ssub.s32 8192, 8192
      %74 = vsyncadd [#allocation9], %s73
      %s75 = sshll.u32 [#allocation10], 4
      %s76 = int_to_ptr.vmem [resolvable:$true] %s75
      %81 = dma.hbm_to_vmem [thread:$0]  %s4, 8192, %s76, [#allocation9], 128, 128, 8
    $region21: #{tpu_custom_call.1} parent=1 // pred_fallthru
      _
    // Predicated region
    $region22: #{tpu_custom_call.1} parent=1 // pred_check
      _
    $region23: #{tpu_custom_call.1} parent=1 // pred_check_branch
      %83 = sbr.rel (0) target = $region25
    $region24: #{tpu_custom_call.1} parent=1 // pred_region
      %s85 = ssub.s32 8192, 8192
      %86 = vsyncadd [#allocation12], %s85
      %s87 = sshll.u32 [#allocation11], 4
      %s88 = int_to_ptr.vmem [resolvable:$true] %s87
      %93 = dma.hbm_to_vmem [thread:$0]  %s5, 8192, %s88, [#allocation12], 128, 128, 8
    $region25: #{tpu_custom_call.1} parent=1 // pred_fallthru
      _
    // Predicated region
    $region26: #{tpu_custom_call.1} parent=1 // pred_check
      _
    $region27: #{tpu_custom_call.1} parent=1 // pred_check_branch
      %95 = sbr.rel (0) target = $region29
    $region28: #{tpu_custom_call.1} parent=1 // pred_region
      %s97 = ssub.s32 8192, 8192
      %98 = vsyncadd [#allocation12], %s97
      %s99 = sshll.u32 [#allocation13], 4
      %s100 = int_to_ptr.vmem [resolvable:$true] %s99
      %105 = dma.hbm_to_vmem [thread:$0]  %s6, 8192, %s100, [#allocation12], 128, 128, 8
    $region29: #{tpu_custom_call.1} parent=1 // pred_fallthru
      _
    // Predicated region
    $region30: #{tpu_custom_call.1} parent=1 // pred_check
      _
    $region31: #{tpu_custom_call.1} parent=1 // pred_check_branch
      %107 = sbr.rel (0) target = $region33
    $region32: #{tpu_custom_call.1} parent=1 // pred_region
      %s109 = ssub.s32 8192, 8192
      %110 = vsyncadd [#allocation15], %s109
      %s111 = sshll.u32 [#allocation14], 4
      %s112 = int_to_ptr.vmem [resolvable:$true] %s111
      %117 = dma.hbm_to_vmem [thread:$0]  %s7, 8192, %s112, [#allocation15], 128, 128, 8
    $region33: #{tpu_custom_call.1} parent=1 // pred_fallthru
      _
    // Predicated region
    $region34: #{tpu_custom_call.1} parent=1 // pred_check
      _
    $region35: #{tpu_custom_call.1} parent=1 // pred_check_branch
      %119 = sbr.rel (0) target = $region37
    $region36: #{tpu_custom_call.1} parent=1 // pred_region
      %120 = dma.done [#allocation3], 256
    $region37: #{tpu_custom_call.1} parent=1 // pred_fallthru
      _
    // Predicated region
    $region38: #{tpu_custom_call.1} parent=1 // pred_check
      _
    $region39: #{tpu_custom_call.1} parent=1 // pred_check_branch
      %122 = sbr.rel (0) target = $region41
    $region40: #{tpu_custom_call.1} parent=1 // pred_region
      %123 = dma.done [#allocation6], 256
    $region41: #{tpu_custom_call.1} parent=1 // pred_fallthru
      _
    // Predicated region
    $region42: #{tpu_custom_call.1} parent=1 // pred_check
      _
    $region43: #{tpu_custom_call.1} parent=1 // pred_check_branch
      %125 = sbr.rel (0) target = $region45
    $region44: #{tpu_custom_call.1} parent=1 // pred_region
      %126 = dma.done [#allocation6], 256
    $region45: #{tpu_custom_call.1} parent=1 // pred_fallthru
      _
    // Predicated region
    $region46: #{tpu_custom_call.1} parent=1 // pred_check
      _
    $region47: #{tpu_custom_call.1} parent=1 // pred_check_branch
      %128 = sbr.rel (0) target = $region49
    $region48: #{tpu_custom_call.1} parent=1 // pred_region
      %129 = dma.done [#allocation9], 256
    $region49: #{tpu_custom_call.1} parent=1 // pred_fallthru
      _
    // Predicated region
    $region50: #{tpu_custom_call.1} parent=1 // pred_check
      _
    $region51: #{tpu_custom_call.1} parent=1 // pred_check_branch
      %131 = sbr.rel (0) target = $region53
    $region52: #{tpu_custom_call.1} parent=1 // pred_region
      %132 = dma.done [#allocation9], 8192
    $region53: #{tpu_custom_call.1} parent=1 // pred_fallthru
      _
    // Predicated region
    $region54: #{tpu_custom_call.1} parent=1 // pred_check
      _
    $region55: #{tpu_custom_call.1} parent=1 // pred_check_branch
      %134 = sbr.rel (0) target = $region57
    $region56: #{tpu_custom_call.1} parent=1 // pred_region
      %135 = dma.done [#allocation12], 8192
    $region57: #{tpu_custom_call.1} parent=1 // pred_fallthru
      _
    // Predicated region
    $region58: #{tpu_custom_call.1} parent=1 // pred_check
      _
    $region59: #{tpu_custom_call.1} parent=1 // pred_check_branch
      %137 = sbr.rel (0) target = $region61
    $region60: #{tpu_custom_call.1} parent=1 // pred_region
      %138 = dma.done [#allocation12], 8192
    $region61: #{tpu_custom_call.1} parent=1 // pred_fallthru
      _
    // Predicated region
    $region62: #{tpu_custom_call.1} parent=1 // pred_check
      _
    $region63: #{tpu_custom_call.1} parent=1 // pred_check_branch
      %140 = sbr.rel (0) target = $region65
    $region64: #{tpu_custom_call.1} parent=1 // pred_region
      %141 = dma.done [#allocation15], 8192
    $region65: #{tpu_custom_call.1} parent=1 // pred_fallthru
      _
    %v142 = vld [vmem:[#allocation2] sm:$0xff]
    %v143 = vld [vmem:[#allocation2 + $0x8] sm:$0xff]
    %v144 = vld [vmem:[#allocation5] sm:$0xff]
    %v145 = vld [vmem:[#allocation5 + $0x8] sm:$0xff]
    %v146 = vld [vmem:[#allocation7] sm:$0xff]
    %v147 = vld [vmem:[#allocation7 + $0x8] sm:$0xff]
    %v148 = vld [vmem:[#allocation8] sm:$0xff]
    %v149 = vld [vmem:[#allocation8 + $0x8] sm:$0xff]
    %vm150 = vcmp.ne.s32.totalorder %v148, 0
    %vm151 = vcmp.ne.s32.totalorder %v149, 0
    %v152 = vld [vmem:[#allocation10] sm:$0xff]
    %v153 = vld [vmem:[#allocation10 + $0x8] sm:$0xff]
    %v154 = vld [vmem:[#allocation10 + $0x10] sm:$0xff]
    %v155 = vld [vmem:[#allocation10 + $0x18] sm:$0xff]
    %v156 = vld [vmem:[#allocation10 + $0x20] sm:$0xff]
    %v157 = vld [vmem:[#allocation10 + $0x28] sm:$0xff]
    %v158 = vld [vmem:[#allocation10 + $0x30] sm:$0xff]
    %v159 = vld [vmem:[#allocation10 + $0x38] sm:$0xff]
    %vm160 = vcmask 523264
    %v162 = vsel %vm160, %v142, 0
    %v165 = vsel %vm160, %v143, 0
    %167 = vmatprep.subr.mxu0 0.0
    %168 = vmatpush1.msra.mxu0 0.0
    %169 = vmatprep.subr.mxu0 0.0
    %170 = vmatpush1.msra.mxu0 0.0
    %171 = vmatprep.subr.mxu0 0.0
    %172 = vmatpush1.msra.mxu0 0.0
    %173 = vmatprep.subr.mxu0 0.0
    %174 = vmatpush1.msra.mxu0 0.0
    %175 = vmatprep.subr.mxu0 0.0
    %176 = vmatpush1.msra.mxu0 0.0
    %177 = vmatprep.subr.mxu0 0.0
    %178 = vmatpush1.msra.mxu0 0.0
    %179 = vmatprep.subr.mxu0 0.0
    %180 = vmatpush1.msra.mxu0 0.0
    %181 = vmatprep.subr.mxu0 0.0
    %182 = vmatpush1.msra.mxu0 0.0
    %183 = vmatprep.subr.mxu0 0.0
    %184 = vmatpush1.msra.mxu0 %v159
    %185 = vmatprep.subr.mxu0 0.0
    %186 = vmatpush1.msra.mxu0 %v158
    %187 = vmatprep.subr.mxu0 0.0
    %188 = vmatpush1.msra.mxu0 %v157
    %189 = vmatprep.subr.mxu0 0.0
    %190 = vmatpush1.msra.mxu0 %v156
    %191 = vmatprep.subr.mxu0 0.0
    %192 = vmatpush1.msra.mxu0 %v155
    %193 = vmatprep.subr.mxu0 0.0
    %194 = vmatpush1.msra.mxu0 %v154
    %195 = vmatprep.subr.mxu0 0.0
    %196 = vmatpush1.msra.mxu0 %v153
    %197 = vmatprep.subr.mxu0 0.0
    %198 = vmatpush1.msra.mxu0 %v152
    %199 = vmatprep.subr.mxu0 0.0
    %200 = vmatpush2.msra.mxu0 0.0
    %201 = vmatprep.subr.mxu0 0.0
    %202 = vmatpush2.msra.mxu0 0.0
    %203 = vmatprep.subr.mxu0 0.0
    %204 = vmatpush2.msra.mxu0 0.0
    %205 = vmatprep.subr.mxu0 0.0
    %206 = vmatpush2.msra.mxu0 0.0
    %207 = vmatprep.subr.mxu0 0.0
    %208 = vmatpush2.msra.mxu0 0.0
    %209 = vmatprep.subr.mxu0 0.0
    %210 = vmatpush2.msra.mxu0 0.0
    %211 = vmatprep.subr.mxu0 0.0
    %212 = vmatpush2.msra.mxu0 0.0
    %213 = vmatprep.subr.mxu0 0.0
    %214 = vmatpush2.msra.mxu0 0.0
    %215 = vmatprep.subr.mxu0 0.0
    %216 = vmatpush2.msra.mxu0 0.0
    %217 = vmatprep.subr.mxu0 0.0
    %218 = vmatpush2.msra.mxu0 0.0
    %219 = vmatprep.subr.mxu0 0.0
    %220 = vmatpush2.msra.mxu0 0.0
    %221 = vmatprep.subr.mxu0 0.0
    %222 = vmatpush2.msra.mxu0 0.0
    %223 = vmatprep.subr.mxu0 0.0
    %224 = vmatpush2.msra.mxu0 0.0
    %225 = vmatprep.subr.mxu0 0.0
    %226 = vmatpush2.msra.mxu0 0.0
    %227 = vmatprep.subr.mxu0 0.0
    %228 = vmatpush2.msra.mxu0 0.0
    %229 = vmatprep.subr.mxu0 0.0
    %230 = vmatpush2.msra.mxu0 0.0
    %231 = vmatprep.mubr.f32.mxu0 0.0
    %232 = vmatmul.mubr.f32.gmra.mxu0 %v162
    %v233 = vpop.f32.mrf.mxu0
    %v234 = vadd.f32 0.0, %v233
    %v235 = vpop.f32.mrf.mxu0
    %236 = vmatprep.mubr.f32.mxu0 0.0
    %237 = vmatmul.mubr.f32.gmra.mxu0 %v165
    %v238 = vpop.f32.mrf.mxu0
    %v239 = vadd.f32 0.0, %v238
    %v240 = vpop.f32.mrf.mxu0
    %241 = vdwg.mxu0
    %v242 = vld [vmem:[#allocation11] sm:$0xff]
    %v243 = vld [vmem:[#allocation11 + $0x8] sm:$0xff]
    %v244 = vld [vmem:[#allocation11 + $0x10] sm:$0xff]
    %v245 = vld [vmem:[#allocation11 + $0x18] sm:$0xff]
    %v246 = vld [vmem:[#allocation11 + $0x20] sm:$0xff]
    %v247 = vld [vmem:[#allocation11 + $0x28] sm:$0xff]
    %v248 = vld [vmem:[#allocation11 + $0x30] sm:$0xff]
    %v249 = vld [vmem:[#allocation11 + $0x38] sm:$0xff]
    %v251 = vsel %vm160, %v144, 0
    %v254 = vsel %vm160, %v145, 0
    %256 = vmatprep.subr.mxu0 0.0
    %257 = vmatpush1.msra.mxu0 0.0
    %258 = vmatprep.subr.mxu0 0.0
    %259 = vmatpush1.msra.mxu0 0.0
    %260 = vmatprep.subr.mxu0 0.0
    %261 = vmatpush1.msra.mxu0 0.0
    %262 = vmatprep.subr.mxu0 0.0
    %263 = vmatpush1.msra.mxu0 0.0
    %264 = vmatprep.subr.mxu0 0.0
    %265 = vmatpush1.msra.mxu0 0.0
    %266 = vmatprep.subr.mxu0 0.0
    %267 = vmatpush1.msra.mxu0 0.0
    %268 = vmatprep.subr.mxu0 0.0
    %269 = vmatpush1.msra.mxu0 0.0
    %270 = vmatprep.subr.mxu0 0.0
    %271 = vmatpush1.msra.mxu0 0.0
    %272 = vmatprep.subr.mxu0 0.0
    %273 = vmatpush1.msra.mxu0 %v249
    %274 = vmatprep.subr.mxu0 0.0
    %275 = vmatpush1.msra.mxu0 %v248
    %276 = vmatprep.subr.mxu0 0.0
    %277 = vmatpush1.msra.mxu0 %v247
    %278 = vmatprep.subr.mxu0 0.0
    %279 = vmatpush1.msra.mxu0 %v246
    %280 = vmatprep.subr.mxu0 0.0
    %281 = vmatpush1.msra.mxu0 %v245
    %282 = vmatprep.subr.mxu0 0.0
    %283 = vmatpush1.msra.mxu0 %v244
    %284 = vmatprep.subr.mxu0 0.0
    %285 = vmatpush1.msra.mxu0 %v243
    %286 = vmatprep.subr.mxu0 0.0
    %287 = vmatpush1.msra.mxu0 %v242
    %288 = vmatprep.subr.mxu0 0.0
    %289 = vmatpush2.msra.mxu0 0.0
    %290 = vmatprep.subr.mxu0 0.0
    %291 = vmatpush2.msra.mxu0 0.0
    %292 = vmatprep.subr.mxu0 0.0
    %293 = vmatpush2.msra.mxu0 0.0
    %294 = vmatprep.subr.mxu0 0.0
    %295 = vmatpush2.msra.mxu0 0.0
    %296 = vmatprep.subr.mxu0 0.0
    %297 = vmatpush2.msra.mxu0 0.0
    %298 = vmatprep.subr.mxu0 0.0
    %299 = vmatpush2.msra.mxu0 0.0
    %300 = vmatprep.subr.mxu0 0.0
    %301 = vmatpush2.msra.mxu0 0.0
    %302 = vmatprep.subr.mxu0 0.0
    %303 = vmatpush2.msra.mxu0 0.0
    %304 = vmatprep.subr.mxu0 0.0
    %305 = vmatpush2.msra.mxu0 0.0
    %306 = vmatprep.subr.mxu0 0.0
    %307 = vmatpush2.msra.mxu0 0.0
    %308 = vmatprep.subr.mxu0 0.0
    %309 = vmatpush2.msra.mxu0 0.0
    %310 = vmatprep.subr.mxu0 0.0
    %311 = vmatpush2.msra.mxu0 0.0
    %312 = vmatprep.subr.mxu0 0.0
    %313 = vmatpush2.msra.mxu0 0.0
    %314 = vmatprep.subr.mxu0 0.0
    %315 = vmatpush2.msra.mxu0 0.0
    %316 = vmatprep.subr.mxu0 0.0
    %317 = vmatpush2.msra.mxu0 0.0
    %318 = vmatprep.subr.mxu0 0.0
    %319 = vmatpush2.msra.mxu0 0.0
    %320 = vmatprep.mubr.f32.mxu0 0.0
    %321 = vmatmul.mubr.f32.gmra.mxu0 %v251
    %v322 = vpop.f32.mrf.mxu0
    %v323 = vadd.f32 0.0, %v322
    %v324 = vpop.f32.mrf.mxu0
    %325 = vmatprep.mubr.f32.mxu0 0.0
    %326 = vmatmul.mubr.f32.gmra.mxu0 %v254
    %v327 = vpop.f32.mrf.mxu0
    %v328 = vadd.f32 0.0, %v327
    %v329 = vpop.f32.mrf.mxu0
    %330 = vdwg.mxu0
    %v331 = vld [vmem:[#allocation13] sm:$0xff]
    %v332 = vld [vmem:[#allocation13 + $0x8] sm:$0xff]
    %v333 = vld [vmem:[#allocation13 + $0x10] sm:$0xff]
    %v334 = vld [vmem:[#allocation13 + $0x18] sm:$0xff]
    %v335 = vld [vmem:[#allocation13 + $0x20] sm:$0xff]
    %v336 = vld [vmem:[#allocation13 + $0x28] sm:$0xff]
    %v337 = vld [vmem:[#allocation13 + $0x30] sm:$0xff]
    %v338 = vld [vmem:[#allocation13 + $0x38] sm:$0xff]
    %v340 = vsel %vm160, %v146, 0
    %v343 = vsel %vm160, %v147, 0
    %345 = vmatprep.subr.mxu0 0.0
    %346 = vmatpush1.msra.mxu0 0.0
    %347 = vmatprep.subr.mxu0 0.0
    %348 = vmatpush1.msra.mxu0 0.0
    %349 = vmatprep.subr.mxu0 0.0
    %350 = vmatpush1.msra.mxu0 0.0
    %351 = vmatprep.subr.mxu0 0.0
    %352 = vmatpush1.msra.mxu0 0.0
    %353 = vmatprep.subr.mxu0 0.0
    %354 = vmatpush1.msra.mxu0 0.0
    %355 = vmatprep.subr.mxu0 0.0
    %356 = vmatpush1.msra.mxu0 0.0
    %357 = vmatprep.subr.mxu0 0.0
    %358 = vmatpush1.msra.mxu0 0.0
    %359 = vmatprep.subr.mxu0 0.0
    %360 = vmatpush1.msra.mxu0 0.0
    %361 = vmatprep.subr.mxu0 0.0
    %362 = vmatpush1.msra.mxu0 %v338
    %363 = vmatprep.subr.mxu0 0.0
    %364 = vmatpush1.msra.mxu0 %v337
    %365 = vmatprep.subr.mxu0 0.0
    %366 = vmatpush1.msra.mxu0 %v336
    %367 = vmatprep.subr.mxu0 0.0
    %368 = vmatpush1.msra.mxu0 %v335
    %369 = vmatprep.subr.mxu0 0.0
    %370 = vmatpush1.msra.mxu0 %v334
    %371 = vmatprep.subr.mxu0 0.0
    %372 = vmatpush1.msra.mxu0 %v333
    %373 = vmatprep.subr.mxu0 0.0
    %374 = vmatpush1.msra.mxu0 %v332
    %375 = vmatprep.subr.mxu0 0.0
    %376 = vmatpush1.msra.mxu0 %v331
    %377 = vmatprep.subr.mxu0 0.0
    %378 = vmatpush2.msra.mxu0 0.0
    %379 = vmatprep.subr.mxu0 0.0
    %380 = vmatpush2.msra.mxu0 0.0
    %381 = vmatprep.subr.mxu0 0.0
    %382 = vmatpush2.msra.mxu0 0.0
    %383 = vmatprep.subr.mxu0 0.0
    %384 = vmatpush2.msra.mxu0 0.0
    %385 = vmatprep.subr.mxu0 0.0
    %386 = vmatpush2.msra.mxu0 0.0
    %387 = vmatprep.subr.mxu0 0.0
    %388 = vmatpush2.msra.mxu0 0.0
    %389 = vmatprep.subr.mxu0 0.0
    %390 = vmatpush2.msra.mxu0 0.0
    %391 = vmatprep.subr.mxu0 0.0
    %392 = vmatpush2.msra.mxu0 0.0
    %393 = vmatprep.subr.mxu0 0.0
    %394 = vmatpush2.msra.mxu0 0.0
    %395 = vmatprep.subr.mxu0 0.0
    %396 = vmatpush2.msra.mxu0 0.0
    %397 = vmatprep.subr.mxu0 0.0
    %398 = vmatpush2.msra.mxu0 0.0
    %399 = vmatprep.subr.mxu0 0.0
    %400 = vmatpush2.msra.mxu0 0.0
    %401 = vmatprep.subr.mxu0 0.0
    %402 = vmatpush2.msra.mxu0 0.0
    %403 = vmatprep.subr.mxu0 0.0
    %404 = vmatpush2.msra.mxu0 0.0
    %405 = vmatprep.subr.mxu0 0.0
    %406 = vmatpush2.msra.mxu0 0.0
    %407 = vmatprep.subr.mxu0 0.0
    %408 = vmatpush2.msra.mxu0 0.0
    %409 = vmatprep.mubr.f32.mxu0 0.0
    %410 = vmatmul.mubr.f32.gmra.mxu0 %v340
    %v411 = vpop.f32.mrf.mxu0
    %v412 = vadd.f32 0.0, %v411
    %v413 = vpop.f32.mrf.mxu0
    %414 = vmatprep.mubr.f32.mxu0 0.0
    %415 = vmatmul.mubr.f32.gmra.mxu0 %v343
    %v416 = vpop.f32.mrf.mxu0
    %v417 = vadd.f32 0.0, %v416
    %v418 = vpop.f32.mrf.mxu0
    %419 = vdwg.mxu0
    %v421 = vsel %vm160, %v234, 0
    %v424 = vsel %vm160, %v323, 0
    %426 = vmatprep.subr.mxu0 0.0
    %427 = vmatpush1.xpose.msra.mxu0 0.0
    %428 = vmatprep.subr.mxu0 0.0
    %429 = vmatpush1.xpose.msra.mxu0 0.0
    %430 = vmatprep.subr.mxu0 0.0
    %431 = vmatpush1.xpose.msra.mxu0 0.0
    %432 = vmatprep.subr.mxu0 0.0
    %433 = vmatpush1.xpose.msra.mxu0 0.0
    %434 = vmatprep.subr.mxu0 0.0
    %435 = vmatpush1.xpose.msra.mxu0 0.0
    %436 = vmatprep.subr.mxu0 0.0
    %437 = vmatpush1.xpose.msra.mxu0 0.0
    %438 = vmatprep.subr.mxu0 0.0
    %439 = vmatpush1.xpose.msra.mxu0 0.0
    %440 = vmatprep.subr.mxu0 0.0
    %441 = vmatpush1.xpose.msra.mxu0 0.0
    %442 = vmatprep.subr.mxu0 0.0
    %443 = vmatpush1.xpose.msra.mxu0 0.0
    %444 = vmatprep.subr.mxu0 0.0
    %445 = vmatpush1.xpose.msra.mxu0 0.0
    %446 = vmatprep.subr.mxu0 0.0
    %447 = vmatpush1.xpose.msra.mxu0 0.0
    %448 = vmatprep.subr.mxu0 0.0
    %449 = vmatpush1.xpose.msra.mxu0 0.0
    %450 = vmatprep.subr.mxu0 0.0
    %451 = vmatpush1.xpose.msra.mxu0 0.0
    %452 = vmatprep.subr.mxu0 0.0
    %453 = vmatpush1.xpose.msra.mxu0 0.0
    %454 = vmatprep.subr.mxu0 0.0
    %455 = vmatpush1.xpose.msra.mxu0 0.0
    %456 = vmatprep.subr.mxu0 0.0
    %457 = vmatpush1.xpose.msra.mxu0 %v424
    %458 = vmatprep.subr.mxu0 0.0
    %459 = vmatpush2.xpose.msra.mxu0 0.0
    %460 = vmatprep.subr.mxu0 0.0
    %461 = vmatpush2.xpose.msra.mxu0 0.0
    %462 = vmatprep.subr.mxu0 0.0
    %463 = vmatpush2.xpose.msra.mxu0 0.0
    %464 = vmatprep.subr.mxu0 0.0
    %465 = vmatpush2.xpose.msra.mxu0 0.0
    %466 = vmatprep.subr.mxu0 0.0
    %467 = vmatpush2.xpose.msra.mxu0 0.0
    %468 = vmatprep.subr.mxu0 0.0
    %469 = vmatpush2.xpose.msra.mxu0 0.0
    %470 = vmatprep.subr.mxu0 0.0
    %471 = vmatpush2.xpose.msra.mxu0 0.0
    %472 = vmatprep.subr.mxu0 0.0
    %473 = vmatpush2.xpose.msra.mxu0 0.0
    %474 = vmatprep.subr.mxu0 0.0
    %475 = vmatpush2.xpose.msra.mxu0 0.0
    %476 = vmatprep.subr.mxu0 0.0
    %477 = vmatpush2.xpose.msra.mxu0 0.0
    %478 = vmatprep.subr.mxu0 0.0
    %479 = vmatpush2.xpose.msra.mxu0 0.0
    %480 = vmatprep.subr.mxu0 0.0
    %481 = vmatpush2.xpose.msra.mxu0 0.0
    %482 = vmatprep.subr.mxu0 0.0
    %483 = vmatpush2.xpose.msra.mxu0 0.0
    %484 = vmatprep.subr.mxu0 0.0
    %485 = vmatpush2.xpose.msra.mxu0 0.0
    %486 = vmatprep.subr.mxu0 0.0
    %487 = vmatpush2.xpose.msra.mxu0 0.0
    %488 = vmatprep.subr.mxu0 0.0
    %489 = vmatpush2.xpose.msra.mxu0 0.0
    %490 = vmatprep.mubr.f32.mxu0 0.0
    %491 = vmatmul.mubr.f32.gmra.mxu0 %v421
    %v492 = vpop.f32.mrf.mxu0
    %v493 = vadd.f32 0.0, %v492
    %v494 = vpop.f32.mrf.mxu0
    %495 = vdwg.mxu0
    %v497 = vsel %vm160, %v239, 0
    %v500 = vsel %vm160, %v328, 0
    %502 = vmatprep.subr.mxu0 0.0
    %503 = vmatpush1.xpose.msra.mxu0 0.0
    %504 = vmatprep.subr.mxu0 0.0
    %505 = vmatpush1.xpose.msra.mxu0 0.0
    %506 = vmatprep.subr.mxu0 0.0
    %507 = vmatpush1.xpose.msra.mxu0 0.0
    %508 = vmatprep.subr.mxu0 0.0
    %509 = vmatpush1.xpose.msra.mxu0 0.0
    %510 = vmatprep.subr.mxu0 0.0
    %511 = vmatpush1.xpose.msra.mxu0 0.0
    %512 = vmatprep.subr.mxu0 0.0
    %513 = vmatpush1.xpose.msra.mxu0 0.0
    %514 = vmatprep.subr.mxu0 0.0
    %515 = vmatpush1.xpose.msra.mxu0 0.0
    %516 = vmatprep.subr.mxu0 0.0
    %517 = vmatpush1.xpose.msra.mxu0 0.0
    %518 = vmatprep.subr.mxu0 0.0
    %519 = vmatpush1.xpose.msra.mxu0 0.0
    %520 = vmatprep.subr.mxu0 0.0
    %521 = vmatpush1.xpose.msra.mxu0 0.0
    %522 = vmatprep.subr.mxu0 0.0
    %523 = vmatpush1.xpose.msra.mxu0 0.0
    %524 = vmatprep.subr.mxu0 0.0
    %525 = vmatpush1.xpose.msra.mxu0 0.0
    %526 = vmatprep.subr.mxu0 0.0
    %527 = vmatpush1.xpose.msra.mxu0 0.0
    %528 = vmatprep.subr.mxu0 0.0
    %529 = vmatpush1.xpose.msra.mxu0 0.0
    %530 = vmatprep.subr.mxu0 0.0
    %531 = vmatpush1.xpose.msra.mxu0 0.0
    %532 = vmatprep.subr.mxu0 0.0
    %533 = vmatpush1.xpose.msra.mxu0 %v500
    %534 = vmatprep.subr.mxu0 0.0
    %535 = vmatpush2.xpose.msra.mxu0 0.0
    %536 = vmatprep.subr.mxu0 0.0
    %537 = vmatpush2.xpose.msra.mxu0 0.0
    %538 = vmatprep.subr.mxu0 0.0
    %539 = vmatpush2.xpose.msra.mxu0 0.0
    %540 = vmatprep.subr.mxu0 0.0
    %541 = vmatpush2.xpose.msra.mxu0 0.0
    %542 = vmatprep.subr.mxu0 0.0
    %543 = vmatpush2.xpose.msra.mxu0 0.0
    %544 = vmatprep.subr.mxu0 0.0
    %545 = vmatpush2.xpose.msra.mxu0 0.0
    %546 = vmatprep.subr.mxu0 0.0
    %547 = vmatpush2.xpose.msra.mxu0 0.0
    %548 = vmatprep.subr.mxu0 0.0
    %549 = vmatpush2.xpose.msra.mxu0 0.0
    %550 = vmatprep.subr.mxu0 0.0
    %551 = vmatpush2.xpose.msra.mxu0 0.0
    %552 = vmatprep.subr.mxu0 0.0
    %553 = vmatpush2.xpose.msra.mxu0 0.0
    %554 = vmatprep.subr.mxu0 0.0
    %555 = vmatpush2.xpose.msra.mxu0 0.0
    %556 = vmatprep.subr.mxu0 0.0
    %557 = vmatpush2.xpose.msra.mxu0 0.0
    %558 = vmatprep.subr.mxu0 0.0
    %559 = vmatpush2.xpose.msra.mxu0 0.0
    %560 = vmatprep.subr.mxu0 0.0
    %561 = vmatpush2.xpose.msra.mxu0 0.0
    %562 = vmatprep.subr.mxu0 0.0
    %563 = vmatpush2.xpose.msra.mxu0 0.0
    %564 = vmatprep.subr.mxu0 0.0
    %565 = vmatpush2.xpose.msra.mxu0 0.0
    %566 = vmatprep.mubr.f32.mxu0 0.0
    %567 = vmatmul.mubr.f32.gmra.mxu0 %v497
    %v568 = vpop.f32.mrf.mxu0
    %v569 = vadd.f32 0.0, %v568
    %v570 = vpop.f32.mrf.mxu0
    %571 = vdwg.mxu0
    %v572 = vmul.f32 %v493, 0.125
    %v573 = vmul.f32 %v569, 0.125
    %v574 = vsel %vm150, -1e+09, %v572
    %v575 = vsel %vm151, -1e+09, %v573
    %s576 = scalar_lea.vmem [#allocation10], 64
    %v577 = vld [vmem:[%s576] sm:$0xff]
    %v578 = vld [vmem:[%s576 + $0x8] sm:$0xff]
    %v579 = vld [vmem:[%s576 + $0x10] sm:$0xff]
    %v580 = vld [vmem:[%s576 + $0x18] sm:$0xff]
    %v581 = vld [vmem:[%s576 + $0x20] sm:$0xff]
    %v582 = vld [vmem:[%s576 + $0x28] sm:$0xff]
    %v583 = vld [vmem:[%s576 + $0x30] sm:$0xff]
    %v584 = vld [vmem:[%s576 + $0x38] sm:$0xff]
    %585 = vmatprep.subr.mxu0 0.0
    %586 = vmatpush1.msra.mxu0 0.0
    %587 = vmatprep.subr.mxu0 0.0
    %588 = vmatpush1.msra.mxu0 0.0
    %589 = vmatprep.subr.mxu0 0.0
    %590 = vmatpush1.msra.mxu0 0.0
    %591 = vmatprep.subr.mxu0 0.0
    %592 = vmatpush1.msra.mxu0 0.0
    %593 = vmatprep.subr.mxu0 0.0
    %594 = vmatpush1.msra.mxu0 0.0
    %595 = vmatprep.subr.mxu0 0.0
    %596 = vmatpush1.msra.mxu0 0.0
    %597 = vmatprep.subr.mxu0 0.0
    %598 = vmatpush1.msra.mxu0 0.0
    %599 = vmatprep.subr.mxu0 0.0
    %600 = vmatpush1.msra.mxu0 0.0
    %601 = vmatprep.subr.mxu0 0.0
    %602 = vmatpush1.msra.mxu0 %v584
    %603 = vmatprep.subr.mxu0 0.0
    %604 = vmatpush1.msra.mxu0 %v583
    %605 = vmatprep.subr.mxu0 0.0
    %606 = vmatpush1.msra.mxu0 %v582
    %607 = vmatprep.subr.mxu0 0.0
    %608 = vmatpush1.msra.mxu0 %v581
    %609 = vmatprep.subr.mxu0 0.0
    %610 = vmatpush1.msra.mxu0 %v580
    %611 = vmatprep.subr.mxu0 0.0
    %612 = vmatpush1.msra.mxu0 %v579
    %613 = vmatprep.subr.mxu0 0.0
    %614 = vmatpush1.msra.mxu0 %v578
    %615 = vmatprep.subr.mxu0 0.0
    %616 = vmatpush1.msra.mxu0 %v577
    %617 = vmatprep.subr.mxu0 0.0
    %618 = vmatpush2.msra.mxu0 0.0
    %619 = vmatprep.subr.mxu0 0.0
    %620 = vmatpush2.msra.mxu0 0.0
    %621 = vmatprep.subr.mxu0 0.0
    %622 = vmatpush2.msra.mxu0 0.0
    %623 = vmatprep.subr.mxu0 0.0
    %624 = vmatpush2.msra.mxu0 0.0
    %625 = vmatprep.subr.mxu0 0.0
    %626 = vmatpush2.msra.mxu0 0.0
    %627 = vmatprep.subr.mxu0 0.0
    %628 = vmatpush2.msra.mxu0 0.0
    %629 = vmatprep.subr.mxu0 0.0
    %630 = vmatpush2.msra.mxu0 0.0
    %631 = vmatprep.subr.mxu0 0.0
    %632 = vmatpush2.msra.mxu0 0.0
    %633 = vmatprep.subr.mxu0 0.0
    %634 = vmatpush2.msra.mxu0 0.0
    %635 = vmatprep.subr.mxu0 0.0
    %636 = vmatpush2.msra.mxu0 0.0
    %637 = vmatprep.subr.mxu0 0.0
    %638 = vmatpush2.msra.mxu0 0.0
    %639 = vmatprep.subr.mxu0 0.0
    %640 = vmatpush2.msra.mxu0 0.0
    %641 = vmatprep.subr.mxu0 0.0
    %642 = vmatpush2.msra.mxu0 0.0
    %643 = vmatprep.subr.mxu0 0.0
    %644 = vmatpush2.msra.mxu0 0.0
    %645 = vmatprep.subr.mxu0 0.0
    %646 = vmatpush2.msra.mxu0 0.0
    %647 = vmatprep.subr.mxu0 0.0
    %648 = vmatpush2.msra.mxu0 0.0
    %649 = vmatprep.mubr.f32.mxu0 0.0
    %650 = vmatmul.mubr.f32.gmra.mxu0 %v162
    %v651 = vpop.f32.mrf.mxu0
    %v652 = vadd.f32 0.0, %v651
    %v653 = vpop.f32.mrf.mxu0
    %654 = vmatprep.mubr.f32.mxu0 0.0
    %655 = vmatmul.mubr.f32.gmra.mxu0 %v165
    %v656 = vpop.f32.mrf.mxu0
    %v657 = vadd.f32 0.0, %v656
    %v658 = vpop.f32.mrf.mxu0
    %659 = vdwg.mxu0
    %s660 = scalar_lea.vmem [#allocation11], 64
    %v661 = vld [vmem:[%s660] sm:$0xff]
    %v662 = vld [vmem:[%s660 + $0x8] sm:$0xff]
    %v663 = vld [vmem:[%s660 + $0x10] sm:$0xff]
    %v664 = vld [vmem:[%s660 + $0x18] sm:$0xff]
    %v665 = vld [vmem:[%s660 + $0x20] sm:$0xff]
    %v666 = vld [vmem:[%s660 + $0x28] sm:$0xff]
    %v667 = vld [vmem:[%s660 + $0x30] sm:$0xff]
    %v668 = vld [vmem:[%s660 + $0x38] sm:$0xff]
    %669 = vmatprep.subr.mxu0 0.0
    %670 = vmatpush1.msra.mxu0 0.0
    %671 = vmatprep.subr.mxu0 0.0
    %672 = vmatpush1.msra.mxu0 0.0
    %673 = vmatprep.subr.mxu0 0.0
    %674 = vmatpush1.msra.mxu0 0.0
    %675 = vmatprep.subr.mxu0 0.0
    %676 = vmatpush1.msra.mxu0 0.0
    %677 = vmatprep.subr.mxu0 0.0
    %678 = vmatpush1.msra.mxu0 0.0
    %679 = vmatprep.subr.mxu0 0.0
    %680 = vmatpush1.msra.mxu0 0.0
    %681 = vmatprep.subr.mxu0 0.0
    %682 = vmatpush1.msra.mxu0 0.0
    %683 = vmatprep.subr.mxu0 0.0
    %684 = vmatpush1.msra.mxu0 0.0
    %685 = vmatprep.subr.mxu0 0.0
    %686 = vmatpush1.msra.mxu0 %v668
    %687 = vmatprep.subr.mxu0 0.0
    %688 = vmatpush1.msra.mxu0 %v667
    %689 = vmatprep.subr.mxu0 0.0
    %690 = vmatpush1.msra.mxu0 %v666
    %691 = vmatprep.subr.mxu0 0.0
    %692 = vmatpush1.msra.mxu0 %v665
    %693 = vmatprep.subr.mxu0 0.0
    %694 = vmatpush1.msra.mxu0 %v664
    %695 = vmatprep.subr.mxu0 0.0
    %696 = vmatpush1.msra.mxu0 %v663
    %697 = vmatprep.subr.mxu0 0.0
    %698 = vmatpush1.msra.mxu0 %v662
    %699 = vmatprep.subr.mxu0 0.0
    %700 = vmatpush1.msra.mxu0 %v661
    %701 = vmatprep.subr.mxu0 0.0
    %702 = vmatpush2.msra.mxu0 0.0
    %703 = vmatprep.subr.mxu0 0.0
    %704 = vmatpush2.msra.mxu0 0.0
    %705 = vmatprep.subr.mxu0 0.0
    %706 = vmatpush2.msra.mxu0 0.0
    %707 = vmatprep.subr.mxu0 0.0
    %708 = vmatpush2.msra.mxu0 0.0
    %709 = vmatprep.subr.mxu0 0.0
    %710 = vmatpush2.msra.mxu0 0.0
    %711 = vmatprep.subr.mxu0 0.0
    %712 = vmatpush2.msra.mxu0 0.0
    %713 = vmatprep.subr.mxu0 0.0
    %714 = vmatpush2.msra.mxu0 0.0
    %715 = vmatprep.subr.mxu0 0.0
    %716 = vmatpush2.msra.mxu0 0.0
    %717 = vmatprep.subr.mxu0 0.0
    %718 = vmatpush2.msra.mxu0 0.0
    %719 = vmatprep.subr.mxu0 0.0
    %720 = vmatpush2.msra.mxu0 0.0
    %721 = vmatprep.subr.mxu0 0.0
    %722 = vmatpush2.msra.mxu0 0.0
    %723 = vmatprep.subr.mxu0 0.0
    %724 = vmatpush2.msra.mxu0 0.0
    %725 = vmatprep.subr.mxu0 0.0
    %726 = vmatpush2.msra.mxu0 0.0
    %727 = vmatprep.subr.mxu0 0.0
    %728 = vmatpush2.msra.mxu0 0.0
    %729 = vmatprep.subr.mxu0 0.0
    %730 = vmatpush2.msra.mxu0 0.0
    %731 = vmatprep.subr.mxu0 0.0
    %732 = vmatpush2.msra.mxu0 0.0
    %733 = vmatprep.mubr.f32.mxu0 0.0
    %734 = vmatmul.mubr.f32.gmra.mxu0 %v251
    %v735 = vpop.f32.mrf.mxu0
    %v736 = vadd.f32 0.0, %v735
    %v737 = vpop.f32.mrf.mxu0
    %738 = vmatprep.mubr.f32.mxu0 0.0
    %739 = vmatmul.mubr.f32.gmra.mxu0 %v254
    %v740 = vpop.f32.mrf.mxu0
    %v741 = vadd.f32 0.0, %v740
    %v742 = vpop.f32.mrf.mxu0
    %743 = vdwg.mxu0
    %s744 = scalar_lea.vmem [#allocation13], 64
    %v745 = vld [vmem:[%s744] sm:$0xff]
    %v746 = vld [vmem:[%s744 + $0x8] sm:$0xff]
    %v747 = vld [vmem:[%s744 + $0x10] sm:$0xff]
    %v748 = vld [vmem:[%s744 + $0x18] sm:$0xff]
    %v749 = vld [vmem:[%s744 + $0x20] sm:$0xff]
    %v750 = vld [vmem:[%s744 + $0x28] sm:$0xff]
    %v751 = vld [vmem:[%s744 + $0x30] sm:$0xff]
    %v752 = vld [vmem:[%s744 + $0x38] sm:$0xff]
    %753 = vmatprep.subr.mxu0 0.0
    %754 = vmatpush1.msra.mxu0 0.0
    %755 = vmatprep.subr.mxu0 0.0
    %756 = vmatpush1.msra.mxu0 0.0
    %757 = vmatprep.subr.mxu0 0.0
    %758 = vmatpush1.msra.mxu0 0.0
    %759 = vmatprep.subr.mxu0 0.0
    %760 = vmatpush1.msra.mxu0 0.0
    %761 = vmatprep.subr.mxu0 0.0
    %762 = vmatpush1.msra.mxu0 0.0
    %763 = vmatprep.subr.mxu0 0.0
    %764 = vmatpush1.msra.mxu0 0.0
    %765 = vmatprep.subr.mxu0 0.0
    %766 = vmatpush1.msra.mxu0 0.0
    %767 = vmatprep.subr.mxu0 0.0
    %768 = vmatpush1.msra.mxu0 0.0
    %769 = vmatprep.subr.mxu0 0.0
    %770 = vmatpush1.msra.mxu0 %v752
    %771 = vmatprep.subr.mxu0 0.0
    %772 = vmatpush1.msra.mxu0 %v751
    %773 = vmatprep.subr.mxu0 0.0
    %774 = vmatpush1.msra.mxu0 %v750
    %775 = vmatprep.subr.mxu0 0.0
    %776 = vmatpush1.msra.mxu0 %v749
    %777 = vmatprep.subr.mxu0 0.0
    %778 = vmatpush1.msra.mxu0 %v748
    %779 = vmatprep.subr.mxu0 0.0
    %780 = vmatpush1.msra.mxu0 %v747
    %781 = vmatprep.subr.mxu0 0.0
    %782 = vmatpush1.msra.mxu0 %v746
    %783 = vmatprep.subr.mxu0 0.0
    %784 = vmatpush1.msra.mxu0 %v745
    %785 = vmatprep.subr.mxu0 0.0
    %786 = vmatpush2.msra.mxu0 0.0
    %787 = vmatprep.subr.mxu0 0.0
    %788 = vmatpush2.msra.mxu0 0.0
    %789 = vmatprep.subr.mxu0 0.0
    %790 = vmatpush2.msra.mxu0 0.0
    %791 = vmatprep.subr.mxu0 0.0
    %792 = vmatpush2.msra.mxu0 0.0
    %793 = vmatprep.subr.mxu0 0.0
    %794 = vmatpush2.msra.mxu0 0.0
    %795 = vmatprep.subr.mxu0 0.0
    %796 = vmatpush2.msra.mxu0 0.0
    %797 = vmatprep.subr.mxu0 0.0
    %798 = vmatpush2.msra.mxu0 0.0
    %799 = vmatprep.subr.mxu0 0.0
    %800 = vmatpush2.msra.mxu0 0.0
    %801 = vmatprep.subr.mxu0 0.0
    %802 = vmatpush2.msra.mxu0 0.0
    %803 = vmatprep.subr.mxu0 0.0
    %804 = vmatpush2.msra.mxu0 0.0
    %805 = vmatprep.subr.mxu0 0.0
    %806 = vmatpush2.msra.mxu0 0.0
    %807 = vmatprep.subr.mxu0 0.0
    %808 = vmatpush2.msra.mxu0 0.0
    %809 = vmatprep.subr.mxu0 0.0
    %810 = vmatpush2.msra.mxu0 0.0
    %811 = vmatprep.subr.mxu0 0.0
    %812 = vmatpush2.msra.mxu0 0.0
    %813 = vmatprep.subr.mxu0 0.0
    %814 = vmatpush2.msra.mxu0 0.0
    %815 = vmatprep.subr.mxu0 0.0
    %816 = vmatpush2.msra.mxu0 0.0
    %817 = vmatprep.mubr.f32.mxu0 0.0
    %818 = vmatmul.mubr.f32.gmra.mxu0 %v340
    %v819 = vpop.f32.mrf.mxu0
    %v820 = vadd.f32 0.0, %v819
    %v821 = vpop.f32.mrf.mxu0
    %822 = vmatprep.mubr.f32.mxu0 0.0
    %823 = vmatmul.mubr.f32.gmra.mxu0 %v343
    %v824 = vpop.f32.mrf.mxu0
    %v825 = vadd.f32 0.0, %v824
    %v826 = vpop.f32.mrf.mxu0
    %827 = vdwg.mxu0
    %v829 = vsel %vm160, %v652, 0
    %v832 = vsel %vm160, %v736, 0
    %834 = vmatprep.subr.mxu0 0.0
    %835 = vmatpush1.xpose.msra.mxu0 0.0
    %836 = vmatprep.subr.mxu0 0.0
    %837 = vmatpush1.xpose.msra.mxu0 0.0
    %838 = vmatprep.subr.mxu0 0.0
    %839 = vmatpush1.xpose.msra.mxu0 0.0
    %840 = vmatprep.subr.mxu0 0.0
    %841 = vmatpush1.xpose.msra.mxu0 0.0
    %842 = vmatprep.subr.mxu0 0.0
    %843 = vmatpush1.xpose.msra.mxu0 0.0
    %844 = vmatprep.subr.mxu0 0.0
    %845 = vmatpush1.xpose.msra.mxu0 0.0
    %846 = vmatprep.subr.mxu0 0.0
    %847 = vmatpush1.xpose.msra.mxu0 0.0
    %848 = vmatprep.subr.mxu0 0.0
    %849 = vmatpush1.xpose.msra.mxu0 0.0
    %850 = vmatprep.subr.mxu0 0.0
    %851 = vmatpush1.xpose.msra.mxu0 0.0
    %852 = vmatprep.subr.mxu0 0.0
    %853 = vmatpush1.xpose.msra.mxu0 0.0
    %854 = vmatprep.subr.mxu0 0.0
    %855 = vmatpush1.xpose.msra.mxu0 0.0
    %856 = vmatprep.subr.mxu0 0.0
    %857 = vmatpush1.xpose.msra.mxu0 0.0
    %858 = vmatprep.subr.mxu0 0.0
    %859 = vmatpush1.xpose.msra.mxu0 0.0
    %860 = vmatprep.subr.mxu0 0.0
    %861 = vmatpush1.xpose.msra.mxu0 0.0
    %862 = vmatprep.subr.mxu0 0.0
    %863 = vmatpush1.xpose.msra.mxu0 0.0
    %864 = vmatprep.subr.mxu0 0.0
    %865 = vmatpush1.xpose.msra.mxu0 %v832
    %866 = vmatprep.subr.mxu0 0.0
    %867 = vmatpush2.xpose.msra.mxu0 0.0
    %868 = vmatprep.subr.mxu0 0.0
    %869 = vmatpush2.xpose.msra.mxu0 0.0
    %870 = vmatprep.subr.mxu0 0.0
    %871 = vmatpush2.xpose.msra.mxu0 0.0
    %872 = vmatprep.subr.mxu0 0.0
    %873 = vmatpush2.xpose.msra.mxu0 0.0
    %874 = vmatprep.subr.mxu0 0.0
    %875 = vmatpush2.xpose.msra.mxu0 0.0
    %876 = vmatprep.subr.mxu0 0.0
    %877 = vmatpush2.xpose.msra.mxu0 0.0
    %878 = vmatprep.subr.mxu0 0.0
    %879 = vmatpush2.xpose.msra.mxu0 0.0
    %880 = vmatprep.subr.mxu0 0.0
    %881 = vmatpush2.xpose.msra.mxu0 0.0
    %882 = vmatprep.subr.mxu0 0.0
    %883 = vmatpush2.xpose.msra.mxu0 0.0
    %884 = vmatprep.subr.mxu0 0.0
    %885 = vmatpush2.xpose.msra.mxu0 0.0
    %886 = vmatprep.subr.mxu0 0.0
    %887 = vmatpush2.xpose.msra.mxu0 0.0
    %888 = vmatprep.subr.mxu0 0.0
    %889 = vmatpush2.xpose.msra.mxu0 0.0
    %890 = vmatprep.subr.mxu0 0.0
    %891 = vmatpush2.xpose.msra.mxu0 0.0
    %892 = vmatprep.subr.mxu0 0.0
    %893 = vmatpush2.xpose.msra.mxu0 0.0
    %894 = vmatprep.subr.mxu0 0.0
    %895 = vmatpush2.xpose.msra.mxu0 0.0
    %896 = vmatprep.subr.mxu0 0.0
    %897 = vmatpush2.xpose.msra.mxu0 0.0
    %898 = vmatprep.mubr.f32.mxu0 0.0
    %899 = vmatmul.mubr.f32.gmra.mxu0 %v829
    %v900 = vpop.f32.mrf.mxu0
    %v901 = vadd.f32 0.0, %v900
    %v902 = vpop.f32.mrf.mxu0
    %903 = vdwg.mxu0
    %v905 = vsel %vm160, %v657, 0
    %v908 = vsel %vm160, %v741, 0
    %910 = vmatprep.subr.mxu0 0.0
    %911 = vmatpush1.xpose.msra.mxu0 0.0
    %912 = vmatprep.subr.mxu0 0.0
    %913 = vmatpush1.xpose.msra.mxu0 0.0
    %914 = vmatprep.subr.mxu0 0.0
    %915 = vmatpush1.xpose.msra.mxu0 0.0
    %916 = vmatprep.subr.mxu0 0.0
    %917 = vmatpush1.xpose.msra.mxu0 0.0
    %918 = vmatprep.subr.mxu0 0.0
    %919 = vmatpush1.xpose.msra.mxu0 0.0
    %920 = vmatprep.subr.mxu0 0.0
    %921 = vmatpush1.xpose.msra.mxu0 0.0
    %922 = vmatprep.subr.mxu0 0.0
    %923 = vmatpush1.xpose.msra.mxu0 0.0
    %924 = vmatprep.subr.mxu0 0.0
    %925 = vmatpush1.xpose.msra.mxu0 0.0
    %926 = vmatprep.subr.mxu0 0.0
    %927 = vmatpush1.xpose.msra.mxu0 0.0
    %928 = vmatprep.subr.mxu0 0.0
    %929 = vmatpush1.xpose.msra.mxu0 0.0
    %930 = vmatprep.subr.mxu0 0.0
    %931 = vmatpush1.xpose.msra.mxu0 0.0
    %932 = vmatprep.subr.mxu0 0.0
    %933 = vmatpush1.xpose.msra.mxu0 0.0
    %934 = vmatprep.subr.mxu0 0.0
    %935 = vmatpush1.xpose.msra.mxu0 0.0
    %936 = vmatprep.subr.mxu0 0.0
    %937 = vmatpush1.xpose.msra.mxu0 0.0
    %938 = vmatprep.subr.mxu0 0.0
    %939 = vmatpush1.xpose.msra.mxu0 0.0
    %940 = vmatprep.subr.mxu0 0.0
    %941 = vmatpush1.xpose.msra.mxu0 %v908
    %942 = vmatprep.subr.mxu0 0.0
    %943 = vmatpush2.xpose.msra.mxu0 0.0
    %944 = vmatprep.subr.mxu0 0.0
    %945 = vmatpush2.xpose.msra.mxu0 0.0
    %946 = vmatprep.subr.mxu0 0.0
    %947 = vmatpush2.xpose.msra.mxu0 0.0
    %948 = vmatprep.subr.mxu0 0.0
    %949 = vmatpush2.xpose.msra.mxu0 0.0
    %950 = vmatprep.subr.mxu0 0.0
    %951 = vmatpush2.xpose.msra.mxu0 0.0
    %952 = vmatprep.subr.mxu0 0.0
    %953 = vmatpush2.xpose.msra.mxu0 0.0
    %954 = vmatprep.subr.mxu0 0.0
    %955 = vmatpush2.xpose.msra.mxu0 0.0
    %956 = vmatprep.subr.mxu0 0.0
    %957 = vmatpush2.xpose.msra.mxu0 0.0
    %958 = vmatprep.subr.mxu0 0.0
    %959 = vmatpush2.xpose.msra.mxu0 0.0
    %960 = vmatprep.subr.mxu0 0.0
    %961 = vmatpush2.xpose.msra.mxu0 0.0
    %962 = vmatprep.subr.mxu0 0.0
    %963 = vmatpush2.xpose.msra.mxu0 0.0
    %964 = vmatprep.subr.mxu0 0.0
    %965 = vmatpush2.xpose.msra.mxu0 0.0
    %966 = vmatprep.subr.mxu0 0.0
    %967 = vmatpush2.xpose.msra.mxu0 0.0
    %968 = vmatprep.subr.mxu0 0.0
    %969 = vmatpush2.xpose.msra.mxu0 0.0
    %970 = vmatprep.subr.mxu0 0.0
    %971 = vmatpush2.xpose.msra.mxu0 0.0
    %972 = vmatprep.subr.mxu0 0.0
    %973 = vmatpush2.xpose.msra.mxu0 0.0
    %974 = vmatprep.mubr.f32.mxu0 0.0
    %975 = vmatmul.mubr.f32.gmra.mxu0 %v905
    %v976 = vpop.f32.mrf.mxu0
    %v977 = vadd.f32 0.0, %v976
    %v978 = vpop.f32.mrf.mxu0
    %979 = vdwg.mxu0
    %v980 = vmul.f32 %v901, 0.125
    %v981 = vmul.f32 %v977, 0.125
    %v982 = vsel %vm150, -1e+09, %v980
    %v983 = vsel %vm151, -1e+09, %v981
    %s984 = scalar_lea.vmem [#allocation10], 128
    %v985 = vld [vmem:[%s984] sm:$0xff]
    %v986 = vld [vmem:[%s984 + $0x8] sm:$0xff]
    %v987 = vld [vmem:[%s984 + $0x10] sm:$0xff]
    %v988 = vld [vmem:[%s984 + $0x18] sm:$0xff]
    %v989 = vld [vmem:[%s984 + $0x20] sm:$0xff]
    %v990 = vld [vmem:[%s984 + $0x28] sm:$0xff]
    %v991 = vld [vmem:[%s984 + $0x30] sm:$0xff]
    %v992 = vld [vmem:[%s984 + $0x38] sm:$0xff]
    %993 = vmatprep.subr.mxu0 0.0
    %994 = vmatpush1.msra.mxu0 0.0
    %995 = vmatprep.subr.mxu0 0.0
    %996 = vmatpush1.msra.mxu0 0.0
    %997 = vmatprep.subr.mxu0 0.0
    %998 = vmatpush1.msra.mxu0 0.0
    %999 = vmatprep.subr.mxu0 0.0
    %1000 = vmatpush1.msra.mxu0 0.0
    %1001 = vmatprep.subr.mxu0 0.0
    %1002 = vmatpush1.msra.mxu0 0.0
    %1003 = vmatprep.subr.mxu0 0.0
    %1004 = vmatpush1.msra.mxu0 0.0
    %1005 = vmatprep.subr.mxu0 0.0
    %1006 = vmatpush1.msra.mxu0 0.0
    %1007 = vmatprep.subr.mxu0 0.0
    %1008 = vmatpush1.msra.mxu0 0.0
    %1009 = vmatprep.subr.mxu0 0.0
    %1010 = vmatpush1.msra.mxu0 %v992
    %1011 = vmatprep.subr.mxu0 0.0
    %1012 = vmatpush1.msra.mxu0 %v991
    %1013 = vmatprep.subr.mxu0 0.0
    %1014 = vmatpush1.msra.mxu0 %v990
    %1015 = vmatprep.subr.mxu0 0.0
    %1016 = vmatpush1.msra.mxu0 %v989
    %1017 = vmatprep.subr.mxu0 0.0
    %1018 = vmatpush1.msra.mxu0 %v988
    %1019 = vmatprep.subr.mxu0 0.0
    %1020 = vmatpush1.msra.mxu0 %v987
    %1021 = vmatprep.subr.mxu0 0.0
    %1022 = vmatpush1.msra.mxu0 %v986
    %1023 = vmatprep.subr.mxu0 0.0
    %1024 = vmatpush1.msra.mxu0 %v985
    %1025 = vmatprep.subr.mxu0 0.0
    %1026 = vmatpush2.msra.mxu0 0.0
    %1027 = vmatprep.subr.mxu0 0.0
    %1028 = vmatpush2.msra.mxu0 0.0
    %1029 = vmatprep.subr.mxu0 0.0
    %1030 = vmatpush2.msra.mxu0 0.0
    %1031 = vmatprep.subr.mxu0 0.0
    %1032 = vmatpush2.msra.mxu0 0.0
    %1033 = vmatprep.subr.mxu0 0.0
    %1034 = vmatpush2.msra.mxu0 0.0
    %1035 = vmatprep.subr.mxu0 0.0
    %1036 = vmatpush2.msra.mxu0 0.0
    %1037 = vmatprep.subr.mxu0 0.0
    %1038 = vmatpush2.msra.mxu0 0.0
    %1039 = vmatprep.subr.mxu0 0.0
    %1040 = vmatpush2.msra.mxu0 0.0
    %1041 = vmatprep.subr.mxu0 0.0
    %1042 = vmatpush2.msra.mxu0 0.0
    %1043 = vmatprep.subr.mxu0 0.0
    %1044 = vmatpush2.msra.mxu0 0.0
    %1045 = vmatprep.subr.mxu0 0.0
    %1046 = vmatpush2.msra.mxu0 0.0
    %1047 = vmatprep.subr.mxu0 0.0
    %1048 = vmatpush2.msra.mxu0 0.0
    %1049 = vmatprep.subr.mxu0 0.0
    %1050 = vmatpush2.msra.mxu0 0.0
    %1051 = vmatprep.subr.mxu0 0.0
    %1052 = vmatpush2.msra.mxu0 0.0
    %1053 = vmatprep.subr.mxu0 0.0
    %1054 = vmatpush2.msra.mxu0 0.0
    %1055 = vmatprep.subr.mxu0 0.0
    %1056 = vmatpush2.msra.mxu0 0.0
    %1057 = vmatprep.mubr.f32.mxu0 0.0
    %1058 = vmatmul.mubr.f32.gmra.mxu0 %v162
    %v1059 = vpop.f32.mrf.mxu0
    %v1060 = vadd.f32 0.0, %v1059
    %v1061 = vpop.f32.mrf.mxu0
    %1062 = vmatprep.mubr.f32.mxu0 0.0
    %1063 = vmatmul.mubr.f32.gmra.mxu0 %v165
    %v1064 = vpop.f32.mrf.mxu0
    %v1065 = vadd.f32 0.0, %v1064
    %v1066 = vpop.f32.mrf.mxu0
    %1067 = vdwg.mxu0
    %s1068 = scalar_lea.vmem [#allocation11], 128
    %v1069 = vld [vmem:[%s1068] sm:$0xff]
    %v1070 = vld [vmem:[%s1068 + $0x8] sm:$0xff]
    %v1071 = vld [vmem:[%s1068 + $0x10] sm:$0xff]
    %v1072 = vld [vmem:[%s1068 + $0x18] sm:$0xff]
    %v1073 = vld [vmem:[%s1068 + $0x20] sm:$0xff]
    %v1074 = vld [vmem:[%s1068 + $0x28] sm:$0xff]
    %v1075 = vld [vmem:[%s1068 + $0x30] sm:$0xff]
    %v1076 = vld [vmem:[%s1068 + $0x38] sm:$0xff]
    %1077 = vmatprep.subr.mxu0 0.0
    %1078 = vmatpush1.msra.mxu0 0.0
    %1079 = vmatprep.subr.mxu0 0.0
    %1080 = vmatpush1.msra.mxu0 0.0
    %1081 = vmatprep.subr.mxu0 0.0
    %1082 = vmatpush1.msra.mxu0 0.0
    %1083 = vmatprep.subr.mxu0 0.0
    %1084 = vmatpush1.msra.mxu0 0.0
    %1085 = vmatprep.subr.mxu0 0.0
    %1086 = vmatpush1.msra.mxu0 0.0
    %1087 = vmatprep.subr.mxu0 0.0
    %1088 = vmatpush1.msra.mxu0 0.0
    %1089 = vmatprep.subr.mxu0 0.0
    %1090 = vmatpush1.msra.mxu0 0.0
    %1091 = vmatprep.subr.mxu0 0.0
    %1092 = vmatpush1.msra.mxu0 0.0
    %1093 = vmatprep.subr.mxu0 0.0
    %1094 = vmatpush1.msra.mxu0 %v1076
    %1095 = vmatprep.subr.mxu0 0.0
    %1096 = vmatpush1.msra.mxu0 %v1075
    %1097 = vmatprep.subr.mxu0 0.0
    %1098 = vmatpush1.msra.mxu0 %v1074
    %1099 = vmatprep.subr.mxu0 0.0
    %1100 = vmatpush1.msra.mxu0 %v1073
    %1101 = vmatprep.subr.mxu0 0.0
    %1102 = vmatpush1.msra.mxu0 %v1072
    %1103 = vmatprep.subr.mxu0 0.0
    %1104 = vmatpush1.msra.mxu0 %v1071
    %1105 = vmatprep.subr.mxu0 0.0
    %1106 = vmatpush1.msra.mxu0 %v1070
    %1107 = vmatprep.subr.mxu0 0.0
    %1108 = vmatpush1.msra.mxu0 %v1069
    %1109 = vmatprep.subr.mxu0 0.0
    %1110 = vmatpush2.msra.mxu0 0.0
    %1111 = vmatprep.subr.mxu0 0.0
    %1112 = vmatpush2.msra.mxu0 0.0
    %1113 = vmatprep.subr.mxu0 0.0
    %1114 = vmatpush2.msra.mxu0 0.0
    %1115 = vmatprep.subr.mxu0 0.0
    %1116 = vmatpush2.msra.mxu0 0.0
    %1117 = vmatprep.subr.mxu0 0.0
    %1118 = vmatpush2.msra.mxu0 0.0
    %1119 = vmatprep.subr.mxu0 0.0
    %1120 = vmatpush2.msra.mxu0 0.0
    %1121 = vmatprep.subr.mxu0 0.0
    %1122 = vmatpush2.msra.mxu0 0.0
    %1123 = vmatprep.subr.mxu0 0.0
    %1124 = vmatpush2.msra.mxu0 0.0
    %1125 = vmatprep.subr.mxu0 0.0
    %1126 = vmatpush2.msra.mxu0 0.0
    %1127 = vmatprep.subr.mxu0 0.0
    %1128 = vmatpush2.msra.mxu0 0.0
    %1129 = vmatprep.subr.mxu0 0.0
    %1130 = vmatpush2.msra.mxu0 0.0
    %1131 = vmatprep.subr.mxu0 0.0
    %1132 = vmatpush2.msra.mxu0 0.0
    %1133 = vmatprep.subr.mxu0 0.0
    %1134 = vmatpush2.msra.mxu0 0.0
    %1135 = vmatprep.subr.mxu0 0.0
    %1136 = vmatpush2.msra.mxu0 0.0
    %1137 = vmatprep.subr.mxu0 0.0
    %1138 = vmatpush2.msra.mxu0 0.0
    %1139 = vmatprep.subr.mxu0 0.0
    %1140 = vmatpush2.msra.mxu0 0.0
    %1141 = vmatprep.mubr.f32.mxu0 0.0
    %1142 = vmatmul.mubr.f32.gmra.mxu0 %v251
    %v1143 = vpop.f32.mrf.mxu0
    %v1144 = vadd.f32 0.0, %v1143
    %v1145 = vpop.f32.mrf.mxu0
    %1146 = vmatprep.mubr.f32.mxu0 0.0
    %1147 = vmatmul.mubr.f32.gmra.mxu0 %v254
    %v1148 = vpop.f32.mrf.mxu0
    %v1149 = vadd.f32 0.0, %v1148
    %v1150 = vpop.f32.mrf.mxu0
    %1151 = vdwg.mxu0
    %s1152 = scalar_lea.vmem [#allocation13], 128
    %v1153 = vld [vmem:[%s1152] sm:$0xff]
    %v1154 = vld [vmem:[%s1152 + $0x8] sm:$0xff]
    %v1155 = vld [vmem:[%s1152 + $0x10] sm:$0xff]
    %v1156 = vld [vmem:[%s1152 + $0x18] sm:$0xff]
    %v1157 = vld [vmem:[%s1152 + $0x20] sm:$0xff]
    %v1158 = vld [vmem:[%s1152 + $0x28] sm:$0xff]
    %v1159 = vld [vmem:[%s1152 + $0x30] sm:$0xff]
    %v1160 = vld [vmem:[%s1152 + $0x38] sm:$0xff]
    %1161 = vmatprep.subr.mxu0 0.0
    %1162 = vmatpush1.msra.mxu0 0.0
    %1163 = vmatprep.subr.mxu0 0.0
    %1164 = vmatpush1.msra.mxu0 0.0
    %1165 = vmatprep.subr.mxu0 0.0
    %1166 = vmatpush1.msra.mxu0 0.0
    %1167 = vmatprep.subr.mxu0 0.0
    %1168 = vmatpush1.msra.mxu0 0.0
    %1169 = vmatprep.subr.mxu0 0.0
    %1170 = vmatpush1.msra.mxu0 0.0
    %1171 = vmatprep.subr.mxu0 0.0
    %1172 = vmatpush1.msra.mxu0 0.0
    %1173 = vmatprep.subr.mxu0 0.0
    %1174 = vmatpush1.msra.mxu0 0.0
    %1175 = vmatprep.subr.mxu0 0.0
    %1176 = vmatpush1.msra.mxu0 0.0
    %1177 = vmatprep.subr.mxu0 0.0
    %1178 = vmatpush1.msra.mxu0 %v1160
    %1179 = vmatprep.subr.mxu0 0.0
    %1180 = vmatpush1.msra.mxu0 %v1159
    %1181 = vmatprep.subr.mxu0 0.0
    %1182 = vmatpush1.msra.mxu0 %v1158
    %1183 = vmatprep.subr.mxu0 0.0
    %1184 = vmatpush1.msra.mxu0 %v1157
    %1185 = vmatprep.subr.mxu0 0.0
    %1186 = vmatpush1.msra.mxu0 %v1156
    %1187 = vmatprep.subr.mxu0 0.0
    %1188 = vmatpush1.msra.mxu0 %v1155
    %1189 = vmatprep.subr.mxu0 0.0
    %1190 = vmatpush1.msra.mxu0 %v1154
    %1191 = vmatprep.subr.mxu0 0.0
    %1192 = vmatpush1.msra.mxu0 %v1153
    %1193 = vmatprep.subr.mxu0 0.0
    %1194 = vmatpush2.msra.mxu0 0.0
    %1195 = vmatprep.subr.mxu0 0.0
    %1196 = vmatpush2.msra.mxu0 0.0
    %1197 = vmatprep.subr.mxu0 0.0
    %1198 = vmatpush2.msra.mxu0 0.0
    %1199 = vmatprep.subr.mxu0 0.0
    %1200 = vmatpush2.msra.mxu0 0.0
    %1201 = vmatprep.subr.mxu0 0.0
    %1202 = vmatpush2.msra.mxu0 0.0
    %1203 = vmatprep.subr.mxu0 0.0
    %1204 = vmatpush2.msra.mxu0 0.0
    %1205 = vmatprep.subr.mxu0 0.0
    %1206 = vmatpush2.msra.mxu0 0.0
    %1207 = vmatprep.subr.mxu0 0.0
    %1208 = vmatpush2.msra.mxu0 0.0
    %1209 = vmatprep.subr.mxu0 0.0
    %1210 = vmatpush2.msra.mxu0 0.0
    %1211 = vmatprep.subr.mxu0 0.0
    %1212 = vmatpush2.msra.mxu0 0.0
    %1213 = vmatprep.subr.mxu0 0.0
    %1214 = vmatpush2.msra.mxu0 0.0
    %1215 = vmatprep.subr.mxu0 0.0
    %1216 = vmatpush2.msra.mxu0 0.0
    %1217 = vmatprep.subr.mxu0 0.0
    %1218 = vmatpush2.msra.mxu0 0.0
    %1219 = vmatprep.subr.mxu0 0.0
    %1220 = vmatpush2.msra.mxu0 0.0
    %1221 = vmatprep.subr.mxu0 0.0
    %1222 = vmatpush2.msra.mxu0 0.0
    %1223 = vmatprep.subr.mxu0 0.0
    %1224 = vmatpush2.msra.mxu0 0.0
    %1225 = vmatprep.mubr.f32.mxu0 0.0
    %1226 = vmatmul.mubr.f32.gmra.mxu0 %v340
    %v1227 = vpop.f32.mrf.mxu0
    %v1228 = vadd.f32 0.0, %v1227
    %v1229 = vpop.f32.mrf.mxu0
    %1230 = vmatprep.mubr.f32.mxu0 0.0
    %1231 = vmatmul.mubr.f32.gmra.mxu0 %v343
    %v1232 = vpop.f32.mrf.mxu0
    %v1233 = vadd.f32 0.0, %v1232
    %v1234 = vpop.f32.mrf.mxu0
    %1235 = vdwg.mxu0
    %v1237 = vsel %vm160, %v1060, 0
    %v1240 = vsel %vm160, %v1144, 0
    %1242 = vmatprep.subr.mxu0 0.0
    %1243 = vmatpush1.xpose.msra.mxu0 0.0
    %1244 = vmatprep.subr.mxu0 0.0
    %1245 = vmatpush1.xpose.msra.mxu0 0.0
    %1246 = vmatprep.subr.mxu0 0.0
    %1247 = vmatpush1.xpose.msra.mxu0 0.0
    %1248 = vmatprep.subr.mxu0 0.0
    %1249 = vmatpush1.xpose.msra.mxu0 0.0
    %1250 = vmatprep.subr.mxu0 0.0
    %1251 = vmatpush1.xpose.msra.mxu0 0.0
    %1252 = vmatprep.subr.mxu0 0.0
    %1253 = vmatpush1.xpose.msra.mxu0 0.0
    %1254 = vmatprep.subr.mxu0 0.0
    %1255 = vmatpush1.xpose.msra.mxu0 0.0
    %1256 = vmatprep.subr.mxu0 0.0
    %1257 = vmatpush1.xpose.msra.mxu0 0.0
    %1258 = vmatprep.subr.mxu0 0.0
    %1259 = vmatpush1.xpose.msra.mxu0 0.0
    %1260 = vmatprep.subr.mxu0 0.0
    %1261 = vmatpush1.xpose.msra.mxu0 0.0
    %1262 = vmatprep.subr.mxu0 0.0
    %1263 = vmatpush1.xpose.msra.mxu0 0.0
    %1264 = vmatprep.subr.mxu0 0.0
    %1265 = vmatpush1.xpose.msra.mxu0 0.0
    %1266 = vmatprep.subr.mxu0 0.0
    %1267 = vmatpush1.xpose.msra.mxu0 0.0
    %1268 = vmatprep.subr.mxu0 0.0
    %1269 = vmatpush1.xpose.msra.mxu0 0.0
    %1270 = vmatprep.subr.mxu0 0.0
    %1271 = vmatpush1.xpose.msra.mxu0 0.0
    %1272 = vmatprep.subr.mxu0 0.0
    %1273 = vmatpush1.xpose.msra.mxu0 %v1240
    %1274 = vmatprep.subr.mxu0 0.0
    %1275 = vmatpush2.xpose.msra.mxu0 0.0
    %1276 = vmatprep.subr.mxu0 0.0
    %1277 = vmatpush2.xpose.msra.mxu0 0.0
    %1278 = vmatprep.subr.mxu0 0.0
    %1279 = vmatpush2.xpose.msra.mxu0 0.0
    %1280 = vmatprep.subr.mxu0 0.0
    %1281 = vmatpush2.xpose.msra.mxu0 0.0
    %1282 = vmatprep.subr.mxu0 0.0
    %1283 = vmatpush2.xpose.msra.mxu0 0.0
    %1284 = vmatprep.subr.mxu0 0.0
    %1285 = vmatpush2.xpose.msra.mxu0 0.0
    %1286 = vmatprep.subr.mxu0 0.0
    %1287 = vmatpush2.xpose.msra.mxu0 0.0
    %1288 = vmatprep.subr.mxu0 0.0
    %1289 = vmatpush2.xpose.msra.mxu0 0.0
    %1290 = vmatprep.subr.mxu0 0.0
    %1291 = vmatpush2.xpose.msra.mxu0 0.0
    %1292 = vmatprep.subr.mxu0 0.0
    %1293 = vmatpush2.xpose.msra.mxu0 0.0
    %1294 = vmatprep.subr.mxu0 0.0
    %1295 = vmatpush2.xpose.msra.mxu0 0.0
    %1296 = vmatprep.subr.mxu0 0.0
    %1297 = vmatpush2.xpose.msra.mxu0 0.0
    %1298 = vmatprep.subr.mxu0 0.0
    %1299 = vmatpush2.xpose.msra.mxu0 0.0
    %1300 = vmatprep.subr.mxu0 0.0
    %1301 = vmatpush2.xpose.msra.mxu0 0.0
    %1302 = vmatprep.subr.mxu0 0.0
    %1303 = vmatpush2.xpose.msra.mxu0 0.0
    %1304 = vmatprep.subr.mxu0 0.0
    %1305 = vmatpush2.xpose.msra.mxu0 0.0
    %1306 = vmatprep.mubr.f32.mxu0 0.0
    %1307 = vmatmul.mubr.f32.gmra.mxu0 %v1237
    %v1308 = vpop.f32.mrf.mxu0
    %v1309 = vadd.f32 0.0, %v1308
    %v1310 = vpop.f32.mrf.mxu0
    %1311 = vdwg.mxu0
    %v1313 = vsel %vm160, %v1065, 0
    %v1316 = vsel %vm160, %v1149, 0
    %1318 = vmatprep.subr.mxu0 0.0
    %1319 = vmatpush1.xpose.msra.mxu0 0.0
    %1320 = vmatprep.subr.mxu0 0.0
    %1321 = vmatpush1.xpose.msra.mxu0 0.0
    %1322 = vmatprep.subr.mxu0 0.0
    %1323 = vmatpush1.xpose.msra.mxu0 0.0
    %1324 = vmatprep.subr.mxu0 0.0
    %1325 = vmatpush1.xpose.msra.mxu0 0.0
    %1326 = vmatprep.subr.mxu0 0.0
    %1327 = vmatpush1.xpose.msra.mxu0 0.0
    %1328 = vmatprep.subr.mxu0 0.0
    %1329 = vmatpush1.xpose.msra.mxu0 0.0
    %1330 = vmatprep.subr.mxu0 0.0
    %1331 = vmatpush1.xpose.msra.mxu0 0.0
    %1332 = vmatprep.subr.mxu0 0.0
    %1333 = vmatpush1.xpose.msra.mxu0 0.0
    %1334 = vmatprep.subr.mxu0 0.0
    %1335 = vmatpush1.xpose.msra.mxu0 0.0
    %1336 = vmatprep.subr.mxu0 0.0
    %1337 = vmatpush1.xpose.msra.mxu0 0.0
    %1338 = vmatprep.subr.mxu0 0.0
    %1339 = vmatpush1.xpose.msra.mxu0 0.0
    %1340 = vmatprep.subr.mxu0 0.0
    %1341 = vmatpush1.xpose.msra.mxu0 0.0
    %1342 = vmatprep.subr.mxu0 0.0
    %1343 = vmatpush1.xpose.msra.mxu0 0.0
    %1344 = vmatprep.subr.mxu0 0.0
    %1345 = vmatpush1.xpose.msra.mxu0 0.0
    %1346 = vmatprep.subr.mxu0 0.0
    %1347 = vmatpush1.xpose.msra.mxu0 0.0
    %1348 = vmatprep.subr.mxu0 0.0
    %1349 = vmatpush1.xpose.msra.mxu0 %v1316
    %1350 = vmatprep.subr.mxu0 0.0
    %1351 = vmatpush2.xpose.msra.mxu0 0.0
    %1352 = vmatprep.subr.mxu0 0.0
    %1353 = vmatpush2.xpose.msra.mxu0 0.0
    %1354 = vmatprep.subr.mxu0 0.0
    %1355 = vmatpush2.xpose.msra.mxu0 0.0
    %1356 = vmatprep.subr.mxu0 0.0
    %1357 = vmatpush2.xpose.msra.mxu0 0.0
    %1358 = vmatprep.subr.mxu0 0.0
    %1359 = vmatpush2.xpose.msra.mxu0 0.0
    %1360 = vmatprep.subr.mxu0 0.0
    %1361 = vmatpush2.xpose.msra.mxu0 0.0
    %1362 = vmatprep.subr.mxu0 0.0
    %1363 = vmatpush2.xpose.msra.mxu0 0.0
    %1364 = vmatprep.subr.mxu0 0.0
    %1365 = vmatpush2.xpose.msra.mxu0 0.0
    %1366 = vmatprep.subr.mxu0 0.0
    %1367 = vmatpush2.xpose.msra.mxu0 0.0
    %1368 = vmatprep.subr.mxu0 0.0
    %1369 = vmatpush2.xpose.msra.mxu0 0.0
    %1370 = vmatprep.subr.mxu0 0.0
    %1371 = vmatpush2.xpose.msra.mxu0 0.0
    %1372 = vmatprep.subr.mxu0 0.0
    %1373 = vmatpush2.xpose.msra.mxu0 0.0
    %1374 = vmatprep.subr.mxu0 0.0
    %1375 = vmatpush2.xpose.msra.mxu0 0.0
    %1376 = vmatprep.subr.mxu0 0.0
    %1377 = vmatpush2.xpose.msra.mxu0 0.0
    %1378 = vmatprep.subr.mxu0 0.0
    %1379 = vmatpush2.xpose.msra.mxu0 0.0
    %1380 = vmatprep.subr.mxu0 0.0
    %1381 = vmatpush2.xpose.msra.mxu0 0.0
    %1382 = vmatprep.mubr.f32.mxu0 0.0
    %1383 = vmatmul.mubr.f32.gmra.mxu0 %v1313
    %v1384 = vpop.f32.mrf.mxu0
    %v1385 = vadd.f32 0.0, %v1384
    %v1386 = vpop.f32.mrf.mxu0
    %1387 = vdwg.mxu0
    %v1388 = vmul.f32 %v1309, 0.125
    %v1389 = vmul.f32 %v1385, 0.125
    %v1390 = vsel %vm150, -1e+09, %v1388
    %v1391 = vsel %vm151, -1e+09, %v1389
    %s1392 = scalar_lea.vmem [#allocation10], 192
    %v1393 = vld [vmem:[%s1392] sm:$0xff]
    %v1394 = vld [vmem:[%s1392 + $0x8] sm:$0xff]
    %v1395 = vld [vmem:[%s1392 + $0x10] sm:$0xff]
    %v1396 = vld [vmem:[%s1392 + $0x18] sm:$0xff]
    %v1397 = vld [vmem:[%s1392 + $0x20] sm:$0xff]
    %v1398 = vld [vmem:[%s1392 + $0x28] sm:$0xff]
    %v1399 = vld [vmem:[%s1392 + $0x30] sm:$0xff]
    %v1400 = vld [vmem:[%s1392 + $0x38] sm:$0xff]
    %1401 = vmatprep.subr.mxu0 0.0
    %1402 = vmatpush1.msra.mxu0 0.0
    %1403 = vmatprep.subr.mxu0 0.0
    %1404 = vmatpush1.msra.mxu0 0.0
    %1405 = vmatprep.subr.mxu0 0.0
    %1406 = vmatpush1.msra.mxu0 0.0
    %1407 = vmatprep.subr.mxu0 0.0
    %1408 = vmatpush1.msra.mxu0 0.0
    %1409 = vmatprep.subr.mxu0 0.0
    %1410 = vmatpush1.msra.mxu0 0.0
    %1411 = vmatprep.subr.mxu0 0.0
    %1412 = vmatpush1.msra.mxu0 0.0
    %1413 = vmatprep.subr.mxu0 0.0
    %1414 = vmatpush1.msra.mxu0 0.0
    %1415 = vmatprep.subr.mxu0 0.0
    %1416 = vmatpush1.msra.mxu0 0.0
    %1417 = vmatprep.subr.mxu0 0.0
    %1418 = vmatpush1.msra.mxu0 %v1400
    %1419 = vmatprep.subr.mxu0 0.0
    %1420 = vmatpush1.msra.mxu0 %v1399
    %1421 = vmatprep.subr.mxu0 0.0
    %1422 = vmatpush1.msra.mxu0 %v1398
    %1423 = vmatprep.subr.mxu0 0.0
    %1424 = vmatpush1.msra.mxu0 %v1397
    %1425 = vmatprep.subr.mxu0 0.0
    %1426 = vmatpush1.msra.mxu0 %v1396
    %1427 = vmatprep.subr.mxu0 0.0
    %1428 = vmatpush1.msra.mxu0 %v1395
    %1429 = vmatprep.subr.mxu0 0.0
    %1430 = vmatpush1.msra.mxu0 %v1394
    %1431 = vmatprep.subr.mxu0 0.0
    %1432 = vmatpush1.msra.mxu0 %v1393
    %1433 = vmatprep.subr.mxu0 0.0
    %1434 = vmatpush2.msra.mxu0 0.0
    %1435 = vmatprep.subr.mxu0 0.0
    %1436 = vmatpush2.msra.mxu0 0.0
    %1437 = vmatprep.subr.mxu0 0.0
    %1438 = vmatpush2.msra.mxu0 0.0
    %1439 = vmatprep.subr.mxu0 0.0
    %1440 = vmatpush2.msra.mxu0 0.0
    %1441 = vmatprep.subr.mxu0 0.0
    %1442 = vmatpush2.msra.mxu0 0.0
    %1443 = vmatprep.subr.mxu0 0.0
    %1444 = vmatpush2.msra.mxu0 0.0
    %1445 = vmatprep.subr.mxu0 0.0
    %1446 = vmatpush2.msra.mxu0 0.0
    %1447 = vmatprep.subr.mxu0 0.0
    %1448 = vmatpush2.msra.mxu0 0.0
    %1449 = vmatprep.subr.mxu0 0.0
    %1450 = vmatpush2.msra.mxu0 0.0
    %1451 = vmatprep.subr.mxu0 0.0
    %1452 = vmatpush2.msra.mxu0 0.0
    %1453 = vmatprep.subr.mxu0 0.0
    %1454 = vmatpush2.msra.mxu0 0.0
    %1455 = vmatprep.subr.mxu0 0.0
    %1456 = vmatpush2.msra.mxu0 0.0
    %1457 = vmatprep.subr.mxu0 0.0
    %1458 = vmatpush2.msra.mxu0 0.0
    %1459 = vmatprep.subr.mxu0 0.0
    %1460 = vmatpush2.msra.mxu0 0.0
    %1461 = vmatprep.subr.mxu0 0.0
    %1462 = vmatpush2.msra.mxu0 0.0
    %1463 = vmatprep.subr.mxu0 0.0
    %1464 = vmatpush2.msra.mxu0 0.0
    %1465 = vmatprep.mubr.f32.mxu0 0.0
    %1466 = vmatmul.mubr.f32.gmra.mxu0 %v162
    %v1467 = vpop.f32.mrf.mxu0
    %v1468 = vadd.f32 0.0, %v1467
    %v1469 = vpop.f32.mrf.mxu0
    %1470 = vmatprep.mubr.f32.mxu0 0.0
    %1471 = vmatmul.mubr.f32.gmra.mxu0 %v165
    %v1472 = vpop.f32.mrf.mxu0
    %v1473 = vadd.f32 0.0, %v1472
    %v1474 = vpop.f32.mrf.mxu0
    %1475 = vdwg.mxu0
    %s1476 = scalar_lea.vmem [#allocation11], 192
    %v1477 = vld [vmem:[%s1476] sm:$0xff]
    %v1478 = vld [vmem:[%s1476 + $0x8] sm:$0xff]
    %v1479 = vld [vmem:[%s1476 + $0x10] sm:$0xff]
    %v1480 = vld [vmem:[%s1476 + $0x18] sm:$0xff]
    %v1481 = vld [vmem:[%s1476 + $0x20] sm:$0xff]
    %v1482 = vld [vmem:[%s1476 + $0x28] sm:$0xff]
    %v1483 = vld [vmem:[%s1476 + $0x30] sm:$0xff]
    %v1484 = vld [vmem:[%s1476 + $0x38] sm:$0xff]
    %1485 = vmatprep.subr.mxu0 0.0
    %1486 = vmatpush1.msra.mxu0 0.0
    %1487 = vmatprep.subr.mxu0 0.0
    %1488 = vmatpush1.msra.mxu0 0.0
    %1489 = vmatprep.subr.mxu0 0.0
    %1490 = vmatpush1.msra.mxu0 0.0
    %1491 = vmatprep.subr.mxu0 0.0
    %1492 = vmatpush1.msra.mxu0 0.0
    %1493 = vmatprep.subr.mxu0 0.0
    %1494 = vmatpush1.msra.mxu0 0.0
    %1495 = vmatprep.subr.mxu0 0.0
    %1496 = vmatpush1.msra.mxu0 0.0
    %1497 = vmatprep.subr.mxu0 0.0
    %1498 = vmatpush1.msra.mxu0 0.0
    %1499 = vmatprep.subr.mxu0 0.0
    %1500 = vmatpush1.msra.mxu0 0.0
    %1501 = vmatprep.subr.mxu0 0.0
    %1502 = vmatpush1.msra.mxu0 %v1484
    %1503 = vmatprep.subr.mxu0 0.0
    %1504 = vmatpush1.msra.mxu0 %v1483
    %1505 = vmatprep.subr.mxu0 0.0
    %1506 = vmatpush1.msra.mxu0 %v1482
    %1507 = vmatprep.subr.mxu0 0.0
    %1508 = vmatpush1.msra.mxu0 %v1481
    %1509 = vmatprep.subr.mxu0 0.0
    %1510 = vmatpush1.msra.mxu0 %v1480
    %1511 = vmatprep.subr.mxu0 0.0
    %1512 = vmatpush1.msra.mxu0 %v1479
    %1513 = vmatprep.subr.mxu0 0.0
    %1514 = vmatpush1.msra.mxu0 %v1478
    %1515 = vmatprep.subr.mxu0 0.0
    %1516 = vmatpush1.msra.mxu0 %v1477
    %1517 = vmatprep.subr.mxu0 0.0
    %1518 = vmatpush2.msra.mxu0 0.0
    %1519 = vmatprep.subr.mxu0 0.0
    %1520 = vmatpush2.msra.mxu0 0.0
    %1521 = vmatprep.subr.mxu0 0.0
    %1522 = vmatpush2.msra.mxu0 0.0
    %1523 = vmatprep.subr.mxu0 0.0
    %1524 = vmatpush2.msra.mxu0 0.0
    %1525 = vmatprep.subr.mxu0 0.0
    %1526 = vmatpush2.msra.mxu0 0.0
    %1527 = vmatprep.subr.mxu0 0.0
    %1528 = vmatpush2.msra.mxu0 0.0
    %1529 = vmatprep.subr.mxu0 0.0
    %1530 = vmatpush2.msra.mxu0 0.0
    %1531 = vmatprep.subr.mxu0 0.0
    %1532 = vmatpush2.msra.mxu0 0.0
    %1533 = vmatprep.subr.mxu0 0.0
    %1534 = vmatpush2.msra.mxu0 0.0
    %1535 = vmatprep.subr.mxu0 0.0
    %1536 = vmatpush2.msra.mxu0 0.0
    %1537 = vmatprep.subr.mxu0 0.0
    %1538 = vmatpush2.msra.mxu0 0.0
    %1539 = vmatprep.subr.mxu0 0.0
    %1540 = vmatpush2.msra.mxu0 0.0
    %1541 = vmatprep.subr.mxu0 0.0
    %1542 = vmatpush2.msra.mxu0 0.0
    %1543 = vmatprep.subr.mxu0 0.0
    %1544 = vmatpush2.msra.mxu0 0.0
    %1545 = vmatprep.subr.mxu0 0.0
    %1546 = vmatpush2.msra.mxu0 0.0
    %1547 = vmatprep.subr.mxu0 0.0
    %1548 = vmatpush2.msra.mxu0 0.0
    %1549 = vmatprep.mubr.f32.mxu0 0.0
    %1550 = vmatmul.mubr.f32.gmra.mxu0 %v251
    %v1551 = vpop.f32.mrf.mxu0
    %v1552 = vadd.f32 0.0, %v1551
    %v1553 = vpop.f32.mrf.mxu0
    %1554 = vmatprep.mubr.f32.mxu0 0.0
    %1555 = vmatmul.mubr.f32.gmra.mxu0 %v254
    %v1556 = vpop.f32.mrf.mxu0
    %v1557 = vadd.f32 0.0, %v1556
    %v1558 = vpop.f32.mrf.mxu0
    %1559 = vdwg.mxu0
    %s1560 = scalar_lea.vmem [#allocation13], 192
    %v1561 = vld [vmem:[%s1560] sm:$0xff]
    %v1562 = vld [vmem:[%s1560 + $0x8] sm:$0xff]
    %v1563 = vld [vmem:[%s1560 + $0x10] sm:$0xff]
    %v1564 = vld [vmem:[%s1560 + $0x18] sm:$0xff]
    %v1565 = vld [vmem:[%s1560 + $0x20] sm:$0xff]
    %v1566 = vld [vmem:[%s1560 + $0x28] sm:$0xff]
    %v1567 = vld [vmem:[%s1560 + $0x30] sm:$0xff]
    %v1568 = vld [vmem:[%s1560 + $0x38] sm:$0xff]
    %1569 = vmatprep.subr.mxu0 0.0
    %1570 = vmatpush1.msra.mxu0 0.0
    %1571 = vmatprep.subr.mxu0 0.0
    %1572 = vmatpush1.msra.mxu0 0.0
    %1573 = vmatprep.subr.mxu0 0.0
    %1574 = vmatpush1.msra.mxu0 0.0
    %1575 = vmatprep.subr.mxu0 0.0
    %1576 = vmatpush1.msra.mxu0 0.0
    %1577 = vmatprep.subr.mxu0 0.0
    %1578 = vmatpush1.msra.mxu0 0.0
    %1579 = vmatprep.subr.mxu0 0.0
    %1580 = vmatpush1.msra.mxu0 0.0
    %1581 = vmatprep.subr.mxu0 0.0
    %1582 = vmatpush1.msra.mxu0 0.0
    %1583 = vmatprep.subr.mxu0 0.0
    %1584 = vmatpush1.msra.mxu0 0.0
    %1585 = vmatprep.subr.mxu0 0.0
    %1586 = vmatpush1.msra.mxu0 %v1568
    %1587 = vmatprep.subr.mxu0 0.0
    %1588 = vmatpush1.msra.mxu0 %v1567
    %1589 = vmatprep.subr.mxu0 0.0
    %1590 = vmatpush1.msra.mxu0 %v1566
    %1591 = vmatprep.subr.mxu0 0.0
    %1592 = vmatpush1.msra.mxu0 %v1565
    %1593 = vmatprep.subr.mxu0 0.0
    %1594 = vmatpush1.msra.mxu0 %v1564
    %1595 = vmatprep.subr.mxu0 0.0
    %1596 = vmatpush1.msra.mxu0 %v1563
    %1597 = vmatprep.subr.mxu0 0.0
    %1598 = vmatpush1.msra.mxu0 %v1562
    %1599 = vmatprep.subr.mxu0 0.0
    %1600 = vmatpush1.msra.mxu0 %v1561
    %1601 = vmatprep.subr.mxu0 0.0
    %1602 = vmatpush2.msra.mxu0 0.0
    %1603 = vmatprep.subr.mxu0 0.0
    %1604 = vmatpush2.msra.mxu0 0.0
    %1605 = vmatprep.subr.mxu0 0.0
    %1606 = vmatpush2.msra.mxu0 0.0
    %1607 = vmatprep.subr.mxu0 0.0
    %1608 = vmatpush2.msra.mxu0 0.0
    %1609 = vmatprep.subr.mxu0 0.0
    %1610 = vmatpush2.msra.mxu0 0.0
    %1611 = vmatprep.subr.mxu0 0.0
    %1612 = vmatpush2.msra.mxu0 0.0
    %1613 = vmatprep.subr.mxu0 0.0
    %1614 = vmatpush2.msra.mxu0 0.0
    %1615 = vmatprep.subr.mxu0 0.0
    %1616 = vmatpush2.msra.mxu0 0.0
    %1617 = vmatprep.subr.mxu0 0.0
    %1618 = vmatpush2.msra.mxu0 0.0
    %1619 = vmatprep.subr.mxu0 0.0
    %1620 = vmatpush2.msra.mxu0 0.0
    %1621 = vmatprep.subr.mxu0 0.0
    %1622 = vmatpush2.msra.mxu0 0.0
    %1623 = vmatprep.subr.mxu0 0.0
    %1624 = vmatpush2.msra.mxu0 0.0
    %1625 = vmatprep.subr.mxu0 0.0
    %1626 = vmatpush2.msra.mxu0 0.0
    %1627 = vmatprep.subr.mxu0 0.0
    %1628 = vmatpush2.msra.mxu0 0.0
    %1629 = vmatprep.subr.mxu0 0.0
    %1630 = vmatpush2.msra.mxu0 0.0
    %1631 = vmatprep.subr.mxu0 0.0
    %1632 = vmatpush2.msra.mxu0 0.0
    %1633 = vmatprep.mubr.f32.mxu0 0.0
    %1634 = vmatmul.mubr.f32.gmra.mxu0 %v340
    %v1635 = vpop.f32.mrf.mxu0
    %v1636 = vadd.f32 0.0, %v1635
    %v1637 = vpop.f32.mrf.mxu0
    %1638 = vmatprep.mubr.f32.mxu0 0.0
    %1639 = vmatmul.mubr.f32.gmra.mxu0 %v343
    %v1640 = vpop.f32.mrf.mxu0
    %v1641 = vadd.f32 0.0, %v1640
    %v1642 = vpop.f32.mrf.mxu0
    %1643 = vdwg.mxu0
    %v1645 = vsel %vm160, %v1468, 0
    %v1648 = vsel %vm160, %v1552, 0
    %1650 = vmatprep.subr.mxu0 0.0
    %1651 = vmatpush1.xpose.msra.mxu0 0.0
    %1652 = vmatprep.subr.mxu0 0.0
    %1653 = vmatpush1.xpose.msra.mxu0 0.0
    %1654 = vmatprep.subr.mxu0 0.0
    %1655 = vmatpush1.xpose.msra.mxu0 0.0
    %1656 = vmatprep.subr.mxu0 0.0
    %1657 = vmatpush1.xpose.msra.mxu0 0.0
    %1658 = vmatprep.subr.mxu0 0.0
    %1659 = vmatpush1.xpose.msra.mxu0 0.0
    %1660 = vmatprep.subr.mxu0 0.0
    %1661 = vmatpush1.xpose.msra.mxu0 0.0
    %1662 = vmatprep.subr.mxu0 0.0
    %1663 = vmatpush1.xpose.msra.mxu0 0.0
    %1664 = vmatprep.subr.mxu0 0.0
    %1665 = vmatpush1.xpose.msra.mxu0 0.0
    %1666 = vmatprep.subr.mxu0 0.0
    %1667 = vmatpush1.xpose.msra.mxu0 0.0
    %1668 = vmatprep.subr.mxu0 0.0
    %1669 = vmatpush1.xpose.msra.mxu0 0.0
    %1670 = vmatprep.subr.mxu0 0.0
    %1671 = vmatpush1.xpose.msra.mxu0 0.0
    %1672 = vmatprep.subr.mxu0 0.0
    %1673 = vmatpush1.xpose.msra.mxu0 0.0
    %1674 = vmatprep.subr.mxu0 0.0
    %1675 = vmatpush1.xpose.msra.mxu0 0.0
    %1676 = vmatprep.subr.mxu0 0.0
    %1677 = vmatpush1.xpose.msra.mxu0 0.0
    %1678 = vmatprep.subr.mxu0 0.0
    %1679 = vmatpush1.xpose.msra.mxu0 0.0
    %1680 = vmatprep.subr.mxu0 0.0
    %1681 = vmatpush1.xpose.msra.mxu0 %v1648
    %1682 = vmatprep.subr.mxu0 0.0
    %1683 = vmatpush2.xpose.msra.mxu0 0.0
    %1684 = vmatprep.subr.mxu0 0.0
    %1685 = vmatpush2.xpose.msra.mxu0 0.0
    %1686 = vmatprep.subr.mxu0 0.0
    %1687 = vmatpush2.xpose.msra.mxu0 0.0
    %1688 = vmatprep.subr.mxu0 0.0
    %1689 = vmatpush2.xpose.msra.mxu0 0.0
    %1690 = vmatprep.subr.mxu0 0.0
    %1691 = vmatpush2.xpose.msra.mxu0 0.0
    %1692 = vmatprep.subr.mxu0 0.0
    %1693 = vmatpush2.xpose.msra.mxu0 0.0
    %1694 = vmatprep.subr.mxu0 0.0
    %1695 = vmatpush2.xpose.msra.mxu0 0.0
    %1696 = vmatprep.subr.mxu0 0.0
    %1697 = vmatpush2.xpose.msra.mxu0 0.0
    %1698 = vmatprep.subr.mxu0 0.0
    %1699 = vmatpush2.xpose.msra.mxu0 0.0
    %1700 = vmatprep.subr.mxu0 0.0
    %1701 = vmatpush2.xpose.msra.mxu0 0.0
    %1702 = vmatprep.subr.mxu0 0.0
    %1703 = vmatpush2.xpose.msra.mxu0 0.0
    %1704 = vmatprep.subr.mxu0 0.0
    %1705 = vmatpush2.xpose.msra.mxu0 0.0
    %1706 = vmatprep.subr.mxu0 0.0
    %1707 = vmatpush2.xpose.msra.mxu0 0.0
    %1708 = vmatprep.subr.mxu0 0.0
    %1709 = vmatpush2.xpose.msra.mxu0 0.0
    %1710 = vmatprep.subr.mxu0 0.0
    %1711 = vmatpush2.xpose.msra.mxu0 0.0
    %1712 = vmatprep.subr.mxu0 0.0
    %1713 = vmatpush2.xpose.msra.mxu0 0.0
    %1714 = vmatprep.mubr.f32.mxu0 0.0
    %1715 = vmatmul.mubr.f32.gmra.mxu0 %v1645
    %v1716 = vpop.f32.mrf.mxu0
    %v1717 = vadd.f32 0.0, %v1716
    %v1718 = vpop.f32.mrf.mxu0
    %1719 = vdwg.mxu0
    %v1721 = vsel %vm160, %v1473, 0
    %v1724 = vsel %vm160, %v1557, 0
    %1726 = vmatprep.subr.mxu0 0.0
    %1727 = vmatpush1.xpose.msra.mxu0 0.0
    %1728 = vmatprep.subr.mxu0 0.0
    %1729 = vmatpush1.xpose.msra.mxu0 0.0
    %1730 = vmatprep.subr.mxu0 0.0
    %1731 = vmatpush1.xpose.msra.mxu0 0.0
    %1732 = vmatprep.subr.mxu0 0.0
    %1733 = vmatpush1.xpose.msra.mxu0 0.0
    %1734 = vmatprep.subr.mxu0 0.0
    %1735 = vmatpush1.xpose.msra.mxu0 0.0
    %1736 = vmatprep.subr.mxu0 0.0
    %1737 = vmatpush1.xpose.msra.mxu0 0.0
    %1738 = vmatprep.subr.mxu0 0.0
    %1739 = vmatpush1.xpose.msra.mxu0 0.0
    %1740 = vmatprep.subr.mxu0 0.0
    %1741 = vmatpush1.xpose.msra.mxu0 0.0
    %1742 = vmatprep.subr.mxu0 0.0
    %1743 = vmatpush1.xpose.msra.mxu0 0.0
    %1744 = vmatprep.subr.mxu0 0.0
    %1745 = vmatpush1.xpose.msra.mxu0 0.0
    %1746 = vmatprep.subr.mxu0 0.0
    %1747 = vmatpush1.xpose.msra.mxu0 0.0
    %1748 = vmatprep.subr.mxu0 0.0
    %1749 = vmatpush1.xpose.msra.mxu0 0.0
    %1750 = vmatprep.subr.mxu0 0.0
    %1751 = vmatpush1.xpose.msra.mxu0 0.0
    %1752 = vmatprep.subr.mxu0 0.0
    %1753 = vmatpush1.xpose.msra.mxu0 0.0
    %1754 = vmatprep.subr.mxu0 0.0
    %1755 = vmatpush1.xpose.msra.mxu0 0.0
    %1756 = vmatprep.subr.mxu0 0.0
    %1757 = vmatpush1.xpose.msra.mxu0 %v1724
    %1758 = vmatprep.subr.mxu0 0.0
    %1759 = vmatpush2.xpose.msra.mxu0 0.0
    %1760 = vmatprep.subr.mxu0 0.0
    %1761 = vmatpush2.xpose.msra.mxu0 0.0
    %1762 = vmatprep.subr.mxu0 0.0
    %1763 = vmatpush2.xpose.msra.mxu0 0.0
    %1764 = vmatprep.subr.mxu0 0.0
    %1765 = vmatpush2.xpose.msra.mxu0 0.0
    %1766 = vmatprep.subr.mxu0 0.0
    %1767 = vmatpush2.xpose.msra.mxu0 0.0
    %1768 = vmatprep.subr.mxu0 0.0
    %1769 = vmatpush2.xpose.msra.mxu0 0.0
    %1770 = vmatprep.subr.mxu0 0.0
    %1771 = vmatpush2.xpose.msra.mxu0 0.0
    %1772 = vmatprep.subr.mxu0 0.0
    %1773 = vmatpush2.xpose.msra.mxu0 0.0
    %1774 = vmatprep.subr.mxu0 0.0
    %1775 = vmatpush2.xpose.msra.mxu0 0.0
    %1776 = vmatprep.subr.mxu0 0.0
    %1777 = vmatpush2.xpose.msra.mxu0 0.0
    %1778 = vmatprep.subr.mxu0 0.0
    %1779 = vmatpush2.xpose.msra.mxu0 0.0
    %1780 = vmatprep.subr.mxu0 0.0
    %1781 = vmatpush2.xpose.msra.mxu0 0.0
    %1782 = vmatprep.subr.mxu0 0.0
    %1783 = vmatpush2.xpose.msra.mxu0 0.0
    %1784 = vmatprep.subr.mxu0 0.0
    %1785 = vmatpush2.xpose.msra.mxu0 0.0
    %1786 = vmatprep.subr.mxu0 0.0
    %1787 = vmatpush2.xpose.msra.mxu0 0.0
    %1788 = vmatprep.subr.mxu0 0.0
    %1789 = vmatpush2.xpose.msra.mxu0 0.0
    %1790 = vmatprep.mubr.f32.mxu0 0.0
    %1791 = vmatmul.mubr.f32.gmra.mxu0 %v1721
    %v1792 = vpop.f32.mrf.mxu0
    %v1793 = vadd.f32 0.0, %v1792
    %v1794 = vpop.f32.mrf.mxu0
    %1795 = vdwg.mxu0
    %v1796 = vmul.f32 %v1717, 0.125
    %v1797 = vmul.f32 %v1793, 0.125
    %v1798 = vsel %vm150, -1e+09, %v1796
    %v1799 = vsel %vm151, -1e+09, %v1797
    %s1800 = scalar_lea.vmem [#allocation10], 256
    %v1801 = vld [vmem:[%s1800] sm:$0xff]
    %v1802 = vld [vmem:[%s1800 + $0x8] sm:$0xff]
    %v1803 = vld [vmem:[%s1800 + $0x10] sm:$0xff]
    %v1804 = vld [vmem:[%s1800 + $0x18] sm:$0xff]
    %v1805 = vld [vmem:[%s1800 + $0x20] sm:$0xff]
    %v1806 = vld [vmem:[%s1800 + $0x28] sm:$0xff]
    %v1807 = vld [vmem:[%s1800 + $0x30] sm:$0xff]
    %v1808 = vld [vmem:[%s1800 + $0x38] sm:$0xff]
    %1809 = vmatprep.subr.mxu0 0.0
    %1810 = vmatpush1.msra.mxu0 0.0
    %1811 = vmatprep.subr.mxu0 0.0
    %1812 = vmatpush1.msra.mxu0 0.0
    %1813 = vmatprep.subr.mxu0 0.0
    %1814 = vmatpush1.msra.mxu0 0.0
    %1815 = vmatprep.subr.mxu0 0.0
    %1816 = vmatpush1.msra.mxu0 0.0
    %1817 = vmatprep.subr.mxu0 0.0
    %1818 = vmatpush1.msra.mxu0 0.0
    %1819 = vmatprep.subr.mxu0 0.0
    %1820 = vmatpush1.msra.mxu0 0.0
    %1821 = vmatprep.subr.mxu0 0.0
    %1822 = vmatpush1.msra.mxu0 0.0
    %1823 = vmatprep.subr.mxu0 0.0
    %1824 = vmatpush1.msra.mxu0 0.0
    %1825 = vmatprep.subr.mxu0 0.0
    %1826 = vmatpush1.msra.mxu0 %v1808
    %1827 = vmatprep.subr.mxu0 0.0
    %1828 = vmatpush1.msra.mxu0 %v1807
    %1829 = vmatprep.subr.mxu0 0.0
    %1830 = vmatpush1.msra.mxu0 %v1806
    %1831 = vmatprep.subr.mxu0 0.0
    %1832 = vmatpush1.msra.mxu0 %v1805
    %1833 = vmatprep.subr.mxu0 0.0
    %1834 = vmatpush1.msra.mxu0 %v1804
    %1835 = vmatprep.subr.mxu0 0.0
    %1836 = vmatpush1.msra.mxu0 %v1803
    %1837 = vmatprep.subr.mxu0 0.0
    %1838 = vmatpush1.msra.mxu0 %v1802
    %1839 = vmatprep.subr.mxu0 0.0
    %1840 = vmatpush1.msra.mxu0 %v1801
    %1841 = vmatprep.subr.mxu0 0.0
    %1842 = vmatpush2.msra.mxu0 0.0
    %1843 = vmatprep.subr.mxu0 0.0
    %1844 = vmatpush2.msra.mxu0 0.0
    %1845 = vmatprep.subr.mxu0 0.0
    %1846 = vmatpush2.msra.mxu0 0.0
    %1847 = vmatprep.subr.mxu0 0.0
    %1848 = vmatpush2.msra.mxu0 0.0
    %1849 = vmatprep.subr.mxu0 0.0
    %1850 = vmatpush2.msra.mxu0 0.0
    %1851 = vmatprep.subr.mxu0 0.0
    %1852 = vmatpush2.msra.mxu0 0.0
    %1853 = vmatprep.subr.mxu0 0.0
    %1854 = vmatpush2.msra.mxu0 0.0
    %1855 = vmatprep.subr.mxu0 0.0
    %1856 = vmatpush2.msra.mxu0 0.0
    %1857 = vmatprep.subr.mxu0 0.0
    %1858 = vmatpush2.msra.mxu0 0.0
    %1859 = vmatprep.subr.mxu0 0.0
    %1860 = vmatpush2.msra.mxu0 0.0
    %1861 = vmatprep.subr.mxu0 0.0
    %1862 = vmatpush2.msra.mxu0 0.0
    %1863 = vmatprep.subr.mxu0 0.0
    %1864 = vmatpush2.msra.mxu0 0.0
    %1865 = vmatprep.subr.mxu0 0.0
    %1866 = vmatpush2.msra.mxu0 0.0
    %1867 = vmatprep.subr.mxu0 0.0
    %1868 = vmatpush2.msra.mxu0 0.0
    %1869 = vmatprep.subr.mxu0 0.0
    %1870 = vmatpush2.msra.mxu0 0.0
    %1871 = vmatprep.subr.mxu0 0.0
    %1872 = vmatpush2.msra.mxu0 0.0
    %1873 = vmatprep.mubr.f32.mxu0 0.0
    %1874 = vmatmul.mubr.f32.gmra.mxu0 %v162
    %v1875 = vpop.f32.mrf.mxu0
    %v1876 = vadd.f32 0.0, %v1875
    %v1877 = vpop.f32.mrf.mxu0
    %1878 = vmatprep.mubr.f32.mxu0 0.0
    %1879 = vmatmul.mubr.f32.gmra.mxu0 %v165
    %v1880 = vpop.f32.mrf.mxu0
    %v1881 = vadd.f32 0.0, %v1880
    %v1882 = vpop.f32.mrf.mxu0
    %1883 = vdwg.mxu0
    %s1884 = scalar_lea.vmem [#allocation11], 256
    %v1885 = vld [vmem:[%s1884] sm:$0xff]
    %v1886 = vld [vmem:[%s1884 + $0x8] sm:$0xff]
    %v1887 = vld [vmem:[%s1884 + $0x10] sm:$0xff]
    %v1888 = vld [vmem:[%s1884 + $0x18] sm:$0xff]
    %v1889 = vld [vmem:[%s1884 + $0x20] sm:$0xff]
    %v1890 = vld [vmem:[%s1884 + $0x28] sm:$0xff]
    %v1891 = vld [vmem:[%s1884 + $0x30] sm:$0xff]
    %v1892 = vld [vmem:[%s1884 + $0x38] sm:$0xff]
    %1893 = vmatprep.subr.mxu0 0.0
    %1894 = vmatpush1.msra.mxu0 0.0
    %1895 = vmatprep.subr.mxu0 0.0
    %1896 = vmatpush1.msra.mxu0 0.0
    %1897 = vmatprep.subr.mxu0 0.0
    %1898 = vmatpush1.msra.mxu0 0.0
    %1899 = vmatprep.subr.mxu0 0.0
    %1900 = vmatpush1.msra.mxu0 0.0
    %1901 = vmatprep.subr.mxu0 0.0
    %1902 = vmatpush1.msra.mxu0 0.0
    %1903 = vmatprep.subr.mxu0 0.0
    %1904 = vmatpush1.msra.mxu0 0.0
    %1905 = vmatprep.subr.mxu0 0.0
    %1906 = vmatpush1.msra.mxu0 0.0
    %1907 = vmatprep.subr.mxu0 0.0
    %1908 = vmatpush1.msra.mxu0 0.0
    %1909 = vmatprep.subr.mxu0 0.0
    %1910 = vmatpush1.msra.mxu0 %v1892
    %1911 = vmatprep.subr.mxu0 0.0
    %1912 = vmatpush1.msra.mxu0 %v1891
    %1913 = vmatprep.subr.mxu0 0.0
    %1914 = vmatpush1.msra.mxu0 %v1890
    %1915 = vmatprep.subr.mxu0 0.0
    %1916 = vmatpush1.msra.mxu0 %v1889
    %1917 = vmatprep.subr.mxu0 0.0
    %1918 = vmatpush1.msra.mxu0 %v1888
    %1919 = vmatprep.subr.mxu0 0.0
    %1920 = vmatpush1.msra.mxu0 %v1887
    %1921 = vmatprep.subr.mxu0 0.0
    %1922 = vmatpush1.msra.mxu0 %v1886
    %1923 = vmatprep.subr.mxu0 0.0
    %1924 = vmatpush1.msra.mxu0 %v1885
    %1925 = vmatprep.subr.mxu0 0.0
    %1926 = vmatpush2.msra.mxu0 0.0
    %1927 = vmatprep.subr.mxu0 0.0
    %1928 = vmatpush2.msra.mxu0 0.0
    %1929 = vmatprep.subr.mxu0 0.0
    %1930 = vmatpush2.msra.mxu0 0.0
    %1931 = vmatprep.subr.mxu0 0.0
    %1932 = vmatpush2.msra.mxu0 0.0
    %1933 = vmatprep.subr.mxu0 0.0
    %1934 = vmatpush2.msra.mxu0 0.0
    %1935 = vmatprep.subr.mxu0 0.0
    %1936 = vmatpush2.msra.mxu0 0.0
    %1937 = vmatprep.subr.mxu0 0.0
    %1938 = vmatpush2.msra.mxu0 0.0
    %1939 = vmatprep.subr.mxu0 0.0
    %1940 = vmatpush2.msra.mxu0 0.0
    %1941 = vmatprep.subr.mxu0 0.0
    %1942 = vmatpush2.msra.mxu0 0.0
    %1943 = vmatprep.subr.mxu0 0.0
    %1944 = vmatpush2.msra.mxu0 0.0
    %1945 = vmatprep.subr.mxu0 0.0
    %1946 = vmatpush2.msra.mxu0 0.0
    %1947 = vmatprep.subr.mxu0 0.0
    %1948 = vmatpush2.msra.mxu0 0.0
    %1949 = vmatprep.subr.mxu0 0.0
    %1950 = vmatpush2.msra.mxu0 0.0
    %1951 = vmatprep.subr.mxu0 0.0
    %1952 = vmatpush2.msra.mxu0 0.0
    %1953 = vmatprep.subr.mxu0 0.0
    %1954 = vmatpush2.msra.mxu0 0.0
    %1955 = vmatprep.subr.mxu0 0.0
    %1956 = vmatpush2.msra.mxu0 0.0
    %1957 = vmatprep.mubr.f32.mxu0 0.0
    %1958 = vmatmul.mubr.f32.gmra.mxu0 %v251
    %v1959 = vpop.f32.mrf.mxu0
    %v1960 = vadd.f32 0.0, %v1959
    %v1961 = vpop.f32.mrf.mxu0
    %1962 = vmatprep.mubr.f32.mxu0 0.0
    %1963 = vmatmul.mubr.f32.gmra.mxu0 %v254
    %v1964 = vpop.f32.mrf.mxu0
    %v1965 = vadd.f32 0.0, %v1964
    %v1966 = vpop.f32.mrf.mxu0
    %1967 = vdwg.mxu0
    %s1968 = scalar_lea.vmem [#allocation13], 256
    %v1969 = vld [vmem:[%s1968] sm:$0xff]
    %v1970 = vld [vmem:[%s1968 + $0x8] sm:$0xff]
    %v1971 = vld [vmem:[%s1968 + $0x10] sm:$0xff]
    %v1972 = vld [vmem:[%s1968 + $0x18] sm:$0xff]
    %v1973 = vld [vmem:[%s1968 + $0x20] sm:$0xff]
    %v1974 = vld [vmem:[%s1968 + $0x28] sm:$0xff]
    %v1975 = vld [vmem:[%s1968 + $0x30] sm:$0xff]
    %v1976 = vld [vmem:[%s1968 + $0x38] sm:$0xff]
    %1977 = vmatprep.subr.mxu0 0.0
    %1978 = vmatpush1.msra.mxu0 0.0
    %1979 = vmatprep.subr.mxu0 0.0
    %1980 = vmatpush1.msra.mxu0 0.0
    %1981 = vmatprep.subr.mxu0 0.0
    %1982 = vmatpush1.msra.mxu0 0.0
    %1983 = vmatprep.subr.mxu0 0.0
    %1984 = vmatpush1.msra.mxu0 0.0
    %1985 = vmatprep.subr.mxu0 0.0
    %1986 = vmatpush1.msra.mxu0 0.0
    %1987 = vmatprep.subr.mxu0 0.0
    %1988 = vmatpush1.msra.mxu0 0.0
    %1989 = vmatprep.subr.mxu0 0.0
    %1990 = vmatpush1.msra.mxu0 0.0
    %1991 = vmatprep.subr.mxu0 0.0
    %1992 = vmatpush1.msra.mxu0 0.0
    %1993 = vmatprep.subr.mxu0 0.0
    %1994 = vmatpush1.msra.mxu0 %v1976
    %1995 = vmatprep.subr.mxu0 0.0
    %1996 = vmatpush1.msra.mxu0 %v1975
    %1997 = vmatprep.subr.mxu0 0.0
    %1998 = vmatpush1.msra.mxu0 %v1974
    %1999 = vmatprep.subr.mxu0 0.0
    %2000 = vmatpush1.msra.mxu0 %v1973
    %2001 = vmatprep.subr.mxu0 0.0
    %2002 = vmatpush1.msra.mxu0 %v1972
    %2003 = vmatprep.subr.mxu0 0.0
    %2004 = vmatpush1.msra.mxu0 %v1971
    %2005 = vmatprep.subr.mxu0 0.0
    %2006 = vmatpush1.msra.mxu0 %v1970
    %2007 = vmatprep.subr.mxu0 0.0
    %2008 = vmatpush1.msra.mxu0 %v1969
    %2009 = vmatprep.subr.mxu0 0.0
    %2010 = vmatpush2.msra.mxu0 0.0
    %2011 = vmatprep.subr.mxu0 0.0
    %2012 = vmatpush2.msra.mxu0 0.0
    %2013 = vmatprep.subr.mxu0 0.0
    %2014 = vmatpush2.msra.mxu0 0.0
    %2015 = vmatprep.subr.mxu0 0.0
    %2016 = vmatpush2.msra.mxu0 0.0
    %2017 = vmatprep.subr.mxu0 0.0
    %2018 = vmatpush2.msra.mxu0 0.0
    %2019 = vmatprep.subr.mxu0 0.0
    %2020 = vmatpush2.msra.mxu0 0.0
    %2021 = vmatprep.subr.mxu0 0.0
    %2022 = vmatpush2.msra.mxu0 0.0
    %2023 = vmatprep.subr.mxu0 0.0
    %2024 = vmatpush2.msra.mxu0 0.0
    %2025 = vmatprep.subr.mxu0 0.0
    %2026 = vmatpush2.msra.mxu0 0.0
    %2027 = vmatprep.subr.mxu0 0.0
    %2028 = vmatpush2.msra.mxu0 0.0
    %2029 = vmatprep.subr.mxu0 0.0
    %2030 = vmatpush2.msra.mxu0 0.0
    %2031 = vmatprep.subr.mxu0 0.0
    %2032 = vmatpush2.msra.mxu0 0.0
    %2033 = vmatprep.subr.mxu0 0.0
    %2034 = vmatpush2.msra.mxu0 0.0
    %2035 = vmatprep.subr.mxu0 0.0
    %2036 = vmatpush2.msra.mxu0 0.0
    %2037 = vmatprep.subr.mxu0 0.0
    %2038 = vmatpush2.msra.mxu0 0.0
    %2039 = vmatprep.subr.mxu0 0.0
    %2040 = vmatpush2.msra.mxu0 0.0
    %2041 = vmatprep.mubr.f32.mxu0 0.0
    %2042 = vmatmul.mubr.f32.gmra.mxu0 %v340
    %v2043 = vpop.f32.mrf.mxu0
    %v2044 = vadd.f32 0.0, %v2043
    %v2045 = vpop.f32.mrf.mxu0
    %2046 = vmatprep.mubr.f32.mxu0 0.0
    %2047 = vmatmul.mubr.f32.gmra.mxu0 %v343
    %v2048 = vpop.f32.mrf.mxu0
    %v2049 = vadd.f32 0.0, %v2048
    %v2050 = vpop.f32.mrf.mxu0
    %2051 = vdwg.mxu0
    %v2053 = vsel %vm160, %v1876, 0
    %v2056 = vsel %vm160, %v1960, 0
    %2058 = vmatprep.subr.mxu0 0.0
    %2059 = vmatpush1.xpose.msra.mxu0 0.0
    %2060 = vmatprep.subr.mxu0 0.0
    %2061 = vmatpush1.xpose.msra.mxu0 0.0
    %2062 = vmatprep.subr.mxu0 0.0
    %2063 = vmatpush1.xpose.msra.mxu0 0.0
    %2064 = vmatprep.subr.mxu0 0.0
    %2065 = vmatpush1.xpose.msra.mxu0 0.0
    %2066 = vmatprep.subr.mxu0 0.0
    %2067 = vmatpush1.xpose.msra.mxu0 0.0
    %2068 = vmatprep.subr.mxu0 0.0
    %2069 = vmatpush1.xpose.msra.mxu0 0.0
    %2070 = vmatprep.subr.mxu0 0.0
    %2071 = vmatpush1.xpose.msra.mxu0 0.0
    %2072 = vmatprep.subr.mxu0 0.0
    %2073 = vmatpush1.xpose.msra.mxu0 0.0
    %2074 = vmatprep.subr.mxu0 0.0
    %2075 = vmatpush1.xpose.msra.mxu0 0.0
    %2076 = vmatprep.subr.mxu0 0.0
    %2077 = vmatpush1.xpose.msra.mxu0 0.0
    %2078 = vmatprep.subr.mxu0 0.0
    %2079 = vmatpush1.xpose.msra.mxu0 0.0
    %2080 = vmatprep.subr.mxu0 0.0
    %2081 = vmatpush1.xpose.msra.mxu0 0.0
    %2082 = vmatprep.subr.mxu0 0.0
    %2083 = vmatpush1.xpose.msra.mxu0 0.0
    %2084 = vmatprep.subr.mxu0 0.0
    %2085 = vmatpush1.xpose.msra.mxu0 0.0
    %2086 = vmatprep.subr.mxu0 0.0
    %2087 = vmatpush1.xpose.msra.mxu0 0.0
    %2088 = vmatprep.subr.mxu0 0.0
    %2089 = vmatpush1.xpose.msra.mxu0 %v2056
    %2090 = vmatprep.subr.mxu0 0.0
    %2091 = vmatpush2.xpose.msra.mxu0 0.0
    %2092 = vmatprep.subr.mxu0 0.0
    %2093 = vmatpush2.xpose.msra.mxu0 0.0
    %2094 = vmatprep.subr.mxu0 0.0
    %2095 = vmatpush2.xpose.msra.mxu0 0.0
    %2096 = vmatprep.subr.mxu0 0.0
    %2097 = vmatpush2.xpose.msra.mxu0 0.0
    %2098 = vmatprep.subr.mxu0 0.0
    %2099 = vmatpush2.xpose.msra.mxu0 0.0
    %2100 = vmatprep.subr.mxu0 0.0
    %2101 = vmatpush2.xpose.msra.mxu0 0.0
    %2102 = vmatprep.subr.mxu0 0.0
    %2103 = vmatpush2.xpose.msra.mxu0 0.0
    %2104 = vmatprep.subr.mxu0 0.0
    %2105 = vmatpush2.xpose.msra.mxu0 0.0
    %2106 = vmatprep.subr.mxu0 0.0
    %2107 = vmatpush2.xpose.msra.mxu0 0.0
    %2108 = vmatprep.subr.mxu0 0.0
    %2109 = vmatpush2.xpose.msra.mxu0 0.0
    %2110 = vmatprep.subr.mxu0 0.0
    %2111 = vmatpush2.xpose.msra.mxu0 0.0
    %2112 = vmatprep.subr.mxu0 0.0
    %2113 = vmatpush2.xpose.msra.mxu0 0.0
    %2114 = vmatprep.subr.mxu0 0.0
    %2115 = vmatpush2.xpose.msra.mxu0 0.0
    %2116 = vmatprep.subr.mxu0 0.0
    %2117 = vmatpush2.xpose.msra.mxu0 0.0
    %2118 = vmatprep.subr.mxu0 0.0
    %2119 = vmatpush2.xpose.msra.mxu0 0.0
    %2120 = vmatprep.subr.mxu0 0.0
    %2121 = vmatpush2.xpose.msra.mxu0 0.0
    %2122 = vmatprep.mubr.f32.mxu0 0.0
    %2123 = vmatmul.mubr.f32.gmra.mxu0 %v2053
    %v2124 = vpop.f32.mrf.mxu0
    %v2125 = vadd.f32 0.0, %v2124
    %v2126 = vpop.f32.mrf.mxu0
    %2127 = vdwg.mxu0
    %v2129 = vsel %vm160, %v1881, 0
    %v2132 = vsel %vm160, %v1965, 0
    %2134 = vmatprep.subr.mxu0 0.0
    %2135 = vmatpush1.xpose.msra.mxu0 0.0
    %2136 = vmatprep.subr.mxu0 0.0
    %2137 = vmatpush1.xpose.msra.mxu0 0.0
    %2138 = vmatprep.subr.mxu0 0.0
    %2139 = vmatpush1.xpose.msra.mxu0 0.0
    %2140 = vmatprep.subr.mxu0 0.0
    %2141 = vmatpush1.xpose.msra.mxu0 0.0
    %2142 = vmatprep.subr.mxu0 0.0
    %2143 = vmatpush1.xpose.msra.mxu0 0.0
    %2144 = vmatprep.subr.mxu0 0.0
    %2145 = vmatpush1.xpose.msra.mxu0 0.0
    %2146 = vmatprep.subr.mxu0 0.0
    %2147 = vmatpush1.xpose.msra.mxu0 0.0
    %2148 = vmatprep.subr.mxu0 0.0
    %2149 = vmatpush1.xpose.msra.mxu0 0.0
    %2150 = vmatprep.subr.mxu0 0.0
    %2151 = vmatpush1.xpose.msra.mxu0 0.0
    %2152 = vmatprep.subr.mxu0 0.0
    %2153 = vmatpush1.xpose.msra.mxu0 0.0
    %2154 = vmatprep.subr.mxu0 0.0
    %2155 = vmatpush1.xpose.msra.mxu0 0.0
    %2156 = vmatprep.subr.mxu0 0.0
    %2157 = vmatpush1.xpose.msra.mxu0 0.0
    %2158 = vmatprep.subr.mxu0 0.0
    %2159 = vmatpush1.xpose.msra.mxu0 0.0
    %2160 = vmatprep.subr.mxu0 0.0
    %2161 = vmatpush1.xpose.msra.mxu0 0.0
    %2162 = vmatprep.subr.mxu0 0.0
    %2163 = vmatpush1.xpose.msra.mxu0 0.0
    %2164 = vmatprep.subr.mxu0 0.0
    %2165 = vmatpush1.xpose.msra.mxu0 %v2132
    %2166 = vmatprep.subr.mxu0 0.0
    %2167 = vmatpush2.xpose.msra.mxu0 0.0
    %2168 = vmatprep.subr.mxu0 0.0
    %2169 = vmatpush2.xpose.msra.mxu0 0.0
    %2170 = vmatprep.subr.mxu0 0.0
    %2171 = vmatpush2.xpose.msra.mxu0 0.0
    %2172 = vmatprep.subr.mxu0 0.0
    %2173 = vmatpush2.xpose.msra.mxu0 0.0
    %2174 = vmatprep.subr.mxu0 0.0
    %2175 = vmatpush2.xpose.msra.mxu0 0.0
    %2176 = vmatprep.subr.mxu0 0.0
    %2177 = vmatpush2.xpose.msra.mxu0 0.0
    %2178 = vmatprep.subr.mxu0 0.0
    %2179 = vmatpush2.xpose.msra.mxu0 0.0
    %2180 = vmatprep.subr.mxu0 0.0
    %2181 = vmatpush2.xpose.msra.mxu0 0.0
    %2182 = vmatprep.subr.mxu0 0.0
    %2183 = vmatpush2.xpose.msra.mxu0 0.0
    %2184 = vmatprep.subr.mxu0 0.0
    %2185 = vmatpush2.xpose.msra.mxu0 0.0
    %2186 = vmatprep.subr.mxu0 0.0
    %2187 = vmatpush2.xpose.msra.mxu0 0.0
    %2188 = vmatprep.subr.mxu0 0.0
    %2189 = vmatpush2.xpose.msra.mxu0 0.0
    %2190 = vmatprep.subr.mxu0 0.0
    %2191 = vmatpush2.xpose.msra.mxu0 0.0
    %2192 = vmatprep.subr.mxu0 0.0
    %2193 = vmatpush2.xpose.msra.mxu0 0.0
    %2194 = vmatprep.subr.mxu0 0.0
    %2195 = vmatpush2.xpose.msra.mxu0 0.0
    %2196 = vmatprep.subr.mxu0 0.0
    %2197 = vmatpush2.xpose.msra.mxu0 0.0
    %2198 = vmatprep.mubr.f32.mxu0 0.0
    %2199 = vmatmul.mubr.f32.gmra.mxu0 %v2129
    %v2200 = vpop.f32.mrf.mxu0
    %v2201 = vadd.f32 0.0, %v2200
    %v2202 = vpop.f32.mrf.mxu0
    %2203 = vdwg.mxu0
    %v2204 = vmul.f32 %v2125, 0.125
    %v2205 = vmul.f32 %v2201, 0.125
    %v2206 = vsel %vm150, -1e+09, %v2204
    %v2207 = vsel %vm151, -1e+09, %v2205
    %s2208 = scalar_lea.vmem [#allocation10], 320
    %v2209 = vld [vmem:[%s2208] sm:$0xff]
    %v2210 = vld [vmem:[%s2208 + $0x8] sm:$0xff]
    %v2211 = vld [vmem:[%s2208 + $0x10] sm:$0xff]
    %v2212 = vld [vmem:[%s2208 + $0x18] sm:$0xff]
    %v2213 = vld [vmem:[%s2208 + $0x20] sm:$0xff]
    %v2214 = vld [vmem:[%s2208 + $0x28] sm:$0xff]
    %v2215 = vld [vmem:[%s2208 + $0x30] sm:$0xff]
    %v2216 = vld [vmem:[%s2208 + $0x38] sm:$0xff]
    %2217 = vmatprep.subr.mxu0 0.0
    %2218 = vmatpush1.msra.mxu0 0.0
    %2219 = vmatprep.subr.mxu0 0.0
    %2220 = vmatpush1.msra.mxu0 0.0
    %2221 = vmatprep.subr.mxu0 0.0
    %2222 = vmatpush1.msra.mxu0 0.0
    %2223 = vmatprep.subr.mxu0 0.0
    %2224 = vmatpush1.msra.mxu0 0.0
    %2225 = vmatprep.subr.mxu0 0.0
    %2226 = vmatpush1.msra.mxu0 0.0
    %2227 = vmatprep.subr.mxu0 0.0
    %2228 = vmatpush1.msra.mxu0 0.0
    %2229 = vmatprep.subr.mxu0 0.0
    %2230 = vmatpush1.msra.mxu0 0.0
    %2231 = vmatprep.subr.mxu0 0.0
    %2232 = vmatpush1.msra.mxu0 0.0
    %2233 = vmatprep.subr.mxu0 0.0
    %2234 = vmatpush1.msra.mxu0 %v2216
    %2235 = vmatprep.subr.mxu0 0.0
    %2236 = vmatpush1.msra.mxu0 %v2215
    %2237 = vmatprep.subr.mxu0 0.0
    %2238 = vmatpush1.msra.mxu0 %v2214
    %2239 = vmatprep.subr.mxu0 0.0
    %2240 = vmatpush1.msra.mxu0 %v2213
    %2241 = vmatprep.subr.mxu0 0.0
    %2242 = vmatpush1.msra.mxu0 %v2212
    %2243 = vmatprep.subr.mxu0 0.0
    %2244 = vmatpush1.msra.mxu0 %v2211
    %2245 = vmatprep.subr.mxu0 0.0
    %2246 = vmatpush1.msra.mxu0 %v2210
    %2247 = vmatprep.subr.mxu0 0.0
    %2248 = vmatpush1.msra.mxu0 %v2209
    %2249 = vmatprep.subr.mxu0 0.0
    %2250 = vmatpush2.msra.mxu0 0.0
    %2251 = vmatprep.subr.mxu0 0.0
    %2252 = vmatpush2.msra.mxu0 0.0
    %2253 = vmatprep.subr.mxu0 0.0
    %2254 = vmatpush2.msra.mxu0 0.0
    %2255 = vmatprep.subr.mxu0 0.0
    %2256 = vmatpush2.msra.mxu0 0.0
    %2257 = vmatprep.subr.mxu0 0.0
    %2258 = vmatpush2.msra.mxu0 0.0
    %2259 = vmatprep.subr.mxu0 0.0
    %2260 = vmatpush2.msra.mxu0 0.0
    %2261 = vmatprep.subr.mxu0 0.0
    %2262 = vmatpush2.msra.mxu0 0.0
    %2263 = vmatprep.subr.mxu0 0.0
    %2264 = vmatpush2.msra.mxu0 0.0
    %2265 = vmatprep.subr.mxu0 0.0
    %2266 = vmatpush2.msra.mxu0 0.0
    %2267 = vmatprep.subr.mxu0 0.0
    %2268 = vmatpush2.msra.mxu0 0.0
    %2269 = vmatprep.subr.mxu0 0.0
    %2270 = vmatpush2.msra.mxu0 0.0
    %2271 = vmatprep.subr.mxu0 0.0
    %2272 = vmatpush2.msra.mxu0 0.0
    %2273 = vmatprep.subr.mxu0 0.0
    %2274 = vmatpush2.msra.mxu0 0.0
    %2275 = vmatprep.subr.mxu0 0.0
    %2276 = vmatpush2.msra.mxu0 0.0
    %2277 = vmatprep.subr.mxu0 0.0
    %2278 = vmatpush2.msra.mxu0 0.0
    %2279 = vmatprep.subr.mxu0 0.0
    %2280 = vmatpush2.msra.mxu0 0.0
    %2281 = vmatprep.mubr.f32.mxu0 0.0
    %2282 = vmatmul.mubr.f32.gmra.mxu0 %v162
    %v2283 = vpop.f32.mrf.mxu0
    %v2284 = vadd.f32 0.0, %v2283
    %v2285 = vpop.f32.mrf.mxu0
    %2286 = vmatprep.mubr.f32.mxu0 0.0
    %2287 = vmatmul.mubr.f32.gmra.mxu0 %v165
    %v2288 = vpop.f32.mrf.mxu0
    %v2289 = vadd.f32 0.0, %v2288
    %v2290 = vpop.f32.mrf.mxu0
    %2291 = vdwg.mxu0
    %s2292 = scalar_lea.vmem [#allocation11], 320
    %v2293 = vld [vmem:[%s2292] sm:$0xff]
    %v2294 = vld [vmem:[%s2292 + $0x8] sm:$0xff]
    %v2295 = vld [vmem:[%s2292 + $0x10] sm:$0xff]
    %v2296 = vld [vmem:[%s2292 + $0x18] sm:$0xff]
    %v2297 = vld [vmem:[%s2292 + $0x20] sm:$0xff]
    %v2298 = vld [vmem:[%s2292 + $0x28] sm:$0xff]
    %v2299 = vld [vmem:[%s2292 + $0x30] sm:$0xff]
    %v2300 = vld [vmem:[%s2292 + $0x38] sm:$0xff]
    %2301 = vmatprep.subr.mxu0 0.0
    %2302 = vmatpush1.msra.mxu0 0.0
    %2303 = vmatprep.subr.mxu0 0.0
    %2304 = vmatpush1.msra.mxu0 0.0
    %2305 = vmatprep.subr.mxu0 0.0
    %2306 = vmatpush1.msra.mxu0 0.0
    %2307 = vmatprep.subr.mxu0 0.0
    %2308 = vmatpush1.msra.mxu0 0.0
    %2309 = vmatprep.subr.mxu0 0.0
    %2310 = vmatpush1.msra.mxu0 0.0
    %2311 = vmatprep.subr.mxu0 0.0
    %2312 = vmatpush1.msra.mxu0 0.0
    %2313 = vmatprep.subr.mxu0 0.0
    %2314 = vmatpush1.msra.mxu0 0.0
    %2315 = vmatprep.subr.mxu0 0.0
    %2316 = vmatpush1.msra.mxu0 0.0
    %2317 = vmatprep.subr.mxu0 0.0
    %2318 = vmatpush1.msra.mxu0 %v2300
    %2319 = vmatprep.subr.mxu0 0.0
    %2320 = vmatpush1.msra.mxu0 %v2299
    %2321 = vmatprep.subr.mxu0 0.0
    %2322 = vmatpush1.msra.mxu0 %v2298
    %2323 = vmatprep.subr.mxu0 0.0
    %2324 = vmatpush1.msra.mxu0 %v2297
    %2325 = vmatprep.subr.mxu0 0.0
    %2326 = vmatpush1.msra.mxu0 %v2296
    %2327 = vmatprep.subr.mxu0 0.0
    %2328 = vmatpush1.msra.mxu0 %v2295
    %2329 = vmatprep.subr.mxu0 0.0
    %2330 = vmatpush1.msra.mxu0 %v2294
    %2331 = vmatprep.subr.mxu0 0.0
    %2332 = vmatpush1.msra.mxu0 %v2293
    %2333 = vmatprep.subr.mxu0 0.0
    %2334 = vmatpush2.msra.mxu0 0.0
    %2335 = vmatprep.subr.mxu0 0.0
    %2336 = vmatpush2.msra.mxu0 0.0
    %2337 = vmatprep.subr.mxu0 0.0
    %2338 = vmatpush2.msra.mxu0 0.0
    %2339 = vmatprep.subr.mxu0 0.0
    %2340 = vmatpush2.msra.mxu0 0.0
    %2341 = vmatprep.subr.mxu0 0.0
    %2342 = vmatpush2.msra.mxu0 0.0
    %2343 = vmatprep.subr.mxu0 0.0
    %2344 = vmatpush2.msra.mxu0 0.0
    %2345 = vmatprep.subr.mxu0 0.0
    %2346 = vmatpush2.msra.mxu0 0.0
    %2347 = vmatprep.subr.mxu0 0.0
    %2348 = vmatpush2.msra.mxu0 0.0
    %2349 = vmatprep.subr.mxu0 0.0
    %2350 = vmatpush2.msra.mxu0 0.0
    %2351 = vmatprep.subr.mxu0 0.0
    %2352 = vmatpush2.msra.mxu0 0.0
    %2353 = vmatprep.subr.mxu0 0.0
    %2354 = vmatpush2.msra.mxu0 0.0
    %2355 = vmatprep.subr.mxu0 0.0
    %2356 = vmatpush2.msra.mxu0 0.0
    %2357 = vmatprep.subr.mxu0 0.0
    %2358 = vmatpush2.msra.mxu0 0.0
    %2359 = vmatprep.subr.mxu0 0.0
    %2360 = vmatpush2.msra.mxu0 0.0
    %2361 = vmatprep.subr.mxu0 0.0
    %2362 = vmatpush2.msra.mxu0 0.0
    %2363 = vmatprep.subr.mxu0 0.0
    %2364 = vmatpush2.msra.mxu0 0.0
    %2365 = vmatprep.mubr.f32.mxu0 0.0
    %2366 = vmatmul.mubr.f32.gmra.mxu0 %v251
    %v2367 = vpop.f32.mrf.mxu0
    %v2368 = vadd.f32 0.0, %v2367
    %v2369 = vpop.f32.mrf.mxu0
    %2370 = vmatprep.mubr.f32.mxu0 0.0
    %2371 = vmatmul.mubr.f32.gmra.mxu0 %v254
    %v2372 = vpop.f32.mrf.mxu0
    %v2373 = vadd.f32 0.0, %v2372
    %v2374 = vpop.f32.mrf.mxu0
    %2375 = vdwg.mxu0
    %s2376 = scalar_lea.vmem [#allocation13], 320
    %v2377 = vld [vmem:[%s2376] sm:$0xff]
    %v2378 = vld [vmem:[%s2376 + $0x8] sm:$0xff]
    %v2379 = vld [vmem:[%s2376 + $0x10] sm:$0xff]
    %v2380 = vld [vmem:[%s2376 + $0x18] sm:$0xff]
    %v2381 = vld [vmem:[%s2376 + $0x20] sm:$0xff]
    %v2382 = vld [vmem:[%s2376 + $0x28] sm:$0xff]
    %v2383 = vld [vmem:[%s2376 + $0x30] sm:$0xff]
    %v2384 = vld [vmem:[%s2376 + $0x38] sm:$0xff]
    %2385 = vmatprep.subr.mxu0 0.0
    %2386 = vmatpush1.msra.mxu0 0.0
    %2387 = vmatprep.subr.mxu0 0.0
    %2388 = vmatpush1.msra.mxu0 0.0
    %2389 = vmatprep.subr.mxu0 0.0
    %2390 = vmatpush1.msra.mxu0 0.0
    %2391 = vmatprep.subr.mxu0 0.0
    %2392 = vmatpush1.msra.mxu0 0.0
    %2393 = vmatprep.subr.mxu0 0.0
    %2394 = vmatpush1.msra.mxu0 0.0
    %2395 = vmatprep.subr.mxu0 0.0
    %2396 = vmatpush1.msra.mxu0 0.0
    %2397 = vmatprep.subr.mxu0 0.0
    %2398 = vmatpush1.msra.mxu0 0.0
    %2399 = vmatprep.subr.mxu0 0.0
    %2400 = vmatpush1.msra.mxu0 0.0
    %2401 = vmatprep.subr.mxu0 0.0
    %2402 = vmatpush1.msra.mxu0 %v2384
    %2403 = vmatprep.subr.mxu0 0.0
    %2404 = vmatpush1.msra.mxu0 %v2383
    %2405 = vmatprep.subr.mxu0 0.0
    %2406 = vmatpush1.msra.mxu0 %v2382
    %2407 = vmatprep.subr.mxu0 0.0
    %2408 = vmatpush1.msra.mxu0 %v2381
    %2409 = vmatprep.subr.mxu0 0.0
    %2410 = vmatpush1.msra.mxu0 %v2380
    %2411 = vmatprep.subr.mxu0 0.0
    %2412 = vmatpush1.msra.mxu0 %v2379
    %2413 = vmatprep.subr.mxu0 0.0
    %2414 = vmatpush1.msra.mxu0 %v2378
    %2415 = vmatprep.subr.mxu0 0.0
    %2416 = vmatpush1.msra.mxu0 %v2377
    %2417 = vmatprep.subr.mxu0 0.0
    %2418 = vmatpush2.msra.mxu0 0.0
    %2419 = vmatprep.subr.mxu0 0.0
    %2420 = vmatpush2.msra.mxu0 0.0
    %2421 = vmatprep.subr.mxu0 0.0
    %2422 = vmatpush2.msra.mxu0 0.0
    %2423 = vmatprep.subr.mxu0 0.0
    %2424 = vmatpush2.msra.mxu0 0.0
    %2425 = vmatprep.subr.mxu0 0.0
    %2426 = vmatpush2.msra.mxu0 0.0
    %2427 = vmatprep.subr.mxu0 0.0
    %2428 = vmatpush2.msra.mxu0 0.0
    %2429 = vmatprep.subr.mxu0 0.0
    %2430 = vmatpush2.msra.mxu0 0.0
    %2431 = vmatprep.subr.mxu0 0.0
    %2432 = vmatpush2.msra.mxu0 0.0
    %2433 = vmatprep.subr.mxu0 0.0
    %2434 = vmatpush2.msra.mxu0 0.0
    %2435 = vmatprep.subr.mxu0 0.0
    %2436 = vmatpush2.msra.mxu0 0.0
    %2437 = vmatprep.subr.mxu0 0.0
    %2438 = vmatpush2.msra.mxu0 0.0
    %2439 = vmatprep.subr.mxu0 0.0
    %2440 = vmatpush2.msra.mxu0 0.0
    %2441 = vmatprep.subr.mxu0 0.0
    %2442 = vmatpush2.msra.mxu0 0.0
    %2443 = vmatprep.subr.mxu0 0.0
    %2444 = vmatpush2.msra.mxu0 0.0
    %2445 = vmatprep.subr.mxu0 0.0
    %2446 = vmatpush2.msra.mxu0 0.0
    %2447 = vmatprep.subr.mxu0 0.0
    %2448 = vmatpush2.msra.mxu0 0.0
    %2449 = vmatprep.mubr.f32.mxu0 0.0
    %2450 = vmatmul.mubr.f32.gmra.mxu0 %v340
    %v2451 = vpop.f32.mrf.mxu0
    %v2452 = vadd.f32 0.0, %v2451
    %v2453 = vpop.f32.mrf.mxu0
    %2454 = vmatprep.mubr.f32.mxu0 0.0
    %2455 = vmatmul.mubr.f32.gmra.mxu0 %v343
    %v2456 = vpop.f32.mrf.mxu0
    %v2457 = vadd.f32 0.0, %v2456
    %v2458 = vpop.f32.mrf.mxu0
    %2459 = vdwg.mxu0
    %v2461 = vsel %vm160, %v2284, 0
    %v2464 = vsel %vm160, %v2368, 0
    %2466 = vmatprep.subr.mxu0 0.0
    %2467 = vmatpush1.xpose.msra.mxu0 0.0
    %2468 = vmatprep.subr.mxu0 0.0
    %2469 = vmatpush1.xpose.msra.mxu0 0.0
    %2470 = vmatprep.subr.mxu0 0.0
    %2471 = vmatpush1.xpose.msra.mxu0 0.0
    %2472 = vmatprep.subr.mxu0 0.0
    %2473 = vmatpush1.xpose.msra.mxu0 0.0
    %2474 = vmatprep.subr.mxu0 0.0
    %2475 = vmatpush1.xpose.msra.mxu0 0.0
    %2476 = vmatprep.subr.mxu0 0.0
    %2477 = vmatpush1.xpose.msra.mxu0 0.0
    %2478 = vmatprep.subr.mxu0 0.0
    %2479 = vmatpush1.xpose.msra.mxu0 0.0
    %2480 = vmatprep.subr.mxu0 0.0
    %2481 = vmatpush1.xpose.msra.mxu0 0.0
    %2482 = vmatprep.subr.mxu0 0.0
    %2483 = vmatpush1.xpose.msra.mxu0 0.0
    %2484 = vmatprep.subr.mxu0 0.0
    %2485 = vmatpush1.xpose.msra.mxu0 0.0
    %2486 = vmatprep.subr.mxu0 0.0
    %2487 = vmatpush1.xpose.msra.mxu0 0.0
    %2488 = vmatprep.subr.mxu0 0.0
    %2489 = vmatpush1.xpose.msra.mxu0 0.0
    %2490 = vmatprep.subr.mxu0 0.0
    %2491 = vmatpush1.xpose.msra.mxu0 0.0
    %2492 = vmatprep.subr.mxu0 0.0
    %2493 = vmatpush1.xpose.msra.mxu0 0.0
    %2494 = vmatprep.subr.mxu0 0.0
    %2495 = vmatpush1.xpose.msra.mxu0 0.0
    %2496 = vmatprep.subr.mxu0 0.0
    %2497 = vmatpush1.xpose.msra.mxu0 %v2464
    %2498 = vmatprep.subr.mxu0 0.0
    %2499 = vmatpush2.xpose.msra.mxu0 0.0
    %2500 = vmatprep.subr.mxu0 0.0
    %2501 = vmatpush2.xpose.msra.mxu0 0.0
    %2502 = vmatprep.subr.mxu0 0.0
    %2503 = vmatpush2.xpose.msra.mxu0 0.0
    %2504 = vmatprep.subr.mxu0 0.0
    %2505 = vmatpush2.xpose.msra.mxu0 0.0
    %2506 = vmatprep.subr.mxu0 0.0
    %2507 = vmatpush2.xpose.msra.mxu0 0.0
    %2508 = vmatprep.subr.mxu0 0.0
    %2509 = vmatpush2.xpose.msra.mxu0 0.0
    %2510 = vmatprep.subr.mxu0 0.0
    %2511 = vmatpush2.xpose.msra.mxu0 0.0
    %2512 = vmatprep.subr.mxu0 0.0
    %2513 = vmatpush2.xpose.msra.mxu0 0.0
    %2514 = vmatprep.subr.mxu0 0.0
    %2515 = vmatpush2.xpose.msra.mxu0 0.0
    %2516 = vmatprep.subr.mxu0 0.0
    %2517 = vmatpush2.xpose.msra.mxu0 0.0
    %2518 = vmatprep.subr.mxu0 0.0
    %2519 = vmatpush2.xpose.msra.mxu0 0.0
    %2520 = vmatprep.subr.mxu0 0.0
    %2521 = vmatpush2.xpose.msra.mxu0 0.0
    %2522 = vmatprep.subr.mxu0 0.0
    %2523 = vmatpush2.xpose.msra.mxu0 0.0
    %2524 = vmatprep.subr.mxu0 0.0
    %2525 = vmatpush2.xpose.msra.mxu0 0.0
    %2526 = vmatprep.subr.mxu0 0.0
    %2527 = vmatpush2.xpose.msra.mxu0 0.0
    %2528 = vmatprep.subr.mxu0 0.0
    %2529 = vmatpush2.xpose.msra.mxu0 0.0
    %2530 = vmatprep.mubr.f32.mxu0 0.0
    %2531 = vmatmul.mubr.f32.gmra.mxu0 %v2461
    %v2532 = vpop.f32.mrf.mxu0
    %v2533 = vadd.f32 0.0, %v2532
    %v2534 = vpop.f32.mrf.mxu0
    %2535 = vdwg.mxu0
    %v2537 = vsel %vm160, %v2289, 0
    %v2540 = vsel %vm160, %v2373, 0
    %2542 = vmatprep.subr.mxu0 0.0
    %2543 = vmatpush1.xpose.msra.mxu0 0.0
    %2544 = vmatprep.subr.mxu0 0.0
    %2545 = vmatpush1.xpose.msra.mxu0 0.0
    %2546 = vmatprep.subr.mxu0 0.0
    %2547 = vmatpush1.xpose.msra.mxu0 0.0
    %2548 = vmatprep.subr.mxu0 0.0
    %2549 = vmatpush1.xpose.msra.mxu0 0.0
    %2550 = vmatprep.subr.mxu0 0.0
    %2551 = vmatpush1.xpose.msra.mxu0 0.0
    %2552 = vmatprep.subr.mxu0 0.0
    %2553 = vmatpush1.xpose.msra.mxu0 0.0
    %2554 = vmatprep.subr.mxu0 0.0
    %2555 = vmatpush1.xpose.msra.mxu0 0.0
    %2556 = vmatprep.subr.mxu0 0.0
    %2557 = vmatpush1.xpose.msra.mxu0 0.0
    %2558 = vmatprep.subr.mxu0 0.0
    %2559 = vmatpush1.xpose.msra.mxu0 0.0
    %2560 = vmatprep.subr.mxu0 0.0
    %2561 = vmatpush1.xpose.msra.mxu0 0.0
    %2562 = vmatprep.subr.mxu0 0.0
    %2563 = vmatpush1.xpose.msra.mxu0 0.0
    %2564 = vmatprep.subr.mxu0 0.0
    %2565 = vmatpush1.xpose.msra.mxu0 0.0
    %2566 = vmatprep.subr.mxu0 0.0
    %2567 = vmatpush1.xpose.msra.mxu0 0.0
    %2568 = vmatprep.subr.mxu0 0.0
    %2569 = vmatpush1.xpose.msra.mxu0 0.0
    %2570 = vmatprep.subr.mxu0 0.0
    %2571 = vmatpush1.xpose.msra.mxu0 0.0
    %2572 = vmatprep.subr.mxu0 0.0
    %2573 = vmatpush1.xpose.msra.mxu0 %v2540
    %2574 = vmatprep.subr.mxu0 0.0
    %2575 = vmatpush2.xpose.msra.mxu0 0.0
    %2576 = vmatprep.subr.mxu0 0.0
    %2577 = vmatpush2.xpose.msra.mxu0 0.0
    %2578 = vmatprep.subr.mxu0 0.0
    %2579 = vmatpush2.xpose.msra.mxu0 0.0
    %2580 = vmatprep.subr.mxu0 0.0
    %2581 = vmatpush2.xpose.msra.mxu0 0.0
    %2582 = vmatprep.subr.mxu0 0.0
    %2583 = vmatpush2.xpose.msra.mxu0 0.0
    %2584 = vmatprep.subr.mxu0 0.0
    %2585 = vmatpush2.xpose.msra.mxu0 0.0
    %2586 = vmatprep.subr.mxu0 0.0
    %2587 = vmatpush2.xpose.msra.mxu0 0.0
    %2588 = vmatprep.subr.mxu0 0.0
    %2589 = vmatpush2.xpose.msra.mxu0 0.0
    %2590 = vmatprep.subr.mxu0 0.0
    %2591 = vmatpush2.xpose.msra.mxu0 0.0
    %2592 = vmatprep.subr.mxu0 0.0
    %2593 = vmatpush2.xpose.msra.mxu0 0.0
    %2594 = vmatprep.subr.mxu0 0.0
    %2595 = vmatpush2.xpose.msra.mxu0 0.0
    %2596 = vmatprep.subr.mxu0 0.0
    %2597 = vmatpush2.xpose.msra.mxu0 0.0
    %2598 = vmatprep.subr.mxu0 0.0
    %2599 = vmatpush2.xpose.msra.mxu0 0.0
    %2600 = vmatprep.subr.mxu0 0.0
    %2601 = vmatpush2.xpose.msra.mxu0 0.0
    %2602 = vmatprep.subr.mxu0 0.0
    %2603 = vmatpush2.xpose.msra.mxu0 0.0
    %2604 = vmatprep.subr.mxu0 0.0
    %2605 = vmatpush2.xpose.msra.mxu0 0.0
    %2606 = vmatprep.mubr.f32.mxu0 0.0
    %2607 = vmatmul.mubr.f32.gmra.mxu0 %v2537
    %v2608 = vpop.f32.mrf.mxu0
    %v2609 = vadd.f32 0.0, %v2608
    %v2610 = vpop.f32.mrf.mxu0
    %2611 = vdwg.mxu0
    %v2612 = vmul.f32 %v2533, 0.125
    %v2613 = vmul.f32 %v2609, 0.125
    %v2614 = vsel %vm150, -1e+09, %v2612
    %v2615 = vsel %vm151, -1e+09, %v2613
    %s2616 = scalar_lea.vmem [#allocation10], 384
    %v2617 = vld [vmem:[%s2616] sm:$0xff]
    %v2618 = vld [vmem:[%s2616 + $0x8] sm:$0xff]
    %v2619 = vld [vmem:[%s2616 + $0x10] sm:$0xff]
    %v2620 = vld [vmem:[%s2616 + $0x18] sm:$0xff]
    %v2621 = vld [vmem:[%s2616 + $0x20] sm:$0xff]
    %v2622 = vld [vmem:[%s2616 + $0x28] sm:$0xff]
    %v2623 = vld [vmem:[%s2616 + $0x30] sm:$0xff]
    %v2624 = vld [vmem:[%s2616 + $0x38] sm:$0xff]
    %2625 = vmatprep.subr.mxu0 0.0
    %2626 = vmatpush1.msra.mxu0 0.0
    %2627 = vmatprep.subr.mxu0 0.0
    %2628 = vmatpush1.msra.mxu0 0.0
    %2629 = vmatprep.subr.mxu0 0.0
    %2630 = vmatpush1.msra.mxu0 0.0
    %2631 = vmatprep.subr.mxu0 0.0
    %2632 = vmatpush1.msra.mxu0 0.0
    %2633 = vmatprep.subr.mxu0 0.0
    %2634 = vmatpush1.msra.mxu0 0.0
    %2635 = vmatprep.subr.mxu0 0.0
    %2636 = vmatpush1.msra.mxu0 0.0
    %2637 = vmatprep.subr.mxu0 0.0
    %2638 = vmatpush1.msra.mxu0 0.0
    %2639 = vmatprep.subr.mxu0 0.0
    %2640 = vmatpush1.msra.mxu0 0.0
    %2641 = vmatprep.subr.mxu0 0.0
    %2642 = vmatpush1.msra.mxu0 %v2624
    %2643 = vmatprep.subr.mxu0 0.0
    %2644 = vmatpush1.msra.mxu0 %v2623
    %2645 = vmatprep.subr.mxu0 0.0
    %2646 = vmatpush1.msra.mxu0 %v2622
    %2647 = vmatprep.subr.mxu0 0.0
    %2648 = vmatpush1.msra.mxu0 %v2621
    %2649 = vmatprep.subr.mxu0 0.0
    %2650 = vmatpush1.msra.mxu0 %v2620
    %2651 = vmatprep.subr.mxu0 0.0
    %2652 = vmatpush1.msra.mxu0 %v2619
    %2653 = vmatprep.subr.mxu0 0.0
    %2654 = vmatpush1.msra.mxu0 %v2618
    %2655 = vmatprep.subr.mxu0 0.0
    %2656 = vmatpush1.msra.mxu0 %v2617
    %2657 = vmatprep.subr.mxu0 0.0
    %2658 = vmatpush2.msra.mxu0 0.0
    %2659 = vmatprep.subr.mxu0 0.0
    %2660 = vmatpush2.msra.mxu0 0.0
    %2661 = vmatprep.subr.mxu0 0.0
    %2662 = vmatpush2.msra.mxu0 0.0
    %2663 = vmatprep.subr.mxu0 0.0
    %2664 = vmatpush2.msra.mxu0 0.0
    %2665 = vmatprep.subr.mxu0 0.0
    %2666 = vmatpush2.msra.mxu0 0.0
    %2667 = vmatprep.subr.mxu0 0.0
    %2668 = vmatpush2.msra.mxu0 0.0
    %2669 = vmatprep.subr.mxu0 0.0
    %2670 = vmatpush2.msra.mxu0 0.0
    %2671 = vmatprep.subr.mxu0 0.0
    %2672 = vmatpush2.msra.mxu0 0.0
    %2673 = vmatprep.subr.mxu0 0.0
    %2674 = vmatpush2.msra.mxu0 0.0
    %2675 = vmatprep.subr.mxu0 0.0
    %2676 = vmatpush2.msra.mxu0 0.0
    %2677 = vmatprep.subr.mxu0 0.0
    %2678 = vmatpush2.msra.mxu0 0.0
    %2679 = vmatprep.subr.mxu0 0.0
    %2680 = vmatpush2.msra.mxu0 0.0
    %2681 = vmatprep.subr.mxu0 0.0
    %2682 = vmatpush2.msra.mxu0 0.0
    %2683 = vmatprep.subr.mxu0 0.0
    %2684 = vmatpush2.msra.mxu0 0.0
    %2685 = vmatprep.subr.mxu0 0.0
    %2686 = vmatpush2.msra.mxu0 0.0
    %2687 = vmatprep.subr.mxu0 0.0
    %2688 = vmatpush2.msra.mxu0 0.0
    %2689 = vmatprep.mubr.f32.mxu0 0.0
    %2690 = vmatmul.mubr.f32.gmra.mxu0 %v162
    %v2691 = vpop.f32.mrf.mxu0
    %v2692 = vadd.f32 0.0, %v2691
    %v2693 = vpop.f32.mrf.mxu0
    %2694 = vmatprep.mubr.f32.mxu0 0.0
    %2695 = vmatmul.mubr.f32.gmra.mxu0 %v165
    %v2696 = vpop.f32.mrf.mxu0
    %v2697 = vadd.f32 0.0, %v2696
    %v2698 = vpop.f32.mrf.mxu0
    %2699 = vdwg.mxu0
    %s2700 = scalar_lea.vmem [#allocation11], 384
    %v2701 = vld [vmem:[%s2700] sm:$0xff]
    %v2702 = vld [vmem:[%s2700 + $0x8] sm:$0xff]
    %v2703 = vld [vmem:[%s2700 + $0x10] sm:$0xff]
    %v2704 = vld [vmem:[%s2700 + $0x18] sm:$0xff]
    %v2705 = vld [vmem:[%s2700 + $0x20] sm:$0xff]
    %v2706 = vld [vmem:[%s2700 + $0x28] sm:$0xff]
    %v2707 = vld [vmem:[%s2700 + $0x30] sm:$0xff]
    %v2708 = vld [vmem:[%s2700 + $0x38] sm:$0xff]
    %2709 = vmatprep.subr.mxu0 0.0
    %2710 = vmatpush1.msra.mxu0 0.0
    %2711 = vmatprep.subr.mxu0 0.0
    %2712 = vmatpush1.msra.mxu0 0.0
    %2713 = vmatprep.subr.mxu0 0.0
    %2714 = vmatpush1.msra.mxu0 0.0
    %2715 = vmatprep.subr.mxu0 0.0
    %2716 = vmatpush1.msra.mxu0 0.0
    %2717 = vmatprep.subr.mxu0 0.0
    %2718 = vmatpush1.msra.mxu0 0.0
    %2719 = vmatprep.subr.mxu0 0.0
    %2720 = vmatpush1.msra.mxu0 0.0
    %2721 = vmatprep.subr.mxu0 0.0
    %2722 = vmatpush1.msra.mxu0 0.0
    %2723 = vmatprep.subr.mxu0 0.0
    %2724 = vmatpush1.msra.mxu0 0.0
    %2725 = vmatprep.subr.mxu0 0.0
    %2726 = vmatpush1.msra.mxu0 %v2708
    %2727 = vmatprep.subr.mxu0 0.0
    %2728 = vmatpush1.msra.mxu0 %v2707
    %2729 = vmatprep.subr.mxu0 0.0
    %2730 = vmatpush1.msra.mxu0 %v2706
    %2731 = vmatprep.subr.mxu0 0.0
    %2732 = vmatpush1.msra.mxu0 %v2705
    %2733 = vmatprep.subr.mxu0 0.0
    %2734 = vmatpush1.msra.mxu0 %v2704
    %2735 = vmatprep.subr.mxu0 0.0
    %2736 = vmatpush1.msra.mxu0 %v2703
    %2737 = vmatprep.subr.mxu0 0.0
    %2738 = vmatpush1.msra.mxu0 %v2702
    %2739 = vmatprep.subr.mxu0 0.0
    %2740 = vmatpush1.msra.mxu0 %v2701
    %2741 = vmatprep.subr.mxu0 0.0
    %2742 = vmatpush2.msra.mxu0 0.0
    %2743 = vmatprep.subr.mxu0 0.0
    %2744 = vmatpush2.msra.mxu0 0.0
    %2745 = vmatprep.subr.mxu0 0.0
    %2746 = vmatpush2.msra.mxu0 0.0
    %2747 = vmatprep.subr.mxu0 0.0
    %2748 = vmatpush2.msra.mxu0 0.0
    %2749 = vmatprep.subr.mxu0 0.0
    %2750 = vmatpush2.msra.mxu0 0.0
    %2751 = vmatprep.subr.mxu0 0.0
    %2752 = vmatpush2.msra.mxu0 0.0
    %2753 = vmatprep.subr.mxu0 0.0
    %2754 = vmatpush2.msra.mxu0 0.0
    %2755 = vmatprep.subr.mxu0 0.0
    %2756 = vmatpush2.msra.mxu0 0.0
    %2757 = vmatprep.subr.mxu0 0.0
    %2758 = vmatpush2.msra.mxu0 0.0
    %2759 = vmatprep.subr.mxu0 0.0
    %2760 = vmatpush2.msra.mxu0 0.0
    %2761 = vmatprep.subr.mxu0 0.0
    %2762 = vmatpush2.msra.mxu0 0.0
    %2763 = vmatprep.subr.mxu0 0.0
    %2764 = vmatpush2.msra.mxu0 0.0
    %2765 = vmatprep.subr.mxu0 0.0
    %2766 = vmatpush2.msra.mxu0 0.0
    %2767 = vmatprep.subr.mxu0 0.0
    %2768 = vmatpush2.msra.mxu0 0.0
    %2769 = vmatprep.subr.mxu0 0.0
    %2770 = vmatpush2.msra.mxu0 0.0
    %2771 = vmatprep.subr.mxu0 0.0
    %2772 = vmatpush2.msra.mxu0 0.0
    %2773 = vmatprep.mubr.f32.mxu0 0.0
    %2774 = vmatmul.mubr.f32.gmra.mxu0 %v251
    %v2775 = vpop.f32.mrf.mxu0
    %v2776 = vadd.f32 0.0, %v2775
    %v2777 = vpop.f32.mrf.mxu0
    %2778 = vmatprep.mubr.f32.mxu0 0.0
    %2779 = vmatmul.mubr.f32.gmra.mxu0 %v254
    %v2780 = vpop.f32.mrf.mxu0
    %v2781 = vadd.f32 0.0, %v2780
    %v2782 = vpop.f32.mrf.mxu0
    %2783 = vdwg.mxu0
    %s2784 = scalar_lea.vmem [#allocation13], 384
    %v2785 = vld [vmem:[%s2784] sm:$0xff]
    %v2786 = vld [vmem:[%s2784 + $0x8] sm:$0xff]
    %v2787 = vld [vmem:[%s2784 + $0x10] sm:$0xff]
    %v2788 = vld [vmem:[%s2784 + $0x18] sm:$0xff]
    %v2789 = vld [vmem:[%s2784 + $0x20] sm:$0xff]
    %v2790 = vld [vmem:[%s2784 + $0x28] sm:$0xff]
    %v2791 = vld [vmem:[%s2784 + $0x30] sm:$0xff]
    %v2792 = vld [vmem:[%s2784 + $0x38] sm:$0xff]
    %2793 = vmatprep.subr.mxu0 0.0
    %2794 = vmatpush1.msra.mxu0 0.0
    %2795 = vmatprep.subr.mxu0 0.0
    %2796 = vmatpush1.msra.mxu0 0.0
    %2797 = vmatprep.subr.mxu0 0.0
    %2798 = vmatpush1.msra.mxu0 0.0
    %2799 = vmatprep.subr.mxu0 0.0
    %2800 = vmatpush1.msra.mxu0 0.0
    %2801 = vmatprep.subr.mxu0 0.0
    %2802 = vmatpush1.msra.mxu0 0.0
    %2803 = vmatprep.subr.mxu0 0.0
    %2804 = vmatpush1.msra.mxu0 0.0
    %2805 = vmatprep.subr.mxu0 0.0
    %2806 = vmatpush1.msra.mxu0 0.0
    %2807 = vmatprep.subr.mxu0 0.0
    %2808 = vmatpush1.msra.mxu0 0.0
    %2809 = vmatprep.subr.mxu0 0.0
    %2810 = vmatpush1.msra.mxu0 %v2792
    %2811 = vmatprep.subr.mxu0 0.0
    %2812 = vmatpush1.msra.mxu0 %v2791
    %2813 = vmatprep.subr.mxu0 0.0
    %2814 = vmatpush1.msra.mxu0 %v2790
    %2815 = vmatprep.subr.mxu0 0.0
    %2816 = vmatpush1.msra.mxu0 %v2789
    %2817 = vmatprep.subr.mxu0 0.0
    %2818 = vmatpush1.msra.mxu0 %v2788
    %2819 = vmatprep.subr.mxu0 0.0
    %2820 = vmatpush1.msra.mxu0 %v2787
    %2821 = vmatprep.subr.mxu0 0.0
    %2822 = vmatpush1.msra.mxu0 %v2786
    %2823 = vmatprep.subr.mxu0 0.0
    %2824 = vmatpush1.msra.mxu0 %v2785
    %2825 = vmatprep.subr.mxu0 0.0
    %2826 = vmatpush2.msra.mxu0 0.0
    %2827 = vmatprep.subr.mxu0 0.0
    %2828 = vmatpush2.msra.mxu0 0.0
    %2829 = vmatprep.subr.mxu0 0.0
    %2830 = vmatpush2.msra.mxu0 0.0
    %2831 = vmatprep.subr.mxu0 0.0
    %2832 = vmatpush2.msra.mxu0 0.0
    %2833 = vmatprep.subr.mxu0 0.0
    %2834 = vmatpush2.msra.mxu0 0.0
    %2835 = vmatprep.subr.mxu0 0.0
    %2836 = vmatpush2.msra.mxu0 0.0
    %2837 = vmatprep.subr.mxu0 0.0
    %2838 = vmatpush2.msra.mxu0 0.0
    %2839 = vmatprep.subr.mxu0 0.0
    %2840 = vmatpush2.msra.mxu0 0.0
    %2841 = vmatprep.subr.mxu0 0.0
    %2842 = vmatpush2.msra.mxu0 0.0
    %2843 = vmatprep.subr.mxu0 0.0
    %2844 = vmatpush2.msra.mxu0 0.0
    %2845 = vmatprep.subr.mxu0 0.0
    %2846 = vmatpush2.msra.mxu0 0.0
    %2847 = vmatprep.subr.mxu0 0.0
    %2848 = vmatpush2.msra.mxu0 0.0
    %2849 = vmatprep.subr.mxu0 0.0
    %2850 = vmatpush2.msra.mxu0 0.0
    %2851 = vmatprep.subr.mxu0 0.0
    %2852 = vmatpush2.msra.mxu0 0.0
    %2853 = vmatprep.subr.mxu0 0.0
    %2854 = vmatpush2.msra.mxu0 0.0
    %2855 = vmatprep.subr.mxu0 0.0
    %2856 = vmatpush2.msra.mxu0 0.0
    %2857 = vmatprep.mubr.f32.mxu0 0.0
    %2858 = vmatmul.mubr.f32.gmra.mxu0 %v340
    %v2859 = vpop.f32.mrf.mxu0
    %v2860 = vadd.f32 0.0, %v2859
    %v2861 = vpop.f32.mrf.mxu0
    %2862 = vmatprep.mubr.f32.mxu0 0.0
    %2863 = vmatmul.mubr.f32.gmra.mxu0 %v343
    %v2864 = vpop.f32.mrf.mxu0
    %v2865 = vadd.f32 0.0, %v2864
    %v2866 = vpop.f32.mrf.mxu0
    %2867 = vdwg.mxu0
    %v2869 = vsel %vm160, %v2692, 0
    %v2872 = vsel %vm160, %v2776, 0
    %2874 = vmatprep.subr.mxu0 0.0
    %2875 = vmatpush1.xpose.msra.mxu0 0.0
    %2876 = vmatprep.subr.mxu0 0.0
    %2877 = vmatpush1.xpose.msra.mxu0 0.0
    %2878 = vmatprep.subr.mxu0 0.0
    %2879 = vmatpush1.xpose.msra.mxu0 0.0
    %2880 = vmatprep.subr.mxu0 0.0
    %2881 = vmatpush1.xpose.msra.mxu0 0.0
    %2882 = vmatprep.subr.mxu0 0.0
    %2883 = vmatpush1.xpose.msra.mxu0 0.0
    %2884 = vmatprep.subr.mxu0 0.0
    %2885 = vmatpush1.xpose.msra.mxu0 0.0
    %2886 = vmatprep.subr.mxu0 0.0
    %2887 = vmatpush1.xpose.msra.mxu0 0.0
    %2888 = vmatprep.subr.mxu0 0.0
    %2889 = vmatpush1.xpose.msra.mxu0 0.0
    %2890 = vmatprep.subr.mxu0 0.0
    %2891 = vmatpush1.xpose.msra.mxu0 0.0
    %2892 = vmatprep.subr.mxu0 0.0
    %2893 = vmatpush1.xpose.msra.mxu0 0.0
    %2894 = vmatprep.subr.mxu0 0.0
    %2895 = vmatpush1.xpose.msra.mxu0 0.0
    %2896 = vmatprep.subr.mxu0 0.0
    %2897 = vmatpush1.xpose.msra.mxu0 0.0
    %2898 = vmatprep.subr.mxu0 0.0
    %2899 = vmatpush1.xpose.msra.mxu0 0.0
    %2900 = vmatprep.subr.mxu0 0.0
    %2901 = vmatpush1.xpose.msra.mxu0 0.0
    %2902 = vmatprep.subr.mxu0 0.0
    %2903 = vmatpush1.xpose.msra.mxu0 0.0
    %2904 = vmatprep.subr.mxu0 0.0
    %2905 = vmatpush1.xpose.msra.mxu0 %v2872
    %2906 = vmatprep.subr.mxu0 0.0
    %2907 = vmatpush2.xpose.msra.mxu0 0.0
    %2908 = vmatprep.subr.mxu0 0.0
    %2909 = vmatpush2.xpose.msra.mxu0 0.0
    %2910 = vmatprep.subr.mxu0 0.0
    %2911 = vmatpush2.xpose.msra.mxu0 0.0
    %2912 = vmatprep.subr.mxu0 0.0
    %2913 = vmatpush2.xpose.msra.mxu0 0.0
    %2914 = vmatprep.subr.mxu0 0.0
    %2915 = vmatpush2.xpose.msra.mxu0 0.0
    %2916 = vmatprep.subr.mxu0 0.0
    %2917 = vmatpush2.xpose.msra.mxu0 0.0
    %2918 = vmatprep.subr.mxu0 0.0
    %2919 = vmatpush2.xpose.msra.mxu0 0.0
    %2920 = vmatprep.subr.mxu0 0.0
    %2921 = vmatpush2.xpose.msra.mxu0 0.0
    %2922 = vmatprep.subr.mxu0 0.0
    %2923 = vmatpush2.xpose.msra.mxu0 0.0
    %2924 = vmatprep.subr.mxu0 0.0
    %2925 = vmatpush2.xpose.msra.mxu0 0.0
    %2926 = vmatprep.subr.mxu0 0.0
    %2927 = vmatpush2.xpose.msra.mxu0 0.0
    %2928 = vmatprep.subr.mxu0 0.0
    %2929 = vmatpush2.xpose.msra.mxu0 0.0
    %2930 = vmatprep.subr.mxu0 0.0
    %2931 = vmatpush2.xpose.msra.mxu0 0.0
    %2932 = vmatprep.subr.mxu0 0.0
    %2933 = vmatpush2.xpose.msra.mxu0 0.0
    %2934 = vmatprep.subr.mxu0 0.0
    %2935 = vmatpush2.xpose.msra.mxu0 0.0
    %2936 = vmatprep.subr.mxu0 0.0
    %2937 = vmatpush2.xpose.msra.mxu0 0.0
    %2938 = vmatprep.mubr.f32.mxu0 0.0
    %2939 = vmatmul.mubr.f32.gmra.mxu0 %v2869
    %v2940 = vpop.f32.mrf.mxu0
    %v2941 = vadd.f32 0.0, %v2940
    %v2942 = vpop.f32.mrf.mxu0
    %2943 = vdwg.mxu0
    %v2945 = vsel %vm160, %v2697, 0
    %v2948 = vsel %vm160, %v2781, 0
    %2950 = vmatprep.subr.mxu0 0.0
    %2951 = vmatpush1.xpose.msra.mxu0 0.0
    %2952 = vmatprep.subr.mxu0 0.0
    %2953 = vmatpush1.xpose.msra.mxu0 0.0
    %2954 = vmatprep.subr.mxu0 0.0
    %2955 = vmatpush1.xpose.msra.mxu0 0.0
    %2956 = vmatprep.subr.mxu0 0.0
    %2957 = vmatpush1.xpose.msra.mxu0 0.0
    %2958 = vmatprep.subr.mxu0 0.0
    %2959 = vmatpush1.xpose.msra.mxu0 0.0
    %2960 = vmatprep.subr.mxu0 0.0
    %2961 = vmatpush1.xpose.msra.mxu0 0.0
    %2962 = vmatprep.subr.mxu0 0.0
    %2963 = vmatpush1.xpose.msra.mxu0 0.0
    %2964 = vmatprep.subr.mxu0 0.0
    %2965 = vmatpush1.xpose.msra.mxu0 0.0
    %2966 = vmatprep.subr.mxu0 0.0
    %2967 = vmatpush1.xpose.msra.mxu0 0.0
    %2968 = vmatprep.subr.mxu0 0.0
    %2969 = vmatpush1.xpose.msra.mxu0 0.0
    %2970 = vmatprep.subr.mxu0 0.0
    %2971 = vmatpush1.xpose.msra.mxu0 0.0
    %2972 = vmatprep.subr.mxu0 0.0
    %2973 = vmatpush1.xpose.msra.mxu0 0.0
    %2974 = vmatprep.subr.mxu0 0.0
    %2975 = vmatpush1.xpose.msra.mxu0 0.0
    %2976 = vmatprep.subr.mxu0 0.0
    %2977 = vmatpush1.xpose.msra.mxu0 0.0
    %2978 = vmatprep.subr.mxu0 0.0
    %2979 = vmatpush1.xpose.msra.mxu0 0.0
    %2980 = vmatprep.subr.mxu0 0.0
    %2981 = vmatpush1.xpose.msra.mxu0 %v2948
    %2982 = vmatprep.subr.mxu0 0.0
    %2983 = vmatpush2.xpose.msra.mxu0 0.0
    %2984 = vmatprep.subr.mxu0 0.0
    %2985 = vmatpush2.xpose.msra.mxu0 0.0
    %2986 = vmatprep.subr.mxu0 0.0
    %2987 = vmatpush2.xpose.msra.mxu0 0.0
    %2988 = vmatprep.subr.mxu0 0.0
    %2989 = vmatpush2.xpose.msra.mxu0 0.0
    %2990 = vmatprep.subr.mxu0 0.0
    %2991 = vmatpush2.xpose.msra.mxu0 0.0
    %2992 = vmatprep.subr.mxu0 0.0
    %2993 = vmatpush2.xpose.msra.mxu0 0.0
    %2994 = vmatprep.subr.mxu0 0.0
    %2995 = vmatpush2.xpose.msra.mxu0 0.0
    %2996 = vmatprep.subr.mxu0 0.0
    %2997 = vmatpush2.xpose.msra.mxu0 0.0
    %2998 = vmatprep.subr.mxu0 0.0
    %2999 = vmatpush2.xpose.msra.mxu0 0.0
    %3000 = vmatprep.subr.mxu0 0.0
    %3001 = vmatpush2.xpose.msra.mxu0 0.0
    %3002 = vmatprep.subr.mxu0 0.0
    %3003 = vmatpush2.xpose.msra.mxu0 0.0
    %3004 = vmatprep.subr.mxu0 0.0
    %3005 = vmatpush2.xpose.msra.mxu0 0.0
    %3006 = vmatprep.subr.mxu0 0.0
    %3007 = vmatpush2.xpose.msra.mxu0 0.0
    %3008 = vmatprep.subr.mxu0 0.0
    %3009 = vmatpush2.xpose.msra.mxu0 0.0
    %3010 = vmatprep.subr.mxu0 0.0
    %3011 = vmatpush2.xpose.msra.mxu0 0.0
    %3012 = vmatprep.subr.mxu0 0.0
    %3013 = vmatpush2.xpose.msra.mxu0 0.0
    %3014 = vmatprep.mubr.f32.mxu0 0.0
    %3015 = vmatmul.mubr.f32.gmra.mxu0 %v2945
    %v3016 = vpop.f32.mrf.mxu0
    %v3017 = vadd.f32 0.0, %v3016
    %v3018 = vpop.f32.mrf.mxu0
    %3019 = vdwg.mxu0
    %v3020 = vmul.f32 %v2941, 0.125
    %v3021 = vmul.f32 %v3017, 0.125
    %v3022 = vsel %vm150, -1e+09, %v3020
    %v3023 = vsel %vm151, -1e+09, %v3021
    %s3024 = scalar_lea.vmem [#allocation10], 448
    %v3025 = vld [vmem:[%s3024] sm:$0xff]
    %v3026 = vld [vmem:[%s3024 + $0x8] sm:$0xff]
    %v3027 = vld [vmem:[%s3024 + $0x10] sm:$0xff]
    %v3028 = vld [vmem:[%s3024 + $0x18] sm:$0xff]
    %v3029 = vld [vmem:[%s3024 + $0x20] sm:$0xff]
    %v3030 = vld [vmem:[%s3024 + $0x28] sm:$0xff]
    %v3031 = vld [vmem:[%s3024 + $0x30] sm:$0xff]
    %v3032 = vld [vmem:[%s3024 + $0x38] sm:$0xff]
    %3033 = vmatprep.subr.mxu0 0.0
    %3034 = vmatpush1.msra.mxu0 0.0
    %3035 = vmatprep.subr.mxu0 0.0
    %3036 = vmatpush1.msra.mxu0 0.0
    %3037 = vmatprep.subr.mxu0 0.0
    %3038 = vmatpush1.msra.mxu0 0.0
    %3039 = vmatprep.subr.mxu0 0.0
    %3040 = vmatpush1.msra.mxu0 0.0
    %3041 = vmatprep.subr.mxu0 0.0
    %3042 = vmatpush1.msra.mxu0 0.0
    %3043 = vmatprep.subr.mxu0 0.0
    %3044 = vmatpush1.msra.mxu0 0.0
    %3045 = vmatprep.subr.mxu0 0.0
    %3046 = vmatpush1.msra.mxu0 0.0
    %3047 = vmatprep.subr.mxu0 0.0
    %3048 = vmatpush1.msra.mxu0 0.0
    %3049 = vmatprep.subr.mxu0 0.0
    %3050 = vmatpush1.msra.mxu0 %v3032
    %3051 = vmatprep.subr.mxu0 0.0
    %3052 = vmatpush1.msra.mxu0 %v3031
    %3053 = vmatprep.subr.mxu0 0.0
    %3054 = vmatpush1.msra.mxu0 %v3030
    %3055 = vmatprep.subr.mxu0 0.0
    %3056 = vmatpush1.msra.mxu0 %v3029
    %3057 = vmatprep.subr.mxu0 0.0
    %3058 = vmatpush1.msra.mxu0 %v3028
    %3059 = vmatprep.subr.mxu0 0.0
    %3060 = vmatpush1.msra.mxu0 %v3027
    %3061 = vmatprep.subr.mxu0 0.0
    %3062 = vmatpush1.msra.mxu0 %v3026
    %3063 = vmatprep.subr.mxu0 0.0
    %3064 = vmatpush1.msra.mxu0 %v3025
    %3065 = vmatprep.subr.mxu0 0.0
    %3066 = vmatpush2.msra.mxu0 0.0
    %3067 = vmatprep.subr.mxu0 0.0
    %3068 = vmatpush2.msra.mxu0 0.0
    %3069 = vmatprep.subr.mxu0 0.0
    %3070 = vmatpush2.msra.mxu0 0.0
    %3071 = vmatprep.subr.mxu0 0.0
    %3072 = vmatpush2.msra.mxu0 0.0
    %3073 = vmatprep.subr.mxu0 0.0
    %3074 = vmatpush2.msra.mxu0 0.0
    %3075 = vmatprep.subr.mxu0 0.0
    %3076 = vmatpush2.msra.mxu0 0.0
    %3077 = vmatprep.subr.mxu0 0.0
    %3078 = vmatpush2.msra.mxu0 0.0
    %3079 = vmatprep.subr.mxu0 0.0
    %3080 = vmatpush2.msra.mxu0 0.0
    %3081 = vmatprep.subr.mxu0 0.0
    %3082 = vmatpush2.msra.mxu0 0.0
    %3083 = vmatprep.subr.mxu0 0.0
    %3084 = vmatpush2.msra.mxu0 0.0
    %3085 = vmatprep.subr.mxu0 0.0
    %3086 = vmatpush2.msra.mxu0 0.0
    %3087 = vmatprep.subr.mxu0 0.0
    %3088 = vmatpush2.msra.mxu0 0.0
    %3089 = vmatprep.subr.mxu0 0.0
    %3090 = vmatpush2.msra.mxu0 0.0
    %3091 = vmatprep.subr.mxu0 0.0
    %3092 = vmatpush2.msra.mxu0 0.0
    %3093 = vmatprep.subr.mxu0 0.0
    %3094 = vmatpush2.msra.mxu0 0.0
    %3095 = vmatprep.subr.mxu0 0.0
    %3096 = vmatpush2.msra.mxu0 0.0
    %3097 = vmatprep.mubr.f32.mxu0 0.0
    %3098 = vmatmul.mubr.f32.gmra.mxu0 %v162
    %v3099 = vpop.f32.mrf.mxu0
    %v3100 = vadd.f32 0.0, %v3099
    %v3101 = vpop.f32.mrf.mxu0
    %3102 = vmatprep.mubr.f32.mxu0 0.0
    %3103 = vmatmul.mubr.f32.gmra.mxu0 %v165
    %v3104 = vpop.f32.mrf.mxu0
    %v3105 = vadd.f32 0.0, %v3104
    %v3106 = vpop.f32.mrf.mxu0
    %3107 = vdwg.mxu0
    %s3108 = scalar_lea.vmem [#allocation11], 448
    %v3109 = vld [vmem:[%s3108] sm:$0xff]
    %v3110 = vld [vmem:[%s3108 + $0x8] sm:$0xff]
    %v3111 = vld [vmem:[%s3108 + $0x10] sm:$0xff]
    %v3112 = vld [vmem:[%s3108 + $0x18] sm:$0xff]
    %v3113 = vld [vmem:[%s3108 + $0x20] sm:$0xff]
    %v3114 = vld [vmem:[%s3108 + $0x28] sm:$0xff]
    %v3115 = vld [vmem:[%s3108 + $0x30] sm:$0xff]
    %v3116 = vld [vmem:[%s3108 + $0x38] sm:$0xff]
    %3117 = vmatprep.subr.mxu0 0.0
    %3118 = vmatpush1.msra.mxu0 0.0
    %3119 = vmatprep.subr.mxu0 0.0
    %3120 = vmatpush1.msra.mxu0 0.0
    %3121 = vmatprep.subr.mxu0 0.0
    %3122 = vmatpush1.msra.mxu0 0.0
    %3123 = vmatprep.subr.mxu0 0.0
    %3124 = vmatpush1.msra.mxu0 0.0
    %3125 = vmatprep.subr.mxu0 0.0
    %3126 = vmatpush1.msra.mxu0 0.0
    %3127 = vmatprep.subr.mxu0 0.0
    %3128 = vmatpush1.msra.mxu0 0.0
    %3129 = vmatprep.subr.mxu0 0.0
    %3130 = vmatpush1.msra.mxu0 0.0
    %3131 = vmatprep.subr.mxu0 0.0
    %3132 = vmatpush1.msra.mxu0 0.0
    %3133 = vmatprep.subr.mxu0 0.0
    %3134 = vmatpush1.msra.mxu0 %v3116
    %3135 = vmatprep.subr.mxu0 0.0
    %3136 = vmatpush1.msra.mxu0 %v3115
    %3137 = vmatprep.subr.mxu0 0.0
    %3138 = vmatpush1.msra.mxu0 %v3114
    %3139 = vmatprep.subr.mxu0 0.0
    %3140 = vmatpush1.msra.mxu0 %v3113
    %3141 = vmatprep.subr.mxu0 0.0
    %3142 = vmatpush1.msra.mxu0 %v3112
    %3143 = vmatprep.subr.mxu0 0.0
    %3144 = vmatpush1.msra.mxu0 %v3111
    %3145 = vmatprep.subr.mxu0 0.0
    %3146 = vmatpush1.msra.mxu0 %v3110
    %3147 = vmatprep.subr.mxu0 0.0
    %3148 = vmatpush1.msra.mxu0 %v3109
    %3149 = vmatprep.subr.mxu0 0.0
    %3150 = vmatpush2.msra.mxu0 0.0
    %3151 = vmatprep.subr.mxu0 0.0
    %3152 = vmatpush2.msra.mxu0 0.0
    %3153 = vmatprep.subr.mxu0 0.0
    %3154 = vmatpush2.msra.mxu0 0.0
    %3155 = vmatprep.subr.mxu0 0.0
    %3156 = vmatpush2.msra.mxu0 0.0
    %3157 = vmatprep.subr.mxu0 0.0
    %3158 = vmatpush2.msra.mxu0 0.0
    %3159 = vmatprep.subr.mxu0 0.0
    %3160 = vmatpush2.msra.mxu0 0.0
    %3161 = vmatprep.subr.mxu0 0.0
    %3162 = vmatpush2.msra.mxu0 0.0
    %3163 = vmatprep.subr.mxu0 0.0
    %3164 = vmatpush2.msra.mxu0 0.0
    %3165 = vmatprep.subr.mxu0 0.0
    %3166 = vmatpush2.msra.mxu0 0.0
    %3167 = vmatprep.subr.mxu0 0.0
    %3168 = vmatpush2.msra.mxu0 0.0
    %3169 = vmatprep.subr.mxu0 0.0
    %3170 = vmatpush2.msra.mxu0 0.0
    %3171 = vmatprep.subr.mxu0 0.0
    %3172 = vmatpush2.msra.mxu0 0.0
    %3173 = vmatprep.subr.mxu0 0.0
    %3174 = vmatpush2.msra.mxu0 0.0
    %3175 = vmatprep.subr.mxu0 0.0
    %3176 = vmatpush2.msra.mxu0 0.0
    %3177 = vmatprep.subr.mxu0 0.0
    %3178 = vmatpush2.msra.mxu0 0.0
    %3179 = vmatprep.subr.mxu0 0.0
    %3180 = vmatpush2.msra.mxu0 0.0
    %3181 = vmatprep.mubr.f32.mxu0 0.0
    %3182 = vmatmul.mubr.f32.gmra.mxu0 %v251
    %v3183 = vpop.f32.mrf.mxu0
    %v3184 = vadd.f32 0.0, %v3183
    %v3185 = vpop.f32.mrf.mxu0
    %3186 = vmatprep.mubr.f32.mxu0 0.0
    %3187 = vmatmul.mubr.f32.gmra.mxu0 %v254
    %v3188 = vpop.f32.mrf.mxu0
    %v3189 = vadd.f32 0.0, %v3188
    %v3190 = vpop.f32.mrf.mxu0
    %3191 = vdwg.mxu0
    %s3192 = scalar_lea.vmem [#allocation13], 448
    %v3193 = vld [vmem:[%s3192] sm:$0xff]
    %v3194 = vld [vmem:[%s3192 + $0x8] sm:$0xff]
    %v3195 = vld [vmem:[%s3192 + $0x10] sm:$0xff]
    %v3196 = vld [vmem:[%s3192 + $0x18] sm:$0xff]
    %v3197 = vld [vmem:[%s3192 + $0x20] sm:$0xff]
    %v3198 = vld [vmem:[%s3192 + $0x28] sm:$0xff]
    %v3199 = vld [vmem:[%s3192 + $0x30] sm:$0xff]
    %v3200 = vld [vmem:[%s3192 + $0x38] sm:$0xff]
    %3201 = vmatprep.subr.mxu0 0.0
    %3202 = vmatpush1.msra.mxu0 0.0
    %3203 = vmatprep.subr.mxu0 0.0
    %3204 = vmatpush1.msra.mxu0 0.0
    %3205 = vmatprep.subr.mxu0 0.0
    %3206 = vmatpush1.msra.mxu0 0.0
    %3207 = vmatprep.subr.mxu0 0.0
    %3208 = vmatpush1.msra.mxu0 0.0
    %3209 = vmatprep.subr.mxu0 0.0
    %3210 = vmatpush1.msra.mxu0 0.0
    %3211 = vmatprep.subr.mxu0 0.0
    %3212 = vmatpush1.msra.mxu0 0.0
    %3213 = vmatprep.subr.mxu0 0.0
    %3214 = vmatpush1.msra.mxu0 0.0
    %3215 = vmatprep.subr.mxu0 0.0
    %3216 = vmatpush1.msra.mxu0 0.0
    %3217 = vmatprep.subr.mxu0 0.0
    %3218 = vmatpush1.msra.mxu0 %v3200
    %3219 = vmatprep.subr.mxu0 0.0
    %3220 = vmatpush1.msra.mxu0 %v3199
    %3221 = vmatprep.subr.mxu0 0.0
    %3222 = vmatpush1.msra.mxu0 %v3198
    %3223 = vmatprep.subr.mxu0 0.0
    %3224 = vmatpush1.msra.mxu0 %v3197
    %3225 = vmatprep.subr.mxu0 0.0
    %3226 = vmatpush1.msra.mxu0 %v3196
    %3227 = vmatprep.subr.mxu0 0.0
    %3228 = vmatpush1.msra.mxu0 %v3195
    %3229 = vmatprep.subr.mxu0 0.0
    %3230 = vmatpush1.msra.mxu0 %v3194
    %3231 = vmatprep.subr.mxu0 0.0
    %3232 = vmatpush1.msra.mxu0 %v3193
    %3233 = vmatprep.subr.mxu0 0.0
    %3234 = vmatpush2.msra.mxu0 0.0
    %3235 = vmatprep.subr.mxu0 0.0
    %3236 = vmatpush2.msra.mxu0 0.0
    %3237 = vmatprep.subr.mxu0 0.0
    %3238 = vmatpush2.msra.mxu0 0.0
    %3239 = vmatprep.subr.mxu0 0.0
    %3240 = vmatpush2.msra.mxu0 0.0
    %3241 = vmatprep.subr.mxu0 0.0
    %3242 = vmatpush2.msra.mxu0 0.0
    %3243 = vmatprep.subr.mxu0 0.0
    %3244 = vmatpush2.msra.mxu0 0.0
    %3245 = vmatprep.subr.mxu0 0.0
    %3246 = vmatpush2.msra.mxu0 0.0
    %3247 = vmatprep.subr.mxu0 0.0
    %3248 = vmatpush2.msra.mxu0 0.0
    %3249 = vmatprep.subr.mxu0 0.0
    %3250 = vmatpush2.msra.mxu0 0.0
    %3251 = vmatprep.subr.mxu0 0.0
    %3252 = vmatpush2.msra.mxu0 0.0
    %3253 = vmatprep.subr.mxu0 0.0
    %3254 = vmatpush2.msra.mxu0 0.0
    %3255 = vmatprep.subr.mxu0 0.0
    %3256 = vmatpush2.msra.mxu0 0.0
    %3257 = vmatprep.subr.mxu0 0.0
    %3258 = vmatpush2.msra.mxu0 0.0
    %3259 = vmatprep.subr.mxu0 0.0
    %3260 = vmatpush2.msra.mxu0 0.0
    %3261 = vmatprep.subr.mxu0 0.0
    %3262 = vmatpush2.msra.mxu0 0.0
    %3263 = vmatprep.subr.mxu0 0.0
    %3264 = vmatpush2.msra.mxu0 0.0
    %3265 = vmatprep.mubr.f32.mxu0 0.0
    %3266 = vmatmul.mubr.f32.gmra.mxu0 %v340
    %v3267 = vpop.f32.mrf.mxu0
    %v3268 = vadd.f32 0.0, %v3267
    %v3269 = vpop.f32.mrf.mxu0
    %3270 = vmatprep.mubr.f32.mxu0 0.0
    %3271 = vmatmul.mubr.f32.gmra.mxu0 %v343
    %v3272 = vpop.f32.mrf.mxu0
    %v3273 = vadd.f32 0.0, %v3272
    %v3274 = vpop.f32.mrf.mxu0
    %3275 = vdwg.mxu0
    %v3277 = vsel %vm160, %v3100, 0
    %v3280 = vsel %vm160, %v3184, 0
    %3282 = vmatprep.subr.mxu0 0.0
    %3283 = vmatpush1.xpose.msra.mxu0 0.0
    %3284 = vmatprep.subr.mxu0 0.0
    %3285 = vmatpush1.xpose.msra.mxu0 0.0
    %3286 = vmatprep.subr.mxu0 0.0
    %3287 = vmatpush1.xpose.msra.mxu0 0.0
    %3288 = vmatprep.subr.mxu0 0.0
    %3289 = vmatpush1.xpose.msra.mxu0 0.0
    %3290 = vmatprep.subr.mxu0 0.0
    %3291 = vmatpush1.xpose.msra.mxu0 0.0
    %3292 = vmatprep.subr.mxu0 0.0
    %3293 = vmatpush1.xpose.msra.mxu0 0.0
    %3294 = vmatprep.subr.mxu0 0.0
    %3295 = vmatpush1.xpose.msra.mxu0 0.0
    %3296 = vmatprep.subr.mxu0 0.0
    %3297 = vmatpush1.xpose.msra.mxu0 0.0
    %3298 = vmatprep.subr.mxu0 0.0
    %3299 = vmatpush1.xpose.msra.mxu0 0.0
    %3300 = vmatprep.subr.mxu0 0.0
    %3301 = vmatpush1.xpose.msra.mxu0 0.0
    %3302 = vmatprep.subr.mxu0 0.0
    %3303 = vmatpush1.xpose.msra.mxu0 0.0
    %3304 = vmatprep.subr.mxu0 0.0
    %3305 = vmatpush1.xpose.msra.mxu0 0.0
    %3306 = vmatprep.subr.mxu0 0.0
    %3307 = vmatpush1.xpose.msra.mxu0 0.0
    %3308 = vmatprep.subr.mxu0 0.0
    %3309 = vmatpush1.xpose.msra.mxu0 0.0
    %3310 = vmatprep.subr.mxu0 0.0
    %3311 = vmatpush1.xpose.msra.mxu0 0.0
    %3312 = vmatprep.subr.mxu0 0.0
    %3313 = vmatpush1.xpose.msra.mxu0 %v3280
    %3314 = vmatprep.subr.mxu0 0.0
    %3315 = vmatpush2.xpose.msra.mxu0 0.0
    %3316 = vmatprep.subr.mxu0 0.0
    %3317 = vmatpush2.xpose.msra.mxu0 0.0
    %3318 = vmatprep.subr.mxu0 0.0
    %3319 = vmatpush2.xpose.msra.mxu0 0.0
    %3320 = vmatprep.subr.mxu0 0.0
    %3321 = vmatpush2.xpose.msra.mxu0 0.0
    %3322 = vmatprep.subr.mxu0 0.0
    %3323 = vmatpush2.xpose.msra.mxu0 0.0
    %3324 = vmatprep.subr.mxu0 0.0
    %3325 = vmatpush2.xpose.msra.mxu0 0.0
    %3326 = vmatprep.subr.mxu0 0.0
    %3327 = vmatpush2.xpose.msra.mxu0 0.0
    %3328 = vmatprep.subr.mxu0 0.0
    %3329 = vmatpush2.xpose.msra.mxu0 0.0
    %3330 = vmatprep.subr.mxu0 0.0
    %3331 = vmatpush2.xpose.msra.mxu0 0.0
    %3332 = vmatprep.subr.mxu0 0.0
    %3333 = vmatpush2.xpose.msra.mxu0 0.0
    %3334 = vmatprep.subr.mxu0 0.0
    %3335 = vmatpush2.xpose.msra.mxu0 0.0
    %3336 = vmatprep.subr.mxu0 0.0
    %3337 = vmatpush2.xpose.msra.mxu0 0.0
    %3338 = vmatprep.subr.mxu0 0.0
    %3339 = vmatpush2.xpose.msra.mxu0 0.0
    %3340 = vmatprep.subr.mxu0 0.0
    %3341 = vmatpush2.xpose.msra.mxu0 0.0
    %3342 = vmatprep.subr.mxu0 0.0
    %3343 = vmatpush2.xpose.msra.mxu0 0.0
    %3344 = vmatprep.subr.mxu0 0.0
    %3345 = vmatpush2.xpose.msra.mxu0 0.0
    %3346 = vmatprep.mubr.f32.mxu0 0.0
    %3347 = vmatmul.mubr.f32.gmra.mxu0 %v3277
    %v3348 = vpop.f32.mrf.mxu0
    %v3349 = vadd.f32 0.0, %v3348
    %v3350 = vpop.f32.mrf.mxu0
    %3351 = vdwg.mxu0
    %v3353 = vsel %vm160, %v3105, 0
    %v3356 = vsel %vm160, %v3189, 0
    %3358 = vmatprep.subr.mxu0 0.0
    %3359 = vmatpush1.xpose.msra.mxu0 0.0
    %3360 = vmatprep.subr.mxu0 0.0
    %3361 = vmatpush1.xpose.msra.mxu0 0.0
    %3362 = vmatprep.subr.mxu0 0.0
    %3363 = vmatpush1.xpose.msra.mxu0 0.0
    %3364 = vmatprep.subr.mxu0 0.0
    %3365 = vmatpush1.xpose.msra.mxu0 0.0
    %3366 = vmatprep.subr.mxu0 0.0
    %3367 = vmatpush1.xpose.msra.mxu0 0.0
    %3368 = vmatprep.subr.mxu0 0.0
    %3369 = vmatpush1.xpose.msra.mxu0 0.0
    %3370 = vmatprep.subr.mxu0 0.0
    %3371 = vmatpush1.xpose.msra.mxu0 0.0
    %3372 = vmatprep.subr.mxu0 0.0
    %3373 = vmatpush1.xpose.msra.mxu0 0.0
    %3374 = vmatprep.subr.mxu0 0.0
    %3375 = vmatpush1.xpose.msra.mxu0 0.0
    %3376 = vmatprep.subr.mxu0 0.0
    %3377 = vmatpush1.xpose.msra.mxu0 0.0
    %3378 = vmatprep.subr.mxu0 0.0
    %3379 = vmatpush1.xpose.msra.mxu0 0.0
    %3380 = vmatprep.subr.mxu0 0.0
    %3381 = vmatpush1.xpose.msra.mxu0 0.0
    %3382 = vmatprep.subr.mxu0 0.0
    %3383 = vmatpush1.xpose.msra.mxu0 0.0
    %3384 = vmatprep.subr.mxu0 0.0
    %3385 = vmatpush1.xpose.msra.mxu0 0.0
    %3386 = vmatprep.subr.mxu0 0.0
    %3387 = vmatpush1.xpose.msra.mxu0 0.0
    %3388 = vmatprep.subr.mxu0 0.0
    %3389 = vmatpush1.xpose.msra.mxu0 %v3356
    %3390 = vmatprep.subr.mxu0 0.0
    %3391 = vmatpush2.xpose.msra.mxu0 0.0
    %3392 = vmatprep.subr.mxu0 0.0
    %3393 = vmatpush2.xpose.msra.mxu0 0.0
    %3394 = vmatprep.subr.mxu0 0.0
    %3395 = vmatpush2.xpose.msra.mxu0 0.0
    %3396 = vmatprep.subr.mxu0 0.0
    %3397 = vmatpush2.xpose.msra.mxu0 0.0
    %3398 = vmatprep.subr.mxu0 0.0
    %3399 = vmatpush2.xpose.msra.mxu0 0.0
    %3400 = vmatprep.subr.mxu0 0.0
    %3401 = vmatpush2.xpose.msra.mxu0 0.0
    %3402 = vmatprep.subr.mxu0 0.0
    %3403 = vmatpush2.xpose.msra.mxu0 0.0
    %3404 = vmatprep.subr.mxu0 0.0
    %3405 = vmatpush2.xpose.msra.mxu0 0.0
    %3406 = vmatprep.subr.mxu0 0.0
    %3407 = vmatpush2.xpose.msra.mxu0 0.0
    %3408 = vmatprep.subr.mxu0 0.0
    %3409 = vmatpush2.xpose.msra.mxu0 0.0
    %3410 = vmatprep.subr.mxu0 0.0
    %3411 = vmatpush2.xpose.msra.mxu0 0.0
    %3412 = vmatprep.subr.mxu0 0.0
    %3413 = vmatpush2.xpose.msra.mxu0 0.0
    %3414 = vmatprep.subr.mxu0 0.0
    %3415 = vmatpush2.xpose.msra.mxu0 0.0
    %3416 = vmatprep.subr.mxu0 0.0
    %3417 = vmatpush2.xpose.msra.mxu0 0.0
    %3418 = vmatprep.subr.mxu0 0.0
    %3419 = vmatpush2.xpose.msra.mxu0 0.0
    %3420 = vmatprep.subr.mxu0 0.0
    %3421 = vmatpush2.xpose.msra.mxu0 0.0
    %3422 = vmatprep.mubr.f32.mxu0 0.0
    %3423 = vmatmul.mubr.f32.gmra.mxu0 %v3353
    %v3424 = vpop.f32.mrf.mxu0
    %v3425 = vadd.f32 0.0, %v3424
    %v3426 = vpop.f32.mrf.mxu0
    %3427 = vdwg.mxu0
    %v3428 = vmul.f32 %v3349, 0.125
    %v3429 = vmul.f32 %v3425, 0.125
    %v3430 = vsel %vm150, -1e+09, %v3428
    %v3431 = vsel %vm151, -1e+09, %v3429
    %vm3432 = vcmask 64512
    %v3433 = vsel %vm3432, %v574, -inf
    %3434 = vmax.xlane.f32.xlu0 %v3433
    %v3435 = vpop.xlane.xlu0 %3434
    %v3436 = vsel %vm3432, %v982, -inf
    %3437 = vmax.xlane.f32.xlu0 %v3436
    %v3438 = vpop.xlane.xlu0 %3437
    %v3439 = vsel %vm3432, %v1390, -inf
    %3440 = vmax.xlane.f32.xlu0 %v3439
    %v3441 = vpop.xlane.xlu0 %3440
    %v3442 = vsel %vm3432, %v1798, -inf
    %3443 = vmax.xlane.f32.xlu0 %v3442
    %v3444 = vpop.xlane.xlu0 %3443
    %v3445 = vsel %vm3432, %v2206, -inf
    %3446 = vmax.xlane.f32.xlu0 %v3445
    %v3447 = vpop.xlane.xlu0 %3446
    %v3448 = vsel %vm3432, %v2614, -inf
    %3449 = vmax.xlane.f32.xlu0 %v3448
    %v3450 = vpop.xlane.xlu0 %3449
    %v3451 = vsel %vm3432, %v3022, -inf
    %3452 = vmax.xlane.f32.xlu0 %v3451
    %v3453 = vpop.xlane.xlu0 %3452
    %v3454 = vsel %vm3432, %v3430, -inf
    %3455 = vmax.xlane.f32.xlu0 %v3454
    %v3456 = vpop.xlane.xlu0 %3455
    %v3457 = vsel %vm3432, %v575, -inf
    %3458 = vmax.xlane.f32.xlu0 %v3457
    %v3459 = vpop.xlane.xlu0 %3458
    %v3460 = vsel %vm3432, %v983, -inf
    %3461 = vmax.xlane.f32.xlu0 %v3460
    %v3462 = vpop.xlane.xlu0 %3461
    %v3463 = vsel %vm3432, %v1391, -inf
    %3464 = vmax.xlane.f32.xlu0 %v3463
    %v3465 = vpop.xlane.xlu0 %3464
    %v3466 = vsel %vm3432, %v1799, -inf
    %3467 = vmax.xlane.f32.xlu0 %v3466
    %v3468 = vpop.xlane.xlu0 %3467
    %v3469 = vsel %vm3432, %v2207, -inf
    %3470 = vmax.xlane.f32.xlu0 %v3469
    %v3471 = vpop.xlane.xlu0 %3470
    %v3472 = vsel %vm3432, %v2615, -inf
    %3473 = vmax.xlane.f32.xlu0 %v3472
    %v3474 = vpop.xlane.xlu0 %3473
    %v3475 = vsel %vm3432, %v3023, -inf
    %3476 = vmax.xlane.f32.xlu0 %v3475
    %v3477 = vpop.xlane.xlu0 %3476
    %v3478 = vsel %vm3432, %v3431, -inf
    %3479 = vmax.xlane.f32.xlu0 %v3478
    %v3480 = vpop.xlane.xlu0 %3479
    %v3481 = vsub.f32 %v574, %v3435
    %v3482 = vsub.f32 %v982, %v3438
    %v3483 = vsub.f32 %v1390, %v3441
    %v3484 = vsub.f32 %v1798, %v3444
    %v3485 = vsub.f32 %v2206, %v3447
    %v3486 = vsub.f32 %v2614, %v3450
    %v3487 = vsub.f32 %v3022, %v3453
    %v3488 = vsub.f32 %v3430, %v3456
    %v3489 = vsub.f32 %v575, %v3459
    %v3490 = vsub.f32 %v983, %v3462
    %v3491 = vsub.f32 %v1391, %v3465
    %v3492 = vsub.f32 %v1799, %v3468
    %v3493 = vsub.f32 %v2207, %v3471
    %v3494 = vsub.f32 %v2615, %v3474
    %v3495 = vsub.f32 %v3023, %v3477
    %v3496 = vsub.f32 %v3431, %v3480
    %v3497 = vmul.f32 %v3481, 1.442695
    %v3498 = vpow.pop %v3497
    %v3499 = vmul.f32 %v3482, 1.442695
    %v3500 = vpow.pop %v3499
    %v3501 = vmul.f32 %v3483, 1.442695
    %v3502 = vpow.pop %v3501
    %v3503 = vmul.f32 %v3484, 1.442695
    %v3504 = vpow.pop %v3503
    %v3505 = vmul.f32 %v3485, 1.442695
    %v3506 = vpow.pop %v3505
    %v3507 = vmul.f32 %v3486, 1.442695
    %v3508 = vpow.pop %v3507
    %v3509 = vmul.f32 %v3487, 1.442695
    %v3510 = vpow.pop %v3509
    %v3511 = vmul.f32 %v3488, 1.442695
    %v3512 = vpow.pop %v3511
    %v3513 = vmul.f32 %v3489, 1.442695
    %v3514 = vpow.pop %v3513
    %v3515 = vmul.f32 %v3490, 1.442695
    %v3516 = vpow.pop %v3515
    %v3517 = vmul.f32 %v3491, 1.442695
    %v3518 = vpow.pop %v3517
    %v3519 = vmul.f32 %v3492, 1.442695
    %v3520 = vpow.pop %v3519
    %v3521 = vmul.f32 %v3493, 1.442695
    %v3522 = vpow.pop %v3521
    %v3523 = vmul.f32 %v3494, 1.442695
    %v3524 = vpow.pop %v3523
    %v3525 = vmul.f32 %v3495, 1.442695
    %v3526 = vpow.pop %v3525
    %v3527 = vmul.f32 %v3496, 1.442695
    %v3528 = vpow.pop %v3527
    %v3529 = vsel %vm3432, %v3498, 0.0
    %3530 = vadd.xlane.f32.xlu0 %v3529
    %v3531 = vpop.xlane.xlu0 %3530
    %v3532 = vsel %vm3432, %v3500, 0.0
    %3533 = vadd.xlane.f32.xlu0 %v3532
    %v3534 = vpop.xlane.xlu0 %3533
    %v3535 = vsel %vm3432, %v3502, 0.0
    %3536 = vadd.xlane.f32.xlu0 %v3535
    %v3537 = vpop.xlane.xlu0 %3536
    %v3538 = vsel %vm3432, %v3504, 0.0
    %3539 = vadd.xlane.f32.xlu0 %v3538
    %v3540 = vpop.xlane.xlu0 %3539
    %v3541 = vsel %vm3432, %v3506, 0.0
    %3542 = vadd.xlane.f32.xlu0 %v3541
    %v3543 = vpop.xlane.xlu0 %3542
    %v3544 = vsel %vm3432, %v3508, 0.0
    %3545 = vadd.xlane.f32.xlu0 %v3544
    %v3546 = vpop.xlane.xlu0 %3545
    %v3547 = vsel %vm3432, %v3510, 0.0
    %3548 = vadd.xlane.f32.xlu0 %v3547
    %v3549 = vpop.xlane.xlu0 %3548
    %v3550 = vsel %vm3432, %v3512, 0.0
    %3551 = vadd.xlane.f32.xlu0 %v3550
    %v3552 = vpop.xlane.xlu0 %3551
    %v3553 = vsel %vm3432, %v3514, 0.0
    %3554 = vadd.xlane.f32.xlu0 %v3553
    %v3555 = vpop.xlane.xlu0 %3554
    %v3556 = vsel %vm3432, %v3516, 0.0
    %3557 = vadd.xlane.f32.xlu0 %v3556
    %v3558 = vpop.xlane.xlu0 %3557
    %v3559 = vsel %vm3432, %v3518, 0.0
    %3560 = vadd.xlane.f32.xlu0 %v3559
    %v3561 = vpop.xlane.xlu0 %3560
    %v3562 = vsel %vm3432, %v3520, 0.0
    %3563 = vadd.xlane.f32.xlu0 %v3562
    %v3564 = vpop.xlane.xlu0 %3563
    %v3565 = vsel %vm3432, %v3522, 0.0
    %3566 = vadd.xlane.f32.xlu0 %v3565
    %v3567 = vpop.xlane.xlu0 %3566
    %v3568 = vsel %vm3432, %v3524, 0.0
    %3569 = vadd.xlane.f32.xlu0 %v3568
    %v3570 = vpop.xlane.xlu0 %3569
    %v3571 = vsel %vm3432, %v3526, 0.0
    %3572 = vadd.xlane.f32.xlu0 %v3571
    %v3573 = vpop.xlane.xlu0 %3572
    %v3574 = vsel %vm3432, %v3528, 0.0
    %3575 = vadd.xlane.f32.xlu0 %v3574
    %v3576 = vpop.xlane.xlu0 %3575
    %v3577 = vrcp.pop %v3531
    %v3578 = vrcp.pop %v3534
    %v3579 = vrcp.pop %v3537
    %v3580 = vrcp.pop %v3540
    %v3581 = vrcp.pop %v3543
    %v3582 = vrcp.pop %v3546
    %v3583 = vrcp.pop %v3549
    %v3584 = vrcp.pop %v3552
    %v3585 = vrcp.pop %v3555
    %v3586 = vrcp.pop %v3558
    %v3587 = vrcp.pop %v3561
    %v3588 = vrcp.pop %v3564
    %v3589 = vrcp.pop %v3567
    %v3590 = vrcp.pop %v3570
    %v3591 = vrcp.pop %v3573
    %v3592 = vrcp.pop %v3576
    %v3593 = vmul.f32 %v3498, %v3577
    %v3594 = vmul.f32 %v3500, %v3578
    %v3595 = vmul.f32 %v3502, %v3579
    %v3596 = vmul.f32 %v3504, %v3580
    %v3597 = vmul.f32 %v3506, %v3581
    %v3598 = vmul.f32 %v3508, %v3582
    %v3599 = vmul.f32 %v3510, %v3583
    %v3600 = vmul.f32 %v3512, %v3584
    %v3601 = vmul.f32 %v3514, %v3585
    %v3602 = vmul.f32 %v3516, %v3586
    %v3603 = vmul.f32 %v3518, %v3587
    %v3604 = vmul.f32 %v3520, %v3588
    %v3605 = vmul.f32 %v3522, %v3589
    %v3606 = vmul.f32 %v3524, %v3590
    %v3607 = vmul.f32 %v3526, %v3591
    %v3608 = vmul.f32 %v3528, %v3592
    %3609 = vst.msk [vmem:[#allocation17] sm:$0xff] %vm3432, %v3593
    %3610 = vst.msk [vmem:[#allocation17 + $0x8] sm:$0xff] %vm3432, %v3594
    %3611 = vst.msk [vmem:[#allocation17 + $0x10] sm:$0xff] %vm3432, %v3595
    %3612 = vst.msk [vmem:[#allocation17 + $0x18] sm:$0xff] %vm3432, %v3596
    %3613 = vst.msk [vmem:[#allocation17 + $0x20] sm:$0xff] %vm3432, %v3597
    %3614 = vst.msk [vmem:[#allocation17 + $0x28] sm:$0xff] %vm3432, %v3598
    %3615 = vst.msk [vmem:[#allocation17 + $0x30] sm:$0xff] %vm3432, %v3599
    %3616 = vst.msk [vmem:[#allocation17 + $0x38] sm:$0xff] %vm3432, %v3600
    %3617 = vst.msk [vmem:[#allocation17 + $0x40] sm:$0xff] %vm3432, %v3601
    %3618 = vst.msk [vmem:[#allocation17 + $0x48] sm:$0xff] %vm3432, %v3602
    %3619 = vst.msk [vmem:[#allocation17 + $0x50] sm:$0xff] %vm3432, %v3603
    %3620 = vst.msk [vmem:[#allocation17 + $0x58] sm:$0xff] %vm3432, %v3604
    %3621 = vst.msk [vmem:[#allocation17 + $0x60] sm:$0xff] %vm3432, %v3605
    %3622 = vst.msk [vmem:[#allocation17 + $0x68] sm:$0xff] %vm3432, %v3606
    %3623 = vst.msk [vmem:[#allocation17 + $0x70] sm:$0xff] %vm3432, %v3607
    %3624 = vst.msk [vmem:[#allocation17 + $0x78] sm:$0xff] %vm3432, %v3608
    %v3626 = vsel %vm3432, %v3593, 0
    %3628 = vmatprep.subr.mxu0 0.0
    %3629 = vmatpush1.msra.mxu0 0.0
    %3630 = vmatprep.subr.mxu0 0.0
    %3631 = vmatpush1.msra.mxu0 0.0
    %3632 = vmatprep.subr.mxu0 0.0
    %3633 = vmatpush1.msra.mxu0 0.0
    %3634 = vmatprep.subr.mxu0 0.0
    %3635 = vmatpush1.msra.mxu0 0.0
    %3636 = vmatprep.subr.mxu0 0.0
    %3637 = vmatpush1.msra.mxu0 0.0
    %3638 = vmatprep.subr.mxu0 0.0
    %3639 = vmatpush1.msra.mxu0 0.0
    %3640 = vmatprep.subr.mxu0 0.0
    %3641 = vmatpush1.msra.mxu0 0.0
    %3642 = vmatprep.subr.mxu0 0.0
    %3643 = vmatpush1.msra.mxu0 0.0
    %3644 = vmatprep.subr.mxu0 0.0
    %3645 = vmatpush1.msra.mxu0 0.0
    %3646 = vmatprep.subr.mxu0 0.0
    %3647 = vmatpush1.msra.mxu0 0.0
    %3648 = vmatprep.subr.mxu0 0.0
    %3649 = vmatpush1.msra.mxu0 0.0
    %3650 = vmatprep.subr.mxu0 0.0
    %3651 = vmatpush1.msra.mxu0 0.0
    %3652 = vmatprep.subr.mxu0 0.0
    %3653 = vmatpush1.msra.mxu0 0.0
    %3654 = vmatprep.subr.mxu0 0.0
    %3655 = vmatpush1.msra.mxu0 0.0
    %3656 = vmatprep.subr.mxu0 0.0
    %3657 = vmatpush1.msra.mxu0 0.0
    %3658 = vmatprep.subr.mxu0 0.0
    %3659 = vmatpush1.msra.mxu0 %v412
    %3660 = vmatprep.subr.mxu0 0.0
    %3661 = vmatpush2.msra.mxu0 0.0
    %3662 = vmatprep.subr.mxu0 0.0
    %3663 = vmatpush2.msra.mxu0 0.0
    %3664 = vmatprep.subr.mxu0 0.0
    %3665 = vmatpush2.msra.mxu0 0.0
    %3666 = vmatprep.subr.mxu0 0.0
    %3667 = vmatpush2.msra.mxu0 0.0
    %3668 = vmatprep.subr.mxu0 0.0
    %3669 = vmatpush2.msra.mxu0 0.0
    %3670 = vmatprep.subr.mxu0 0.0
    %3671 = vmatpush2.msra.mxu0 0.0
    %3672 = vmatprep.subr.mxu0 0.0
    %3673 = vmatpush2.msra.mxu0 0.0
    %3674 = vmatprep.subr.mxu0 0.0
    %3675 = vmatpush2.msra.mxu0 0.0
    %3676 = vmatprep.subr.mxu0 0.0
    %3677 = vmatpush2.msra.mxu0 0.0
    %3678 = vmatprep.subr.mxu0 0.0
    %3679 = vmatpush2.msra.mxu0 0.0
    %3680 = vmatprep.subr.mxu0 0.0
    %3681 = vmatpush2.msra.mxu0 0.0
    %3682 = vmatprep.subr.mxu0 0.0
    %3683 = vmatpush2.msra.mxu0 0.0
    %3684 = vmatprep.subr.mxu0 0.0
    %3685 = vmatpush2.msra.mxu0 0.0
    %3686 = vmatprep.subr.mxu0 0.0
    %3687 = vmatpush2.msra.mxu0 0.0
    %3688 = vmatprep.subr.mxu0 0.0
    %3689 = vmatpush2.msra.mxu0 0.0
    %3690 = vmatprep.subr.mxu0 0.0
    %3691 = vmatpush2.msra.mxu0 0.0
    %3692 = vmatprep.mubr.f32.mxu0 0.0
    %3693 = vmatmul.mubr.f32.gmra.mxu0 %v3626
    %v3694 = vpop.f32.mrf.mxu0
    %v3695 = vadd.f32 0.0, %v3694
    %v3696 = vpop.f32.mrf.mxu0
    %3697 = vdwg.mxu0
    %v3699 = vsel %vm3432, %v3601, 0
    %3701 = vmatprep.subr.mxu0 0.0
    %3702 = vmatpush1.msra.mxu0 0.0
    %3703 = vmatprep.subr.mxu0 0.0
    %3704 = vmatpush1.msra.mxu0 0.0
    %3705 = vmatprep.subr.mxu0 0.0
    %3706 = vmatpush1.msra.mxu0 0.0
    %3707 = vmatprep.subr.mxu0 0.0
    %3708 = vmatpush1.msra.mxu0 0.0
    %3709 = vmatprep.subr.mxu0 0.0
    %3710 = vmatpush1.msra.mxu0 0.0
    %3711 = vmatprep.subr.mxu0 0.0
    %3712 = vmatpush1.msra.mxu0 0.0
    %3713 = vmatprep.subr.mxu0 0.0
    %3714 = vmatpush1.msra.mxu0 0.0
    %3715 = vmatprep.subr.mxu0 0.0
    %3716 = vmatpush1.msra.mxu0 0.0
    %3717 = vmatprep.subr.mxu0 0.0
    %3718 = vmatpush1.msra.mxu0 0.0
    %3719 = vmatprep.subr.mxu0 0.0
    %3720 = vmatpush1.msra.mxu0 0.0
    %3721 = vmatprep.subr.mxu0 0.0
    %3722 = vmatpush1.msra.mxu0 0.0
    %3723 = vmatprep.subr.mxu0 0.0
    %3724 = vmatpush1.msra.mxu0 0.0
    %3725 = vmatprep.subr.mxu0 0.0
    %3726 = vmatpush1.msra.mxu0 0.0
    %3727 = vmatprep.subr.mxu0 0.0
    %3728 = vmatpush1.msra.mxu0 0.0
    %3729 = vmatprep.subr.mxu0 0.0
    %3730 = vmatpush1.msra.mxu0 0.0
    %3731 = vmatprep.subr.mxu0 0.0
    %3732 = vmatpush1.msra.mxu0 %v417
    %3733 = vmatprep.subr.mxu0 0.0
    %3734 = vmatpush2.msra.mxu0 0.0
    %3735 = vmatprep.subr.mxu0 0.0
    %3736 = vmatpush2.msra.mxu0 0.0
    %3737 = vmatprep.subr.mxu0 0.0
    %3738 = vmatpush2.msra.mxu0 0.0
    %3739 = vmatprep.subr.mxu0 0.0
    %3740 = vmatpush2.msra.mxu0 0.0
    %3741 = vmatprep.subr.mxu0 0.0
    %3742 = vmatpush2.msra.mxu0 0.0
    %3743 = vmatprep.subr.mxu0 0.0
    %3744 = vmatpush2.msra.mxu0 0.0
    %3745 = vmatprep.subr.mxu0 0.0
    %3746 = vmatpush2.msra.mxu0 0.0
    %3747 = vmatprep.subr.mxu0 0.0
    %3748 = vmatpush2.msra.mxu0 0.0
    %3749 = vmatprep.subr.mxu0 0.0
    %3750 = vmatpush2.msra.mxu0 0.0
    %3751 = vmatprep.subr.mxu0 0.0
    %3752 = vmatpush2.msra.mxu0 0.0
    %3753 = vmatprep.subr.mxu0 0.0
    %3754 = vmatpush2.msra.mxu0 0.0
    %3755 = vmatprep.subr.mxu0 0.0
    %3756 = vmatpush2.msra.mxu0 0.0
    %3757 = vmatprep.subr.mxu0 0.0
    %3758 = vmatpush2.msra.mxu0 0.0
    %3759 = vmatprep.subr.mxu0 0.0
    %3760 = vmatpush2.msra.mxu0 0.0
    %3761 = vmatprep.subr.mxu0 0.0
    %3762 = vmatpush2.msra.mxu0 0.0
    %3763 = vmatprep.subr.mxu0 0.0
    %3764 = vmatpush2.msra.mxu0 0.0
    %3765 = vmatprep.mubr.f32.mxu0 0.0
    %3766 = vmatmul.mubr.f32.gmra.mxu0 %v3699
    %v3767 = vpop.f32.mrf.mxu0
    %v3768 = vadd.f32 0.0, %v3767
    %v3769 = vpop.f32.mrf.mxu0
    %3770 = vdwg.mxu0
    %v3771 = vld [vmem:[#allocation14] sm:$0xff]
    %v3772 = vld [vmem:[#allocation14 + $0x8] sm:$0xff]
    %v3773 = vld [vmem:[#allocation14 + $0x10] sm:$0xff]
    %v3774 = vld [vmem:[#allocation14 + $0x18] sm:$0xff]
    %v3775 = vld [vmem:[#allocation14 + $0x20] sm:$0xff]
    %v3776 = vld [vmem:[#allocation14 + $0x28] sm:$0xff]
    %v3777 = vld [vmem:[#allocation14 + $0x30] sm:$0xff]
    %v3778 = vld [vmem:[#allocation14 + $0x38] sm:$0xff]
    %v3780 = vsel %vm160, %v3695, 0
    %v3783 = vsel %vm160, %v3768, 0
    %3785 = vmatprep.subr.mxu0 0.0
    %3786 = vmatpush1.msra.mxu0 0.0
    %3787 = vmatprep.subr.mxu0 0.0
    %3788 = vmatpush1.msra.mxu0 0.0
    %3789 = vmatprep.subr.mxu0 0.0
    %3790 = vmatpush1.msra.mxu0 0.0
    %3791 = vmatprep.subr.mxu0 0.0
    %3792 = vmatpush1.msra.mxu0 0.0
    %3793 = vmatprep.subr.mxu0 0.0
    %3794 = vmatpush1.msra.mxu0 0.0
    %3795 = vmatprep.subr.mxu0 0.0
    %3796 = vmatpush1.msra.mxu0 0.0
    %3797 = vmatprep.subr.mxu0 0.0
    %3798 = vmatpush1.msra.mxu0 0.0
    %3799 = vmatprep.subr.mxu0 0.0
    %3800 = vmatpush1.msra.mxu0 0.0
    %3801 = vmatprep.subr.mxu0 0.0
    %3802 = vmatpush1.msra.mxu0 %v3778
    %3803 = vmatprep.subr.mxu0 0.0
    %3804 = vmatpush1.msra.mxu0 %v3777
    %3805 = vmatprep.subr.mxu0 0.0
    %3806 = vmatpush1.msra.mxu0 %v3776
    %3807 = vmatprep.subr.mxu0 0.0
    %3808 = vmatpush1.msra.mxu0 %v3775
    %3809 = vmatprep.subr.mxu0 0.0
    %3810 = vmatpush1.msra.mxu0 %v3774
    %3811 = vmatprep.subr.mxu0 0.0
    %3812 = vmatpush1.msra.mxu0 %v3773
    %3813 = vmatprep.subr.mxu0 0.0
    %3814 = vmatpush1.msra.mxu0 %v3772
    %3815 = vmatprep.subr.mxu0 0.0
    %3816 = vmatpush1.msra.mxu0 %v3771
    %3817 = vmatprep.subr.mxu0 0.0
    %3818 = vmatpush2.msra.mxu0 0.0
    %3819 = vmatprep.subr.mxu0 0.0
    %3820 = vmatpush2.msra.mxu0 0.0
    %3821 = vmatprep.subr.mxu0 0.0
    %3822 = vmatpush2.msra.mxu0 0.0
    %3823 = vmatprep.subr.mxu0 0.0
    %3824 = vmatpush2.msra.mxu0 0.0
    %3825 = vmatprep.subr.mxu0 0.0
    %3826 = vmatpush2.msra.mxu0 0.0
    %3827 = vmatprep.subr.mxu0 0.0
    %3828 = vmatpush2.msra.mxu0 0.0
    %3829 = vmatprep.subr.mxu0 0.0
    %3830 = vmatpush2.msra.mxu0 0.0
    %3831 = vmatprep.subr.mxu0 0.0
    %3832 = vmatpush2.msra.mxu0 0.0
    %3833 = vmatprep.subr.mxu0 0.0
    %3834 = vmatpush2.msra.mxu0 0.0
    %3835 = vmatprep.subr.mxu0 0.0
    %3836 = vmatpush2.msra.mxu0 0.0
    %3837 = vmatprep.subr.mxu0 0.0
    %3838 = vmatpush2.msra.mxu0 0.0
    %3839 = vmatprep.subr.mxu0 0.0
    %3840 = vmatpush2.msra.mxu0 0.0
    %3841 = vmatprep.subr.mxu0 0.0
    %3842 = vmatpush2.msra.mxu0 0.0
    %3843 = vmatprep.subr.mxu0 0.0
    %3844 = vmatpush2.msra.mxu0 0.0
    %3845 = vmatprep.subr.mxu0 0.0
    %3846 = vmatpush2.msra.mxu0 0.0
    %3847 = vmatprep.subr.mxu0 0.0
    %3848 = vmatpush2.msra.mxu0 0.0
    %3849 = vmatprep.mubr.f32.mxu0 0.0
    %3850 = vmatmul.mubr.f32.gmra.mxu0 %v3780
    %v3851 = vpop.f32.mrf.mxu0
    %v3852 = vadd.f32 0.0, %v3851
    %v3853 = vpop.f32.mrf.mxu0
    %3854 = vmatprep.mubr.f32.mxu0 0.0
    %3855 = vmatmul.mubr.f32.gmra.mxu0 %v3783
    %v3856 = vpop.f32.mrf.mxu0
    %v3857 = vadd.f32 0.0, %v3856
    %v3858 = vpop.f32.mrf.mxu0
    %3859 = vdwg.mxu0
    %v3860 = vadd.f32 %v142, %v3852
    %v3861 = vadd.f32 %v143, %v3857
    %v3863 = vsel %vm3432, %v3594, 0
    %3865 = vmatprep.subr.mxu0 0.0
    %3866 = vmatpush1.msra.mxu0 0.0
    %3867 = vmatprep.subr.mxu0 0.0
    %3868 = vmatpush1.msra.mxu0 0.0
    %3869 = vmatprep.subr.mxu0 0.0
    %3870 = vmatpush1.msra.mxu0 0.0
    %3871 = vmatprep.subr.mxu0 0.0
    %3872 = vmatpush1.msra.mxu0 0.0
    %3873 = vmatprep.subr.mxu0 0.0
    %3874 = vmatpush1.msra.mxu0 0.0
    %3875 = vmatprep.subr.mxu0 0.0
    %3876 = vmatpush1.msra.mxu0 0.0
    %3877 = vmatprep.subr.mxu0 0.0
    %3878 = vmatpush1.msra.mxu0 0.0
    %3879 = vmatprep.subr.mxu0 0.0
    %3880 = vmatpush1.msra.mxu0 0.0
    %3881 = vmatprep.subr.mxu0 0.0
    %3882 = vmatpush1.msra.mxu0 0.0
    %3883 = vmatprep.subr.mxu0 0.0
    %3884 = vmatpush1.msra.mxu0 0.0
    %3885 = vmatprep.subr.mxu0 0.0
    %3886 = vmatpush1.msra.mxu0 0.0
    %3887 = vmatprep.subr.mxu0 0.0
    %3888 = vmatpush1.msra.mxu0 0.0
    %3889 = vmatprep.subr.mxu0 0.0
    %3890 = vmatpush1.msra.mxu0 0.0
    %3891 = vmatprep.subr.mxu0 0.0
    %3892 = vmatpush1.msra.mxu0 0.0
    %3893 = vmatprep.subr.mxu0 0.0
    %3894 = vmatpush1.msra.mxu0 0.0
    %3895 = vmatprep.subr.mxu0 0.0
    %3896 = vmatpush1.msra.mxu0 %v820
    %3897 = vmatprep.subr.mxu0 0.0
    %3898 = vmatpush2.msra.mxu0 0.0
    %3899 = vmatprep.subr.mxu0 0.0
    %3900 = vmatpush2.msra.mxu0 0.0
    %3901 = vmatprep.subr.mxu0 0.0
    %3902 = vmatpush2.msra.mxu0 0.0
    %3903 = vmatprep.subr.mxu0 0.0
    %3904 = vmatpush2.msra.mxu0 0.0
    %3905 = vmatprep.subr.mxu0 0.0
    %3906 = vmatpush2.msra.mxu0 0.0
    %3907 = vmatprep.subr.mxu0 0.0
    %3908 = vmatpush2.msra.mxu0 0.0
    %3909 = vmatprep.subr.mxu0 0.0
    %3910 = vmatpush2.msra.mxu0 0.0
    %3911 = vmatprep.subr.mxu0 0.0
    %3912 = vmatpush2.msra.mxu0 0.0
    %3913 = vmatprep.subr.mxu0 0.0
    %3914 = vmatpush2.msra.mxu0 0.0
    %3915 = vmatprep.subr.mxu0 0.0
    %3916 = vmatpush2.msra.mxu0 0.0
    %3917 = vmatprep.subr.mxu0 0.0
    %3918 = vmatpush2.msra.mxu0 0.0
    %3919 = vmatprep.subr.mxu0 0.0
    %3920 = vmatpush2.msra.mxu0 0.0
    %3921 = vmatprep.subr.mxu0 0.0
    %3922 = vmatpush2.msra.mxu0 0.0
    %3923 = vmatprep.subr.mxu0 0.0
    %3924 = vmatpush2.msra.mxu0 0.0
    %3925 = vmatprep.subr.mxu0 0.0
    %3926 = vmatpush2.msra.mxu0 0.0
    %3927 = vmatprep.subr.mxu0 0.0
    %3928 = vmatpush2.msra.mxu0 0.0
    %3929 = vmatprep.mubr.f32.mxu0 0.0
    %3930 = vmatmul.mubr.f32.gmra.mxu0 %v3863
    %v3931 = vpop.f32.mrf.mxu0
    %v3932 = vadd.f32 0.0, %v3931
    %v3933 = vpop.f32.mrf.mxu0
    %3934 = vdwg.mxu0
    %v3936 = vsel %vm3432, %v3602, 0
    %3938 = vmatprep.subr.mxu0 0.0
    %3939 = vmatpush1.msra.mxu0 0.0
    %3940 = vmatprep.subr.mxu0 0.0
    %3941 = vmatpush1.msra.mxu0 0.0
    %3942 = vmatprep.subr.mxu0 0.0
    %3943 = vmatpush1.msra.mxu0 0.0
    %3944 = vmatprep.subr.mxu0 0.0
    %3945 = vmatpush1.msra.mxu0 0.0
    %3946 = vmatprep.subr.mxu0 0.0
    %3947 = vmatpush1.msra.mxu0 0.0
    %3948 = vmatprep.subr.mxu0 0.0
    %3949 = vmatpush1.msra.mxu0 0.0
    %3950 = vmatprep.subr.mxu0 0.0
    %3951 = vmatpush1.msra.mxu0 0.0
    %3952 = vmatprep.subr.mxu0 0.0
    %3953 = vmatpush1.msra.mxu0 0.0
    %3954 = vmatprep.subr.mxu0 0.0
    %3955 = vmatpush1.msra.mxu0 0.0
    %3956 = vmatprep.subr.mxu0 0.0
    %3957 = vmatpush1.msra.mxu0 0.0
    %3958 = vmatprep.subr.mxu0 0.0
    %3959 = vmatpush1.msra.mxu0 0.0
    %3960 = vmatprep.subr.mxu0 0.0
    %3961 = vmatpush1.msra.mxu0 0.0
    %3962 = vmatprep.subr.mxu0 0.0
    %3963 = vmatpush1.msra.mxu0 0.0
    %3964 = vmatprep.subr.mxu0 0.0
    %3965 = vmatpush1.msra.mxu0 0.0
    %3966 = vmatprep.subr.mxu0 0.0
    %3967 = vmatpush1.msra.mxu0 0.0
    %3968 = vmatprep.subr.mxu0 0.0
    %3969 = vmatpush1.msra.mxu0 %v825
    %3970 = vmatprep.subr.mxu0 0.0
    %3971 = vmatpush2.msra.mxu0 0.0
    %3972 = vmatprep.subr.mxu0 0.0
    %3973 = vmatpush2.msra.mxu0 0.0
    %3974 = vmatprep.subr.mxu0 0.0
    %3975 = vmatpush2.msra.mxu0 0.0
    %3976 = vmatprep.subr.mxu0 0.0
    %3977 = vmatpush2.msra.mxu0 0.0
    %3978 = vmatprep.subr.mxu0 0.0
    %3979 = vmatpush2.msra.mxu0 0.0
    %3980 = vmatprep.subr.mxu0 0.0
    %3981 = vmatpush2.msra.mxu0 0.0
    %3982 = vmatprep.subr.mxu0 0.0
    %3983 = vmatpush2.msra.mxu0 0.0
    %3984 = vmatprep.subr.mxu0 0.0
    %3985 = vmatpush2.msra.mxu0 0.0
    %3986 = vmatprep.subr.mxu0 0.0
    %3987 = vmatpush2.msra.mxu0 0.0
    %3988 = vmatprep.subr.mxu0 0.0
    %3989 = vmatpush2.msra.mxu0 0.0
    %3990 = vmatprep.subr.mxu0 0.0
    %3991 = vmatpush2.msra.mxu0 0.0
    %3992 = vmatprep.subr.mxu0 0.0
    %3993 = vmatpush2.msra.mxu0 0.0
    %3994 = vmatprep.subr.mxu0 0.0
    %3995 = vmatpush2.msra.mxu0 0.0
    %3996 = vmatprep.subr.mxu0 0.0
    %3997 = vmatpush2.msra.mxu0 0.0
    %3998 = vmatprep.subr.mxu0 0.0
    %3999 = vmatpush2.msra.mxu0 0.0
    %4000 = vmatprep.subr.mxu0 0.0
    %4001 = vmatpush2.msra.mxu0 0.0
    %4002 = vmatprep.mubr.f32.mxu0 0.0
    %4003 = vmatmul.mubr.f32.gmra.mxu0 %v3936
    %v4004 = vpop.f32.mrf.mxu0
    %v4005 = vadd.f32 0.0, %v4004
    %v4006 = vpop.f32.mrf.mxu0
    %4007 = vdwg.mxu0
    %s4008 = scalar_lea.vmem [#allocation14], 64
    %v4009 = vld [vmem:[%s4008] sm:$0xff]
    %v4010 = vld [vmem:[%s4008 + $0x8] sm:$0xff]
    %v4011 = vld [vmem:[%s4008 + $0x10] sm:$0xff]
    %v4012 = vld [vmem:[%s4008 + $0x18] sm:$0xff]
    %v4013 = vld [vmem:[%s4008 + $0x20] sm:$0xff]
    %v4014 = vld [vmem:[%s4008 + $0x28] sm:$0xff]
    %v4015 = vld [vmem:[%s4008 + $0x30] sm:$0xff]
    %v4016 = vld [vmem:[%s4008 + $0x38] sm:$0xff]
    %v4018 = vsel %vm160, %v3932, 0
    %v4021 = vsel %vm160, %v4005, 0
    %4023 = vmatprep.subr.mxu0 0.0
    %4024 = vmatpush1.msra.mxu0 0.0
    %4025 = vmatprep.subr.mxu0 0.0
    %4026 = vmatpush1.msra.mxu0 0.0
    %4027 = vmatprep.subr.mxu0 0.0
    %4028 = vmatpush1.msra.mxu0 0.0
    %4029 = vmatprep.subr.mxu0 0.0
    %4030 = vmatpush1.msra.mxu0 0.0
    %4031 = vmatprep.subr.mxu0 0.0
    %4032 = vmatpush1.msra.mxu0 0.0
    %4033 = vmatprep.subr.mxu0 0.0
    %4034 = vmatpush1.msra.mxu0 0.0
    %4035 = vmatprep.subr.mxu0 0.0
    %4036 = vmatpush1.msra.mxu0 0.0
    %4037 = vmatprep.subr.mxu0 0.0
    %4038 = vmatpush1.msra.mxu0 0.0
    %4039 = vmatprep.subr.mxu0 0.0
    %4040 = vmatpush1.msra.mxu0 %v4016
    %4041 = vmatprep.subr.mxu0 0.0
    %4042 = vmatpush1.msra.mxu0 %v4015
    %4043 = vmatprep.subr.mxu0 0.0
    %4044 = vmatpush1.msra.mxu0 %v4014
    %4045 = vmatprep.subr.mxu0 0.0
    %4046 = vmatpush1.msra.mxu0 %v4013
    %4047 = vmatprep.subr.mxu0 0.0
    %4048 = vmatpush1.msra.mxu0 %v4012
    %4049 = vmatprep.subr.mxu0 0.0
    %4050 = vmatpush1.msra.mxu0 %v4011
    %4051 = vmatprep.subr.mxu0 0.0
    %4052 = vmatpush1.msra.mxu0 %v4010
    %4053 = vmatprep.subr.mxu0 0.0
    %4054 = vmatpush1.msra.mxu0 %v4009
    %4055 = vmatprep.subr.mxu0 0.0
    %4056 = vmatpush2.msra.mxu0 0.0
    %4057 = vmatprep.subr.mxu0 0.0
    %4058 = vmatpush2.msra.mxu0 0.0
    %4059 = vmatprep.subr.mxu0 0.0
    %4060 = vmatpush2.msra.mxu0 0.0
    %4061 = vmatprep.subr.mxu0 0.0
    %4062 = vmatpush2.msra.mxu0 0.0
    %4063 = vmatprep.subr.mxu0 0.0
    %4064 = vmatpush2.msra.mxu0 0.0
    %4065 = vmatprep.subr.mxu0 0.0
    %4066 = vmatpush2.msra.mxu0 0.0
    %4067 = vmatprep.subr.mxu0 0.0
    %4068 = vmatpush2.msra.mxu0 0.0
    %4069 = vmatprep.subr.mxu0 0.0
    %4070 = vmatpush2.msra.mxu0 0.0
    %4071 = vmatprep.subr.mxu0 0.0
    %4072 = vmatpush2.msra.mxu0 0.0
    %4073 = vmatprep.subr.mxu0 0.0
    %4074 = vmatpush2.msra.mxu0 0.0
    %4075 = vmatprep.subr.mxu0 0.0
    %4076 = vmatpush2.msra.mxu0 0.0
    %4077 = vmatprep.subr.mxu0 0.0
    %4078 = vmatpush2.msra.mxu0 0.0
    %4079 = vmatprep.subr.mxu0 0.0
    %4080 = vmatpush2.msra.mxu0 0.0
    %4081 = vmatprep.subr.mxu0 0.0
    %4082 = vmatpush2.msra.mxu0 0.0
    %4083 = vmatprep.subr.mxu0 0.0
    %4084 = vmatpush2.msra.mxu0 0.0
    %4085 = vmatprep.subr.mxu0 0.0
    %4086 = vmatpush2.msra.mxu0 0.0
    %4087 = vmatprep.mubr.f32.mxu0 0.0
    %4088 = vmatmul.mubr.f32.gmra.mxu0 %v4018
    %v4089 = vpop.f32.mrf.mxu0
    %v4090 = vadd.f32 0.0, %v4089
    %v4091 = vpop.f32.mrf.mxu0
    %4092 = vmatprep.mubr.f32.mxu0 0.0
    %4093 = vmatmul.mubr.f32.gmra.mxu0 %v4021
    %v4094 = vpop.f32.mrf.mxu0
    %v4095 = vadd.f32 0.0, %v4094
    %v4096 = vpop.f32.mrf.mxu0
    %4097 = vdwg.mxu0
    %v4098 = vadd.f32 %v3860, %v4090
    %v4099 = vadd.f32 %v3861, %v4095
    %v4101 = vsel %vm3432, %v3595, 0
    %4103 = vmatprep.subr.mxu0 0.0
    %4104 = vmatpush1.msra.mxu0 0.0
    %4105 = vmatprep.subr.mxu0 0.0
    %4106 = vmatpush1.msra.mxu0 0.0
    %4107 = vmatprep.subr.mxu0 0.0
    %4108 = vmatpush1.msra.mxu0 0.0
    %4109 = vmatprep.subr.mxu0 0.0
    %4110 = vmatpush1.msra.mxu0 0.0
    %4111 = vmatprep.subr.mxu0 0.0
    %4112 = vmatpush1.msra.mxu0 0.0
    %4113 = vmatprep.subr.mxu0 0.0
    %4114 = vmatpush1.msra.mxu0 0.0
    %4115 = vmatprep.subr.mxu0 0.0
    %4116 = vmatpush1.msra.mxu0 0.0
    %4117 = vmatprep.subr.mxu0 0.0
    %4118 = vmatpush1.msra.mxu0 0.0
    %4119 = vmatprep.subr.mxu0 0.0
    %4120 = vmatpush1.msra.mxu0 0.0
    %4121 = vmatprep.subr.mxu0 0.0
    %4122 = vmatpush1.msra.mxu0 0.0
    %4123 = vmatprep.subr.mxu0 0.0
    %4124 = vmatpush1.msra.mxu0 0.0
    %4125 = vmatprep.subr.mxu0 0.0
    %4126 = vmatpush1.msra.mxu0 0.0
    %4127 = vmatprep.subr.mxu0 0.0
    %4128 = vmatpush1.msra.mxu0 0.0
    %4129 = vmatprep.subr.mxu0 0.0
    %4130 = vmatpush1.msra.mxu0 0.0
    %4131 = vmatprep.subr.mxu0 0.0
    %4132 = vmatpush1.msra.mxu0 0.0
    %4133 = vmatprep.subr.mxu0 0.0
    %4134 = vmatpush1.msra.mxu0 %v1228
    %4135 = vmatprep.subr.mxu0 0.0
    %4136 = vmatpush2.msra.mxu0 0.0
    %4137 = vmatprep.subr.mxu0 0.0
    %4138 = vmatpush2.msra.mxu0 0.0
    %4139 = vmatprep.subr.mxu0 0.0
    %4140 = vmatpush2.msra.mxu0 0.0
    %4141 = vmatprep.subr.mxu0 0.0
    %4142 = vmatpush2.msra.mxu0 0.0
    %4143 = vmatprep.subr.mxu0 0.0
    %4144 = vmatpush2.msra.mxu0 0.0
    %4145 = vmatprep.subr.mxu0 0.0
    %4146 = vmatpush2.msra.mxu0 0.0
    %4147 = vmatprep.subr.mxu0 0.0
    %4148 = vmatpush2.msra.mxu0 0.0
    %4149 = vmatprep.subr.mxu0 0.0
    %4150 = vmatpush2.msra.mxu0 0.0
    %4151 = vmatprep.subr.mxu0 0.0
    %4152 = vmatpush2.msra.mxu0 0.0
    %4153 = vmatprep.subr.mxu0 0.0
    %4154 = vmatpush2.msra.mxu0 0.0
    %4155 = vmatprep.subr.mxu0 0.0
    %4156 = vmatpush2.msra.mxu0 0.0
    %4157 = vmatprep.subr.mxu0 0.0
    %4158 = vmatpush2.msra.mxu0 0.0
    %4159 = vmatprep.subr.mxu0 0.0
    %4160 = vmatpush2.msra.mxu0 0.0
    %4161 = vmatprep.subr.mxu0 0.0
    %4162 = vmatpush2.msra.mxu0 0.0
    %4163 = vmatprep.subr.mxu0 0.0
    %4164 = vmatpush2.msra.mxu0 0.0
    %4165 = vmatprep.subr.mxu0 0.0
    %4166 = vmatpush2.msra.mxu0 0.0
    %4167 = vmatprep.mubr.f32.mxu0 0.0
    %4168 = vmatmul.mubr.f32.gmra.mxu0 %v4101
    %v4169 = vpop.f32.mrf.mxu0
    %v4170 = vadd.f32 0.0, %v4169
    %v4171 = vpop.f32.mrf.mxu0
    %4172 = vdwg.mxu0
    %v4174 = vsel %vm3432, %v3603, 0
    %4176 = vmatprep.subr.mxu0 0.0
    %4177 = vmatpush1.msra.mxu0 0.0
    %4178 = vmatprep.subr.mxu0 0.0
    %4179 = vmatpush1.msra.mxu0 0.0
    %4180 = vmatprep.subr.mxu0 0.0
    %4181 = vmatpush1.msra.mxu0 0.0
    %4182 = vmatprep.subr.mxu0 0.0
    %4183 = vmatpush1.msra.mxu0 0.0
    %4184 = vmatprep.subr.mxu0 0.0
    %4185 = vmatpush1.msra.mxu0 0.0
    %4186 = vmatprep.subr.mxu0 0.0
    %4187 = vmatpush1.msra.mxu0 0.0
    %4188 = vmatprep.subr.mxu0 0.0
    %4189 = vmatpush1.msra.mxu0 0.0
    %4190 = vmatprep.subr.mxu0 0.0
    %4191 = vmatpush1.msra.mxu0 0.0
    %4192 = vmatprep.subr.mxu0 0.0
    %4193 = vmatpush1.msra.mxu0 0.0
    %4194 = vmatprep.subr.mxu0 0.0
    %4195 = vmatpush1.msra.mxu0 0.0
    %4196 = vmatprep.subr.mxu0 0.0
    %4197 = vmatpush1.msra.mxu0 0.0
    %4198 = vmatprep.subr.mxu0 0.0
    %4199 = vmatpush1.msra.mxu0 0.0
    %4200 = vmatprep.subr.mxu0 0.0
    %4201 = vmatpush1.msra.mxu0 0.0
    %4202 = vmatprep.subr.mxu0 0.0
    %4203 = vmatpush1.msra.mxu0 0.0
    %4204 = vmatprep.subr.mxu0 0.0
    %4205 = vmatpush1.msra.mxu0 0.0
    %4206 = vmatprep.subr.mxu0 0.0
    %4207 = vmatpush1.msra.mxu0 %v1233
    %4208 = vmatprep.subr.mxu0 0.0
    %4209 = vmatpush2.msra.mxu0 0.0
    %4210 = vmatprep.subr.mxu0 0.0
    %4211 = vmatpush2.msra.mxu0 0.0
    %4212 = vmatprep.subr.mxu0 0.0
    %4213 = vmatpush2.msra.mxu0 0.0
    %4214 = vmatprep.subr.mxu0 0.0
    %4215 = vmatpush2.msra.mxu0 0.0
    %4216 = vmatprep.subr.mxu0 0.0
    %4217 = vmatpush2.msra.mxu0 0.0
    %4218 = vmatprep.subr.mxu0 0.0
    %4219 = vmatpush2.msra.mxu0 0.0
    %4220 = vmatprep.subr.mxu0 0.0
    %4221 = vmatpush2.msra.mxu0 0.0
    %4222 = vmatprep.subr.mxu0 0.0
    %4223 = vmatpush2.msra.mxu0 0.0
    %4224 = vmatprep.subr.mxu0 0.0
    %4225 = vmatpush2.msra.mxu0 0.0
    %4226 = vmatprep.subr.mxu0 0.0
    %4227 = vmatpush2.msra.mxu0 0.0
    %4228 = vmatprep.subr.mxu0 0.0
    %4229 = vmatpush2.msra.mxu0 0.0
    %4230 = vmatprep.subr.mxu0 0.0
    %4231 = vmatpush2.msra.mxu0 0.0
    %4232 = vmatprep.subr.mxu0 0.0
    %4233 = vmatpush2.msra.mxu0 0.0
    %4234 = vmatprep.subr.mxu0 0.0
    %4235 = vmatpush2.msra.mxu0 0.0
    %4236 = vmatprep.subr.mxu0 0.0
    %4237 = vmatpush2.msra.mxu0 0.0
    %4238 = vmatprep.subr.mxu0 0.0
    %4239 = vmatpush2.msra.mxu0 0.0
    %4240 = vmatprep.mubr.f32.mxu0 0.0
    %4241 = vmatmul.mubr.f32.gmra.mxu0 %v4174
    %v4242 = vpop.f32.mrf.mxu0
    %v4243 = vadd.f32 0.0, %v4242
    %v4244 = vpop.f32.mrf.mxu0
    %4245 = vdwg.mxu0
    %s4246 = scalar_lea.vmem [#allocation14], 128
    %v4247 = vld [vmem:[%s4246] sm:$0xff]
    %v4248 = vld [vmem:[%s4246 + $0x8] sm:$0xff]
    %v4249 = vld [vmem:[%s4246 + $0x10] sm:$0xff]
    %v4250 = vld [vmem:[%s4246 + $0x18] sm:$0xff]
    %v4251 = vld [vmem:[%s4246 + $0x20] sm:$0xff]
    %v4252 = vld [vmem:[%s4246 + $0x28] sm:$0xff]
    %v4253 = vld [vmem:[%s4246 + $0x30] sm:$0xff]
    %v4254 = vld [vmem:[%s4246 + $0x38] sm:$0xff]
    %v4256 = vsel %vm160, %v4170, 0
    %v4259 = vsel %vm160, %v4243, 0
    %4261 = vmatprep.subr.mxu0 0.0
    %4262 = vmatpush1.msra.mxu0 0.0
    %4263 = vmatprep.subr.mxu0 0.0
    %4264 = vmatpush1.msra.mxu0 0.0
    %4265 = vmatprep.subr.mxu0 0.0
    %4266 = vmatpush1.msra.mxu0 0.0
    %4267 = vmatprep.subr.mxu0 0.0
    %4268 = vmatpush1.msra.mxu0 0.0
    %4269 = vmatprep.subr.mxu0 0.0
    %4270 = vmatpush1.msra.mxu0 0.0
    %4271 = vmatprep.subr.mxu0 0.0
    %4272 = vmatpush1.msra.mxu0 0.0
    %4273 = vmatprep.subr.mxu0 0.0
    %4274 = vmatpush1.msra.mxu0 0.0
    %4275 = vmatprep.subr.mxu0 0.0
    %4276 = vmatpush1.msra.mxu0 0.0
    %4277 = vmatprep.subr.mxu0 0.0
    %4278 = vmatpush1.msra.mxu0 %v4254
    %4279 = vmatprep.subr.mxu0 0.0
    %4280 = vmatpush1.msra.mxu0 %v4253
    %4281 = vmatprep.subr.mxu0 0.0
    %4282 = vmatpush1.msra.mxu0 %v4252
    %4283 = vmatprep.subr.mxu0 0.0
    %4284 = vmatpush1.msra.mxu0 %v4251
    %4285 = vmatprep.subr.mxu0 0.0
    %4286 = vmatpush1.msra.mxu0 %v4250
    %4287 = vmatprep.subr.mxu0 0.0
    %4288 = vmatpush1.msra.mxu0 %v4249
    %4289 = vmatprep.subr.mxu0 0.0
    %4290 = vmatpush1.msra.mxu0 %v4248
    %4291 = vmatprep.subr.mxu0 0.0
    %4292 = vmatpush1.msra.mxu0 %v4247
    %4293 = vmatprep.subr.mxu0 0.0
    %4294 = vmatpush2.msra.mxu0 0.0
    %4295 = vmatprep.subr.mxu0 0.0
    %4296 = vmatpush2.msra.mxu0 0.0
    %4297 = vmatprep.subr.mxu0 0.0
    %4298 = vmatpush2.msra.mxu0 0.0
    %4299 = vmatprep.subr.mxu0 0.0
    %4300 = vmatpush2.msra.mxu0 0.0
    %4301 = vmatprep.subr.mxu0 0.0
    %4302 = vmatpush2.msra.mxu0 0.0
    %4303 = vmatprep.subr.mxu0 0.0
    %4304 = vmatpush2.msra.mxu0 0.0
    %4305 = vmatprep.subr.mxu0 0.0
    %4306 = vmatpush2.msra.mxu0 0.0
    %4307 = vmatprep.subr.mxu0 0.0
    %4308 = vmatpush2.msra.mxu0 0.0
    %4309 = vmatprep.subr.mxu0 0.0
    %4310 = vmatpush2.msra.mxu0 0.0
    %4311 = vmatprep.subr.mxu0 0.0
    %4312 = vmatpush2.msra.mxu0 0.0
    %4313 = vmatprep.subr.mxu0 0.0
    %4314 = vmatpush2.msra.mxu0 0.0
    %4315 = vmatprep.subr.mxu0 0.0
    %4316 = vmatpush2.msra.mxu0 0.0
    %4317 = vmatprep.subr.mxu0 0.0
    %4318 = vmatpush2.msra.mxu0 0.0
    %4319 = vmatprep.subr.mxu0 0.0
    %4320 = vmatpush2.msra.mxu0 0.0
    %4321 = vmatprep.subr.mxu0 0.0
    %4322 = vmatpush2.msra.mxu0 0.0
    %4323 = vmatprep.subr.mxu0 0.0
    %4324 = vmatpush2.msra.mxu0 0.0
    %4325 = vmatprep.mubr.f32.mxu0 0.0
    %4326 = vmatmul.mubr.f32.gmra.mxu0 %v4256
    %v4327 = vpop.f32.mrf.mxu0
    %v4328 = vadd.f32 0.0, %v4327
    %v4329 = vpop.f32.mrf.mxu0
    %4330 = vmatprep.mubr.f32.mxu0 0.0
    %4331 = vmatmul.mubr.f32.gmra.mxu0 %v4259
    %v4332 = vpop.f32.mrf.mxu0
    %v4333 = vadd.f32 0.0, %v4332
    %v4334 = vpop.f32.mrf.mxu0
    %4335 = vdwg.mxu0
    %v4336 = vadd.f32 %v4098, %v4328
    %v4337 = vadd.f32 %v4099, %v4333
    %v4339 = vsel %vm3432, %v3596, 0
    %4341 = vmatprep.subr.mxu0 0.0
    %4342 = vmatpush1.msra.mxu0 0.0
    %4343 = vmatprep.subr.mxu0 0.0
    %4344 = vmatpush1.msra.mxu0 0.0
    %4345 = vmatprep.subr.mxu0 0.0
    %4346 = vmatpush1.msra.mxu0 0.0
    %4347 = vmatprep.subr.mxu0 0.0
    %4348 = vmatpush1.msra.mxu0 0.0
    %4349 = vmatprep.subr.mxu0 0.0
    %4350 = vmatpush1.msra.mxu0 0.0
    %4351 = vmatprep.subr.mxu0 0.0
    %4352 = vmatpush1.msra.mxu0 0.0
    %4353 = vmatprep.subr.mxu0 0.0
    %4354 = vmatpush1.msra.mxu0 0.0
    %4355 = vmatprep.subr.mxu0 0.0
    %4356 = vmatpush1.msra.mxu0 0.0
    %4357 = vmatprep.subr.mxu0 0.0
    %4358 = vmatpush1.msra.mxu0 0.0
    %4359 = vmatprep.subr.mxu0 0.0
    %4360 = vmatpush1.msra.mxu0 0.0
    %4361 = vmatprep.subr.mxu0 0.0
    %4362 = vmatpush1.msra.mxu0 0.0
    %4363 = vmatprep.subr.mxu0 0.0
    %4364 = vmatpush1.msra.mxu0 0.0
    %4365 = vmatprep.subr.mxu0 0.0
    %4366 = vmatpush1.msra.mxu0 0.0
    %4367 = vmatprep.subr.mxu0 0.0
    %4368 = vmatpush1.msra.mxu0 0.0
    %4369 = vmatprep.subr.mxu0 0.0
    %4370 = vmatpush1.msra.mxu0 0.0
    %4371 = vmatprep.subr.mxu0 0.0
    %4372 = vmatpush1.msra.mxu0 %v1636
    %4373 = vmatprep.subr.mxu0 0.0
    %4374 = vmatpush2.msra.mxu0 0.0
    %4375 = vmatprep.subr.mxu0 0.0
    %4376 = vmatpush2.msra.mxu0 0.0
    %4377 = vmatprep.subr.mxu0 0.0
    %4378 = vmatpush2.msra.mxu0 0.0
    %4379 = vmatprep.subr.mxu0 0.0
    %4380 = vmatpush2.msra.mxu0 0.0
    %4381 = vmatprep.subr.mxu0 0.0
    %4382 = vmatpush2.msra.mxu0 0.0
    %4383 = vmatprep.subr.mxu0 0.0
    %4384 = vmatpush2.msra.mxu0 0.0
    %4385 = vmatprep.subr.mxu0 0.0
    %4386 = vmatpush2.msra.mxu0 0.0
    %4387 = vmatprep.subr.mxu0 0.0
    %4388 = vmatpush2.msra.mxu0 0.0
    %4389 = vmatprep.subr.mxu0 0.0
    %4390 = vmatpush2.msra.mxu0 0.0
    %4391 = vmatprep.subr.mxu0 0.0
    %4392 = vmatpush2.msra.mxu0 0.0
    %4393 = vmatprep.subr.mxu0 0.0
    %4394 = vmatpush2.msra.mxu0 0.0
    %4395 = vmatprep.subr.mxu0 0.0
    %4396 = vmatpush2.msra.mxu0 0.0
    %4397 = vmatprep.subr.mxu0 0.0
    %4398 = vmatpush2.msra.mxu0 0.0
    %4399 = vmatprep.subr.mxu0 0.0
    %4400 = vmatpush2.msra.mxu0 0.0
    %4401 = vmatprep.subr.mxu0 0.0
    %4402 = vmatpush2.msra.mxu0 0.0
    %4403 = vmatprep.subr.mxu0 0.0
    %4404 = vmatpush2.msra.mxu0 0.0
    %4405 = vmatprep.mubr.f32.mxu0 0.0
    %4406 = vmatmul.mubr.f32.gmra.mxu0 %v4339
    %v4407 = vpop.f32.mrf.mxu0
    %v4408 = vadd.f32 0.0, %v4407
    %v4409 = vpop.f32.mrf.mxu0
    %4410 = vdwg.mxu0
    %v4412 = vsel %vm3432, %v3604, 0
    %4414 = vmatprep.subr.mxu0 0.0
    %4415 = vmatpush1.msra.mxu0 0.0
    %4416 = vmatprep.subr.mxu0 0.0
    %4417 = vmatpush1.msra.mxu0 0.0
    %4418 = vmatprep.subr.mxu0 0.0
    %4419 = vmatpush1.msra.mxu0 0.0
    %4420 = vmatprep.subr.mxu0 0.0
    %4421 = vmatpush1.msra.mxu0 0.0
    %4422 = vmatprep.subr.mxu0 0.0
    %4423 = vmatpush1.msra.mxu0 0.0
    %4424 = vmatprep.subr.mxu0 0.0
    %4425 = vmatpush1.msra.mxu0 0.0
    %4426 = vmatprep.subr.mxu0 0.0
    %4427 = vmatpush1.msra.mxu0 0.0
    %4428 = vmatprep.subr.mxu0 0.0
    %4429 = vmatpush1.msra.mxu0 0.0
    %4430 = vmatprep.subr.mxu0 0.0
    %4431 = vmatpush1.msra.mxu0 0.0
    %4432 = vmatprep.subr.mxu0 0.0
    %4433 = vmatpush1.msra.mxu0 0.0
    %4434 = vmatprep.subr.mxu0 0.0
    %4435 = vmatpush1.msra.mxu0 0.0
    %4436 = vmatprep.subr.mxu0 0.0
    %4437 = vmatpush1.msra.mxu0 0.0
    %4438 = vmatprep.subr.mxu0 0.0
    %4439 = vmatpush1.msra.mxu0 0.0
    %4440 = vmatprep.subr.mxu0 0.0
    %4441 = vmatpush1.msra.mxu0 0.0
    %4442 = vmatprep.subr.mxu0 0.0
    %4443 = vmatpush1.msra.mxu0 0.0
    %4444 = vmatprep.subr.mxu0 0.0
    %4445 = vmatpush1.msra.mxu0 %v1641
    %4446 = vmatprep.subr.mxu0 0.0
    %4447 = vmatpush2.msra.mxu0 0.0
    %4448 = vmatprep.subr.mxu0 0.0
    %4449 = vmatpush2.msra.mxu0 0.0
    %4450 = vmatprep.subr.mxu0 0.0
    %4451 = vmatpush2.msra.mxu0 0.0
    %4452 = vmatprep.subr.mxu0 0.0
    %4453 = vmatpush2.msra.mxu0 0.0
    %4454 = vmatprep.subr.mxu0 0.0
    %4455 = vmatpush2.msra.mxu0 0.0
    %4456 = vmatprep.subr.mxu0 0.0
    %4457 = vmatpush2.msra.mxu0 0.0
    %4458 = vmatprep.subr.mxu0 0.0
    %4459 = vmatpush2.msra.mxu0 0.0
    %4460 = vmatprep.subr.mxu0 0.0
    %4461 = vmatpush2.msra.mxu0 0.0
    %4462 = vmatprep.subr.mxu0 0.0
    %4463 = vmatpush2.msra.mxu0 0.0
    %4464 = vmatprep.subr.mxu0 0.0
    %4465 = vmatpush2.msra.mxu0 0.0
    %4466 = vmatprep.subr.mxu0 0.0
    %4467 = vmatpush2.msra.mxu0 0.0
    %4468 = vmatprep.subr.mxu0 0.0
    %4469 = vmatpush2.msra.mxu0 0.0
    %4470 = vmatprep.subr.mxu0 0.0
    %4471 = vmatpush2.msra.mxu0 0.0
    %4472 = vmatprep.subr.mxu0 0.0
    %4473 = vmatpush2.msra.mxu0 0.0
    %4474 = vmatprep.subr.mxu0 0.0
    %4475 = vmatpush2.msra.mxu0 0.0
    %4476 = vmatprep.subr.mxu0 0.0
    %4477 = vmatpush2.msra.mxu0 0.0
    %4478 = vmatprep.mubr.f32.mxu0 0.0
    %4479 = vmatmul.mubr.f32.gmra.mxu0 %v4412
    %v4480 = vpop.f32.mrf.mxu0
    %v4481 = vadd.f32 0.0, %v4480
    %v4482 = vpop.f32.mrf.mxu0
    %4483 = vdwg.mxu0
    %s4484 = scalar_lea.vmem [#allocation14], 192
    %v4485 = vld [vmem:[%s4484] sm:$0xff]
    %v4486 = vld [vmem:[%s4484 + $0x8] sm:$0xff]
    %v4487 = vld [vmem:[%s4484 + $0x10] sm:$0xff]
    %v4488 = vld [vmem:[%s4484 + $0x18] sm:$0xff]
    %v4489 = vld [vmem:[%s4484 + $0x20] sm:$0xff]
    %v4490 = vld [vmem:[%s4484 + $0x28] sm:$0xff]
    %v4491 = vld [vmem:[%s4484 + $0x30] sm:$0xff]
    %v4492 = vld [vmem:[%s4484 + $0x38] sm:$0xff]
    %v4494 = vsel %vm160, %v4408, 0
    %v4497 = vsel %vm160, %v4481, 0
    %4499 = vmatprep.subr.mxu0 0.0
    %4500 = vmatpush1.msra.mxu0 0.0
    %4501 = vmatprep.subr.mxu0 0.0
    %4502 = vmatpush1.msra.mxu0 0.0
    %4503 = vmatprep.subr.mxu0 0.0
    %4504 = vmatpush1.msra.mxu0 0.0
    %4505 = vmatprep.subr.mxu0 0.0
    %4506 = vmatpush1.msra.mxu0 0.0
    %4507 = vmatprep.subr.mxu0 0.0
    %4508 = vmatpush1.msra.mxu0 0.0
    %4509 = vmatprep.subr.mxu0 0.0
    %4510 = vmatpush1.msra.mxu0 0.0
    %4511 = vmatprep.subr.mxu0 0.0
    %4512 = vmatpush1.msra.mxu0 0.0
    %4513 = vmatprep.subr.mxu0 0.0
    %4514 = vmatpush1.msra.mxu0 0.0
    %4515 = vmatprep.subr.mxu0 0.0
    %4516 = vmatpush1.msra.mxu0 %v4492
    %4517 = vmatprep.subr.mxu0 0.0
    %4518 = vmatpush1.msra.mxu0 %v4491
    %4519 = vmatprep.subr.mxu0 0.0
    %4520 = vmatpush1.msra.mxu0 %v4490
    %4521 = vmatprep.subr.mxu0 0.0
    %4522 = vmatpush1.msra.mxu0 %v4489
    %4523 = vmatprep.subr.mxu0 0.0
    %4524 = vmatpush1.msra.mxu0 %v4488
    %4525 = vmatprep.subr.mxu0 0.0
    %4526 = vmatpush1.msra.mxu0 %v4487
    %4527 = vmatprep.subr.mxu0 0.0
    %4528 = vmatpush1.msra.mxu0 %v4486
    %4529 = vmatprep.subr.mxu0 0.0
    %4530 = vmatpush1.msra.mxu0 %v4485
    %4531 = vmatprep.subr.mxu0 0.0
    %4532 = vmatpush2.msra.mxu0 0.0
    %4533 = vmatprep.subr.mxu0 0.0
    %4534 = vmatpush2.msra.mxu0 0.0
    %4535 = vmatprep.subr.mxu0 0.0
    %4536 = vmatpush2.msra.mxu0 0.0
    %4537 = vmatprep.subr.mxu0 0.0
    %4538 = vmatpush2.msra.mxu0 0.0
    %4539 = vmatprep.subr.mxu0 0.0
    %4540 = vmatpush2.msra.mxu0 0.0
    %4541 = vmatprep.subr.mxu0 0.0
    %4542 = vmatpush2.msra.mxu0 0.0
    %4543 = vmatprep.subr.mxu0 0.0
    %4544 = vmatpush2.msra.mxu0 0.0
    %4545 = vmatprep.subr.mxu0 0.0
    %4546 = vmatpush2.msra.mxu0 0.0
    %4547 = vmatprep.subr.mxu0 0.0
    %4548 = vmatpush2.msra.mxu0 0.0
    %4549 = vmatprep.subr.mxu0 0.0
    %4550 = vmatpush2.msra.mxu0 0.0
    %4551 = vmatprep.subr.mxu0 0.0
    %4552 = vmatpush2.msra.mxu0 0.0
    %4553 = vmatprep.subr.mxu0 0.0
    %4554 = vmatpush2.msra.mxu0 0.0
    %4555 = vmatprep.subr.mxu0 0.0
    %4556 = vmatpush2.msra.mxu0 0.0
    %4557 = vmatprep.subr.mxu0 0.0
    %4558 = vmatpush2.msra.mxu0 0.0
    %4559 = vmatprep.subr.mxu0 0.0
    %4560 = vmatpush2.msra.mxu0 0.0
    %4561 = vmatprep.subr.mxu0 0.0
    %4562 = vmatpush2.msra.mxu0 0.0
    %4563 = vmatprep.mubr.f32.mxu0 0.0
    %4564 = vmatmul.mubr.f32.gmra.mxu0 %v4494
    %v4565 = vpop.f32.mrf.mxu0
    %v4566 = vadd.f32 0.0, %v4565
    %v4567 = vpop.f32.mrf.mxu0
    %4568 = vmatprep.mubr.f32.mxu0 0.0
    %4569 = vmatmul.mubr.f32.gmra.mxu0 %v4497
    %v4570 = vpop.f32.mrf.mxu0
    %v4571 = vadd.f32 0.0, %v4570
    %v4572 = vpop.f32.mrf.mxu0
    %4573 = vdwg.mxu0
    %v4574 = vadd.f32 %v4336, %v4566
    %v4575 = vadd.f32 %v4337, %v4571
    %v4577 = vsel %vm3432, %v3597, 0
    %4579 = vmatprep.subr.mxu0 0.0
    %4580 = vmatpush1.msra.mxu0 0.0
    %4581 = vmatprep.subr.mxu0 0.0
    %4582 = vmatpush1.msra.mxu0 0.0
    %4583 = vmatprep.subr.mxu0 0.0
    %4584 = vmatpush1.msra.mxu0 0.0
    %4585 = vmatprep.subr.mxu0 0.0
    %4586 = vmatpush1.msra.mxu0 0.0
    %4587 = vmatprep.subr.mxu0 0.0
    %4588 = vmatpush1.msra.mxu0 0.0
    %4589 = vmatprep.subr.mxu0 0.0
    %4590 = vmatpush1.msra.mxu0 0.0
    %4591 = vmatprep.subr.mxu0 0.0
    %4592 = vmatpush1.msra.mxu0 0.0
    %4593 = vmatprep.subr.mxu0 0.0
    %4594 = vmatpush1.msra.mxu0 0.0
    %4595 = vmatprep.subr.mxu0 0.0
    %4596 = vmatpush1.msra.mxu0 0.0
    %4597 = vmatprep.subr.mxu0 0.0
    %4598 = vmatpush1.msra.mxu0 0.0
    %4599 = vmatprep.subr.mxu0 0.0
    %4600 = vmatpush1.msra.mxu0 0.0
    %4601 = vmatprep.subr.mxu0 0.0
    %4602 = vmatpush1.msra.mxu0 0.0
    %4603 = vmatprep.subr.mxu0 0.0
    %4604 = vmatpush1.msra.mxu0 0.0
    %4605 = vmatprep.subr.mxu0 0.0
    %4606 = vmatpush1.msra.mxu0 0.0
    %4607 = vmatprep.subr.mxu0 0.0
    %4608 = vmatpush1.msra.mxu0 0.0
    %4609 = vmatprep.subr.mxu0 0.0
    %4610 = vmatpush1.msra.mxu0 %v2044
    %4611 = vmatprep.subr.mxu0 0.0
    %4612 = vmatpush2.msra.mxu0 0.0
    %4613 = vmatprep.subr.mxu0 0.0
    %4614 = vmatpush2.msra.mxu0 0.0
    %4615 = vmatprep.subr.mxu0 0.0
    %4616 = vmatpush2.msra.mxu0 0.0
    %4617 = vmatprep.subr.mxu0 0.0
    %4618 = vmatpush2.msra.mxu0 0.0
    %4619 = vmatprep.subr.mxu0 0.0
    %4620 = vmatpush2.msra.mxu0 0.0
    %4621 = vmatprep.subr.mxu0 0.0
    %4622 = vmatpush2.msra.mxu0 0.0
    %4623 = vmatprep.subr.mxu0 0.0
    %4624 = vmatpush2.msra.mxu0 0.0
    %4625 = vmatprep.subr.mxu0 0.0
    %4626 = vmatpush2.msra.mxu0 0.0
    %4627 = vmatprep.subr.mxu0 0.0
    %4628 = vmatpush2.msra.mxu0 0.0
    %4629 = vmatprep.subr.mxu0 0.0
    %4630 = vmatpush2.msra.mxu0 0.0
    %4631 = vmatprep.subr.mxu0 0.0
    %4632 = vmatpush2.msra.mxu0 0.0
    %4633 = vmatprep.subr.mxu0 0.0
    %4634 = vmatpush2.msra.mxu0 0.0
    %4635 = vmatprep.subr.mxu0 0.0
    %4636 = vmatpush2.msra.mxu0 0.0
    %4637 = vmatprep.subr.mxu0 0.0
    %4638 = vmatpush2.msra.mxu0 0.0
    %4639 = vmatprep.subr.mxu0 0.0
    %4640 = vmatpush2.msra.mxu0 0.0
    %4641 = vmatprep.subr.mxu0 0.0
    %4642 = vmatpush2.msra.mxu0 0.0
    %4643 = vmatprep.mubr.f32.mxu0 0.0
    %4644 = vmatmul.mubr.f32.gmra.mxu0 %v4577
    %v4645 = vpop.f32.mrf.mxu0
    %v4646 = vadd.f32 0.0, %v4645
    %v4647 = vpop.f32.mrf.mxu0
    %4648 = vdwg.mxu0
    %v4650 = vsel %vm3432, %v3605, 0
    %4652 = vmatprep.subr.mxu0 0.0
    %4653 = vmatpush1.msra.mxu0 0.0
    %4654 = vmatprep.subr.mxu0 0.0
    %4655 = vmatpush1.msra.mxu0 0.0
    %4656 = vmatprep.subr.mxu0 0.0
    %4657 = vmatpush1.msra.mxu0 0.0
    %4658 = vmatprep.subr.mxu0 0.0
    %4659 = vmatpush1.msra.mxu0 0.0
    %4660 = vmatprep.subr.mxu0 0.0
    %4661 = vmatpush1.msra.mxu0 0.0
    %4662 = vmatprep.subr.mxu0 0.0
    %4663 = vmatpush1.msra.mxu0 0.0
    %4664 = vmatprep.subr.mxu0 0.0
    %4665 = vmatpush1.msra.mxu0 0.0
    %4666 = vmatprep.subr.mxu0 0.0
    %4667 = vmatpush1.msra.mxu0 0.0
    %4668 = vmatprep.subr.mxu0 0.0
    %4669 = vmatpush1.msra.mxu0 0.0
    %4670 = vmatprep.subr.mxu0 0.0
    %4671 = vmatpush1.msra.mxu0 0.0
    %4672 = vmatprep.subr.mxu0 0.0
    %4673 = vmatpush1.msra.mxu0 0.0
    %4674 = vmatprep.subr.mxu0 0.0
    %4675 = vmatpush1.msra.mxu0 0.0
    %4676 = vmatprep.subr.mxu0 0.0
    %4677 = vmatpush1.msra.mxu0 0.0
    %4678 = vmatprep.subr.mxu0 0.0
    %4679 = vmatpush1.msra.mxu0 0.0
    %4680 = vmatprep.subr.mxu0 0.0
    %4681 = vmatpush1.msra.mxu0 0.0
    %4682 = vmatprep.subr.mxu0 0.0
    %4683 = vmatpush1.msra.mxu0 %v2049
    %4684 = vmatprep.subr.mxu0 0.0
    %4685 = vmatpush2.msra.mxu0 0.0
    %4686 = vmatprep.subr.mxu0 0.0
    %4687 = vmatpush2.msra.mxu0 0.0
    %4688 = vmatprep.subr.mxu0 0.0
    %4689 = vmatpush2.msra.mxu0 0.0
    %4690 = vmatprep.subr.mxu0 0.0
    %4691 = vmatpush2.msra.mxu0 0.0
    %4692 = vmatprep.subr.mxu0 0.0
    %4693 = vmatpush2.msra.mxu0 0.0
    %4694 = vmatprep.subr.mxu0 0.0
    %4695 = vmatpush2.msra.mxu0 0.0
    %4696 = vmatprep.subr.mxu0 0.0
    %4697 = vmatpush2.msra.mxu0 0.0
    %4698 = vmatprep.subr.mxu0 0.0
    %4699 = vmatpush2.msra.mxu0 0.0
    %4700 = vmatprep.subr.mxu0 0.0
    %4701 = vmatpush2.msra.mxu0 0.0
    %4702 = vmatprep.subr.mxu0 0.0
    %4703 = vmatpush2.msra.mxu0 0.0
    %4704 = vmatprep.subr.mxu0 0.0
    %4705 = vmatpush2.msra.mxu0 0.0
    %4706 = vmatprep.subr.mxu0 0.0
    %4707 = vmatpush2.msra.mxu0 0.0
    %4708 = vmatprep.subr.mxu0 0.0
    %4709 = vmatpush2.msra.mxu0 0.0
    %4710 = vmatprep.subr.mxu0 0.0
    %4711 = vmatpush2.msra.mxu0 0.0
    %4712 = vmatprep.subr.mxu0 0.0
    %4713 = vmatpush2.msra.mxu0 0.0
    %4714 = vmatprep.subr.mxu0 0.0
    %4715 = vmatpush2.msra.mxu0 0.0
    %4716 = vmatprep.mubr.f32.mxu0 0.0
    %4717 = vmatmul.mubr.f32.gmra.mxu0 %v4650
    %v4718 = vpop.f32.mrf.mxu0
    %v4719 = vadd.f32 0.0, %v4718
    %v4720 = vpop.f32.mrf.mxu0
    %4721 = vdwg.mxu0
    %s4722 = scalar_lea.vmem [#allocation14], 256
    %v4723 = vld [vmem:[%s4722] sm:$0xff]
    %v4724 = vld [vmem:[%s4722 + $0x8] sm:$0xff]
    %v4725 = vld [vmem:[%s4722 + $0x10] sm:$0xff]
    %v4726 = vld [vmem:[%s4722 + $0x18] sm:$0xff]
    %v4727 = vld [vmem:[%s4722 + $0x20] sm:$0xff]
    %v4728 = vld [vmem:[%s4722 + $0x28] sm:$0xff]
    %v4729 = vld [vmem:[%s4722 + $0x30] sm:$0xff]
    %v4730 = vld [vmem:[%s4722 + $0x38] sm:$0xff]
    %v4732 = vsel %vm160, %v4646, 0
    %v4735 = vsel %vm160, %v4719, 0
    %4737 = vmatprep.subr.mxu0 0.0
    %4738 = vmatpush1.msra.mxu0 0.0
    %4739 = vmatprep.subr.mxu0 0.0
    %4740 = vmatpush1.msra.mxu0 0.0
    %4741 = vmatprep.subr.mxu0 0.0
    %4742 = vmatpush1.msra.mxu0 0.0
    %4743 = vmatprep.subr.mxu0 0.0
    %4744 = vmatpush1.msra.mxu0 0.0
    %4745 = vmatprep.subr.mxu0 0.0
    %4746 = vmatpush1.msra.mxu0 0.0
    %4747 = vmatprep.subr.mxu0 0.0
    %4748 = vmatpush1.msra.mxu0 0.0
    %4749 = vmatprep.subr.mxu0 0.0
    %4750 = vmatpush1.msra.mxu0 0.0
    %4751 = vmatprep.subr.mxu0 0.0
    %4752 = vmatpush1.msra.mxu0 0.0
    %4753 = vmatprep.subr.mxu0 0.0
    %4754 = vmatpush1.msra.mxu0 %v4730
    %4755 = vmatprep.subr.mxu0 0.0
    %4756 = vmatpush1.msra.mxu0 %v4729
    %4757 = vmatprep.subr.mxu0 0.0
    %4758 = vmatpush1.msra.mxu0 %v4728
    %4759 = vmatprep.subr.mxu0 0.0
    %4760 = vmatpush1.msra.mxu0 %v4727
    %4761 = vmatprep.subr.mxu0 0.0
    %4762 = vmatpush1.msra.mxu0 %v4726
    %4763 = vmatprep.subr.mxu0 0.0
    %4764 = vmatpush1.msra.mxu0 %v4725
    %4765 = vmatprep.subr.mxu0 0.0
    %4766 = vmatpush1.msra.mxu0 %v4724
    %4767 = vmatprep.subr.mxu0 0.0
    %4768 = vmatpush1.msra.mxu0 %v4723
    %4769 = vmatprep.subr.mxu0 0.0
    %4770 = vmatpush2.msra.mxu0 0.0
    %4771 = vmatprep.subr.mxu0 0.0
    %4772 = vmatpush2.msra.mxu0 0.0
    %4773 = vmatprep.subr.mxu0 0.0
    %4774 = vmatpush2.msra.mxu0 0.0
    %4775 = vmatprep.subr.mxu0 0.0
    %4776 = vmatpush2.msra.mxu0 0.0
    %4777 = vmatprep.subr.mxu0 0.0
    %4778 = vmatpush2.msra.mxu0 0.0
    %4779 = vmatprep.subr.mxu0 0.0
    %4780 = vmatpush2.msra.mxu0 0.0
    %4781 = vmatprep.subr.mxu0 0.0
    %4782 = vmatpush2.msra.mxu0 0.0
    %4783 = vmatprep.subr.mxu0 0.0
    %4784 = vmatpush2.msra.mxu0 0.0
    %4785 = vmatprep.subr.mxu0 0.0
    %4786 = vmatpush2.msra.mxu0 0.0
    %4787 = vmatprep.subr.mxu0 0.0
    %4788 = vmatpush2.msra.mxu0 0.0
    %4789 = vmatprep.subr.mxu0 0.0
    %4790 = vmatpush2.msra.mxu0 0.0
    %4791 = vmatprep.subr.mxu0 0.0
    %4792 = vmatpush2.msra.mxu0 0.0
    %4793 = vmatprep.subr.mxu0 0.0
    %4794 = vmatpush2.msra.mxu0 0.0
    %4795 = vmatprep.subr.mxu0 0.0
    %4796 = vmatpush2.msra.mxu0 0.0
    %4797 = vmatprep.subr.mxu0 0.0
    %4798 = vmatpush2.msra.mxu0 0.0
    %4799 = vmatprep.subr.mxu0 0.0
    %4800 = vmatpush2.msra.mxu0 0.0
    %4801 = vmatprep.mubr.f32.mxu0 0.0
    %4802 = vmatmul.mubr.f32.gmra.mxu0 %v4732
    %v4803 = vpop.f32.mrf.mxu0
    %v4804 = vadd.f32 0.0, %v4803
    %v4805 = vpop.f32.mrf.mxu0
    %4806 = vmatprep.mubr.f32.mxu0 0.0
    %4807 = vmatmul.mubr.f32.gmra.mxu0 %v4735
    %v4808 = vpop.f32.mrf.mxu0
    %v4809 = vadd.f32 0.0, %v4808
    %v4810 = vpop.f32.mrf.mxu0
    %4811 = vdwg.mxu0
    %v4812 = vadd.f32 %v4574, %v4804
    %v4813 = vadd.f32 %v4575, %v4809
    %v4815 = vsel %vm3432, %v3598, 0
    %4817 = vmatprep.subr.mxu0 0.0
    %4818 = vmatpush1.msra.mxu0 0.0
    %4819 = vmatprep.subr.mxu0 0.0
    %4820 = vmatpush1.msra.mxu0 0.0
    %4821 = vmatprep.subr.mxu0 0.0
    %4822 = vmatpush1.msra.mxu0 0.0
    %4823 = vmatprep.subr.mxu0 0.0
    %4824 = vmatpush1.msra.mxu0 0.0
    %4825 = vmatprep.subr.mxu0 0.0
    %4826 = vmatpush1.msra.mxu0 0.0
    %4827 = vmatprep.subr.mxu0 0.0
    %4828 = vmatpush1.msra.mxu0 0.0
    %4829 = vmatprep.subr.mxu0 0.0
    %4830 = vmatpush1.msra.mxu0 0.0
    %4831 = vmatprep.subr.mxu0 0.0
    %4832 = vmatpush1.msra.mxu0 0.0
    %4833 = vmatprep.subr.mxu0 0.0
    %4834 = vmatpush1.msra.mxu0 0.0
    %4835 = vmatprep.subr.mxu0 0.0
    %4836 = vmatpush1.msra.mxu0 0.0
    %4837 = vmatprep.subr.mxu0 0.0
    %4838 = vmatpush1.msra.mxu0 0.0
    %4839 = vmatprep.subr.mxu0 0.0
    %4840 = vmatpush1.msra.mxu0 0.0
    %4841 = vmatprep.subr.mxu0 0.0
    %4842 = vmatpush1.msra.mxu0 0.0
    %4843 = vmatprep.subr.mxu0 0.0
    %4844 = vmatpush1.msra.mxu0 0.0
    %4845 = vmatprep.subr.mxu0 0.0
    %4846 = vmatpush1.msra.mxu0 0.0
    %4847 = vmatprep.subr.mxu0 0.0
    %4848 = vmatpush1.msra.mxu0 %v2452
    %4849 = vmatprep.subr.mxu0 0.0
    %4850 = vmatpush2.msra.mxu0 0.0
    %4851 = vmatprep.subr.mxu0 0.0
    %4852 = vmatpush2.msra.mxu0 0.0
    %4853 = vmatprep.subr.mxu0 0.0
    %4854 = vmatpush2.msra.mxu0 0.0
    %4855 = vmatprep.subr.mxu0 0.0
    %4856 = vmatpush2.msra.mxu0 0.0
    %4857 = vmatprep.subr.mxu0 0.0
    %4858 = vmatpush2.msra.mxu0 0.0
    %4859 = vmatprep.subr.mxu0 0.0
    %4860 = vmatpush2.msra.mxu0 0.0
    %4861 = vmatprep.subr.mxu0 0.0
    %4862 = vmatpush2.msra.mxu0 0.0
    %4863 = vmatprep.subr.mxu0 0.0
    %4864 = vmatpush2.msra.mxu0 0.0
    %4865 = vmatprep.subr.mxu0 0.0
    %4866 = vmatpush2.msra.mxu0 0.0
    %4867 = vmatprep.subr.mxu0 0.0
    %4868 = vmatpush2.msra.mxu0 0.0
    %4869 = vmatprep.subr.mxu0 0.0
    %4870 = vmatpush2.msra.mxu0 0.0
    %4871 = vmatprep.subr.mxu0 0.0
    %4872 = vmatpush2.msra.mxu0 0.0
    %4873 = vmatprep.subr.mxu0 0.0
    %4874 = vmatpush2.msra.mxu0 0.0
    %4875 = vmatprep.subr.mxu0 0.0
    %4876 = vmatpush2.msra.mxu0 0.0
    %4877 = vmatprep.subr.mxu0 0.0
    %4878 = vmatpush2.msra.mxu0 0.0
    %4879 = vmatprep.subr.mxu0 0.0
    %4880 = vmatpush2.msra.mxu0 0.0
    %4881 = vmatprep.mubr.f32.mxu0 0.0
    %4882 = vmatmul.mubr.f32.gmra.mxu0 %v4815
    %v4883 = vpop.f32.mrf.mxu0
    %v4884 = vadd.f32 0.0, %v4883
    %v4885 = vpop.f32.mrf.mxu0
    %4886 = vdwg.mxu0
    %v4888 = vsel %vm3432, %v3606, 0
    %4890 = vmatprep.subr.mxu0 0.0
    %4891 = vmatpush1.msra.mxu0 0.0
    %4892 = vmatprep.subr.mxu0 0.0
    %4893 = vmatpush1.msra.mxu0 0.0
    %4894 = vmatprep.subr.mxu0 0.0
    %4895 = vmatpush1.msra.mxu0 0.0
    %4896 = vmatprep.subr.mxu0 0.0
    %4897 = vmatpush1.msra.mxu0 0.0
    %4898 = vmatprep.subr.mxu0 0.0
    %4899 = vmatpush1.msra.mxu0 0.0
    %4900 = vmatprep.subr.mxu0 0.0
    %4901 = vmatpush1.msra.mxu0 0.0
    %4902 = vmatprep.subr.mxu0 0.0
    %4903 = vmatpush1.msra.mxu0 0.0
    %4904 = vmatprep.subr.mxu0 0.0
    %4905 = vmatpush1.msra.mxu0 0.0
    %4906 = vmatprep.subr.mxu0 0.0
    %4907 = vmatpush1.msra.mxu0 0.0
    %4908 = vmatprep.subr.mxu0 0.0
    %4909 = vmatpush1.msra.mxu0 0.0
    %4910 = vmatprep.subr.mxu0 0.0
    %4911 = vmatpush1.msra.mxu0 0.0
    %4912 = vmatprep.subr.mxu0 0.0
    %4913 = vmatpush1.msra.mxu0 0.0
    %4914 = vmatprep.subr.mxu0 0.0
    %4915 = vmatpush1.msra.mxu0 0.0
    %4916 = vmatprep.subr.mxu0 0.0
    %4917 = vmatpush1.msra.mxu0 0.0
    %4918 = vmatprep.subr.mxu0 0.0
    %4919 = vmatpush1.msra.mxu0 0.0
    %4920 = vmatprep.subr.mxu0 0.0
    %4921 = vmatpush1.msra.mxu0 %v2457
    %4922 = vmatprep.subr.mxu0 0.0
    %4923 = vmatpush2.msra.mxu0 0.0
    %4924 = vmatprep.subr.mxu0 0.0
    %4925 = vmatpush2.msra.mxu0 0.0
    %4926 = vmatprep.subr.mxu0 0.0
    %4927 = vmatpush2.msra.mxu0 0.0
    %4928 = vmatprep.subr.mxu0 0.0
    %4929 = vmatpush2.msra.mxu0 0.0
    %4930 = vmatprep.subr.mxu0 0.0
    %4931 = vmatpush2.msra.mxu0 0.0
    %4932 = vmatprep.subr.mxu0 0.0
    %4933 = vmatpush2.msra.mxu0 0.0
    %4934 = vmatprep.subr.mxu0 0.0
    %4935 = vmatpush2.msra.mxu0 0.0
    %4936 = vmatprep.subr.mxu0 0.0
    %4937 = vmatpush2.msra.mxu0 0.0
    %4938 = vmatprep.subr.mxu0 0.0
    %4939 = vmatpush2.msra.mxu0 0.0
    %4940 = vmatprep.subr.mxu0 0.0
    %4941 = vmatpush2.msra.mxu0 0.0
    %4942 = vmatprep.subr.mxu0 0.0
    %4943 = vmatpush2.msra.mxu0 0.0
    %4944 = vmatprep.subr.mxu0 0.0
    %4945 = vmatpush2.msra.mxu0 0.0
    %4946 = vmatprep.subr.mxu0 0.0
    %4947 = vmatpush2.msra.mxu0 0.0
    %4948 = vmatprep.subr.mxu0 0.0
    %4949 = vmatpush2.msra.mxu0 0.0
    %4950 = vmatprep.subr.mxu0 0.0
    %4951 = vmatpush2.msra.mxu0 0.0
    %4952 = vmatprep.subr.mxu0 0.0
    %4953 = vmatpush2.msra.mxu0 0.0
    %4954 = vmatprep.mubr.f32.mxu0 0.0
    %4955 = vmatmul.mubr.f32.gmra.mxu0 %v4888
    %v4956 = vpop.f32.mrf.mxu0
    %v4957 = vadd.f32 0.0, %v4956
    %v4958 = vpop.f32.mrf.mxu0
    %4959 = vdwg.mxu0
    %s4960 = scalar_lea.vmem [#allocation14], 320
    %v4961 = vld [vmem:[%s4960] sm:$0xff]
    %v4962 = vld [vmem:[%s4960 + $0x8] sm:$0xff]
    %v4963 = vld [vmem:[%s4960 + $0x10] sm:$0xff]
    %v4964 = vld [vmem:[%s4960 + $0x18] sm:$0xff]
    %v4965 = vld [vmem:[%s4960 + $0x20] sm:$0xff]
    %v4966 = vld [vmem:[%s4960 + $0x28] sm:$0xff]
    %v4967 = vld [vmem:[%s4960 + $0x30] sm:$0xff]
    %v4968 = vld [vmem:[%s4960 + $0x38] sm:$0xff]
    %v4970 = vsel %vm160, %v4884, 0
    %v4973 = vsel %vm160, %v4957, 0
    %4975 = vmatprep.subr.mxu0 0.0
    %4976 = vmatpush1.msra.mxu0 0.0
    %4977 = vmatprep.subr.mxu0 0.0
    %4978 = vmatpush1.msra.mxu0 0.0
    %4979 = vmatprep.subr.mxu0 0.0
    %4980 = vmatpush1.msra.mxu0 0.0
    %4981 = vmatprep.subr.mxu0 0.0
    %4982 = vmatpush1.msra.mxu0 0.0
    %4983 = vmatprep.subr.mxu0 0.0
    %4984 = vmatpush1.msra.mxu0 0.0
    %4985 = vmatprep.subr.mxu0 0.0
    %4986 = vmatpush1.msra.mxu0 0.0
    %4987 = vmatprep.subr.mxu0 0.0
    %4988 = vmatpush1.msra.mxu0 0.0
    %4989 = vmatprep.subr.mxu0 0.0
    %4990 = vmatpush1.msra.mxu0 0.0
    %4991 = vmatprep.subr.mxu0 0.0
    %4992 = vmatpush1.msra.mxu0 %v4968
    %4993 = vmatprep.subr.mxu0 0.0
    %4994 = vmatpush1.msra.mxu0 %v4967
    %4995 = vmatprep.subr.mxu0 0.0
    %4996 = vmatpush1.msra.mxu0 %v4966
    %4997 = vmatprep.subr.mxu0 0.0
    %4998 = vmatpush1.msra.mxu0 %v4965
    %4999 = vmatprep.subr.mxu0 0.0
    %5000 = vmatpush1.msra.mxu0 %v4964
    %5001 = vmatprep.subr.mxu0 0.0
    %5002 = vmatpush1.msra.mxu0 %v4963
    %5003 = vmatprep.subr.mxu0 0.0
    %5004 = vmatpush1.msra.mxu0 %v4962
    %5005 = vmatprep.subr.mxu0 0.0
    %5006 = vmatpush1.msra.mxu0 %v4961
    %5007 = vmatprep.subr.mxu0 0.0
    %5008 = vmatpush2.msra.mxu0 0.0
    %5009 = vmatprep.subr.mxu0 0.0
    %5010 = vmatpush2.msra.mxu0 0.0
    %5011 = vmatprep.subr.mxu0 0.0
    %5012 = vmatpush2.msra.mxu0 0.0
    %5013 = vmatprep.subr.mxu0 0.0
    %5014 = vmatpush2.msra.mxu0 0.0
    %5015 = vmatprep.subr.mxu0 0.0
    %5016 = vmatpush2.msra.mxu0 0.0
    %5017 = vmatprep.subr.mxu0 0.0
    %5018 = vmatpush2.msra.mxu0 0.0
    %5019 = vmatprep.subr.mxu0 0.0
    %5020 = vmatpush2.msra.mxu0 0.0
    %5021 = vmatprep.subr.mxu0 0.0
    %5022 = vmatpush2.msra.mxu0 0.0
    %5023 = vmatprep.subr.mxu0 0.0
    %5024 = vmatpush2.msra.mxu0 0.0
    %5025 = vmatprep.subr.mxu0 0.0
    %5026 = vmatpush2.msra.mxu0 0.0
    %5027 = vmatprep.subr.mxu0 0.0
    %5028 = vmatpush2.msra.mxu0 0.0
    %5029 = vmatprep.subr.mxu0 0.0
    %5030 = vmatpush2.msra.mxu0 0.0
    %5031 = vmatprep.subr.mxu0 0.0
    %5032 = vmatpush2.msra.mxu0 0.0
    %5033 = vmatprep.subr.mxu0 0.0
    %5034 = vmatpush2.msra.mxu0 0.0
    %5035 = vmatprep.subr.mxu0 0.0
    %5036 = vmatpush2.msra.mxu0 0.0
    %5037 = vmatprep.subr.mxu0 0.0
    %5038 = vmatpush2.msra.mxu0 0.0
    %5039 = vmatprep.mubr.f32.mxu0 0.0
    %5040 = vmatmul.mubr.f32.gmra.mxu0 %v4970
    %v5041 = vpop.f32.mrf.mxu0
    %v5042 = vadd.f32 0.0, %v5041
    %v5043 = vpop.f32.mrf.mxu0
    %5044 = vmatprep.mubr.f32.mxu0 0.0
    %5045 = vmatmul.mubr.f32.gmra.mxu0 %v4973
    %v5046 = vpop.f32.mrf.mxu0
    %v5047 = vadd.f32 0.0, %v5046
    %v5048 = vpop.f32.mrf.mxu0
    %5049 = vdwg.mxu0
    %v5050 = vadd.f32 %v4812, %v5042
    %v5051 = vadd.f32 %v4813, %v5047
    %v5053 = vsel %vm3432, %v3599, 0
    %5055 = vmatprep.subr.mxu0 0.0
    %5056 = vmatpush1.msra.mxu0 0.0
    %5057 = vmatprep.subr.mxu0 0.0
    %5058 = vmatpush1.msra.mxu0 0.0
    %5059 = vmatprep.subr.mxu0 0.0
    %5060 = vmatpush1.msra.mxu0 0.0
    %5061 = vmatprep.subr.mxu0 0.0
    %5062 = vmatpush1.msra.mxu0 0.0
    %5063 = vmatprep.subr.mxu0 0.0
    %5064 = vmatpush1.msra.mxu0 0.0
    %5065 = vmatprep.subr.mxu0 0.0
    %5066 = vmatpush1.msra.mxu0 0.0
    %5067 = vmatprep.subr.mxu0 0.0
    %5068 = vmatpush1.msra.mxu0 0.0
    %5069 = vmatprep.subr.mxu0 0.0
    %5070 = vmatpush1.msra.mxu0 0.0
    %5071 = vmatprep.subr.mxu0 0.0
    %5072 = vmatpush1.msra.mxu0 0.0
    %5073 = vmatprep.subr.mxu0 0.0
    %5074 = vmatpush1.msra.mxu0 0.0
    %5075 = vmatprep.subr.mxu0 0.0
    %5076 = vmatpush1.msra.mxu0 0.0
    %5077 = vmatprep.subr.mxu0 0.0
    %5078 = vmatpush1.msra.mxu0 0.0
    %5079 = vmatprep.subr.mxu0 0.0
    %5080 = vmatpush1.msra.mxu0 0.0
    %5081 = vmatprep.subr.mxu0 0.0
    %5082 = vmatpush1.msra.mxu0 0.0
    %5083 = vmatprep.subr.mxu0 0.0
    %5084 = vmatpush1.msra.mxu0 0.0
    %5085 = vmatprep.subr.mxu0 0.0
    %5086 = vmatpush1.msra.mxu0 %v2860
    %5087 = vmatprep.subr.mxu0 0.0
    %5088 = vmatpush2.msra.mxu0 0.0
    %5089 = vmatprep.subr.mxu0 0.0
    %5090 = vmatpush2.msra.mxu0 0.0
    %5091 = vmatprep.subr.mxu0 0.0
    %5092 = vmatpush2.msra.mxu0 0.0
    %5093 = vmatprep.subr.mxu0 0.0
    %5094 = vmatpush2.msra.mxu0 0.0
    %5095 = vmatprep.subr.mxu0 0.0
    %5096 = vmatpush2.msra.mxu0 0.0
    %5097 = vmatprep.subr.mxu0 0.0
    %5098 = vmatpush2.msra.mxu0 0.0
    %5099 = vmatprep.subr.mxu0 0.0
    %5100 = vmatpush2.msra.mxu0 0.0
    %5101 = vmatprep.subr.mxu0 0.0
    %5102 = vmatpush2.msra.mxu0 0.0
    %5103 = vmatprep.subr.mxu0 0.0
    %5104 = vmatpush2.msra.mxu0 0.0
    %5105 = vmatprep.subr.mxu0 0.0
    %5106 = vmatpush2.msra.mxu0 0.0
    %5107 = vmatprep.subr.mxu0 0.0
    %5108 = vmatpush2.msra.mxu0 0.0
    %5109 = vmatprep.subr.mxu0 0.0
    %5110 = vmatpush2.msra.mxu0 0.0
    %5111 = vmatprep.subr.mxu0 0.0
    %5112 = vmatpush2.msra.mxu0 0.0
    %5113 = vmatprep.subr.mxu0 0.0
    %5114 = vmatpush2.msra.mxu0 0.0
    %5115 = vmatprep.subr.mxu0 0.0
    %5116 = vmatpush2.msra.mxu0 0.0
    %5117 = vmatprep.subr.mxu0 0.0
    %5118 = vmatpush2.msra.mxu0 0.0
    %5119 = vmatprep.mubr.f32.mxu0 0.0
    %5120 = vmatmul.mubr.f32.gmra.mxu0 %v5053
    %v5121 = vpop.f32.mrf.mxu0
    %v5122 = vadd.f32 0.0, %v5121
    %v5123 = vpop.f32.mrf.mxu0
    %5124 = vdwg.mxu0
    %v5126 = vsel %vm3432, %v3607, 0
    %5128 = vmatprep.subr.mxu0 0.0
    %5129 = vmatpush1.msra.mxu0 0.0
    %5130 = vmatprep.subr.mxu0 0.0
    %5131 = vmatpush1.msra.mxu0 0.0
    %5132 = vmatprep.subr.mxu0 0.0
    %5133 = vmatpush1.msra.mxu0 0.0
    %5134 = vmatprep.subr.mxu0 0.0
    %5135 = vmatpush1.msra.mxu0 0.0
    %5136 = vmatprep.subr.mxu0 0.0
    %5137 = vmatpush1.msra.mxu0 0.0
    %5138 = vmatprep.subr.mxu0 0.0
    %5139 = vmatpush1.msra.mxu0 0.0
    %5140 = vmatprep.subr.mxu0 0.0
    %5141 = vmatpush1.msra.mxu0 0.0
    %5142 = vmatprep.subr.mxu0 0.0
    %5143 = vmatpush1.msra.mxu0 0.0
    %5144 = vmatprep.subr.mxu0 0.0
    %5145 = vmatpush1.msra.mxu0 0.0
    %5146 = vmatprep.subr.mxu0 0.0
    %5147 = vmatpush1.msra.mxu0 0.0
    %5148 = vmatprep.subr.mxu0 0.0
    %5149 = vmatpush1.msra.mxu0 0.0
    %5150 = vmatprep.subr.mxu0 0.0
    %5151 = vmatpush1.msra.mxu0 0.0
    %5152 = vmatprep.subr.mxu0 0.0
    %5153 = vmatpush1.msra.mxu0 0.0
    %5154 = vmatprep.subr.mxu0 0.0
    %5155 = vmatpush1.msra.mxu0 0.0
    %5156 = vmatprep.subr.mxu0 0.0
    %5157 = vmatpush1.msra.mxu0 0.0
    %5158 = vmatprep.subr.mxu0 0.0
    %5159 = vmatpush1.msra.mxu0 %v2865
    %5160 = vmatprep.subr.mxu0 0.0
    %5161 = vmatpush2.msra.mxu0 0.0
    %5162 = vmatprep.subr.mxu0 0.0
    %5163 = vmatpush2.msra.mxu0 0.0
    %5164 = vmatprep.subr.mxu0 0.0
    %5165 = vmatpush2.msra.mxu0 0.0
    %5166 = vmatprep.subr.mxu0 0.0
    %5167 = vmatpush2.msra.mxu0 0.0
    %5168 = vmatprep.subr.mxu0 0.0
    %5169 = vmatpush2.msra.mxu0 0.0
    %5170 = vmatprep.subr.mxu0 0.0
    %5171 = vmatpush2.msra.mxu0 0.0
    %5172 = vmatprep.subr.mxu0 0.0
    %5173 = vmatpush2.msra.mxu0 0.0
    %5174 = vmatprep.subr.mxu0 0.0
    %5175 = vmatpush2.msra.mxu0 0.0
    %5176 = vmatprep.subr.mxu0 0.0
    %5177 = vmatpush2.msra.mxu0 0.0
    %5178 = vmatprep.subr.mxu0 0.0
    %5179 = vmatpush2.msra.mxu0 0.0
    %5180 = vmatprep.subr.mxu0 0.0
    %5181 = vmatpush2.msra.mxu0 0.0
    %5182 = vmatprep.subr.mxu0 0.0
    %5183 = vmatpush2.msra.mxu0 0.0
    %5184 = vmatprep.subr.mxu0 0.0
    %5185 = vmatpush2.msra.mxu0 0.0
    %5186 = vmatprep.subr.mxu0 0.0
    %5187 = vmatpush2.msra.mxu0 0.0
    %5188 = vmatprep.subr.mxu0 0.0
    %5189 = vmatpush2.msra.mxu0 0.0
    %5190 = vmatprep.subr.mxu0 0.0
    %5191 = vmatpush2.msra.mxu0 0.0
    %5192 = vmatprep.mubr.f32.mxu0 0.0
    %5193 = vmatmul.mubr.f32.gmra.mxu0 %v5126
    %v5194 = vpop.f32.mrf.mxu0
    %v5195 = vadd.f32 0.0, %v5194
    %v5196 = vpop.f32.mrf.mxu0
    %5197 = vdwg.mxu0
    %s5198 = scalar_lea.vmem [#allocation14], 384
    %v5199 = vld [vmem:[%s5198] sm:$0xff]
    %v5200 = vld [vmem:[%s5198 + $0x8] sm:$0xff]
    %v5201 = vld [vmem:[%s5198 + $0x10] sm:$0xff]
    %v5202 = vld [vmem:[%s5198 + $0x18] sm:$0xff]
    %v5203 = vld [vmem:[%s5198 + $0x20] sm:$0xff]
    %v5204 = vld [vmem:[%s5198 + $0x28] sm:$0xff]
    %v5205 = vld [vmem:[%s5198 + $0x30] sm:$0xff]
    %v5206 = vld [vmem:[%s5198 + $0x38] sm:$0xff]
    %v5208 = vsel %vm160, %v5122, 0
    %v5211 = vsel %vm160, %v5195, 0
    %5213 = vmatprep.subr.mxu0 0.0
    %5214 = vmatpush1.msra.mxu0 0.0
    %5215 = vmatprep.subr.mxu0 0.0
    %5216 = vmatpush1.msra.mxu0 0.0
    %5217 = vmatprep.subr.mxu0 0.0
    %5218 = vmatpush1.msra.mxu0 0.0
    %5219 = vmatprep.subr.mxu0 0.0
    %5220 = vmatpush1.msra.mxu0 0.0
    %5221 = vmatprep.subr.mxu0 0.0
    %5222 = vmatpush1.msra.mxu0 0.0
    %5223 = vmatprep.subr.mxu0 0.0
    %5224 = vmatpush1.msra.mxu0 0.0
    %5225 = vmatprep.subr.mxu0 0.0
    %5226 = vmatpush1.msra.mxu0 0.0
    %5227 = vmatprep.subr.mxu0 0.0
    %5228 = vmatpush1.msra.mxu0 0.0
    %5229 = vmatprep.subr.mxu0 0.0
    %5230 = vmatpush1.msra.mxu0 %v5206
    %5231 = vmatprep.subr.mxu0 0.0
    %5232 = vmatpush1.msra.mxu0 %v5205
    %5233 = vmatprep.subr.mxu0 0.0
    %5234 = vmatpush1.msra.mxu0 %v5204
    %5235 = vmatprep.subr.mxu0 0.0
    %5236 = vmatpush1.msra.mxu0 %v5203
    %5237 = vmatprep.subr.mxu0 0.0
    %5238 = vmatpush1.msra.mxu0 %v5202
    %5239 = vmatprep.subr.mxu0 0.0
    %5240 = vmatpush1.msra.mxu0 %v5201
    %5241 = vmatprep.subr.mxu0 0.0
    %5242 = vmatpush1.msra.mxu0 %v5200
    %5243 = vmatprep.subr.mxu0 0.0
    %5244 = vmatpush1.msra.mxu0 %v5199
    %5245 = vmatprep.subr.mxu0 0.0
    %5246 = vmatpush2.msra.mxu0 0.0
    %5247 = vmatprep.subr.mxu0 0.0
    %5248 = vmatpush2.msra.mxu0 0.0
    %5249 = vmatprep.subr.mxu0 0.0
    %5250 = vmatpush2.msra.mxu0 0.0
    %5251 = vmatprep.subr.mxu0 0.0
    %5252 = vmatpush2.msra.mxu0 0.0
    %5253 = vmatprep.subr.mxu0 0.0
    %5254 = vmatpush2.msra.mxu0 0.0
    %5255 = vmatprep.subr.mxu0 0.0
    %5256 = vmatpush2.msra.mxu0 0.0
    %5257 = vmatprep.subr.mxu0 0.0
    %5258 = vmatpush2.msra.mxu0 0.0
    %5259 = vmatprep.subr.mxu0 0.0
    %5260 = vmatpush2.msra.mxu0 0.0
    %5261 = vmatprep.subr.mxu0 0.0
    %5262 = vmatpush2.msra.mxu0 0.0
    %5263 = vmatprep.subr.mxu0 0.0
    %5264 = vmatpush2.msra.mxu0 0.0
    %5265 = vmatprep.subr.mxu0 0.0
    %5266 = vmatpush2.msra.mxu0 0.0
    %5267 = vmatprep.subr.mxu0 0.0
    %5268 = vmatpush2.msra.mxu0 0.0
    %5269 = vmatprep.subr.mxu0 0.0
    %5270 = vmatpush2.msra.mxu0 0.0
    %5271 = vmatprep.subr.mxu0 0.0
    %5272 = vmatpush2.msra.mxu0 0.0
    %5273 = vmatprep.subr.mxu0 0.0
    %5274 = vmatpush2.msra.mxu0 0.0
    %5275 = vmatprep.subr.mxu0 0.0
    %5276 = vmatpush2.msra.mxu0 0.0
    %5277 = vmatprep.mubr.f32.mxu0 0.0
    %5278 = vmatmul.mubr.f32.gmra.mxu0 %v5208
    %v5279 = vpop.f32.mrf.mxu0
    %v5280 = vadd.f32 0.0, %v5279
    %v5281 = vpop.f32.mrf.mxu0
    %5282 = vmatprep.mubr.f32.mxu0 0.0
    %5283 = vmatmul.mubr.f32.gmra.mxu0 %v5211
    %v5284 = vpop.f32.mrf.mxu0
    %v5285 = vadd.f32 0.0, %v5284
    %v5286 = vpop.f32.mrf.mxu0
    %5287 = vdwg.mxu0
    %v5288 = vadd.f32 %v5050, %v5280
    %v5289 = vadd.f32 %v5051, %v5285
    %v5291 = vsel %vm3432, %v3600, 0
    %5293 = vmatprep.subr.mxu0 0.0
    %5294 = vmatpush1.msra.mxu0 0.0
    %5295 = vmatprep.subr.mxu0 0.0
    %5296 = vmatpush1.msra.mxu0 0.0
    %5297 = vmatprep.subr.mxu0 0.0
    %5298 = vmatpush1.msra.mxu0 0.0
    %5299 = vmatprep.subr.mxu0 0.0
    %5300 = vmatpush1.msra.mxu0 0.0
    %5301 = vmatprep.subr.mxu0 0.0
    %5302 = vmatpush1.msra.mxu0 0.0
    %5303 = vmatprep.subr.mxu0 0.0
    %5304 = vmatpush1.msra.mxu0 0.0
    %5305 = vmatprep.subr.mxu0 0.0
    %5306 = vmatpush1.msra.mxu0 0.0
    %5307 = vmatprep.subr.mxu0 0.0
    %5308 = vmatpush1.msra.mxu0 0.0
    %5309 = vmatprep.subr.mxu0 0.0
    %5310 = vmatpush1.msra.mxu0 0.0
    %5311 = vmatprep.subr.mxu0 0.0
    %5312 = vmatpush1.msra.mxu0 0.0
    %5313 = vmatprep.subr.mxu0 0.0
    %5314 = vmatpush1.msra.mxu0 0.0
    %5315 = vmatprep.subr.mxu0 0.0
    %5316 = vmatpush1.msra.mxu0 0.0
    %5317 = vmatprep.subr.mxu0 0.0
    %5318 = vmatpush1.msra.mxu0 0.0
    %5319 = vmatprep.subr.mxu0 0.0
    %5320 = vmatpush1.msra.mxu0 0.0
    %5321 = vmatprep.subr.mxu0 0.0
    %5322 = vmatpush1.msra.mxu0 0.0
    %5323 = vmatprep.subr.mxu0 0.0
    %5324 = vmatpush1.msra.mxu0 %v3268
    %5325 = vmatprep.subr.mxu0 0.0
    %5326 = vmatpush2.msra.mxu0 0.0
    %5327 = vmatprep.subr.mxu0 0.0
    %5328 = vmatpush2.msra.mxu0 0.0
    %5329 = vmatprep.subr.mxu0 0.0
    %5330 = vmatpush2.msra.mxu0 0.0
    %5331 = vmatprep.subr.mxu0 0.0
    %5332 = vmatpush2.msra.mxu0 0.0
    %5333 = vmatprep.subr.mxu0 0.0
    %5334 = vmatpush2.msra.mxu0 0.0
    %5335 = vmatprep.subr.mxu0 0.0
    %5336 = vmatpush2.msra.mxu0 0.0
    %5337 = vmatprep.subr.mxu0 0.0
    %5338 = vmatpush2.msra.mxu0 0.0
    %5339 = vmatprep.subr.mxu0 0.0
    %5340 = vmatpush2.msra.mxu0 0.0
    %5341 = vmatprep.subr.mxu0 0.0
    %5342 = vmatpush2.msra.mxu0 0.0
    %5343 = vmatprep.subr.mxu0 0.0
    %5344 = vmatpush2.msra.mxu0 0.0
    %5345 = vmatprep.subr.mxu0 0.0
    %5346 = vmatpush2.msra.mxu0 0.0
    %5347 = vmatprep.subr.mxu0 0.0
    %5348 = vmatpush2.msra.mxu0 0.0
    %5349 = vmatprep.subr.mxu0 0.0
    %5350 = vmatpush2.msra.mxu0 0.0
    %5351 = vmatprep.subr.mxu0 0.0
    %5352 = vmatpush2.msra.mxu0 0.0
    %5353 = vmatprep.subr.mxu0 0.0
    %5354 = vmatpush2.msra.mxu0 0.0
    %5355 = vmatprep.subr.mxu0 0.0
    %5356 = vmatpush2.msra.mxu0 0.0
    %5357 = vmatprep.mubr.f32.mxu0 0.0
    %5358 = vmatmul.mubr.f32.gmra.mxu0 %v5291
    %v5359 = vpop.f32.mrf.mxu0
    %v5360 = vadd.f32 0.0, %v5359
    %v5361 = vpop.f32.mrf.mxu0
    %5362 = vdwg.mxu0
    %v5364 = vsel %vm3432, %v3608, 0
    %5366 = vmatprep.subr.mxu0 0.0
    %5367 = vmatpush1.msra.mxu0 0.0
    %5368 = vmatprep.subr.mxu0 0.0
    %5369 = vmatpush1.msra.mxu0 0.0
    %5370 = vmatprep.subr.mxu0 0.0
    %5371 = vmatpush1.msra.mxu0 0.0
    %5372 = vmatprep.subr.mxu0 0.0
    %5373 = vmatpush1.msra.mxu0 0.0
    %5374 = vmatprep.subr.mxu0 0.0
    %5375 = vmatpush1.msra.mxu0 0.0
    %5376 = vmatprep.subr.mxu0 0.0
    %5377 = vmatpush1.msra.mxu0 0.0
    %5378 = vmatprep.subr.mxu0 0.0
    %5379 = vmatpush1.msra.mxu0 0.0
    %5380 = vmatprep.subr.mxu0 0.0
    %5381 = vmatpush1.msra.mxu0 0.0
    %5382 = vmatprep.subr.mxu0 0.0
    %5383 = vmatpush1.msra.mxu0 0.0
    %5384 = vmatprep.subr.mxu0 0.0
    %5385 = vmatpush1.msra.mxu0 0.0
    %5386 = vmatprep.subr.mxu0 0.0
    %5387 = vmatpush1.msra.mxu0 0.0
    %5388 = vmatprep.subr.mxu0 0.0
    %5389 = vmatpush1.msra.mxu0 0.0
    %5390 = vmatprep.subr.mxu0 0.0
    %5391 = vmatpush1.msra.mxu0 0.0
    %5392 = vmatprep.subr.mxu0 0.0
    %5393 = vmatpush1.msra.mxu0 0.0
    %5394 = vmatprep.subr.mxu0 0.0
    %5395 = vmatpush1.msra.mxu0 0.0
    %5396 = vmatprep.subr.mxu0 0.0
    %5397 = vmatpush1.msra.mxu0 %v3273
    %5398 = vmatprep.subr.mxu0 0.0
    %5399 = vmatpush2.msra.mxu0 0.0
    %5400 = vmatprep.subr.mxu0 0.0
    %5401 = vmatpush2.msra.mxu0 0.0
    %5402 = vmatprep.subr.mxu0 0.0
    %5403 = vmatpush2.msra.mxu0 0.0
    %5404 = vmatprep.subr.mxu0 0.0
    %5405 = vmatpush2.msra.mxu0 0.0
    %5406 = vmatprep.subr.mxu0 0.0
    %5407 = vmatpush2.msra.mxu0 0.0
    %5408 = vmatprep.subr.mxu0 0.0
    %5409 = vmatpush2.msra.mxu0 0.0
    %5410 = vmatprep.subr.mxu0 0.0
    %5411 = vmatpush2.msra.mxu0 0.0
    %5412 = vmatprep.subr.mxu0 0.0
    %5413 = vmatpush2.msra.mxu0 0.0
    %5414 = vmatprep.subr.mxu0 0.0
    %5415 = vmatpush2.msra.mxu0 0.0
    %5416 = vmatprep.subr.mxu0 0.0
    %5417 = vmatpush2.msra.mxu0 0.0
    %5418 = vmatprep.subr.mxu0 0.0
    %5419 = vmatpush2.msra.mxu0 0.0
    %5420 = vmatprep.subr.mxu0 0.0
    %5421 = vmatpush2.msra.mxu0 0.0
    %5422 = vmatprep.subr.mxu0 0.0
    %5423 = vmatpush2.msra.mxu0 0.0
    %5424 = vmatprep.subr.mxu0 0.0
    %5425 = vmatpush2.msra.mxu0 0.0
    %5426 = vmatprep.subr.mxu0 0.0
    %5427 = vmatpush2.msra.mxu0 0.0
    %5428 = vmatprep.subr.mxu0 0.0
    %5429 = vmatpush2.msra.mxu0 0.0
    %5430 = vmatprep.mubr.f32.mxu0 0.0
    %5431 = vmatmul.mubr.f32.gmra.mxu0 %v5364
    %v5432 = vpop.f32.mrf.mxu0
    %v5433 = vadd.f32 0.0, %v5432
    %v5434 = vpop.f32.mrf.mxu0
    %5435 = vdwg.mxu0
    %s5436 = scalar_lea.vmem [#allocation14], 448
    %v5437 = vld [vmem:[%s5436] sm:$0xff]
    %v5438 = vld [vmem:[%s5436 + $0x8] sm:$0xff]
    %v5439 = vld [vmem:[%s5436 + $0x10] sm:$0xff]
    %v5440 = vld [vmem:[%s5436 + $0x18] sm:$0xff]
    %v5441 = vld [vmem:[%s5436 + $0x20] sm:$0xff]
    %v5442 = vld [vmem:[%s5436 + $0x28] sm:$0xff]
    %v5443 = vld [vmem:[%s5436 + $0x30] sm:$0xff]
    %v5444 = vld [vmem:[%s5436 + $0x38] sm:$0xff]
    %v5446 = vsel %vm160, %v5360, 0
    %v5449 = vsel %vm160, %v5433, 0
    %5451 = vmatprep.subr.mxu0 0.0
    %5452 = vmatpush1.msra.mxu0 0.0
    %5453 = vmatprep.subr.mxu0 0.0
    %5454 = vmatpush1.msra.mxu0 0.0
    %5455 = vmatprep.subr.mxu0 0.0
    %5456 = vmatpush1.msra.mxu0 0.0
    %5457 = vmatprep.subr.mxu0 0.0
    %5458 = vmatpush1.msra.mxu0 0.0
    %5459 = vmatprep.subr.mxu0 0.0
    %5460 = vmatpush1.msra.mxu0 0.0
    %5461 = vmatprep.subr.mxu0 0.0
    %5462 = vmatpush1.msra.mxu0 0.0
    %5463 = vmatprep.subr.mxu0 0.0
    %5464 = vmatpush1.msra.mxu0 0.0
    %5465 = vmatprep.subr.mxu0 0.0
    %5466 = vmatpush1.msra.mxu0 0.0
    %5467 = vmatprep.subr.mxu0 0.0
    %5468 = vmatpush1.msra.mxu0 %v5444
    %5469 = vmatprep.subr.mxu0 0.0
    %5470 = vmatpush1.msra.mxu0 %v5443
    %5471 = vmatprep.subr.mxu0 0.0
    %5472 = vmatpush1.msra.mxu0 %v5442
    %5473 = vmatprep.subr.mxu0 0.0
    %5474 = vmatpush1.msra.mxu0 %v5441
    %5475 = vmatprep.subr.mxu0 0.0
    %5476 = vmatpush1.msra.mxu0 %v5440
    %5477 = vmatprep.subr.mxu0 0.0
    %5478 = vmatpush1.msra.mxu0 %v5439
    %5479 = vmatprep.subr.mxu0 0.0
    %5480 = vmatpush1.msra.mxu0 %v5438
    %5481 = vmatprep.subr.mxu0 0.0
    %5482 = vmatpush1.msra.mxu0 %v5437
    %5483 = vmatprep.subr.mxu0 0.0
    %5484 = vmatpush2.msra.mxu0 0.0
    %5485 = vmatprep.subr.mxu0 0.0
    %5486 = vmatpush2.msra.mxu0 0.0
    %5487 = vmatprep.subr.mxu0 0.0
    %5488 = vmatpush2.msra.mxu0 0.0
    %5489 = vmatprep.subr.mxu0 0.0
    %5490 = vmatpush2.msra.mxu0 0.0
    %5491 = vmatprep.subr.mxu0 0.0
    %5492 = vmatpush2.msra.mxu0 0.0
    %5493 = vmatprep.subr.mxu0 0.0
    %5494 = vmatpush2.msra.mxu0 0.0
    %5495 = vmatprep.subr.mxu0 0.0
    %5496 = vmatpush2.msra.mxu0 0.0
    %5497 = vmatprep.subr.mxu0 0.0
    %5498 = vmatpush2.msra.mxu0 0.0
    %5499 = vmatprep.subr.mxu0 0.0
    %5500 = vmatpush2.msra.mxu0 0.0
    %5501 = vmatprep.subr.mxu0 0.0
    %5502 = vmatpush2.msra.mxu0 0.0
    %5503 = vmatprep.subr.mxu0 0.0
    %5504 = vmatpush2.msra.mxu0 0.0
    %5505 = vmatprep.subr.mxu0 0.0
    %5506 = vmatpush2.msra.mxu0 0.0
    %5507 = vmatprep.subr.mxu0 0.0
    %5508 = vmatpush2.msra.mxu0 0.0
    %5509 = vmatprep.subr.mxu0 0.0
    %5510 = vmatpush2.msra.mxu0 0.0
    %5511 = vmatprep.subr.mxu0 0.0
    %5512 = vmatpush2.msra.mxu0 0.0
    %5513 = vmatprep.subr.mxu0 0.0
    %5514 = vmatpush2.msra.mxu0 0.0
    %5515 = vmatprep.mubr.f32.mxu0 0.0
    %5516 = vmatmul.mubr.f32.gmra.mxu0 %v5446
    %v5517 = vpop.f32.mrf.mxu0
    %v5518 = vadd.f32 0.0, %v5517
    %v5519 = vpop.f32.mrf.mxu0
    %5520 = vmatprep.mubr.f32.mxu0 0.0
    %5521 = vmatmul.mubr.f32.gmra.mxu0 %v5449
    %v5522 = vpop.f32.mrf.mxu0
    %v5523 = vadd.f32 0.0, %v5522
    %v5524 = vpop.f32.mrf.mxu0
    %5525 = vdwg.mxu0
    %v5526 = vadd.f32 %v5288, %v5518
    %v5527 = vadd.f32 %v5289, %v5523
    %v5528 = vsel %vm160, %v5526, 0.0
    %5529 = vadd.xlane.f32.xlu0 %v5528
    %v5530 = vpop.xlane.xlu0 %5529
    %v5531 = vsel %vm160, %v5527, 0.0
    %5532 = vadd.xlane.f32.xlu0 %v5531
    %v5533 = vpop.xlane.xlu0 %5532
    %v5534 = vrcp.pop 64.0
    %v5535 = vmul.f32 %v5530, %v5534
    %v5536 = vmul.f32 %v5533, %v5534
    %v5537 = vsub.f32 %v5526, %v5535
    %v5538 = vsub.f32 %v5527, %v5536
    %v5539 = vmul.f32 %v5537, %v5537
    %v5540 = vmul.f32 %v5538, %v5538
    %v5541 = vsel %vm160, %v5539, 0.0
    %5542 = vadd.xlane.f32.xlu0 %v5541
    %v5543 = vpop.xlane.xlu0 %5542
    %v5544 = vsel %vm160, %v5540, 0.0
    %5545 = vadd.xlane.f32.xlu0 %v5544
    %v5546 = vpop.xlane.xlu0 %5545
    %v5547 = vmul.f32 %v5543, %v5534
    %v5548 = vmul.f32 %v5546, %v5534
    %v5549 = vadd.f32 %v5547, 1e-05
    %v5550 = vadd.f32 %v5548, 1e-05
    %v5551 = vrsqrt.pop %v5549
    %v5552 = vrsqrt.pop %v5550
    %v5553 = vmul.f32 %v5537, %v5551
    %v5554 = vmul.f32 %v5538, %v5552
    %5555 = vst.msk [vmem:[#allocation16] sm:$0xff] %vm160, %v5553
    %5556 = vst.msk [vmem:[#allocation16 + $0x8] sm:$0xff] %vm160, %v5554
    // Predicated region
    $region66: #{tpu_custom_call.1} parent=1 // pred_check
      _
    $region67: #{tpu_custom_call.1} parent=1 // pred_check_branch
      %5558 = sbr.rel (0) target = $region69
    $region68: #{tpu_custom_call.1} parent=1 // pred_region
      %s5560 = ssub.s32 256, 256
      %5561 = vsyncadd [#allocation4], %s5560
      %s5562 = sshll.u32 [#allocation16], 4
      %s5563 = int_to_ptr.vmem [resolvable:$true] %s5562
      %5568 = dma.vmem_to_hbm [thread:$0]  %s5563, 256, %s8, [#allocation4], 128, 128, 8
    $region69: #{tpu_custom_call.1} parent=1 // pred_fallthru
      _
    // Predicated region
    $region70: #{tpu_custom_call.1} parent=1 // pred_check
      _
    $region71: #{tpu_custom_call.1} parent=1 // pred_check_branch
      %5570 = sbr.rel (0) target = $region73
    $region72: #{tpu_custom_call.1} parent=1 // pred_region
      %s5572 = ssub.s32 2048, 2048
      %5573 = vsyncadd [#allocation18], %s5572
      %s5574 = sshll.u32 [#allocation17], 4
      %s5575 = int_to_ptr.vmem [resolvable:$true] %s5574
      %5580 = dma.vmem_to_hbm [thread:$0]  %s5575, 2048, %s9, [#allocation18], 128, 128, 8
    $region73: #{tpu_custom_call.1} parent=1 // pred_fallthru
      _
    // Predicated region
    $region74: #{tpu_custom_call.1} parent=1 // pred_check
      _
    $region75: #{tpu_custom_call.1} parent=1 // pred_check_branch
      %5582 = sbr.rel (0) target = $region77
    $region76: #{tpu_custom_call.1} parent=1 // pred_region
      %5583 = dma.done [#allocation4], 256
    $region77: #{tpu_custom_call.1} parent=1 // pred_fallthru
      _
    // Predicated region
    $region78: #{tpu_custom_call.1} parent=1 // pred_check
      _
    $region79: #{tpu_custom_call.1} parent=1 // pred_check_branch
      %5585 = sbr.rel (0) target = $region81
    $region80: #{tpu_custom_call.1} parent=1 // pred_region
      %5586 = dma.done [#allocation18], 2048
    $region81: #{tpu_custom_call.1} parent=1 // pred_fallthru
      _
    %5587 = vsyncpa [#allocation3], 1
    %5588 = vsyncpa [#allocation6], 1
    %5589 = vsyncpa [#allocation9], 1
    %5590 = vsyncpa [#allocation12], 1
    %5591 = vsyncpa [#allocation15], 1
    %5592 = vsyncpa [#allocation4], 1
    %5593 = vsyncpa [#allocation18], 1

</llo_original>
